<compile_context>
chip_gen: v7x
topology: tpu7x:2x2x1
jax: 0.10.0
libtpu: 0.0.40
codegen_flags: <defaults>
</compile_context>

<pallas_src>
import math

import jax
import jax.numpy as jnp
from jax import lax
from jax.experimental import pallas as pl
from jax.experimental.pallas import tpu as pltpu


# ---------------------------------------------------------------------------
# Fused forward_teacher kernel
# ---------------------------------------------------------------------------
def make_fused_kernel(num_layers, recurrent_dim, batch_padded, window, horizon, n_blocks):
    L = num_layers
    R = recurrent_dim
    BP = batch_padded                     # batch padded to a multiple of 8 sublanes
    Wn = window
    Tn = horizon
    nb_im_init, nb_im_pred, nb_om_init, nb_om_pred = n_blocks
    f32 = jnp.float32

    def kernel(*refs):
        it = iter(refs)

        # ---- sequence inputs (time-major-flattened, batch-padded: rows ordered (t, b)) ----
        win = next(it)[...]            # (W*BP, C+S)   window  = controls|states
        hor = next(it)[...]            # (T*BP, C+S)   horizon = controls|states
        s2d_ref = next(it)             # (T*BP, S)     states alone (physics A-term), kept as ref

        def read_stack(nb):
            blocks = [next(it) for _ in range(nb)]          # layer-0 W_ih^T block(s)
            whh0 = next(it)                                 # layer-0 W_hh^T          (R, 4R)
            b0 = next(it)                                   # layer-0 b_ih + b_hh     (1, 4R)
            # layers >= 1: host-stacked [[Wih^T],[Whh^T]]   (2R, 4R), bias (1, 4R)
            rest = [(next(it), next(it)) for _ in range(L - 1)]
            return blocks, whh0, b0, rest

        im_init = read_stack(nb_im_init)
        im_pred = read_stack(nb_im_pred)
        im_w_out = next(it)            # (R, E)
        im_b_out = next(it)            # (1, E)
        a_eff = next(it)               # (S, S)  diag(g) A^T diag(1/g)
        b_eff = next(it)               # (E, S)  B^T diag(1/g)
        om_init = read_stack(nb_om_init)
        om_pred = read_stack(nb_om_pred)
        om_w_out = next(it)            # (R, S)
        om_b_out = next(it)            # (1, S)
        out_ref = next(it)             # (T*BP, S)
        xw_win_im = next(it)           # scratch (W*BP, 4R)
        xw_win_om = next(it)           # scratch (W*BP, 4R)
        xw_hor_im = next(it)           # scratch (T*BP, 4R)
        xw_hor_om = next(it)           # scratch (T*BP, 4R)  (controls|states part + bias only)
        phys_sc = next(it)             # scratch (T*BP, S)   per-step physics output
        h_top_om = next(it)            # scratch (T*BP, R)   om predictor top-layer h

        om_wih_phys = om_pred[0][1]    # (S, 4R) -- applied per step, once phys_out exists

        # ------------------------------ helpers ------------------------------
        def row(t):
            return pl.multiple_of(t * BP, BP)

        def gates(g, c_prev):
            # PyTorch gate order i, f, g, o.  Full-width sigmoid; tanh only on the lanes
            # actually needed (g-gate slice and c_new) to shorten the EUP work on the chain.
            sg = jax.nn.sigmoid(g)
            i_g = sg[:, 0 * R:1 * R]
            f_g = sg[:, 1 * R:2 * R]
            o_g = sg[:, 3 * R:4 * R]
            g_g = jnp.tanh(g[:, 2 * R:3 * R])
            c_new = f_g * c_prev + i_g * g_g
            h_new = o_g * jnp.tanh(c_new)
            return h_new, c_new

        def stack_step(xw_t, carry, stack):
            # one time step through all layers; carry = (h0, c0, h1, c1, ...)
            _, whh0, _, rest = stack
            g = xw_t + jnp.dot(carry[0], whh0[...], preferred_element_type=f32)
            h_new, c_new = gates(g, carry[1])
            new_carry = [h_new, c_new]
            below = h_new
            for l in range(1, L):
                w_st, b = rest[l - 1]
                # fused per-step matmul: [h_below | h_prev] @ [[Wih^T],[Whh^T]]  (one MXU push)
                inp = jnp.concatenate([below, carry[2 * l]], axis=-1)          # (BP, 2R)
                g = jnp.dot(inp, w_st[...], preferred_element_type=f32) + b[...]
                h_new, c_new = gates(g, carry[2 * l + 1])
                new_carry += [h_new, c_new]
                below = h_new
            return tuple(new_carry), below

        # ------------- hoisted layer-0 input projections (single matmul each) -------------
        xw_win_im[...] = (jnp.dot(win, im_init[0][0][...], preferred_element_type=f32)
                          + im_init[2][...])
        xw_win_om[...] = (jnp.dot(win, om_init[0][0][...], preferred_element_type=f32)
                          + om_init[2][...])
        xw_hor_im[...] = (jnp.dot(hor, im_pred[0][0][...], preferred_element_type=f32)
                          + im_pred[2][...])
        # om horizon hoist WITHOUT the physics block; that part is added per step.
        xw_hor_om[...] = (jnp.dot(hor, om_pred[0][0][...], preferred_element_type=f32)
                          + om_pred[2][...])

        # ------------- interleaved initializers (im/om independent -> overlapped) -------------
        zeros = tuple(jnp.zeros((BP, R), f32) for _ in range(2 * L))

        def init_body(t, carry):
            ci = carry[:2 * L]
            co = carry[2 * L:]
            x_im = xw_win_im[pl.ds(row(t), BP), :]
            x_om = xw_win_om[pl.ds(row(t), BP), :]
            ci, _ = stack_step(x_im, ci, im_init)
            co, _ = stack_step(x_om, co, om_init)
            return ci + co

        carry = lax.fori_loop(0, Wn, init_body, zeros + zeros, unroll=True)
        carry_im = carry[:2 * L]
        carry_om = carry[2 * L:]

        # ------------- per-step building blocks -------------
        def im_step(t, carry):
            x_t = xw_hor_im[pl.ds(row(t), BP), :]
            return stack_step(x_t, carry, im_pred)

        def physics_step(t, h_top):
            # input-model Linear head + linear physics (gain pre-folded into A_eff / B_eff)
            phys_in = (jnp.dot(h_top, im_w_out[...], preferred_element_type=f32)
                       + im_b_out[...])                                          # (BP, E)
            s_t = s2d_ref[pl.ds(row(t), BP), :]
            phys_out = (jnp.dot(s_t, a_eff[...], preferred_element_type=f32)
                        + jnp.dot(phys_in, b_eff[...], preferred_element_type=f32))   # (BP, S)
            phys_sc[pl.ds(row(t), BP), :] = phys_out
            return phys_out

        def om_step(t, carry, phys_out):
            x_t = (xw_hor_om[pl.ds(row(t), BP), :]
                   + jnp.dot(phys_out, om_wih_phys[...], preferred_element_type=f32))
            carry, h_top = stack_step(x_t, carry, om_pred)
            h_top_om[pl.ds(row(t), BP), :] = h_top
            return carry

        # ------------- skewed predictor pipeline -------------
        # iteration t runs im step t and om step t-1 (independent work -> scheduler overlaps)
        carry_im, h_top0 = im_step(0, carry_im)          # prologue
        phys_prev = physics_step(0, h_top0)

        def body(t, state):
            ci, co, p_prev = state
            ci, h_top = im_step(t, ci)
            p_t = physics_step(t, h_top)
            co = om_step(t - 1, co, p_prev)
            return (ci, co, p_t)

        _, carry_om, phys_prev = lax.fori_loop(
            1, Tn, body, (carry_im, carry_om, phys_prev), unroll=True)

        om_step(Tn - 1, carry_om, phys_prev)             # epilogue

        # ------------- deferred output-model head + fused residual add -------------
        residuals = (jnp.dot(h_top_om[...], om_w_out[...], preferred_element_type=f32)
                     + om_b_out[...])                                            # (T*BP, S)
        out_ref[...] = (phys_sc[...] + residuals).astype(out_ref.dtype)

    return kernel


# ---------------------------------------------------------------------------
# SerialParallelNetwork.forward_teacher wrapper (single pallas_call)
# ---------------------------------------------------------------------------
def serial_parallel_forward_teacher(params, initial_control, initial_state, controls, states):
    """(B,W,C), (B,W,S), (B,T,C), (B,T,S) -> (B,T,S)."""
    im = params["input_model"]
    om = params["output_model"]
    ph = params["physics"]

    B, Wn, C = initial_control.shape
    S = initial_state.shape[2]
    T = controls.shape[1]
    L = 1 + len(im["init"]["rest"])
    R = im["init"]["layer0"]["whh_T"].shape[0]
    E = im["w_out_T"].shape[1]
    f32 = jnp.float32

    BP = max(8, ((B + 7) // 8) * 8)      # pad batch to a full 8-sublane tile

    def tm2d_pad(x):
        steps = x.shape[1]
        xb = jnp.transpose(x, (1, 0, 2)).astype(f32)          # (steps, B, D)
        if BP != B:
            xb = jnp.pad(xb, ((0, 0), (0, BP - B), (0, 0)))
        return xb.reshape(steps * BP, x.shape[2])

    # host-side concat of controls|states -> single layer-0 block per stack
    win2d = tm2d_pad(jnp.concatenate([initial_control, initial_state], axis=2))
    hor2d = tm2d_pad(jnp.concatenate([controls, states], axis=2))
    s2d = tm2d_pad(states)

    def stack_args(stack):
        l0 = stack["layer0"]
        a = list(l0["wih_blocks_T"]) + [l0["whh_T"], l0["b"]]
        for layer in stack["rest"]:
            a += [layer["w_stacked_T"], layer["b"]]
        return a

    args = [win2d, hor2d, s2d]
    args += stack_args(im["init"]) + stack_args(im["pred"]) + [im["w_out_T"], im["b_out"]]
    args += [ph["A_eff"], ph["B_eff"]]
    args += stack_args(om["init"]) + stack_args(om["pred"]) + [om["w_out_T"], om["b_out"]]

    n_blocks = (len(im["init"]["layer0"]["wih_blocks_T"]),
                len(im["pred"]["layer0"]["wih_blocks_T"]),
                len(om["init"]["layer0"]["wih_blocks_T"]),
                len(om["pred"]["layer0"]["wih_blocks_T"]))

    kernel = make_fused_kernel(num_layers=L, recurrent_dim=R, batch_padded=BP,
                               window=Wn, horizon=T, n_blocks=n_blocks)

    scratch_dims = [
        (Wn * BP, 4 * R), (Wn * BP, 4 * R),        # hoisted window projections (im / om)
        (T * BP, 4 * R), (T * BP, 4 * R),          # hoisted horizon projections (im / om)
        (T * BP, S),                               # per-step physics output
        (T * BP, R),                               # om predictor top-layer h
    ]

    # VMEM footprint guard: everything is VMEM-resident & gridless; tightest limit is v7x
    # (32 MiB scoped default / 64 MiB physical).  Re-tile over T-chunks before hitting this.
    vmem_bytes = (sum(a.size * a.dtype.itemsize for a in args)
                  + sum(m * n * 4 for m, n in scratch_dims) + T * BP * S * 4)
    assert vmem_bytes < 24 * (1 << 20), (
        f"VMEM footprint {vmem_bytes} B too large for a gridless call; chunk the horizon.")

    # rough cost hint so XLA schedules the (tiny) fused kernel sensibly
    per_step_flops = 2 * BP * 4 * R * (R + (L - 1) * 2 * R)
    flops = (2 * (Wn + T) * per_step_flops
             + 2 * 2 * (Wn + T) * BP * (C + S) * 4 * R
             + 2 * T * BP * (R * E + S * S + E * S + S * 4 * R + R * S))
    transcendentals = 2 * (Wn + T) * L * BP * 6 * R
    bytes_accessed = int(vmem_bytes)

    out2d = pl.pallas_call(
        kernel,
        out_shape=jax.ShapeDtypeStruct((T * BP, S), f32),
        in_specs=[pl.BlockSpec(memory_space=pltpu.MemorySpace.VMEM)] * len(args),
        out_specs=pl.BlockSpec(memory_space=pltpu.MemorySpace.VMEM),
        scratch_shapes=[pltpu.VMEM(d, f32) for d in scratch_dims],
        cost_estimate=pl.CostEstimate(flops=int(flops),
                                      transcendentals=int(transcendentals),
                                      bytes_accessed=bytes_accessed),
    )(*args)

    out = out2d.reshape(T, BP, S)[:, :B, :]
    return jnp.transpose(out, (1, 0, 2))


# ---------------------------------------------------------------------------
# Pure-JAX reference (same math, no Pallas) for a correctness check
# ---------------------------------------------------------------------------
def reference_forward(params, initial_control, initial_state, controls, states):
    f32 = jnp.float32
    hi = lax.Precision.HIGHEST

    def lstm_stack_apply(stack, x_seq, carry):
        l0 = stack["layer0"]
        wih0_T = jnp.concatenate(l0["wih_blocks_T"], axis=0)
        whh0_T, b0 = l0["whh_T"], l0["b"]
        R = whh0_T.shape[0]
        hs = [h for h, _ in carry]
        cs = [c for _, c in carry]
        outs = []
        for t in range(x_seq.shape[1]):
            x = x_seq[:, t, :]
            layer_ws = [(wih0_T, whh0_T, b0)] + [
                (lay["w_stacked_T"][:R, :], lay["w_stacked_T"][R:, :], lay["b"])
                for lay in stack["rest"]]
            below = x
            for li, (wih_T, whh_T, b) in enumerate(layer_ws):
                g = (jnp.dot(below, wih_T, precision=hi)
                     + jnp.dot(hs[li], whh_T, precision=hi) + b)
                i = jax.nn.sigmoid(g[:, :R]); f = jax.nn.sigmoid(g[:, R:2 * R])
                gg = jnp.tanh(g[:, 2 * R:3 * R]); o = jax.nn.sigmoid(g[:, 3 * R:])
                cs[li] = f * cs[li] + i * gg
                hs[li] = o * jnp.tanh(cs[li])
                below = hs[li]
            outs.append(below)
        return jnp.stack(outs, axis=1), list(zip(hs, cs))

    def ipl_apply(ipl, predictor_input, initializer_input):
        Lr = 1 + len(ipl["init"]["rest"])
        R = ipl["init"]["layer0"]["whh_T"].shape[0]
        B = initializer_input.shape[0]
        zero = [(jnp.zeros((B, R), f32), jnp.zeros((B, R), f32)) for _ in range(Lr)]
        _, carry = lstm_stack_apply(ipl["init"], initializer_input, zero)
        outs, _ = lstm_stack_apply(ipl["pred"], predictor_input, carry)
        return jnp.dot(outs, ipl["w_out_T"], precision=hi) + ipl["b_out"]

    window = jnp.concatenate([initial_control, initial_state], axis=2).astype(f32)
    horizon = jnp.concatenate([controls, states], axis=2).astype(f32)
    physics_input = ipl_apply(params["input_model"], horizon, window)
    physics_output = (jnp.dot(states.astype(f32), params["physics"]["A_eff"], precision=hi)
                      + jnp.dot(physics_input, params["physics"]["B_eff"], precision=hi))
    residuals = ipl_apply(params["output_model"],
                          jnp.concatenate([horizon, physics_output], axis=2), window)
    return physics_output + residuals


# ---------------------------------------------------------------------------
# Deterministic parameter construction (PyTorch-style uniform(-1/sqrt(R), 1/sqrt(R)))
# ---------------------------------------------------------------------------
def init_lstm_stack(key, num_layers, input_block_dims, recurrent_dim):
    """Layer-0 W_ih^T split per input block (controls|states vs physics_output) so the kernel
    never concatenates inputs; layers >= 1 host-stacked as [[Wih^T],[Whh^T]] (2R,4R) for a
    single fused per-step MXU push.  Biases b_ih + b_hh pre-combined."""
    k = 1.0 / math.sqrt(recurrent_dim)
    R4 = 4 * recurrent_dim
    input_dim = sum(input_block_dims)
    key, k1, k2, k3, k4 = jax.random.split(key, 5)
    w_ih0 = jax.random.uniform(k1, (R4, input_dim), jnp.float32, -k, k)
    w_hh0 = jax.random.uniform(k2, (R4, recurrent_dim), jnp.float32, -k, k)
    b0 = (jax.random.uniform(k3, (R4,), jnp.float32, -k, k)
          + jax.random.uniform(k4, (R4,), jnp.float32, -k, k))
    w_ih0_T = w_ih0.T
    blocks, off = [], 0
    for d in input_block_dims:
        blocks.append(w_ih0_T[off:off + d, :])
        off += d
    layer0 = {"wih_blocks_T": blocks, "whh_T": w_hh0.T, "b": b0.reshape(1, R4)}
    rest = []
    for _ in range(1, num_layers):
        key, k1, k2, k3, k4 = jax.random.split(key, 5)
        w_ih = jax.random.uniform(k1, (R4, recurrent_dim), jnp.float32, -k, k)
        w_hh = jax.random.uniform(k2, (R4, recurrent_dim), jnp.float32, -k, k)
        b = (jax.random.uniform(k3, (R4,), jnp.float32, -k, k)
             + jax.random.uniform(k4, (R4,), jnp.float32, -k, k))
        rest.append({"w_stacked_T": jnp.concatenate([w_ih.T, w_hh.T], axis=0),
                     "b": b.reshape(1, R4)})
    return key, {"layer0": layer0, "rest": rest}


def init_ipl_params(key, initializer_block_dims, predictor_block_dims, output_dim,
                    recurrent_dim, num_layers):
    key, init_stack = init_lstm_stack(key, num_layers, initializer_block_dims, recurrent_dim)
    key, pred_stack = init_lstm_stack(key, num_layers, predictor_block_dims, recurrent_dim)
    k = 1.0 / math.sqrt(recurrent_dim)
    key, k1, k2 = jax.random.split(key, 3)
    w_out = jax.random.uniform(k1, (output_dim, recurrent_dim), jnp.float32, -k, k)
    b_out = jax.random.uniform(k2, (output_dim,), jnp.float32, -k, k)
    return key, {"init": init_stack, "pred": pred_stack,
                 "w_out_T": w_out.T, "b_out": b_out.reshape(1, output_dim)}


def init_physics_params(key, state_dim, external_dim, gain):
    """Linear external-input physics stand-in with the normalization gain pre-folded:
       (1/g) * [ (g*x) @ A^T + u @ B^T ]  ==  x @ A_eff + u @ B_eff
       A_eff = diag(g) A^T diag(1/g),  B_eff = B^T diag(1/g)."""
    assert bool(jnp.all(gain != 0.0)), "state_normalization_gain must have no zero entries"
    key, ka, kb = jax.random.split(key, 3)
    A = 0.1 * jax.random.normal(ka, (state_dim, state_dim), jnp.float32)
    Bext = 0.1 * jax.random.normal(kb, (state_dim, external_dim), jnp.float32)
    inv_gain = 1.0 / gain
    A_eff = (gain[:, None] * A.T) * inv_gain[None, :]
    B_eff = Bext.T * inv_gain[None, :]
    return key, {"A_eff": A_eff, "B_eff": B_eff}


if __name__ == "__main__":
    # Small shapes consistent with the module's forward_teacher.
    B, W, T = 2, 5, 8          # batch, window length, horizon length
    C, S = 3, 4                # control_dim, state_dim
    R, L = 32, 2               # recurrent_dim, num_recurrent_layers
    E = 2                      # physics_model.external_input_size()

    key = jax.random.PRNGKey(0)

    key, input_model = init_ipl_params(
        key, initializer_block_dims=[C + S], predictor_block_dims=[C + S],
        output_dim=E, recurrent_dim=R, num_layers=L)
    key, output_model = init_ipl_params(
        key, initializer_block_dims=[C + S], predictor_block_dims=[C + S, S],
        output_dim=S, recurrent_dim=R, num_layers=L)

    gain = jnp.array([0.5, 1.0, 2.0, 1.5], jnp.float32)               # state_normalization_gain
    key, physics = init_physics_params(key, S, E, gain)

    params = {"input_model": input_model, "output_model": output_model, "physics": physics}

    key, k1, k2, k3, k4 = jax.random.split(key, 5)
    initial_control = jax.random.normal(k1, (B, W, C), jnp.float32)
    initial_state = jax.random.normal(k2, (B, W, S), jnp.float32)
    controls = jax.random.normal(k3, (B, T, C), jnp.float32)
    states = jax.random.normal(k4, (B, T, S), jnp.float32)            # already divided by gain

    fwd = jax.jit(serial_parallel_forward_teacher)
    prediction = fwd(params, initial_control, initial_state, controls, states)
    jax.block_until_ready(prediction)
    assert prediction.shape == (B, T, S)

    # correctness check against the pure-JAX reference (generous tolerance for MXU rounding)
    ref = reference_forward(params, initial_control, initial_state, controls, states)
    max_err = float(jnp.max(jnp.abs(prediction - ref)))
    assert max_err < 2e-2, f"kernel/reference mismatch: max abs err {max_err}"

    print("KERNEL_OK")
</pallas_src>

<mosaic_0001>
module attributes {stable_mosaic.version = 11 : i64} {
  func.func @kernel(%arg0: memref<40x7xf32, #tpu.memory_space<vmem>>, %arg1: memref<64x7xf32, #tpu.memory_space<vmem>>, %arg2: memref<64x4xf32, #tpu.memory_space<vmem>>, %arg3: memref<7x128xf32, #tpu.memory_space<vmem>>, %arg4: memref<32x128xf32, #tpu.memory_space<vmem>>, %arg5: memref<1x128xf32, #tpu.memory_space<vmem>>, %arg6: memref<64x128xf32, #tpu.memory_space<vmem>>, %arg7: memref<1x128xf32, #tpu.memory_space<vmem>>, %arg8: memref<7x128xf32, #tpu.memory_space<vmem>>, %arg9: memref<32x128xf32, #tpu.memory_space<vmem>>, %arg10: memref<1x128xf32, #tpu.memory_space<vmem>>, %arg11: memref<64x128xf32, #tpu.memory_space<vmem>>, %arg12: memref<1x128xf32, #tpu.memory_space<vmem>>, %arg13: memref<32x2xf32, #tpu.memory_space<vmem>>, %arg14: memref<1x2xf32, #tpu.memory_space<vmem>>, %arg15: memref<4x4xf32, #tpu.memory_space<vmem>>, %arg16: memref<2x4xf32, #tpu.memory_space<vmem>>, %arg17: memref<7x128xf32, #tpu.memory_space<vmem>>, %arg18: memref<32x128xf32, #tpu.memory_space<vmem>>, %arg19: memref<1x128xf32, #tpu.memory_space<vmem>>, %arg20: memref<64x128xf32, #tpu.memory_space<vmem>>, %arg21: memref<1x128xf32, #tpu.memory_space<vmem>>, %arg22: memref<7x128xf32, #tpu.memory_space<vmem>>, %arg23: memref<4x128xf32, #tpu.memory_space<vmem>>, %arg24: memref<32x128xf32, #tpu.memory_space<vmem>>, %arg25: memref<1x128xf32, #tpu.memory_space<vmem>>, %arg26: memref<64x128xf32, #tpu.memory_space<vmem>>, %arg27: memref<1x128xf32, #tpu.memory_space<vmem>>, %arg28: memref<32x4xf32, #tpu.memory_space<vmem>>, %arg29: memref<1x4xf32, #tpu.memory_space<vmem>>, %arg30: memref<64x4xf32, #tpu.memory_space<vmem>>, %arg31: memref<40x128xf32, #tpu.memory_space<vmem>>, %arg32: memref<40x128xf32, #tpu.memory_space<vmem>>, %arg33: memref<64x128xf32, #tpu.memory_space<vmem>>, %arg34: memref<64x128xf32, #tpu.memory_space<vmem>>, %arg35: memref<64x4xf32, #tpu.memory_space<vmem>>, %arg36: memref<64x32xf32, #tpu.memory_space<vmem>>) attributes {dimension_semantics = [], scalar_prefetch = 0 : i64, scratch_operands = 6 : i64, tpu.core_type = #tpu.core_type<tc>} {
    %c0 = arith.constant 0 : index
    %c0_0 = arith.constant 0 : index
    %0 = vector.load %arg0[%c0, %c0_0] : memref<40x7xf32, #tpu.memory_space<vmem>>, vector<40x7xf32>
    %c0_1 = arith.constant 0 : index
    %c0_2 = arith.constant 0 : index
    %1 = vector.load %arg1[%c0_1, %c0_2] : memref<64x7xf32, #tpu.memory_space<vmem>>, vector<64x7xf32>
    %c0_3 = arith.constant 0 : index
    %c0_4 = arith.constant 0 : index
    %2 = vector.load %arg3[%c0_3, %c0_4] : memref<7x128xf32, #tpu.memory_space<vmem>>, vector<7x128xf32>
    %cst = arith.constant dense<0.000000e+00> : vector<40x128xf32>
    %3 = tpu.matmul %0, %2, %cst {dimension_numbers = #tpu.dot_dimension_numbers<[1], [0], [0], [1], [0, 0, 1, 1], [], []>} : vector<40x7xf32>, vector<7x128xf32>, vector<40x128xf32> -> vector<40x128xf32>
    %c0_5 = arith.constant 0 : index
    %c0_6 = arith.constant 0 : index
    %4 = vector.load %arg5[%c0_5, %c0_6] : memref<1x128xf32, #tpu.memory_space<vmem>>, vector<1x128xf32>
    %5 = vector.broadcast %4 : vector<1x128xf32> to vector<40x128xf32>
    %6 = arith.addf %3, %5 : vector<40x128xf32>
    %c0_7 = arith.constant 0 : index
    %c0_8 = arith.constant 0 : index
    %7 = vector.load %arg31[%c0_7, %c0_8] : memref<40x128xf32, #tpu.memory_space<vmem>>, vector<40x128xf32>
    tpu.vector_store %arg31[%c0_7, %c0_8], %6 {strides = array<i32>} : memref<40x128xf32, #tpu.memory_space<vmem>>, vector<40x128xf32>,
    %c0_9 = arith.constant 0 : index
    %c0_10 = arith.constant 0 : index
    %8 = vector.load %arg17[%c0_9, %c0_10] : memref<7x128xf32, #tpu.memory_space<vmem>>, vector<7x128xf32>
    %cst_11 = arith.constant dense<0.000000e+00> : vector<40x128xf32>
    %9 = tpu.matmul %0, %8, %cst_11 {dimension_numbers = #tpu.dot_dimension_numbers<[1], [0], [0], [1], [0, 0, 1, 1], [], []>} : vector<40x7xf32>, vector<7x128xf32>, vector<40x128xf32> -> vector<40x128xf32>
    %c0_12 = arith.constant 0 : index
    %c0_13 = arith.constant 0 : index
    %10 = vector.load %arg19[%c0_12, %c0_13] : memref<1x128xf32, #tpu.memory_space<vmem>>, vector<1x128xf32>
    %11 = vector.broadcast %10 : vector<1x128xf32> to vector<40x128xf32>
    %12 = arith.addf %9, %11 : vector<40x128xf32>
    %c0_14 = arith.constant 0 : index
    %c0_15 = arith.constant 0 : index
    %13 = vector.load %arg32[%c0_14, %c0_15] : memref<40x128xf32, #tpu.memory_space<vmem>>, vector<40x128xf32>
    tpu.vector_store %arg32[%c0_14, %c0_15], %12 {strides = array<i32>} : memref<40x128xf32, #tpu.memory_space<vmem>>, vector<40x128xf32>,
    %c0_16 = arith.constant 0 : index
    %c0_17 = arith.constant 0 : index
    %14 = vector.load %arg8[%c0_16, %c0_17] : memref<7x128xf32, #tpu.memory_space<vmem>>, vector<7x128xf32>
    %cst_18 = arith.constant dense<0.000000e+00> : vector<64x128xf32>
    %15 = tpu.matmul %1, %14, %cst_18 {dimension_numbers = #tpu.dot_dimension_numbers<[1], [0], [0], [1], [0, 0, 1, 1], [], []>} : vector<64x7xf32>, vector<7x128xf32>, vector<64x128xf32> -> vector<64x128xf32>
    %c0_19 = arith.constant 0 : index
    %c0_20 = arith.constant 0 : index
    %16 = vector.load %arg10[%c0_19, %c0_20] : memref<1x128xf32, #tpu.memory_space<vmem>>, vector<1x128xf32>
    %17 = vector.broadcast %16 : vector<1x128xf32> to vector<64x128xf32>
    %18 = arith.addf %15, %17 : vector<64x128xf32>
    %c0_21 = arith.constant 0 : index
    %c0_22 = arith.constant 0 : index
    %19 = vector.load %arg33[%c0_21, %c0_22] : memref<64x128xf32, #tpu.memory_space<vmem>>, vector<64x128xf32>
    tpu.vector_store %arg33[%c0_21, %c0_22], %18 {strides = array<i32>} : memref<64x128xf32, #tpu.memory_space<vmem>>, vector<64x128xf32>,
    %c0_23 = arith.constant 0 : index
    %c0_24 = arith.constant 0 : index
    %20 = vector.load %arg22[%c0_23, %c0_24] : memref<7x128xf32, #tpu.memory_space<vmem>>, vector<7x128xf32>
    %cst_25 = arith.constant dense<0.000000e+00> : vector<64x128xf32>
    %21 = tpu.matmul %1, %20, %cst_25 {dimension_numbers = #tpu.dot_dimension_numbers<[1], [0], [0], [1], [0, 0, 1, 1], [], []>} : vector<64x7xf32>, vector<7x128xf32>, vector<64x128xf32> -> vector<64x128xf32>
    %c0_26 = arith.constant 0 : index
    %c0_27 = arith.constant 0 : index
    %22 = vector.load %arg25[%c0_26, %c0_27] : memref<1x128xf32, #tpu.memory_space<vmem>>, vector<1x128xf32>
    %23 = vector.broadcast %22 : vector<1x128xf32> to vector<64x128xf32>
    %24 = arith.addf %21, %23 : vector<64x128xf32>
    %c0_28 = arith.constant 0 : index
    %c0_29 = arith.constant 0 : index
    %25 = vector.load %arg34[%c0_28, %c0_29] : memref<64x128xf32, #tpu.memory_space<vmem>>, vector<64x128xf32>
    tpu.vector_store %arg34[%c0_28, %c0_29], %24 {strides = array<i32>} : memref<64x128xf32, #tpu.memory_space<vmem>>, vector<64x128xf32>,
    %cst_30 = arith.constant 0.000000e+00 : f32
    %26 = vector.broadcast %cst_30 : f32 to vector<8x32xf32>
    %cst_31 = arith.constant 0.000000e+00 : f32
    %27 = vector.broadcast %cst_31 : f32 to vector<8x32xf32>
    %cst_32 = arith.constant 0.000000e+00 : f32
    %28 = vector.broadcast %cst_32 : f32 to vector<8x32xf32>
    %cst_33 = arith.constant 0.000000e+00 : f32
    %29 = vector.broadcast %cst_33 : f32 to vector<8x32xf32>
    %c0_i32 = arith.constant 0 : i32
    %c8_i32 = arith.constant 8 : i32
    %30 = arith.muli %c0_i32, %c8_i32 : i32
    %31 = tpu.assume_multiple %30, 8 : i32
    %32 = arith.index_cast %31 : i32 to index
    %c0_34 = arith.constant 0 : index
    %33 = vector.load %arg31[%32, %c0_34] : memref<40x128xf32, #tpu.memory_space<vmem>>, vector<8x128xf32>
    %c8_i32_35 = arith.constant 8 : i32
    %34 = arith.muli %c0_i32, %c8_i32_35 : i32
    %35 = tpu.assume_multiple %34, 8 : i32
    %36 = arith.index_cast %35 : i32 to index
    %c0_36 = arith.constant 0 : index
    %37 = vector.load %arg32[%36, %c0_36] : memref<40x128xf32, #tpu.memory_space<vmem>>, vector<8x128xf32>
    %c0_37 = arith.constant 0 : index
    %c0_38 = arith.constant 0 : index
    %38 = vector.load %arg4[%c0_37, %c0_38] : memref<32x128xf32, #tpu.memory_space<vmem>>, vector<32x128xf32>
    %cst_39 = arith.constant dense<0.000000e+00> : vector<8x128xf32>
    %39 = tpu.matmul %26, %38, %cst_39 {dimension_numbers = #tpu.dot_dimension_numbers<[1], [0], [0], [1], [0, 0, 1, 1], [], []>} : vector<8x32xf32>, vector<32x128xf32>, vector<8x128xf32> -> vector<8x128xf32>
    %40 = arith.addf %33, %39 : vector<8x128xf32>
    %41 = arith.negf %40 : vector<8x128xf32>
    %42 = math.exp %41 : vector<8x128xf32>
    %cst_40 = arith.constant 1.000000e+00 : f32
    %43 = vector.broadcast %cst_40 : f32 to vector<8x128xf32>
    %44 = arith.addf %43, %42 : vector<8x128xf32>
    %45 = arith.divf %43, %44 : vector<8x128xf32>
    %46 = vector.extract_strided_slice %45 {offsets = [0, 0], sizes = [8, 32], strides = [1, 1]} : vector<8x128xf32> to vector<8x32xf32>
    %47 = vector.extract_strided_slice %45 {offsets = [0, 32], sizes = [8, 32], strides = [1, 1]} : vector<8x128xf32> to vector<8x32xf32>
    %48 = vector.extract_strided_slice %45 {offsets = [0, 96], sizes = [8, 32], strides = [1, 1]} : vector<8x128xf32> to vector<8x32xf32>
    %49 = vector.extract_strided_slice %40 {offsets = [0, 64], sizes = [8, 32], strides = [1, 1]} : vector<8x128xf32> to vector<8x32xf32>
    %50 = math.tanh %49 : vector<8x32xf32>
    %51 = arith.mulf %47, %27 : vector<8x32xf32>
    %52 = arith.mulf %46, %50 : vector<8x32xf32>
    %53 = arith.addf %51, %52 : vector<8x32xf32>
    %54 = math.tanh %53 : vector<8x32xf32>
    %55 = arith.mulf %48, %54 : vector<8x32xf32>
    %56 = tpu.concatenate %55, %28 in 1 : vector<8x32xf32>, vector<8x32xf32> -> vector<8x64xf32>
    %c0_41 = arith.constant 0 : index
    %c0_42 = arith.constant 0 : index
    %57 = vector.load %arg6[%c0_41, %c0_42] : memref<64x128xf32, #tpu.memory_space<vmem>>, vector<64x128xf32>
    %cst_43 = arith.constant dense<0.000000e+00> : vector<8x128xf32>
    %58 = tpu.matmul %56, %57, %cst_43 {dimension_numbers = #tpu.dot_dimension_numbers<[1], [0], [0], [1], [0, 0, 1, 1], [], []>} : vector<8x64xf32>, vector<64x128xf32>, vector<8x128xf32> -> vector<8x128xf32>
    %c0_44 = arith.constant 0 : index
    %c0_45 = arith.constant 0 : index
    %59 = vector.load %arg7[%c0_44, %c0_45] : memref<1x128xf32, #tpu.memory_space<vmem>>, vector<1x128xf32>
    %60 = vector.broadcast %59 : vector<1x128xf32> to vector<8x128xf32>
    %61 = arith.addf %58, %60 : vector<8x128xf32>
    %62 = arith.negf %61 : vector<8x128xf32>
    %63 = math.exp %62 : vector<8x128xf32>
    %cst_46 = arith.constant 1.000000e+00 : f32
    %64 = vector.broadcast %cst_46 : f32 to vector<8x128xf32>
    %65 = arith.addf %64, %63 : vector<8x128xf32>
    %66 = arith.divf %64, %65 : vector<8x128xf32>
    %67 = vector.extract_strided_slice %66 {offsets = [0, 0], sizes = [8, 32], strides = [1, 1]} : vector<8x128xf32> to vector<8x32xf32>
    %68 = vector.extract_strided_slice %66 {offsets = [0, 32], sizes = [8, 32], strides = [1, 1]} : vector<8x128xf32> to vector<8x32xf32>
    %69 = vector.extract_strided_slice %66 {offsets = [0, 96], sizes = [8, 32], strides = [1, 1]} : vector<8x128xf32> to vector<8x32xf32>
    %70 = vector.extract_strided_slice %61 {offsets = [0, 64], sizes = [8, 32], strides = [1, 1]} : vector<8x128xf32> to vector<8x32xf32>
    %71 = math.tanh %70 : vector<8x32xf32>
    %72 = arith.mulf %68, %29 : vector<8x32xf32>
    %73 = arith.mulf %67, %71 : vector<8x32xf32>
    %74 = arith.addf %72, %73 : vector<8x32xf32>
    %75 = math.tanh %74 : vector<8x32xf32>
    %76 = arith.mulf %69, %75 : vector<8x32xf32>
    %c0_47 = arith.constant 0 : index
    %c0_48 = arith.constant 0 : index
    %77 = vector.load %arg18[%c0_47, %c0_48] : memref<32x128xf32, #tpu.memory_space<vmem>>, vector<32x128xf32>
    %cst_49 = arith.constant dense<0.000000e+00> : vector<8x128xf32>
    %78 = tpu.matmul %26, %77, %cst_49 {dimension_numbers = #tpu.dot_dimension_numbers<[1], [0], [0], [1], [0, 0, 1, 1], [], []>} : vector<8x32xf32>, vector<32x128xf32>, vector<8x128xf32> -> vector<8x128xf32>
    %79 = arith.addf %37, %78 : vector<8x128xf32>
    %80 = arith.negf %79 : vector<8x128xf32>
    %81 = math.exp %80 : vector<8x128xf32>
    %cst_50 = arith.constant 1.000000e+00 : f32
    %82 = vector.broadcast %cst_50 : f32 to vector<8x128xf32>
    %83 = arith.addf %82, %81 : vector<8x128xf32>
    %84 = arith.divf %82, %83 : vector<8x128xf32>
    %85 = vector.extract_strided_slice %84 {offsets = [0, 0], sizes = [8, 32], strides = [1, 1]} : vector<8x128xf32> to vector<8x32xf32>
    %86 = vector.extract_strided_slice %84 {offsets = [0, 32], sizes = [8, 32], strides = [1, 1]} : vector<8x128xf32> to vector<8x32xf32>
    %87 = vector.extract_strided_slice %84 {offsets = [0, 96], sizes = [8, 32], strides = [1, 1]} : vector<8x128xf32> to vector<8x32xf32>
    %88 = vector.extract_strided_slice %79 {offsets = [0, 64], sizes = [8, 32], strides = [1, 1]} : vector<8x128xf32> to vector<8x32xf32>
    %89 = math.tanh %88 : vector<8x32xf32>
    %90 = arith.mulf %86, %27 : vector<8x32xf32>
    %91 = arith.mulf %85, %89 : vector<8x32xf32>
    %92 = arith.addf %90, %91 : vector<8x32xf32>
    %93 = math.tanh %92 : vector<8x32xf32>
    %94 = arith.mulf %87, %93 : vector<8x32xf32>
    %95 = tpu.concatenate %94, %28 in 1 : vector<8x32xf32>, vector<8x32xf32> -> vector<8x64xf32>
    %c0_51 = arith.constant 0 : index
    %c0_52 = arith.constant 0 : index
    %96 = vector.load %arg20[%c0_51, %c0_52] : memref<64x128xf32, #tpu.memory_space<vmem>>, vector<64x128xf32>
    %cst_53 = arith.constant dense<0.000000e+00> : vector<8x128xf32>
    %97 = tpu.matmul %95, %96, %cst_53 {dimension_numbers = #tpu.dot_dimension_numbers<[1], [0], [0], [1], [0, 0, 1, 1], [], []>} : vector<8x64xf32>, vector<64x128xf32>, vector<8x128xf32> -> vector<8x128xf32>
    %c0_54 = arith.constant 0 : index
    %c0_55 = arith.constant 0 : index
    %98 = vector.load %arg21[%c0_54, %c0_55] : memref<1x128xf32, #tpu.memory_space<vmem>>, vector<1x128xf32>
    %99 = vector.broadcast %98 : vector<1x128xf32> to vector<8x128xf32>
    %100 = arith.addf %97, %99 : vector<8x128xf32>
    %101 = arith.negf %100 : vector<8x128xf32>
    %102 = math.exp %101 : vector<8x128xf32>
    %cst_56 = arith.constant 1.000000e+00 : f32
    %103 = vector.broadcast %cst_56 : f32 to vector<8x128xf32>
    %104 = arith.addf %103, %102 : vector<8x128xf32>
    %105 = arith.divf %103, %104 : vector<8x128xf32>
    %106 = vector.extract_strided_slice %105 {offsets = [0, 0], sizes = [8, 32], strides = [1, 1]} : vector<8x128xf32> to vector<8x32xf32>
    %107 = vector.extract_strided_slice %105 {offsets = [0, 32], sizes = [8, 32], strides = [1, 1]} : vector<8x128xf32> to vector<8x32xf32>
    %108 = vector.extract_strided_slice %105 {offsets = [0, 96], sizes = [8, 32], strides = [1, 1]} : vector<8x128xf32> to vector<8x32xf32>
    %109 = vector.extract_strided_slice %100 {offsets = [0, 64], sizes = [8, 32], strides = [1, 1]} : vector<8x128xf32> to vector<8x32xf32>
    %110 = math.tanh %109 : vector<8x32xf32>
    %111 = arith.mulf %107, %29 : vector<8x32xf32>
    %112 = arith.mulf %106, %110 : vector<8x32xf32>
    %113 = arith.addf %111, %112 : vector<8x32xf32>
    %114 = math.tanh %113 : vector<8x32xf32>
    %115 = arith.mulf %108, %114 : vector<8x32xf32>
    %c1_i32 = arith.constant 1 : i32
    %c8_i32_57 = arith.constant 8 : i32
    %116 = arith.muli %c1_i32, %c8_i32_57 : i32
    %117 = tpu.assume_multiple %116, 8 : i32
    %118 = arith.index_cast %117 : i32 to index
    %c0_58 = arith.constant 0 : index
    %119 = vector.load %arg31[%118, %c0_58] : memref<40x128xf32, #tpu.memory_space<vmem>>, vector<8x128xf32>
    %c8_i32_59 = arith.constant 8 : i32
    %120 = arith.muli %c1_i32, %c8_i32_59 : i32
    %121 = tpu.assume_multiple %120, 8 : i32
    %122 = arith.index_cast %121 : i32 to index
    %c0_60 = arith.constant 0 : index
    %123 = vector.load %arg32[%122, %c0_60] : memref<40x128xf32, #tpu.memory_space<vmem>>, vector<8x128xf32>
    %c0_61 = arith.constant 0 : index
    %c0_62 = arith.constant 0 : index
    %124 = vector.load %arg4[%c0_61, %c0_62] : memref<32x128xf32, #tpu.memory_space<vmem>>, vector<32x128xf32>
    %cst_63 = arith.constant dense<0.000000e+00> : vector<8x128xf32>
    %125 = tpu.matmul %55, %124, %cst_63 {dimension_numbers = #tpu.dot_dimension_numbers<[1], [0], [0], [1], [0, 0, 1, 1], [], []>} : vector<8x32xf32>, vector<32x128xf32>, vector<8x128xf32> -> vector<8x128xf32>
    %126 = arith.addf %119, %125 : vector<8x128xf32>
    %127 = arith.negf %126 : vector<8x128xf32>
    %128 = math.exp %127 : vector<8x128xf32>
    %cst_64 = arith.constant 1.000000e+00 : f32
    %129 = vector.broadcast %cst_64 : f32 to vector<8x128xf32>
    %130 = arith.addf %129, %128 : vector<8x128xf32>
    %131 = arith.divf %129, %130 : vector<8x128xf32>
    %132 = vector.extract_strided_slice %131 {offsets = [0, 0], sizes = [8, 32], strides = [1, 1]} : vector<8x128xf32> to vector<8x32xf32>
    %133 = vector.extract_strided_slice %131 {offsets = [0, 32], sizes = [8, 32], strides = [1, 1]} : vector<8x128xf32> to vector<8x32xf32>
    %134 = vector.extract_strided_slice %131 {offsets = [0, 96], sizes = [8, 32], strides = [1, 1]} : vector<8x128xf32> to vector<8x32xf32>
    %135 = vector.extract_strided_slice %126 {offsets = [0, 64], sizes = [8, 32], strides = [1, 1]} : vector<8x128xf32> to vector<8x32xf32>
    %136 = math.tanh %135 : vector<8x32xf32>
    %137 = arith.mulf %133, %53 : vector<8x32xf32>
    %138 = arith.mulf %132, %136 : vector<8x32xf32>
    %139 = arith.addf %137, %138 : vector<8x32xf32>
    %140 = math.tanh %139 : vector<8x32xf32>
    %141 = arith.mulf %134, %140 : vector<8x32xf32>
    %142 = tpu.concatenate %141, %76 in 1 : vector<8x32xf32>, vector<8x32xf32> -> vector<8x64xf32>
    %c0_65 = arith.constant 0 : index
    %c0_66 = arith.constant 0 : index
    %143 = vector.load %arg6[%c0_65, %c0_66] : memref<64x128xf32, #tpu.memory_space<vmem>>, vector<64x128xf32>
    %cst_67 = arith.constant dense<0.000000e+00> : vector<8x128xf32>
    %144 = tpu.matmul %142, %143, %cst_67 {dimension_numbers = #tpu.dot_dimension_numbers<[1], [0], [0], [1], [0, 0, 1, 1], [], []>} : vector<8x64xf32>, vector<64x128xf32>, vector<8x128xf32> -> vector<8x128xf32>
    %c0_68 = arith.constant 0 : index
    %c0_69 = arith.constant 0 : index
    %145 = vector.load %arg7[%c0_68, %c0_69] : memref<1x128xf32, #tpu.memory_space<vmem>>, vector<1x128xf32>
    %146 = vector.broadcast %145 : vector<1x128xf32> to vector<8x128xf32>
    %147 = arith.addf %144, %146 : vector<8x128xf32>
    %148 = arith.negf %147 : vector<8x128xf32>
    %149 = math.exp %148 : vector<8x128xf32>
    %cst_70 = arith.constant 1.000000e+00 : f32
    %150 = vector.broadcast %cst_70 : f32 to vector<8x128xf32>
    %151 = arith.addf %150, %149 : vector<8x128xf32>
    %152 = arith.divf %150, %151 : vector<8x128xf32>
    %153 = vector.extract_strided_slice %152 {offsets = [0, 0], sizes = [8, 32], strides = [1, 1]} : vector<8x128xf32> to vector<8x32xf32>
    %154 = vector.extract_strided_slice %152 {offsets = [0, 32], sizes = [8, 32], strides = [1, 1]} : vector<8x128xf32> to vector<8x32xf32>
    %155 = vector.extract_strided_slice %152 {offsets = [0, 96], sizes = [8, 32], strides = [1, 1]} : vector<8x128xf32> to vector<8x32xf32>
    %156 = vector.extract_strided_slice %147 {offsets = [0, 64], sizes = [8, 32], strides = [1, 1]} : vector<8x128xf32> to vector<8x32xf32>
    %157 = math.tanh %156 : vector<8x32xf32>
    %158 = arith.mulf %154, %74 : vector<8x32xf32>
    %159 = arith.mulf %153, %157 : vector<8x32xf32>
    %160 = arith.addf %158, %159 : vector<8x32xf32>
    %161 = math.tanh %160 : vector<8x32xf32>
    %162 = arith.mulf %155, %161 : vector<8x32xf32>
    %c0_71 = arith.constant 0 : index
    %c0_72 = arith.constant 0 : index
    %163 = vector.load %arg18[%c0_71, %c0_72] : memref<32x128xf32, #tpu.memory_space<vmem>>, vector<32x128xf32>
    %cst_73 = arith.constant dense<0.000000e+00> : vector<8x128xf32>
    %164 = tpu.matmul %94, %163, %cst_73 {dimension_numbers = #tpu.dot_dimension_numbers<[1], [0], [0], [1], [0, 0, 1, 1], [], []>} : vector<8x32xf32>, vector<32x128xf32>, vector<8x128xf32> -> vector<8x128xf32>
    %165 = arith.addf %123, %164 : vector<8x128xf32>
    %166 = arith.negf %165 : vector<8x128xf32>
    %167 = math.exp %166 : vector<8x128xf32>
    %cst_74 = arith.constant 1.000000e+00 : f32
    %168 = vector.broadcast %cst_74 : f32 to vector<8x128xf32>
    %169 = arith.addf %168, %167 : vector<8x128xf32>
    %170 = arith.divf %168, %169 : vector<8x128xf32>
    %171 = vector.extract_strided_slice %170 {offsets = [0, 0], sizes = [8, 32], strides = [1, 1]} : vector<8x128xf32> to vector<8x32xf32>
    %172 = vector.extract_strided_slice %170 {offsets = [0, 32], sizes = [8, 32], strides = [1, 1]} : vector<8x128xf32> to vector<8x32xf32>
    %173 = vector.extract_strided_slice %170 {offsets = [0, 96], sizes = [8, 32], strides = [1, 1]} : vector<8x128xf32> to vector<8x32xf32>
    %174 = vector.extract_strided_slice %165 {offsets = [0, 64], sizes = [8, 32], strides = [1, 1]} : vector<8x128xf32> to vector<8x32xf32>
    %175 = math.tanh %174 : vector<8x32xf32>
    %176 = arith.mulf %172, %92 : vector<8x32xf32>
    %177 = arith.mulf %171, %175 : vector<8x32xf32>
    %178 = arith.addf %176, %177 : vector<8x32xf32>
    %179 = math.tanh %178 : vector<8x32xf32>
    %180 = arith.mulf %173, %179 : vector<8x32xf32>
    %181 = tpu.concatenate %180, %115 in 1 : vector<8x32xf32>, vector<8x32xf32> -> vector<8x64xf32>
    %c0_75 = arith.constant 0 : index
    %c0_76 = arith.constant 0 : index
    %182 = vector.load %arg20[%c0_75, %c0_76] : memref<64x128xf32, #tpu.memory_space<vmem>>, vector<64x128xf32>
    %cst_77 = arith.constant dense<0.000000e+00> : vector<8x128xf32>
    %183 = tpu.matmul %181, %182, %cst_77 {dimension_numbers = #tpu.dot_dimension_numbers<[1], [0], [0], [1], [0, 0, 1, 1], [], []>} : vector<8x64xf32>, vector<64x128xf32>, vector<8x128xf32> -> vector<8x128xf32>
    %c0_78 = arith.constant 0 : index
    %c0_79 = arith.constant 0 : index
    %184 = vector.load %arg21[%c0_78, %c0_79] : memref<1x128xf32, #tpu.memory_space<vmem>>, vector<1x128xf32>
    %185 = vector.broadcast %184 : vector<1x128xf32> to vector<8x128xf32>
    %186 = arith.addf %183, %185 : vector<8x128xf32>
    %187 = arith.negf %186 : vector<8x128xf32>
    %188 = math.exp %187 : vector<8x128xf32>
    %cst_80 = arith.constant 1.000000e+00 : f32
    %189 = vector.broadcast %cst_80 : f32 to vector<8x128xf32>
    %190 = arith.addf %189, %188 : vector<8x128xf32>
    %191 = arith.divf %189, %190 : vector<8x128xf32>
    %192 = vector.extract_strided_slice %191 {offsets = [0, 0], sizes = [8, 32], strides = [1, 1]} : vector<8x128xf32> to vector<8x32xf32>
    %193 = vector.extract_strided_slice %191 {offsets = [0, 32], sizes = [8, 32], strides = [1, 1]} : vector<8x128xf32> to vector<8x32xf32>
    %194 = vector.extract_strided_slice %191 {offsets = [0, 96], sizes = [8, 32], strides = [1, 1]} : vector<8x128xf32> to vector<8x32xf32>
    %195 = vector.extract_strided_slice %186 {offsets = [0, 64], sizes = [8, 32], strides = [1, 1]} : vector<8x128xf32> to vector<8x32xf32>
    %196 = math.tanh %195 : vector<8x32xf32>
    %197 = arith.mulf %193, %113 : vector<8x32xf32>
    %198 = arith.mulf %192, %196 : vector<8x32xf32>
    %199 = arith.addf %197, %198 : vector<8x32xf32>
    %200 = math.tanh %199 : vector<8x32xf32>
    %201 = arith.mulf %194, %200 : vector<8x32xf32>
    %c2_i32 = arith.constant 2 : i32
    %c8_i32_81 = arith.constant 8 : i32
    %202 = arith.muli %c2_i32, %c8_i32_81 : i32
    %203 = tpu.assume_multiple %202, 8 : i32
    %204 = arith.index_cast %203 : i32 to index
    %c0_82 = arith.constant 0 : index
    %205 = vector.load %arg31[%204, %c0_82] : memref<40x128xf32, #tpu.memory_space<vmem>>, vector<8x128xf32>
    %c8_i32_83 = arith.constant 8 : i32
    %206 = arith.muli %c2_i32, %c8_i32_83 : i32
    %207 = tpu.assume_multiple %206, 8 : i32
    %208 = arith.index_cast %207 : i32 to index
    %c0_84 = arith.constant 0 : index
    %209 = vector.load %arg32[%208, %c0_84] : memref<40x128xf32, #tpu.memory_space<vmem>>, vector<8x128xf32>
    %c0_85 = arith.constant 0 : index
    %c0_86 = arith.constant 0 : index
    %210 = vector.load %arg4[%c0_85, %c0_86] : memref<32x128xf32, #tpu.memory_space<vmem>>, vector<32x128xf32>
    %cst_87 = arith.constant dense<0.000000e+00> : vector<8x128xf32>
    %211 = tpu.matmul %141, %210, %cst_87 {dimension_numbers = #tpu.dot_dimension_numbers<[1], [0], [0], [1], [0, 0, 1, 1], [], []>} : vector<8x32xf32>, vector<32x128xf32>, vector<8x128xf32> -> vector<8x128xf32>
    %212 = arith.addf %205, %211 : vector<8x128xf32>
    %213 = arith.negf %212 : vector<8x128xf32>
    %214 = math.exp %213 : vector<8x128xf32>
    %cst_88 = arith.constant 1.000000e+00 : f32
    %215 = vector.broadcast %cst_88 : f32 to vector<8x128xf32>
    %216 = arith.addf %215, %214 : vector<8x128xf32>
    %217 = arith.divf %215, %216 : vector<8x128xf32>
    %218 = vector.extract_strided_slice %217 {offsets = [0, 0], sizes = [8, 32], strides = [1, 1]} : vector<8x128xf32> to vector<8x32xf32>
    %219 = vector.extract_strided_slice %217 {offsets = [0, 32], sizes = [8, 32], strides = [1, 1]} : vector<8x128xf32> to vector<8x32xf32>
    %220 = vector.extract_strided_slice %217 {offsets = [0, 96], sizes = [8, 32], strides = [1, 1]} : vector<8x128xf32> to vector<8x32xf32>
    %221 = vector.extract_strided_slice %212 {offsets = [0, 64], sizes = [8, 32], strides = [1, 1]} : vector<8x128xf32> to vector<8x32xf32>
    %222 = math.tanh %221 : vector<8x32xf32>
    %223 = arith.mulf %219, %139 : vector<8x32xf32>
    %224 = arith.mulf %218, %222 : vector<8x32xf32>
    %225 = arith.addf %223, %224 : vector<8x32xf32>
    %226 = math.tanh %225 : vector<8x32xf32>
    %227 = arith.mulf %220, %226 : vector<8x32xf32>
    %228 = tpu.concatenate %227, %162 in 1 : vector<8x32xf32>, vector<8x32xf32> -> vector<8x64xf32>
    %c0_89 = arith.constant 0 : index
    %c0_90 = arith.constant 0 : index
    %229 = vector.load %arg6[%c0_89, %c0_90] : memref<64x128xf32, #tpu.memory_space<vmem>>, vector<64x128xf32>
    %cst_91 = arith.constant dense<0.000000e+00> : vector<8x128xf32>
    %230 = tpu.matmul %228, %229, %cst_91 {dimension_numbers = #tpu.dot_dimension_numbers<[1], [0], [0], [1], [0, 0, 1, 1], [], []>} : vector<8x64xf32>, vector<64x128xf32>, vector<8x128xf32> -> vector<8x128xf32>
    %c0_92 = arith.constant 0 : index
    %c0_93 = arith.constant 0 : index
    %231 = vector.load %arg7[%c0_92, %c0_93] : memref<1x128xf32, #tpu.memory_space<vmem>>, vector<1x128xf32>
    %232 = vector.broadcast %231 : vector<1x128xf32> to vector<8x128xf32>
    %233 = arith.addf %230, %232 : vector<8x128xf32>
    %234 = arith.negf %233 : vector<8x128xf32>
    %235 = math.exp %234 : vector<8x128xf32>
    %cst_94 = arith.constant 1.000000e+00 : f32
    %236 = vector.broadcast %cst_94 : f32 to vector<8x128xf32>
    %237 = arith.addf %236, %235 : vector<8x128xf32>
    %238 = arith.divf %236, %237 : vector<8x128xf32>
    %239 = vector.extract_strided_slice %238 {offsets = [0, 0], sizes = [8, 32], strides = [1, 1]} : vector<8x128xf32> to vector<8x32xf32>
    %240 = vector.extract_strided_slice %238 {offsets = [0, 32], sizes = [8, 32], strides = [1, 1]} : vector<8x128xf32> to vector<8x32xf32>
    %241 = vector.extract_strided_slice %238 {offsets = [0, 96], sizes = [8, 32], strides = [1, 1]} : vector<8x128xf32> to vector<8x32xf32>
    %242 = vector.extract_strided_slice %233 {offsets = [0, 64], sizes = [8, 32], strides = [1, 1]} : vector<8x128xf32> to vector<8x32xf32>
    %243 = math.tanh %242 : vector<8x32xf32>
    %244 = arith.mulf %240, %160 : vector<8x32xf32>
    %245 = arith.mulf %239, %243 : vector<8x32xf32>
    %246 = arith.addf %244, %245 : vector<8x32xf32>
    %247 = math.tanh %246 : vector<8x32xf32>
    %248 = arith.mulf %241, %247 : vector<8x32xf32>
    %c0_95 = arith.constant 0 : index
    %c0_96 = arith.constant 0 : index
    %249 = vector.load %arg18[%c0_95, %c0_96] : memref<32x128xf32, #tpu.memory_space<vmem>>, vector<32x128xf32>
    %cst_97 = arith.constant dense<0.000000e+00> : vector<8x128xf32>
    %250 = tpu.matmul %180, %249, %cst_97 {dimension_numbers = #tpu.dot_dimension_numbers<[1], [0], [0], [1], [0, 0, 1, 1], [], []>} : vector<8x32xf32>, vector<32x128xf32>, vector<8x128xf32> -> vector<8x128xf32>
    %251 = arith.addf %209, %250 : vector<8x128xf32>
    %252 = arith.negf %251 : vector<8x128xf32>
    %253 = math.exp %252 : vector<8x128xf32>
    %cst_98 = arith.constant 1.000000e+00 : f32
    %254 = vector.broadcast %cst_98 : f32 to vector<8x128xf32>
    %255 = arith.addf %254, %253 : vector<8x128xf32>
    %256 = arith.divf %254, %255 : vector<8x128xf32>
    %257 = vector.extract_strided_slice %256 {offsets = [0, 0], sizes = [8, 32], strides = [1, 1]} : vector<8x128xf32> to vector<8x32xf32>
    %258 = vector.extract_strided_slice %256 {offsets = [0, 32], sizes = [8, 32], strides = [1, 1]} : vector<8x128xf32> to vector<8x32xf32>
    %259 = vector.extract_strided_slice %256 {offsets = [0, 96], sizes = [8, 32], strides = [1, 1]} : vector<8x128xf32> to vector<8x32xf32>
    %260 = vector.extract_strided_slice %251 {offsets = [0, 64], sizes = [8, 32], strides = [1, 1]} : vector<8x128xf32> to vector<8x32xf32>
    %261 = math.tanh %260 : vector<8x32xf32>
    %262 = arith.mulf %258, %178 : vector<8x32xf32>
    %263 = arith.mulf %257, %261 : vector<8x32xf32>
    %264 = arith.addf %262, %263 : vector<8x32xf32>
    %265 = math.tanh %264 : vector<8x32xf32>
    %266 = arith.mulf %259, %265 : vector<8x32xf32>
    %267 = tpu.concatenate %266, %201 in 1 : vector<8x32xf32>, vector<8x32xf32> -> vector<8x64xf32>
    %c0_99 = arith.constant 0 : index
    %c0_100 = arith.constant 0 : index
    %268 = vector.load %arg20[%c0_99, %c0_100] : memref<64x128xf32, #tpu.memory_space<vmem>>, vector<64x128xf32>
    %cst_101 = arith.constant dense<0.000000e+00> : vector<8x128xf32>
    %269 = tpu.matmul %267, %268, %cst_101 {dimension_numbers = #tpu.dot_dimension_numbers<[1], [0], [0], [1], [0, 0, 1, 1], [], []>} : vector<8x64xf32>, vector<64x128xf32>, vector<8x128xf32> -> vector<8x128xf32>
    %c0_102 = arith.constant 0 : index
    %c0_103 = arith.constant 0 : index
    %270 = vector.load %arg21[%c0_102, %c0_103] : memref<1x128xf32, #tpu.memory_space<vmem>>, vector<1x128xf32>
    %271 = vector.broadcast %270 : vector<1x128xf32> to vector<8x128xf32>
    %272 = arith.addf %269, %271 : vector<8x128xf32>
    %273 = arith.negf %272 : vector<8x128xf32>
    %274 = math.exp %273 : vector<8x128xf32>
    %cst_104 = arith.constant 1.000000e+00 : f32
    %275 = vector.broadcast %cst_104 : f32 to vector<8x128xf32>
    %276 = arith.addf %275, %274 : vector<8x128xf32>
    %277 = arith.divf %275, %276 : vector<8x128xf32>
    %278 = vector.extract_strided_slice %277 {offsets = [0, 0], sizes = [8, 32], strides = [1, 1]} : vector<8x128xf32> to vector<8x32xf32>
    %279 = vector.extract_strided_slice %277 {offsets = [0, 32], sizes = [8, 32], strides = [1, 1]} : vector<8x128xf32> to vector<8x32xf32>
    %280 = vector.extract_strided_slice %277 {offsets = [0, 96], sizes = [8, 32], strides = [1, 1]} : vector<8x128xf32> to vector<8x32xf32>
    %281 = vector.extract_strided_slice %272 {offsets = [0, 64], sizes = [8, 32], strides = [1, 1]} : vector<8x128xf32> to vector<8x32xf32>
    %282 = math.tanh %281 : vector<8x32xf32>
    %283 = arith.mulf %279, %199 : vector<8x32xf32>
    %284 = arith.mulf %278, %282 : vector<8x32xf32>
    %285 = arith.addf %283, %284 : vector<8x32xf32>
    %286 = math.tanh %285 : vector<8x32xf32>
    %287 = arith.mulf %280, %286 : vector<8x32xf32>
    %c3_i32 = arith.constant 3 : i32
    %c8_i32_105 = arith.constant 8 : i32
    %288 = arith.muli %c3_i32, %c8_i32_105 : i32
    %289 = tpu.assume_multiple %288, 8 : i32
    %290 = arith.index_cast %289 : i32 to index
    %c0_106 = arith.constant 0 : index
    %291 = vector.load %arg31[%290, %c0_106] : memref<40x128xf32, #tpu.memory_space<vmem>>, vector<8x128xf32>
    %c8_i32_107 = arith.constant 8 : i32
    %292 = arith.muli %c3_i32, %c8_i32_107 : i32
    %293 = tpu.assume_multiple %292, 8 : i32
    %294 = arith.index_cast %293 : i32 to index
    %c0_108 = arith.constant 0 : index
    %295 = vector.load %arg32[%294, %c0_108] : memref<40x128xf32, #tpu.memory_space<vmem>>, vector<8x128xf32>
    %c0_109 = arith.constant 0 : index
    %c0_110 = arith.constant 0 : index
    %296 = vector.load %arg4[%c0_109, %c0_110] : memref<32x128xf32, #tpu.memory_space<vmem>>, vector<32x128xf32>
    %cst_111 = arith.constant dense<0.000000e+00> : vector<8x128xf32>
    %297 = tpu.matmul %227, %296, %cst_111 {dimension_numbers = #tpu.dot_dimension_numbers<[1], [0], [0], [1], [0, 0, 1, 1], [], []>} : vector<8x32xf32>, vector<32x128xf32>, vector<8x128xf32> -> vector<8x128xf32>
    %298 = arith.addf %291, %297 : vector<8x128xf32>
    %299 = arith.negf %298 : vector<8x128xf32>
    %300 = math.exp %299 : vector<8x128xf32>
    %cst_112 = arith.constant 1.000000e+00 : f32
    %301 = vector.broadcast %cst_112 : f32 to vector<8x128xf32>
    %302 = arith.addf %301, %300 : vector<8x128xf32>
    %303 = arith.divf %301, %302 : vector<8x128xf32>
    %304 = vector.extract_strided_slice %303 {offsets = [0, 0], sizes = [8, 32], strides = [1, 1]} : vector<8x128xf32> to vector<8x32xf32>
    %305 = vector.extract_strided_slice %303 {offsets = [0, 32], sizes = [8, 32], strides = [1, 1]} : vector<8x128xf32> to vector<8x32xf32>
    %306 = vector.extract_strided_slice %303 {offsets = [0, 96], sizes = [8, 32], strides = [1, 1]} : vector<8x128xf32> to vector<8x32xf32>
    %307 = vector.extract_strided_slice %298 {offsets = [0, 64], sizes = [8, 32], strides = [1, 1]} : vector<8x128xf32> to vector<8x32xf32>
    %308 = math.tanh %307 : vector<8x32xf32>
    %309 = arith.mulf %305, %225 : vector<8x32xf32>
    %310 = arith.mulf %304, %308 : vector<8x32xf32>
    %311 = arith.addf %309, %310 : vector<8x32xf32>
    %312 = math.tanh %311 : vector<8x32xf32>
    %313 = arith.mulf %306, %312 : vector<8x32xf32>
    %314 = tpu.concatenate %313, %248 in 1 : vector<8x32xf32>, vector<8x32xf32> -> vector<8x64xf32>
    %c0_113 = arith.constant 0 : index
    %c0_114 = arith.constant 0 : index
    %315 = vector.load %arg6[%c0_113, %c0_114] : memref<64x128xf32, #tpu.memory_space<vmem>>, vector<64x128xf32>
    %cst_115 = arith.constant dense<0.000000e+00> : vector<8x128xf32>
    %316 = tpu.matmul %314, %315, %cst_115 {dimension_numbers = #tpu.dot_dimension_numbers<[1], [0], [0], [1], [0, 0, 1, 1], [], []>} : vector<8x64xf32>, vector<64x128xf32>, vector<8x128xf32> -> vector<8x128xf32>
    %c0_116 = arith.constant 0 : index
    %c0_117 = arith.constant 0 : index
    %317 = vector.load %arg7[%c0_116, %c0_117] : memref<1x128xf32, #tpu.memory_space<vmem>>, vector<1x128xf32>
    %318 = vector.broadcast %317 : vector<1x128xf32> to vector<8x128xf32>
    %319 = arith.addf %316, %318 : vector<8x128xf32>
    %320 = arith.negf %319 : vector<8x128xf32>
    %321 = math.exp %320 : vector<8x128xf32>
    %cst_118 = arith.constant 1.000000e+00 : f32
    %322 = vector.broadcast %cst_118 : f32 to vector<8x128xf32>
    %323 = arith.addf %322, %321 : vector<8x128xf32>
    %324 = arith.divf %322, %323 : vector<8x128xf32>
    %325 = vector.extract_strided_slice %324 {offsets = [0, 0], sizes = [8, 32], strides = [1, 1]} : vector<8x128xf32> to vector<8x32xf32>
    %326 = vector.extract_strided_slice %324 {offsets = [0, 32], sizes = [8, 32], strides = [1, 1]} : vector<8x128xf32> to vector<8x32xf32>
    %327 = vector.extract_strided_slice %324 {offsets = [0, 96], sizes = [8, 32], strides = [1, 1]} : vector<8x128xf32> to vector<8x32xf32>
    %328 = vector.extract_strided_slice %319 {offsets = [0, 64], sizes = [8, 32], strides = [1, 1]} : vector<8x128xf32> to vector<8x32xf32>
    %329 = math.tanh %328 : vector<8x32xf32>
    %330 = arith.mulf %326, %246 : vector<8x32xf32>
    %331 = arith.mulf %325, %329 : vector<8x32xf32>
    %332 = arith.addf %330, %331 : vector<8x32xf32>
    %333 = math.tanh %332 : vector<8x32xf32>
    %334 = arith.mulf %327, %333 : vector<8x32xf32>
    %c0_119 = arith.constant 0 : index
    %c0_120 = arith.constant 0 : index
    %335 = vector.load %arg18[%c0_119, %c0_120] : memref<32x128xf32, #tpu.memory_space<vmem>>, vector<32x128xf32>
    %cst_121 = arith.constant dense<0.000000e+00> : vector<8x128xf32>
    %336 = tpu.matmul %266, %335, %cst_121 {dimension_numbers = #tpu.dot_dimension_numbers<[1], [0], [0], [1], [0, 0, 1, 1], [], []>} : vector<8x32xf32>, vector<32x128xf32>, vector<8x128xf32> -> vector<8x128xf32>
    %337 = arith.addf %295, %336 : vector<8x128xf32>
    %338 = arith.negf %337 : vector<8x128xf32>
    %339 = math.exp %338 : vector<8x128xf32>
    %cst_122 = arith.constant 1.000000e+00 : f32
    %340 = vector.broadcast %cst_122 : f32 to vector<8x128xf32>
    %341 = arith.addf %340, %339 : vector<8x128xf32>
    %342 = arith.divf %340, %341 : vector<8x128xf32>
    %343 = vector.extract_strided_slice %342 {offsets = [0, 0], sizes = [8, 32], strides = [1, 1]} : vector<8x128xf32> to vector<8x32xf32>
    %344 = vector.extract_strided_slice %342 {offsets = [0, 32], sizes = [8, 32], strides = [1, 1]} : vector<8x128xf32> to vector<8x32xf32>
    %345 = vector.extract_strided_slice %342 {offsets = [0, 96], sizes = [8, 32], strides = [1, 1]} : vector<8x128xf32> to vector<8x32xf32>
    %346 = vector.extract_strided_slice %337 {offsets = [0, 64], sizes = [8, 32], strides = [1, 1]} : vector<8x128xf32> to vector<8x32xf32>
    %347 = math.tanh %346 : vector<8x32xf32>
    %348 = arith.mulf %344, %264 : vector<8x32xf32>
    %349 = arith.mulf %343, %347 : vector<8x32xf32>
    %350 = arith.addf %348, %349 : vector<8x32xf32>
    %351 = math.tanh %350 : vector<8x32xf32>
    %352 = arith.mulf %345, %351 : vector<8x32xf32>
    %353 = tpu.concatenate %352, %287 in 1 : vector<8x32xf32>, vector<8x32xf32> -> vector<8x64xf32>
    %c0_123 = arith.constant 0 : index
    %c0_124 = arith.constant 0 : index
    %354 = vector.load %arg20[%c0_123, %c0_124] : memref<64x128xf32, #tpu.memory_space<vmem>>, vector<64x128xf32>
    %cst_125 = arith.constant dense<0.000000e+00> : vector<8x128xf32>
    %355 = tpu.matmul %353, %354, %cst_125 {dimension_numbers = #tpu.dot_dimension_numbers<[1], [0], [0], [1], [0, 0, 1, 1], [], []>} : vector<8x64xf32>, vector<64x128xf32>, vector<8x128xf32> -> vector<8x128xf32>
    %c0_126 = arith.constant 0 : index
    %c0_127 = arith.constant 0 : index
    %356 = vector.load %arg21[%c0_126, %c0_127] : memref<1x128xf32, #tpu.memory_space<vmem>>, vector<1x128xf32>
    %357 = vector.broadcast %356 : vector<1x128xf32> to vector<8x128xf32>
    %358 = arith.addf %355, %357 : vector<8x128xf32>
    %359 = arith.negf %358 : vector<8x128xf32>
    %360 = math.exp %359 : vector<8x128xf32>
    %cst_128 = arith.constant 1.000000e+00 : f32
    %361 = vector.broadcast %cst_128 : f32 to vector<8x128xf32>
    %362 = arith.addf %361, %360 : vector<8x128xf32>
    %363 = arith.divf %361, %362 : vector<8x128xf32>
    %364 = vector.extract_strided_slice %363 {offsets = [0, 0], sizes = [8, 32], strides = [1, 1]} : vector<8x128xf32> to vector<8x32xf32>
    %365 = vector.extract_strided_slice %363 {offsets = [0, 32], sizes = [8, 32], strides = [1, 1]} : vector<8x128xf32> to vector<8x32xf32>
    %366 = vector.extract_strided_slice %363 {offsets = [0, 96], sizes = [8, 32], strides = [1, 1]} : vector<8x128xf32> to vector<8x32xf32>
    %367 = vector.extract_strided_slice %358 {offsets = [0, 64], sizes = [8, 32], strides = [1, 1]} : vector<8x128xf32> to vector<8x32xf32>
    %368 = math.tanh %367 : vector<8x32xf32>
    %369 = arith.mulf %365, %285 : vector<8x32xf32>
    %370 = arith.mulf %364, %368 : vector<8x32xf32>
    %371 = arith.addf %369, %370 : vector<8x32xf32>
    %372 = math.tanh %371 : vector<8x32xf32>
    %373 = arith.mulf %366, %372 : vector<8x32xf32>
    %c4_i32 = arith.constant 4 : i32
    %c8_i32_129 = arith.constant 8 : i32
    %374 = arith.muli %c4_i32, %c8_i32_129 : i32
    %375 = tpu.assume_multiple %374, 8 : i32
    %376 = arith.index_cast %375 : i32 to index
    %c0_130 = arith.constant 0 : index
    %377 = vector.load %arg31[%376, %c0_130] : memref<40x128xf32, #tpu.memory_space<vmem>>, vector<8x128xf32>
    %c8_i32_131 = arith.constant 8 : i32
    %378 = arith.muli %c4_i32, %c8_i32_131 : i32
    %379 = tpu.assume_multiple %378, 8 : i32
    %380 = arith.index_cast %379 : i32 to index
    %c0_132 = arith.constant 0 : index
    %381 = vector.load %arg32[%380, %c0_132] : memref<40x128xf32, #tpu.memory_space<vmem>>, vector<8x128xf32>
    %c0_133 = arith.constant 0 : index
    %c0_134 = arith.constant 0 : index
    %382 = vector.load %arg4[%c0_133, %c0_134] : memref<32x128xf32, #tpu.memory_space<vmem>>, vector<32x128xf32>
    %cst_135 = arith.constant dense<0.000000e+00> : vector<8x128xf32>
    %383 = tpu.matmul %313, %382, %cst_135 {dimension_numbers = #tpu.dot_dimension_numbers<[1], [0], [0], [1], [0, 0, 1, 1], [], []>} : vector<8x32xf32>, vector<32x128xf32>, vector<8x128xf32> -> vector<8x128xf32>
    %384 = arith.addf %377, %383 : vector<8x128xf32>
    %385 = arith.negf %384 : vector<8x128xf32>
    %386 = math.exp %385 : vector<8x128xf32>
    %cst_136 = arith.constant 1.000000e+00 : f32
    %387 = vector.broadcast %cst_136 : f32 to vector<8x128xf32>
    %388 = arith.addf %387, %386 : vector<8x128xf32>
    %389 = arith.divf %387, %388 : vector<8x128xf32>
    %390 = vector.extract_strided_slice %389 {offsets = [0, 0], sizes = [8, 32], strides = [1, 1]} : vector<8x128xf32> to vector<8x32xf32>
    %391 = vector.extract_strided_slice %389 {offsets = [0, 32], sizes = [8, 32], strides = [1, 1]} : vector<8x128xf32> to vector<8x32xf32>
    %392 = vector.extract_strided_slice %389 {offsets = [0, 96], sizes = [8, 32], strides = [1, 1]} : vector<8x128xf32> to vector<8x32xf32>
    %393 = vector.extract_strided_slice %384 {offsets = [0, 64], sizes = [8, 32], strides = [1, 1]} : vector<8x128xf32> to vector<8x32xf32>
    %394 = math.tanh %393 : vector<8x32xf32>
    %395 = arith.mulf %391, %311 : vector<8x32xf32>
    %396 = arith.mulf %390, %394 : vector<8x32xf32>
    %397 = arith.addf %395, %396 : vector<8x32xf32>
    %398 = math.tanh %397 : vector<8x32xf32>
    %399 = arith.mulf %392, %398 : vector<8x32xf32>
    %400 = tpu.concatenate %399, %334 in 1 : vector<8x32xf32>, vector<8x32xf32> -> vector<8x64xf32>
    %c0_137 = arith.constant 0 : index
    %c0_138 = arith.constant 0 : index
    %401 = vector.load %arg6[%c0_137, %c0_138] : memref<64x128xf32, #tpu.memory_space<vmem>>, vector<64x128xf32>
    %cst_139 = arith.constant dense<0.000000e+00> : vector<8x128xf32>
    %402 = tpu.matmul %400, %401, %cst_139 {dimension_numbers = #tpu.dot_dimension_numbers<[1], [0], [0], [1], [0, 0, 1, 1], [], []>} : vector<8x64xf32>, vector<64x128xf32>, vector<8x128xf32> -> vector<8x128xf32>
    %c0_140 = arith.constant 0 : index
    %c0_141 = arith.constant 0 : index
    %403 = vector.load %arg7[%c0_140, %c0_141] : memref<1x128xf32, #tpu.memory_space<vmem>>, vector<1x128xf32>
    %404 = vector.broadcast %403 : vector<1x128xf32> to vector<8x128xf32>
    %405 = arith.addf %402, %404 : vector<8x128xf32>
    %406 = arith.negf %405 : vector<8x128xf32>
    %407 = math.exp %406 : vector<8x128xf32>
    %cst_142 = arith.constant 1.000000e+00 : f32
    %408 = vector.broadcast %cst_142 : f32 to vector<8x128xf32>
    %409 = arith.addf %408, %407 : vector<8x128xf32>
    %410 = arith.divf %408, %409 : vector<8x128xf32>
    %411 = vector.extract_strided_slice %410 {offsets = [0, 0], sizes = [8, 32], strides = [1, 1]} : vector<8x128xf32> to vector<8x32xf32>
    %412 = vector.extract_strided_slice %410 {offsets = [0, 32], sizes = [8, 32], strides = [1, 1]} : vector<8x128xf32> to vector<8x32xf32>
    %413 = vector.extract_strided_slice %410 {offsets = [0, 96], sizes = [8, 32], strides = [1, 1]} : vector<8x128xf32> to vector<8x32xf32>
    %414 = vector.extract_strided_slice %405 {offsets = [0, 64], sizes = [8, 32], strides = [1, 1]} : vector<8x128xf32> to vector<8x32xf32>
    %415 = math.tanh %414 : vector<8x32xf32>
    %416 = arith.mulf %412, %332 : vector<8x32xf32>
    %417 = arith.mulf %411, %415 : vector<8x32xf32>
    %418 = arith.addf %416, %417 : vector<8x32xf32>
    %419 = math.tanh %418 : vector<8x32xf32>
    %420 = arith.mulf %413, %419 : vector<8x32xf32>
    %c0_143 = arith.constant 0 : index
    %c0_144 = arith.constant 0 : index
    %421 = vector.load %arg18[%c0_143, %c0_144] : memref<32x128xf32, #tpu.memory_space<vmem>>, vector<32x128xf32>
    %cst_145 = arith.constant dense<0.000000e+00> : vector<8x128xf32>
    %422 = tpu.matmul %352, %421, %cst_145 {dimension_numbers = #tpu.dot_dimension_numbers<[1], [0], [0], [1], [0, 0, 1, 1], [], []>} : vector<8x32xf32>, vector<32x128xf32>, vector<8x128xf32> -> vector<8x128xf32>
    %423 = arith.addf %381, %422 : vector<8x128xf32>
    %424 = arith.negf %423 : vector<8x128xf32>
    %425 = math.exp %424 : vector<8x128xf32>
    %cst_146 = arith.constant 1.000000e+00 : f32
    %426 = vector.broadcast %cst_146 : f32 to vector<8x128xf32>
    %427 = arith.addf %426, %425 : vector<8x128xf32>
    %428 = arith.divf %426, %427 : vector<8x128xf32>
    %429 = vector.extract_strided_slice %428 {offsets = [0, 0], sizes = [8, 32], strides = [1, 1]} : vector<8x128xf32> to vector<8x32xf32>
    %430 = vector.extract_strided_slice %428 {offsets = [0, 32], sizes = [8, 32], strides = [1, 1]} : vector<8x128xf32> to vector<8x32xf32>
    %431 = vector.extract_strided_slice %428 {offsets = [0, 96], sizes = [8, 32], strides = [1, 1]} : vector<8x128xf32> to vector<8x32xf32>
    %432 = vector.extract_strided_slice %423 {offsets = [0, 64], sizes = [8, 32], strides = [1, 1]} : vector<8x128xf32> to vector<8x32xf32>
    %433 = math.tanh %432 : vector<8x32xf32>
    %434 = arith.mulf %430, %350 : vector<8x32xf32>
    %435 = arith.mulf %429, %433 : vector<8x32xf32>
    %436 = arith.addf %434, %435 : vector<8x32xf32>
    %437 = math.tanh %436 : vector<8x32xf32>
    %438 = arith.mulf %431, %437 : vector<8x32xf32>
    %439 = tpu.concatenate %438, %373 in 1 : vector<8x32xf32>, vector<8x32xf32> -> vector<8x64xf32>
    %c0_147 = arith.constant 0 : index
    %c0_148 = arith.constant 0 : index
    %440 = vector.load %arg20[%c0_147, %c0_148] : memref<64x128xf32, #tpu.memory_space<vmem>>, vector<64x128xf32>
    %cst_149 = arith.constant dense<0.000000e+00> : vector<8x128xf32>
    %441 = tpu.matmul %439, %440, %cst_149 {dimension_numbers = #tpu.dot_dimension_numbers<[1], [0], [0], [1], [0, 0, 1, 1], [], []>} : vector<8x64xf32>, vector<64x128xf32>, vector<8x128xf32> -> vector<8x128xf32>
    %c0_150 = arith.constant 0 : index
    %c0_151 = arith.constant 0 : index
    %442 = vector.load %arg21[%c0_150, %c0_151] : memref<1x128xf32, #tpu.memory_space<vmem>>, vector<1x128xf32>
    %443 = vector.broadcast %442 : vector<1x128xf32> to vector<8x128xf32>
    %444 = arith.addf %441, %443 : vector<8x128xf32>
    %445 = arith.negf %444 : vector<8x128xf32>
    %446 = math.exp %445 : vector<8x128xf32>
    %cst_152 = arith.constant 1.000000e+00 : f32
    %447 = vector.broadcast %cst_152 : f32 to vector<8x128xf32>
    %448 = arith.addf %447, %446 : vector<8x128xf32>
    %449 = arith.divf %447, %448 : vector<8x128xf32>
    %450 = vector.extract_strided_slice %449 {offsets = [0, 0], sizes = [8, 32], strides = [1, 1]} : vector<8x128xf32> to vector<8x32xf32>
    %451 = vector.extract_strided_slice %449 {offsets = [0, 32], sizes = [8, 32], strides = [1, 1]} : vector<8x128xf32> to vector<8x32xf32>
    %452 = vector.extract_strided_slice %449 {offsets = [0, 96], sizes = [8, 32], strides = [1, 1]} : vector<8x128xf32> to vector<8x32xf32>
    %453 = vector.extract_strided_slice %444 {offsets = [0, 64], sizes = [8, 32], strides = [1, 1]} : vector<8x128xf32> to vector<8x32xf32>
    %454 = math.tanh %453 : vector<8x32xf32>
    %455 = arith.mulf %451, %371 : vector<8x32xf32>
    %456 = arith.mulf %450, %454 : vector<8x32xf32>
    %457 = arith.addf %455, %456 : vector<8x32xf32>
    %458 = math.tanh %457 : vector<8x32xf32>
    %459 = arith.mulf %452, %458 : vector<8x32xf32>
    %c5_i32 = arith.constant 5 : i32
    %c0_i32_153 = arith.constant 0 : i32
    %460 = tpu.assume_multiple %c0_i32_153, 8 : i32
    %461 = arith.index_cast %460 : i32 to index
    %c0_154 = arith.constant 0 : index
    %462 = vector.load %arg33[%461, %c0_154] : memref<64x128xf32, #tpu.memory_space<vmem>>, vector<8x128xf32>
    %c0_155 = arith.constant 0 : index
    %c0_156 = arith.constant 0 : index
    %463 = vector.load %arg9[%c0_155, %c0_156] : memref<32x128xf32, #tpu.memory_space<vmem>>, vector<32x128xf32>
    %cst_157 = arith.constant dense<0.000000e+00> : vector<8x128xf32>
    %464 = tpu.matmul %399, %463, %cst_157 {dimension_numbers = #tpu.dot_dimension_numbers<[1], [0], [0], [1], [0, 0, 1, 1], [], []>} : vector<8x32xf32>, vector<32x128xf32>, vector<8x128xf32> -> vector<8x128xf32>
    %465 = arith.addf %462, %464 : vector<8x128xf32>
    %466 = arith.negf %465 : vector<8x128xf32>
    %467 = math.exp %466 : vector<8x128xf32>
    %cst_158 = arith.constant 1.000000e+00 : f32
    %468 = vector.broadcast %cst_158 : f32 to vector<8x128xf32>
    %469 = arith.addf %468, %467 : vector<8x128xf32>
    %470 = arith.divf %468, %469 : vector<8x128xf32>
    %471 = vector.extract_strided_slice %470 {offsets = [0, 0], sizes = [8, 32], strides = [1, 1]} : vector<8x128xf32> to vector<8x32xf32>
    %472 = vector.extract_strided_slice %470 {offsets = [0, 32], sizes = [8, 32], strides = [1, 1]} : vector<8x128xf32> to vector<8x32xf32>
    %473 = vector.extract_strided_slice %470 {offsets = [0, 96], sizes = [8, 32], strides = [1, 1]} : vector<8x128xf32> to vector<8x32xf32>
    %474 = vector.extract_strided_slice %465 {offsets = [0, 64], sizes = [8, 32], strides = [1, 1]} : vector<8x128xf32> to vector<8x32xf32>
    %475 = math.tanh %474 : vector<8x32xf32>
    %476 = arith.mulf %472, %397 : vector<8x32xf32>
    %477 = arith.mulf %471, %475 : vector<8x32xf32>
    %478 = arith.addf %476, %477 : vector<8x32xf32>
    %479 = math.tanh %478 : vector<8x32xf32>
    %480 = arith.mulf %473, %479 : vector<8x32xf32>
    %481 = tpu.concatenate %480, %420 in 1 : vector<8x32xf32>, vector<8x32xf32> -> vector<8x64xf32>
    %c0_159 = arith.constant 0 : index
    %c0_160 = arith.constant 0 : index
    %482 = vector.load %arg11[%c0_159, %c0_160] : memref<64x128xf32, #tpu.memory_space<vmem>>, vector<64x128xf32>
    %cst_161 = arith.constant dense<0.000000e+00> : vector<8x128xf32>
    %483 = tpu.matmul %481, %482, %cst_161 {dimension_numbers = #tpu.dot_dimension_numbers<[1], [0], [0], [1], [0, 0, 1, 1], [], []>} : vector<8x64xf32>, vector<64x128xf32>, vector<8x128xf32> -> vector<8x128xf32>
    %c0_162 = arith.constant 0 : index
    %c0_163 = arith.constant 0 : index
    %484 = vector.load %arg12[%c0_162, %c0_163] : memref<1x128xf32, #tpu.memory_space<vmem>>, vector<1x128xf32>
    %485 = vector.broadcast %484 : vector<1x128xf32> to vector<8x128xf32>
    %486 = arith.addf %483, %485 : vector<8x128xf32>
    %487 = arith.negf %486 : vector<8x128xf32>
    %488 = math.exp %487 : vector<8x128xf32>
    %cst_164 = arith.constant 1.000000e+00 : f32
    %489 = vector.broadcast %cst_164 : f32 to vector<8x128xf32>
    %490 = arith.addf %489, %488 : vector<8x128xf32>
    %491 = arith.divf %489, %490 : vector<8x128xf32>
    %492 = vector.extract_strided_slice %491 {offsets = [0, 0], sizes = [8, 32], strides = [1, 1]} : vector<8x128xf32> to vector<8x32xf32>
    %493 = vector.extract_strided_slice %491 {offsets = [0, 32], sizes = [8, 32], strides = [1, 1]} : vector<8x128xf32> to vector<8x32xf32>
    %494 = vector.extract_strided_slice %491 {offsets = [0, 96], sizes = [8, 32], strides = [1, 1]} : vector<8x128xf32> to vector<8x32xf32>
    %495 = vector.extract_strided_slice %486 {offsets = [0, 64], sizes = [8, 32], strides = [1, 1]} : vector<8x128xf32> to vector<8x32xf32>
    %496 = math.tanh %495 : vector<8x32xf32>
    %497 = arith.mulf %493, %418 : vector<8x32xf32>
    %498 = arith.mulf %492, %496 : vector<8x32xf32>
    %499 = arith.addf %497, %498 : vector<8x32xf32>
    %500 = math.tanh %499 : vector<8x32xf32>
    %501 = arith.mulf %494, %500 : vector<8x32xf32>
    %c0_165 = arith.constant 0 : index
    %c0_166 = arith.constant 0 : index
    %502 = vector.load %arg13[%c0_165, %c0_166] : memref<32x2xf32, #tpu.memory_space<vmem>>, vector<32x2xf32>
    %cst_167 = arith.constant dense<0.000000e+00> : vector<8x2xf32>
    %503 = tpu.matmul %501, %502, %cst_167 {dimension_numbers = #tpu.dot_dimension_numbers<[1], [0], [0], [1], [0, 0, 1, 1], [], []>} : vector<8x32xf32>, vector<32x2xf32>, vector<8x2xf32> -> vector<8x2xf32>
    %c0_168 = arith.constant 0 : index
    %c0_169 = arith.constant 0 : index
    %504 = vector.load %arg14[%c0_168, %c0_169] : memref<1x2xf32, #tpu.memory_space<vmem>>, vector<1x2xf32>
    %505 = vector.broadcast %504 : vector<1x2xf32> to vector<8x2xf32>
    %506 = arith.addf %503, %505 : vector<8x2xf32>
    %c0_i32_170 = arith.constant 0 : i32
    %507 = tpu.assume_multiple %c0_i32_170, 8 : i32
    %508 = arith.index_cast %507 : i32 to index
    %c0_171 = arith.constant 0 : index
    %509 = vector.load %arg2[%508, %c0_171] : memref<64x4xf32, #tpu.memory_space<vmem>>, vector<8x4xf32>
    %c0_172 = arith.constant 0 : index
    %c0_173 = arith.constant 0 : index
    %510 = vector.load %arg15[%c0_172, %c0_173] : memref<4x4xf32, #tpu.memory_space<vmem>>, vector<4x4xf32>
    %cst_174 = arith.constant dense<0.000000e+00> : vector<8x4xf32>
    %511 = tpu.matmul %509, %510, %cst_174 {dimension_numbers = #tpu.dot_dimension_numbers<[1], [0], [0], [1], [0, 0, 1, 1], [], []>} : vector<8x4xf32>, vector<4x4xf32>, vector<8x4xf32> -> vector<8x4xf32>
    %c0_175 = arith.constant 0 : index
    %c0_176 = arith.constant 0 : index
    %512 = vector.load %arg16[%c0_175, %c0_176] : memref<2x4xf32, #tpu.memory_space<vmem>>, vector<2x4xf32>
    %cst_177 = arith.constant dense<0.000000e+00> : vector<8x4xf32>
    %513 = tpu.matmul %506, %512, %cst_177 {dimension_numbers = #tpu.dot_dimension_numbers<[1], [0], [0], [1], [0, 0, 1, 1], [], []>} : vector<8x2xf32>, vector<2x4xf32>, vector<8x4xf32> -> vector<8x4xf32>
    %514 = arith.addf %511, %513 : vector<8x4xf32>
    %c0_i32_178 = arith.constant 0 : i32
    %515 = tpu.assume_multiple %c0_i32_178, 8 : i32
    %516 = arith.index_cast %515 : i32 to index
    %c0_179 = arith.constant 0 : index
    %517 = vector.load %arg35[%516, %c0_179] : memref<64x4xf32, #tpu.memory_space<vmem>>, vector<8x4xf32>
    tpu.vector_store %arg35[%516, %c0_179], %514 {strides = array<i32>} : memref<64x4xf32, #tpu.memory_space<vmem>>, vector<8x4xf32>,
    %c1_i32_180 = arith.constant 1 : i32
    %c8_i32_181 = arith.constant 8 : i32
    %518 = arith.muli %c1_i32_180, %c8_i32_181 : i32
    %519 = tpu.assume_multiple %518, 8 : i32
    %520 = arith.index_cast %519 : i32 to index
    %c0_182 = arith.constant 0 : index
    %521 = vector.load %arg33[%520, %c0_182] : memref<64x128xf32, #tpu.memory_space<vmem>>, vector<8x128xf32>
    %c0_183 = arith.constant 0 : index
    %c0_184 = arith.constant 0 : index
    %522 = vector.load %arg9[%c0_183, %c0_184] : memref<32x128xf32, #tpu.memory_space<vmem>>, vector<32x128xf32>
    %cst_185 = arith.constant dense<0.000000e+00> : vector<8x128xf32>
    %523 = tpu.matmul %480, %522, %cst_185 {dimension_numbers = #tpu.dot_dimension_numbers<[1], [0], [0], [1], [0, 0, 1, 1], [], []>} : vector<8x32xf32>, vector<32x128xf32>, vector<8x128xf32> -> vector<8x128xf32>
    %524 = arith.addf %521, %523 : vector<8x128xf32>
    %525 = arith.negf %524 : vector<8x128xf32>
    %526 = math.exp %525 : vector<8x128xf32>
    %cst_186 = arith.constant 1.000000e+00 : f32
    %527 = vector.broadcast %cst_186 : f32 to vector<8x128xf32>
    %528 = arith.addf %527, %526 : vector<8x128xf32>
    %529 = arith.divf %527, %528 : vector<8x128xf32>
    %530 = vector.extract_strided_slice %529 {offsets = [0, 0], sizes = [8, 32], strides = [1, 1]} : vector<8x128xf32> to vector<8x32xf32>
    %531 = vector.extract_strided_slice %529 {offsets = [0, 32], sizes = [8, 32], strides = [1, 1]} : vector<8x128xf32> to vector<8x32xf32>
    %532 = vector.extract_strided_slice %529 {offsets = [0, 96], sizes = [8, 32], strides = [1, 1]} : vector<8x128xf32> to vector<8x32xf32>
    %533 = vector.extract_strided_slice %524 {offsets = [0, 64], sizes = [8, 32], strides = [1, 1]} : vector<8x128xf32> to vector<8x32xf32>
    %534 = math.tanh %533 : vector<8x32xf32>
    %535 = arith.mulf %531, %478 : vector<8x32xf32>
    %536 = arith.mulf %530, %534 : vector<8x32xf32>
    %537 = arith.addf %535, %536 : vector<8x32xf32>
    %538 = math.tanh %537 : vector<8x32xf32>
    %539 = arith.mulf %532, %538 : vector<8x32xf32>
    %540 = tpu.concatenate %539, %501 in 1 : vector<8x32xf32>, vector<8x32xf32> -> vector<8x64xf32>
    %c0_187 = arith.constant 0 : index
    %c0_188 = arith.constant 0 : index
    %541 = vector.load %arg11[%c0_187, %c0_188] : memref<64x128xf32, #tpu.memory_space<vmem>>, vector<64x128xf32>
    %cst_189 = arith.constant dense<0.000000e+00> : vector<8x128xf32>
    %542 = tpu.matmul %540, %541, %cst_189 {dimension_numbers = #tpu.dot_dimension_numbers<[1], [0], [0], [1], [0, 0, 1, 1], [], []>} : vector<8x64xf32>, vector<64x128xf32>, vector<8x128xf32> -> vector<8x128xf32>
    %c0_190 = arith.constant 0 : index
    %c0_191 = arith.constant 0 : index
    %543 = vector.load %arg12[%c0_190, %c0_191] : memref<1x128xf32, #tpu.memory_space<vmem>>, vector<1x128xf32>
    %544 = vector.broadcast %543 : vector<1x128xf32> to vector<8x128xf32>
    %545 = arith.addf %542, %544 : vector<8x128xf32>
    %546 = arith.negf %545 : vector<8x128xf32>
    %547 = math.exp %546 : vector<8x128xf32>
    %cst_192 = arith.constant 1.000000e+00 : f32
    %548 = vector.broadcast %cst_192 : f32 to vector<8x128xf32>
    %549 = arith.addf %548, %547 : vector<8x128xf32>
    %550 = arith.divf %548, %549 : vector<8x128xf32>
    %551 = vector.extract_strided_slice %550 {offsets = [0, 0], sizes = [8, 32], strides = [1, 1]} : vector<8x128xf32> to vector<8x32xf32>
    %552 = vector.extract_strided_slice %550 {offsets = [0, 32], sizes = [8, 32], strides = [1, 1]} : vector<8x128xf32> to vector<8x32xf32>
    %553 = vector.extract_strided_slice %550 {offsets = [0, 96], sizes = [8, 32], strides = [1, 1]} : vector<8x128xf32> to vector<8x32xf32>
    %554 = vector.extract_strided_slice %545 {offsets = [0, 64], sizes = [8, 32], strides = [1, 1]} : vector<8x128xf32> to vector<8x32xf32>
    %555 = math.tanh %554 : vector<8x32xf32>
    %556 = arith.mulf %552, %499 : vector<8x32xf32>
    %557 = arith.mulf %551, %555 : vector<8x32xf32>
    %558 = arith.addf %556, %557 : vector<8x32xf32>
    %559 = math.tanh %558 : vector<8x32xf32>
    %560 = arith.mulf %553, %559 : vector<8x32xf32>
    %c0_193 = arith.constant 0 : index
    %c0_194 = arith.constant 0 : index
    %561 = vector.load %arg13[%c0_193, %c0_194] : memref<32x2xf32, #tpu.memory_space<vmem>>, vector<32x2xf32>
    %cst_195 = arith.constant dense<0.000000e+00> : vector<8x2xf32>
    %562 = tpu.matmul %560, %561, %cst_195 {dimension_numbers = #tpu.dot_dimension_numbers<[1], [0], [0], [1], [0, 0, 1, 1], [], []>} : vector<8x32xf32>, vector<32x2xf32>, vector<8x2xf32> -> vector<8x2xf32>
    %c0_196 = arith.constant 0 : index
    %c0_197 = arith.constant 0 : index
    %563 = vector.load %arg14[%c0_196, %c0_197] : memref<1x2xf32, #tpu.memory_space<vmem>>, vector<1x2xf32>
    %564 = vector.broadcast %563 : vector<1x2xf32> to vector<8x2xf32>
    %565 = arith.addf %562, %564 : vector<8x2xf32>
    %c8_i32_198 = arith.constant 8 : i32
    %566 = arith.muli %c1_i32_180, %c8_i32_198 : i32
    %567 = tpu.assume_multiple %566, 8 : i32
    %568 = arith.index_cast %567 : i32 to index
    %c0_199 = arith.constant 0 : index
    %569 = vector.load %arg2[%568, %c0_199] : memref<64x4xf32, #tpu.memory_space<vmem>>, vector<8x4xf32>
    %c0_200 = arith.constant 0 : index
    %c0_201 = arith.constant 0 : index
    %570 = vector.load %arg15[%c0_200, %c0_201] : memref<4x4xf32, #tpu.memory_space<vmem>>, vector<4x4xf32>
    %cst_202 = arith.constant dense<0.000000e+00> : vector<8x4xf32>
    %571 = tpu.matmul %569, %570, %cst_202 {dimension_numbers = #tpu.dot_dimension_numbers<[1], [0], [0], [1], [0, 0, 1, 1], [], []>} : vector<8x4xf32>, vector<4x4xf32>, vector<8x4xf32> -> vector<8x4xf32>
    %c0_203 = arith.constant 0 : index
    %c0_204 = arith.constant 0 : index
    %572 = vector.load %arg16[%c0_203, %c0_204] : memref<2x4xf32, #tpu.memory_space<vmem>>, vector<2x4xf32>
    %cst_205 = arith.constant dense<0.000000e+00> : vector<8x4xf32>
    %573 = tpu.matmul %565, %572, %cst_205 {dimension_numbers = #tpu.dot_dimension_numbers<[1], [0], [0], [1], [0, 0, 1, 1], [], []>} : vector<8x2xf32>, vector<2x4xf32>, vector<8x4xf32> -> vector<8x4xf32>
    %574 = arith.addf %571, %573 : vector<8x4xf32>
    %c8_i32_206 = arith.constant 8 : i32
    %575 = arith.muli %c1_i32_180, %c8_i32_206 : i32
    %576 = tpu.assume_multiple %575, 8 : i32
    %577 = arith.index_cast %576 : i32 to index
    %c0_207 = arith.constant 0 : index
    %578 = vector.load %arg35[%577, %c0_207] : memref<64x4xf32, #tpu.memory_space<vmem>>, vector<8x4xf32>
    tpu.vector_store %arg35[%577, %c0_207], %574 {strides = array<i32>} : memref<64x4xf32, #tpu.memory_space<vmem>>, vector<8x4xf32>,
    %c1_i32_208 = arith.constant 1 : i32
    %579 = arith.subi %c1_i32_180, %c1_i32_208 : i32
    %c8_i32_209 = arith.constant 8 : i32
    %580 = arith.muli %579, %c8_i32_209 : i32
    %581 = tpu.assume_multiple %580, 8 : i32
    %582 = arith.index_cast %581 : i32 to index
    %c0_210 = arith.constant 0 : index
    %583 = vector.load %arg34[%582, %c0_210] : memref<64x128xf32, #tpu.memory_space<vmem>>, vector<8x128xf32>
    %c0_211 = arith.constant 0 : index
    %c0_212 = arith.constant 0 : index
    %584 = vector.load %arg23[%c0_211, %c0_212] : memref<4x128xf32, #tpu.memory_space<vmem>>, vector<4x128xf32>
    %cst_213 = arith.constant dense<0.000000e+00> : vector<8x128xf32>
    %585 = tpu.matmul %514, %584, %cst_213 {dimension_numbers = #tpu.dot_dimension_numbers<[1], [0], [0], [1], [0, 0, 1, 1], [], []>} : vector<8x4xf32>, vector<4x128xf32>, vector<8x128xf32> -> vector<8x128xf32>
    %586 = arith.addf %583, %585 : vector<8x128xf32>
    %c0_214 = arith.constant 0 : index
    %c0_215 = arith.constant 0 : index
    %587 = vector.load %arg24[%c0_214, %c0_215] : memref<32x128xf32, #tpu.memory_space<vmem>>, vector<32x128xf32>
    %cst_216 = arith.constant dense<0.000000e+00> : vector<8x128xf32>
    %588 = tpu.matmul %438, %587, %cst_216 {dimension_numbers = #tpu.dot_dimension_numbers<[1], [0], [0], [1], [0, 0, 1, 1], [], []>} : vector<8x32xf32>, vector<32x128xf32>, vector<8x128xf32> -> vector<8x128xf32>
    %589 = arith.addf %586, %588 : vector<8x128xf32>
    %590 = arith.negf %589 : vector<8x128xf32>
    %591 = math.exp %590 : vector<8x128xf32>
    %cst_217 = arith.constant 1.000000e+00 : f32
    %592 = vector.broadcast %cst_217 : f32 to vector<8x128xf32>
    %593 = arith.addf %592, %591 : vector<8x128xf32>
    %594 = arith.divf %592, %593 : vector<8x128xf32>
    %595 = vector.extract_strided_slice %594 {offsets = [0, 0], sizes = [8, 32], strides = [1, 1]} : vector<8x128xf32> to vector<8x32xf32>
    %596 = vector.extract_strided_slice %594 {offsets = [0, 32], sizes = [8, 32], strides = [1, 1]} : vector<8x128xf32> to vector<8x32xf32>
    %597 = vector.extract_strided_slice %594 {offsets = [0, 96], sizes = [8, 32], strides = [1, 1]} : vector<8x128xf32> to vector<8x32xf32>
    %598 = vector.extract_strided_slice %589 {offsets = [0, 64], sizes = [8, 32], strides = [1, 1]} : vector<8x128xf32> to vector<8x32xf32>
    %599 = math.tanh %598 : vector<8x32xf32>
    %600 = arith.mulf %596, %436 : vector<8x32xf32>
    %601 = arith.mulf %595, %599 : vector<8x32xf32>
    %602 = arith.addf %600, %601 : vector<8x32xf32>
    %603 = math.tanh %602 : vector<8x32xf32>
    %604 = arith.mulf %597, %603 : vector<8x32xf32>
    %605 = tpu.concatenate %604, %459 in 1 : vector<8x32xf32>, vector<8x32xf32> -> vector<8x64xf32>
    %c0_218 = arith.constant 0 : index
    %c0_219 = arith.constant 0 : index
    %606 = vector.load %arg26[%c0_218, %c0_219] : memref<64x128xf32, #tpu.memory_space<vmem>>, vector<64x128xf32>
    %cst_220 = arith.constant dense<0.000000e+00> : vector<8x128xf32>
    %607 = tpu.matmul %605, %606, %cst_220 {dimension_numbers = #tpu.dot_dimension_numbers<[1], [0], [0], [1], [0, 0, 1, 1], [], []>} : vector<8x64xf32>, vector<64x128xf32>, vector<8x128xf32> -> vector<8x128xf32>
    %c0_221 = arith.constant 0 : index
    %c0_222 = arith.constant 0 : index
    %608 = vector.load %arg27[%c0_221, %c0_222] : memref<1x128xf32, #tpu.memory_space<vmem>>, vector<1x128xf32>
    %609 = vector.broadcast %608 : vector<1x128xf32> to vector<8x128xf32>
    %610 = arith.addf %607, %609 : vector<8x128xf32>
    %611 = arith.negf %610 : vector<8x128xf32>
    %612 = math.exp %611 : vector<8x128xf32>
    %cst_223 = arith.constant 1.000000e+00 : f32
    %613 = vector.broadcast %cst_223 : f32 to vector<8x128xf32>
    %614 = arith.addf %613, %612 : vector<8x128xf32>
    %615 = arith.divf %613, %614 : vector<8x128xf32>
    %616 = vector.extract_strided_slice %615 {offsets = [0, 0], sizes = [8, 32], strides = [1, 1]} : vector<8x128xf32> to vector<8x32xf32>
    %617 = vector.extract_strided_slice %615 {offsets = [0, 32], sizes = [8, 32], strides = [1, 1]} : vector<8x128xf32> to vector<8x32xf32>
    %618 = vector.extract_strided_slice %615 {offsets = [0, 96], sizes = [8, 32], strides = [1, 1]} : vector<8x128xf32> to vector<8x32xf32>
    %619 = vector.extract_strided_slice %610 {offsets = [0, 64], sizes = [8, 32], strides = [1, 1]} : vector<8x128xf32> to vector<8x32xf32>
    %620 = math.tanh %619 : vector<8x32xf32>
    %621 = arith.mulf %617, %457 : vector<8x32xf32>
    %622 = arith.mulf %616, %620 : vector<8x32xf32>
    %623 = arith.addf %621, %622 : vector<8x32xf32>
    %624 = math.tanh %623 : vector<8x32xf32>
    %625 = arith.mulf %618, %624 : vector<8x32xf32>
    %c8_i32_224 = arith.constant 8 : i32
    %626 = arith.muli %579, %c8_i32_224 : i32
    %627 = tpu.assume_multiple %626, 8 : i32
    %628 = arith.index_cast %627 : i32 to index
    %c0_225 = arith.constant 0 : index
    %629 = vector.load %arg36[%628, %c0_225] : memref<64x32xf32, #tpu.memory_space<vmem>>, vector<8x32xf32>
    tpu.vector_store %arg36[%628, %c0_225], %625 {strides = array<i32>} : memref<64x32xf32, #tpu.memory_space<vmem>>, vector<8x32xf32>,
    %c2_i32_226 = arith.constant 2 : i32
    %c8_i32_227 = arith.constant 8 : i32
    %630 = arith.muli %c2_i32_226, %c8_i32_227 : i32
    %631 = tpu.assume_multiple %630, 8 : i32
    %632 = arith.index_cast %631 : i32 to index
    %c0_228 = arith.constant 0 : index
    %633 = vector.load %arg33[%632, %c0_228] : memref<64x128xf32, #tpu.memory_space<vmem>>, vector<8x128xf32>
    %c0_229 = arith.constant 0 : index
    %c0_230 = arith.constant 0 : index
    %634 = vector.load %arg9[%c0_229, %c0_230] : memref<32x128xf32, #tpu.memory_space<vmem>>, vector<32x128xf32>
    %cst_231 = arith.constant dense<0.000000e+00> : vector<8x128xf32>
    %635 = tpu.matmul %539, %634, %cst_231 {dimension_numbers = #tpu.dot_dimension_numbers<[1], [0], [0], [1], [0, 0, 1, 1], [], []>} : vector<8x32xf32>, vector<32x128xf32>, vector<8x128xf32> -> vector<8x128xf32>
    %636 = arith.addf %633, %635 : vector<8x128xf32>
    %637 = arith.negf %636 : vector<8x128xf32>
    %638 = math.exp %637 : vector<8x128xf32>
    %cst_232 = arith.constant 1.000000e+00 : f32
    %639 = vector.broadcast %cst_232 : f32 to vector<8x128xf32>
    %640 = arith.addf %639, %638 : vector<8x128xf32>
    %641 = arith.divf %639, %640 : vector<8x128xf32>
    %642 = vector.extract_strided_slice %641 {offsets = [0, 0], sizes = [8, 32], strides = [1, 1]} : vector<8x128xf32> to vector<8x32xf32>
    %643 = vector.extract_strided_slice %641 {offsets = [0, 32], sizes = [8, 32], strides = [1, 1]} : vector<8x128xf32> to vector<8x32xf32>
    %644 = vector.extract_strided_slice %641 {offsets = [0, 96], sizes = [8, 32], strides = [1, 1]} : vector<8x128xf32> to vector<8x32xf32>
    %645 = vector.extract_strided_slice %636 {offsets = [0, 64], sizes = [8, 32], strides = [1, 1]} : vector<8x128xf32> to vector<8x32xf32>
    %646 = math.tanh %645 : vector<8x32xf32>
    %647 = arith.mulf %643, %537 : vector<8x32xf32>
    %648 = arith.mulf %642, %646 : vector<8x32xf32>
    %649 = arith.addf %647, %648 : vector<8x32xf32>
    %650 = math.tanh %649 : vector<8x32xf32>
    %651 = arith.mulf %644, %650 : vector<8x32xf32>
    %652 = tpu.concatenate %651, %560 in 1 : vector<8x32xf32>, vector<8x32xf32> -> vector<8x64xf32>
    %c0_233 = arith.constant 0 : index
    %c0_234 = arith.constant 0 : index
    %653 = vector.load %arg11[%c0_233, %c0_234] : memref<64x128xf32, #tpu.memory_space<vmem>>, vector<64x128xf32>
    %cst_235 = arith.constant dense<0.000000e+00> : vector<8x128xf32>
    %654 = tpu.matmul %652, %653, %cst_235 {dimension_numbers = #tpu.dot_dimension_numbers<[1], [0], [0], [1], [0, 0, 1, 1], [], []>} : vector<8x64xf32>, vector<64x128xf32>, vector<8x128xf32> -> vector<8x128xf32>
    %c0_236 = arith.constant 0 : index
    %c0_237 = arith.constant 0 : index
    %655 = vector.load %arg12[%c0_236, %c0_237] : memref<1x128xf32, #tpu.memory_space<vmem>>, vector<1x128xf32>
    %656 = vector.broadcast %655 : vector<1x128xf32> to vector<8x128xf32>
    %657 = arith.addf %654, %656 : vector<8x128xf32>
    %658 = arith.negf %657 : vector<8x128xf32>
    %659 = math.exp %658 : vector<8x128xf32>
    %cst_238 = arith.constant 1.000000e+00 : f32
    %660 = vector.broadcast %cst_238 : f32 to vector<8x128xf32>
    %661 = arith.addf %660, %659 : vector<8x128xf32>
    %662 = arith.divf %660, %661 : vector<8x128xf32>
    %663 = vector.extract_strided_slice %662 {offsets = [0, 0], sizes = [8, 32], strides = [1, 1]} : vector<8x128xf32> to vector<8x32xf32>
    %664 = vector.extract_strided_slice %662 {offsets = [0, 32], sizes = [8, 32], strides = [1, 1]} : vector<8x128xf32> to vector<8x32xf32>
    %665 = vector.extract_strided_slice %662 {offsets = [0, 96], sizes = [8, 32], strides = [1, 1]} : vector<8x128xf32> to vector<8x32xf32>
    %666 = vector.extract_strided_slice %657 {offsets = [0, 64], sizes = [8, 32], strides = [1, 1]} : vector<8x128xf32> to vector<8x32xf32>
    %667 = math.tanh %666 : vector<8x32xf32>
    %668 = arith.mulf %664, %558 : vector<8x32xf32>
    %669 = arith.mulf %663, %667 : vector<8x32xf32>
    %670 = arith.addf %668, %669 : vector<8x32xf32>
    %671 = math.tanh %670 : vector<8x32xf32>
    %672 = arith.mulf %665, %671 : vector<8x32xf32>
    %c0_239 = arith.constant 0 : index
    %c0_240 = arith.constant 0 : index
    %673 = vector.load %arg13[%c0_239, %c0_240] : memref<32x2xf32, #tpu.memory_space<vmem>>, vector<32x2xf32>
    %cst_241 = arith.constant dense<0.000000e+00> : vector<8x2xf32>
    %674 = tpu.matmul %672, %673, %cst_241 {dimension_numbers = #tpu.dot_dimension_numbers<[1], [0], [0], [1], [0, 0, 1, 1], [], []>} : vector<8x32xf32>, vector<32x2xf32>, vector<8x2xf32> -> vector<8x2xf32>
    %c0_242 = arith.constant 0 : index
    %c0_243 = arith.constant 0 : index
    %675 = vector.load %arg14[%c0_242, %c0_243] : memref<1x2xf32, #tpu.memory_space<vmem>>, vector<1x2xf32>
    %676 = vector.broadcast %675 : vector<1x2xf32> to vector<8x2xf32>
    %677 = arith.addf %674, %676 : vector<8x2xf32>
    %c8_i32_244 = arith.constant 8 : i32
    %678 = arith.muli %c2_i32_226, %c8_i32_244 : i32
    %679 = tpu.assume_multiple %678, 8 : i32
    %680 = arith.index_cast %679 : i32 to index
    %c0_245 = arith.constant 0 : index
    %681 = vector.load %arg2[%680, %c0_245] : memref<64x4xf32, #tpu.memory_space<vmem>>, vector<8x4xf32>
    %c0_246 = arith.constant 0 : index
    %c0_247 = arith.constant 0 : index
    %682 = vector.load %arg15[%c0_246, %c0_247] : memref<4x4xf32, #tpu.memory_space<vmem>>, vector<4x4xf32>
    %cst_248 = arith.constant dense<0.000000e+00> : vector<8x4xf32>
    %683 = tpu.matmul %681, %682, %cst_248 {dimension_numbers = #tpu.dot_dimension_numbers<[1], [0], [0], [1], [0, 0, 1, 1], [], []>} : vector<8x4xf32>, vector<4x4xf32>, vector<8x4xf32> -> vector<8x4xf32>
    %c0_249 = arith.constant 0 : index
    %c0_250 = arith.constant 0 : index
    %684 = vector.load %arg16[%c0_249, %c0_250] : memref<2x4xf32, #tpu.memory_space<vmem>>, vector<2x4xf32>
    %cst_251 = arith.constant dense<0.000000e+00> : vector<8x4xf32>
    %685 = tpu.matmul %677, %684, %cst_251 {dimension_numbers = #tpu.dot_dimension_numbers<[1], [0], [0], [1], [0, 0, 1, 1], [], []>} : vector<8x2xf32>, vector<2x4xf32>, vector<8x4xf32> -> vector<8x4xf32>
    %686 = arith.addf %683, %685 : vector<8x4xf32>
    %c8_i32_252 = arith.constant 8 : i32
    %687 = arith.muli %c2_i32_226, %c8_i32_252 : i32
    %688 = tpu.assume_multiple %687, 8 : i32
    %689 = arith.index_cast %688 : i32 to index
    %c0_253 = arith.constant 0 : index
    %690 = vector.load %arg35[%689, %c0_253] : memref<64x4xf32, #tpu.memory_space<vmem>>, vector<8x4xf32>
    tpu.vector_store %arg35[%689, %c0_253], %686 {strides = array<i32>} : memref<64x4xf32, #tpu.memory_space<vmem>>, vector<8x4xf32>,
    %c1_i32_254 = arith.constant 1 : i32
    %691 = arith.subi %c2_i32_226, %c1_i32_254 : i32
    %c8_i32_255 = arith.constant 8 : i32
    %692 = arith.muli %691, %c8_i32_255 : i32
    %693 = tpu.assume_multiple %692, 8 : i32
    %694 = arith.index_cast %693 : i32 to index
    %c0_256 = arith.constant 0 : index
    %695 = vector.load %arg34[%694, %c0_256] : memref<64x128xf32, #tpu.memory_space<vmem>>, vector<8x128xf32>
    %c0_257 = arith.constant 0 : index
    %c0_258 = arith.constant 0 : index
    %696 = vector.load %arg23[%c0_257, %c0_258] : memref<4x128xf32, #tpu.memory_space<vmem>>, vector<4x128xf32>
    %cst_259 = arith.constant dense<0.000000e+00> : vector<8x128xf32>
    %697 = tpu.matmul %574, %696, %cst_259 {dimension_numbers = #tpu.dot_dimension_numbers<[1], [0], [0], [1], [0, 0, 1, 1], [], []>} : vector<8x4xf32>, vector<4x128xf32>, vector<8x128xf32> -> vector<8x128xf32>
    %698 = arith.addf %695, %697 : vector<8x128xf32>
    %c0_260 = arith.constant 0 : index
    %c0_261 = arith.constant 0 : index
    %699 = vector.load %arg24[%c0_260, %c0_261] : memref<32x128xf32, #tpu.memory_space<vmem>>, vector<32x128xf32>
    %cst_262 = arith.constant dense<0.000000e+00> : vector<8x128xf32>
    %700 = tpu.matmul %604, %699, %cst_262 {dimension_numbers = #tpu.dot_dimension_numbers<[1], [0], [0], [1], [0, 0, 1, 1], [], []>} : vector<8x32xf32>, vector<32x128xf32>, vector<8x128xf32> -> vector<8x128xf32>
    %701 = arith.addf %698, %700 : vector<8x128xf32>
    %702 = arith.negf %701 : vector<8x128xf32>
    %703 = math.exp %702 : vector<8x128xf32>
    %cst_263 = arith.constant 1.000000e+00 : f32
    %704 = vector.broadcast %cst_263 : f32 to vector<8x128xf32>
    %705 = arith.addf %704, %703 : vector<8x128xf32>
    %706 = arith.divf %704, %705 : vector<8x128xf32>
    %707 = vector.extract_strided_slice %706 {offsets = [0, 0], sizes = [8, 32], strides = [1, 1]} : vector<8x128xf32> to vector<8x32xf32>
    %708 = vector.extract_strided_slice %706 {offsets = [0, 32], sizes = [8, 32], strides = [1, 1]} : vector<8x128xf32> to vector<8x32xf32>
    %709 = vector.extract_strided_slice %706 {offsets = [0, 96], sizes = [8, 32], strides = [1, 1]} : vector<8x128xf32> to vector<8x32xf32>
    %710 = vector.extract_strided_slice %701 {offsets = [0, 64], sizes = [8, 32], strides = [1, 1]} : vector<8x128xf32> to vector<8x32xf32>
    %711 = math.tanh %710 : vector<8x32xf32>
    %712 = arith.mulf %708, %602 : vector<8x32xf32>
    %713 = arith.mulf %707, %711 : vector<8x32xf32>
    %714 = arith.addf %712, %713 : vector<8x32xf32>
    %715 = math.tanh %714 : vector<8x32xf32>
    %716 = arith.mulf %709, %715 : vector<8x32xf32>
    %717 = tpu.concatenate %716, %625 in 1 : vector<8x32xf32>, vector<8x32xf32> -> vector<8x64xf32>
    %c0_264 = arith.constant 0 : index
    %c0_265 = arith.constant 0 : index
    %718 = vector.load %arg26[%c0_264, %c0_265] : memref<64x128xf32, #tpu.memory_space<vmem>>, vector<64x128xf32>
    %cst_266 = arith.constant dense<0.000000e+00> : vector<8x128xf32>
    %719 = tpu.matmul %717, %718, %cst_266 {dimension_numbers = #tpu.dot_dimension_numbers<[1], [0], [0], [1], [0, 0, 1, 1], [], []>} : vector<8x64xf32>, vector<64x128xf32>, vector<8x128xf32> -> vector<8x128xf32>
    %c0_267 = arith.constant 0 : index
    %c0_268 = arith.constant 0 : index
    %720 = vector.load %arg27[%c0_267, %c0_268] : memref<1x128xf32, #tpu.memory_space<vmem>>, vector<1x128xf32>
    %721 = vector.broadcast %720 : vector<1x128xf32> to vector<8x128xf32>
    %722 = arith.addf %719, %721 : vector<8x128xf32>
    %723 = arith.negf %722 : vector<8x128xf32>
    %724 = math.exp %723 : vector<8x128xf32>
    %cst_269 = arith.constant 1.000000e+00 : f32
    %725 = vector.broadcast %cst_269 : f32 to vector<8x128xf32>
    %726 = arith.addf %725, %724 : vector<8x128xf32>
    %727 = arith.divf %725, %726 : vector<8x128xf32>
    %728 = vector.extract_strided_slice %727 {offsets = [0, 0], sizes = [8, 32], strides = [1, 1]} : vector<8x128xf32> to vector<8x32xf32>
    %729 = vector.extract_strided_slice %727 {offsets = [0, 32], sizes = [8, 32], strides = [1, 1]} : vector<8x128xf32> to vector<8x32xf32>
    %730 = vector.extract_strided_slice %727 {offsets = [0, 96], sizes = [8, 32], strides = [1, 1]} : vector<8x128xf32> to vector<8x32xf32>
    %731 = vector.extract_strided_slice %722 {offsets = [0, 64], sizes = [8, 32], strides = [1, 1]} : vector<8x128xf32> to vector<8x32xf32>
    %732 = math.tanh %731 : vector<8x32xf32>
    %733 = arith.mulf %729, %623 : vector<8x32xf32>
    %734 = arith.mulf %728, %732 : vector<8x32xf32>
    %735 = arith.addf %733, %734 : vector<8x32xf32>
    %736 = math.tanh %735 : vector<8x32xf32>
    %737 = arith.mulf %730, %736 : vector<8x32xf32>
    %c8_i32_270 = arith.constant 8 : i32
    %738 = arith.muli %691, %c8_i32_270 : i32
    %739 = tpu.assume_multiple %738, 8 : i32
    %740 = arith.index_cast %739 : i32 to index
    %c0_271 = arith.constant 0 : index
    %741 = vector.load %arg36[%740, %c0_271] : memref<64x32xf32, #tpu.memory_space<vmem>>, vector<8x32xf32>
    tpu.vector_store %arg36[%740, %c0_271], %737 {strides = array<i32>} : memref<64x32xf32, #tpu.memory_space<vmem>>, vector<8x32xf32>,
    %c3_i32_272 = arith.constant 3 : i32
    %c8_i32_273 = arith.constant 8 : i32
    %742 = arith.muli %c3_i32_272, %c8_i32_273 : i32
    %743 = tpu.assume_multiple %742, 8 : i32
    %744 = arith.index_cast %743 : i32 to index
    %c0_274 = arith.constant 0 : index
    %745 = vector.load %arg33[%744, %c0_274] : memref<64x128xf32, #tpu.memory_space<vmem>>, vector<8x128xf32>
    %c0_275 = arith.constant 0 : index
    %c0_276 = arith.constant 0 : index
    %746 = vector.load %arg9[%c0_275, %c0_276] : memref<32x128xf32, #tpu.memory_space<vmem>>, vector<32x128xf32>
    %cst_277 = arith.constant dense<0.000000e+00> : vector<8x128xf32>
    %747 = tpu.matmul %651, %746, %cst_277 {dimension_numbers = #tpu.dot_dimension_numbers<[1], [0], [0], [1], [0, 0, 1, 1], [], []>} : vector<8x32xf32>, vector<32x128xf32>, vector<8x128xf32> -> vector<8x128xf32>
    %748 = arith.addf %745, %747 : vector<8x128xf32>
    %749 = arith.negf %748 : vector<8x128xf32>
    %750 = math.exp %749 : vector<8x128xf32>
    %cst_278 = arith.constant 1.000000e+00 : f32
    %751 = vector.broadcast %cst_278 : f32 to vector<8x128xf32>
    %752 = arith.addf %751, %750 : vector<8x128xf32>
    %753 = arith.divf %751, %752 : vector<8x128xf32>
    %754 = vector.extract_strided_slice %753 {offsets = [0, 0], sizes = [8, 32], strides = [1, 1]} : vector<8x128xf32> to vector<8x32xf32>
    %755 = vector.extract_strided_slice %753 {offsets = [0, 32], sizes = [8, 32], strides = [1, 1]} : vector<8x128xf32> to vector<8x32xf32>
    %756 = vector.extract_strided_slice %753 {offsets = [0, 96], sizes = [8, 32], strides = [1, 1]} : vector<8x128xf32> to vector<8x32xf32>
    %757 = vector.extract_strided_slice %748 {offsets = [0, 64], sizes = [8, 32], strides = [1, 1]} : vector<8x128xf32> to vector<8x32xf32>
    %758 = math.tanh %757 : vector<8x32xf32>
    %759 = arith.mulf %755, %649 : vector<8x32xf32>
    %760 = arith.mulf %754, %758 : vector<8x32xf32>
    %761 = arith.addf %759, %760 : vector<8x32xf32>
    %762 = math.tanh %761 : vector<8x32xf32>
    %763 = arith.mulf %756, %762 : vector<8x32xf32>
    %764 = tpu.concatenate %763, %672 in 1 : vector<8x32xf32>, vector<8x32xf32> -> vector<8x64xf32>
    %c0_279 = arith.constant 0 : index
    %c0_280 = arith.constant 0 : index
    %765 = vector.load %arg11[%c0_279, %c0_280] : memref<64x128xf32, #tpu.memory_space<vmem>>, vector<64x128xf32>
    %cst_281 = arith.constant dense<0.000000e+00> : vector<8x128xf32>
    %766 = tpu.matmul %764, %765, %cst_281 {dimension_numbers = #tpu.dot_dimension_numbers<[1], [0], [0], [1], [0, 0, 1, 1], [], []>} : vector<8x64xf32>, vector<64x128xf32>, vector<8x128xf32> -> vector<8x128xf32>
    %c0_282 = arith.constant 0 : index
    %c0_283 = arith.constant 0 : index
    %767 = vector.load %arg12[%c0_282, %c0_283] : memref<1x128xf32, #tpu.memory_space<vmem>>, vector<1x128xf32>
    %768 = vector.broadcast %767 : vector<1x128xf32> to vector<8x128xf32>
    %769 = arith.addf %766, %768 : vector<8x128xf32>
    %770 = arith.negf %769 : vector<8x128xf32>
    %771 = math.exp %770 : vector<8x128xf32>
    %cst_284 = arith.constant 1.000000e+00 : f32
    %772 = vector.broadcast %cst_284 : f32 to vector<8x128xf32>
    %773 = arith.addf %772, %771 : vector<8x128xf32>
    %774 = arith.divf %772, %773 : vector<8x128xf32>
    %775 = vector.extract_strided_slice %774 {offsets = [0, 0], sizes = [8, 32], strides = [1, 1]} : vector<8x128xf32> to vector<8x32xf32>
    %776 = vector.extract_strided_slice %774 {offsets = [0, 32], sizes = [8, 32], strides = [1, 1]} : vector<8x128xf32> to vector<8x32xf32>
    %777 = vector.extract_strided_slice %774 {offsets = [0, 96], sizes = [8, 32], strides = [1, 1]} : vector<8x128xf32> to vector<8x32xf32>
    %778 = vector.extract_strided_slice %769 {offsets = [0, 64], sizes = [8, 32], strides = [1, 1]} : vector<8x128xf32> to vector<8x32xf32>
    %779 = math.tanh %778 : vector<8x32xf32>
    %780 = arith.mulf %776, %670 : vector<8x32xf32>
    %781 = arith.mulf %775, %779 : vector<8x32xf32>
    %782 = arith.addf %780, %781 : vector<8x32xf32>
    %783 = math.tanh %782 : vector<8x32xf32>
    %784 = arith.mulf %777, %783 : vector<8x32xf32>
    %c0_285 = arith.constant 0 : index
    %c0_286 = arith.constant 0 : index
    %785 = vector.load %arg13[%c0_285, %c0_286] : memref<32x2xf32, #tpu.memory_space<vmem>>, vector<32x2xf32>
    %cst_287 = arith.constant dense<0.000000e+00> : vector<8x2xf32>
    %786 = tpu.matmul %784, %785, %cst_287 {dimension_numbers = #tpu.dot_dimension_numbers<[1], [0], [0], [1], [0, 0, 1, 1], [], []>} : vector<8x32xf32>, vector<32x2xf32>, vector<8x2xf32> -> vector<8x2xf32>
    %c0_288 = arith.constant 0 : index
    %c0_289 = arith.constant 0 : index
    %787 = vector.load %arg14[%c0_288, %c0_289] : memref<1x2xf32, #tpu.memory_space<vmem>>, vector<1x2xf32>
    %788 = vector.broadcast %787 : vector<1x2xf32> to vector<8x2xf32>
    %789 = arith.addf %786, %788 : vector<8x2xf32>
    %c8_i32_290 = arith.constant 8 : i32
    %790 = arith.muli %c3_i32_272, %c8_i32_290 : i32
    %791 = tpu.assume_multiple %790, 8 : i32
    %792 = arith.index_cast %791 : i32 to index
    %c0_291 = arith.constant 0 : index
    %793 = vector.load %arg2[%792, %c0_291] : memref<64x4xf32, #tpu.memory_space<vmem>>, vector<8x4xf32>
    %c0_292 = arith.constant 0 : index
    %c0_293 = arith.constant 0 : index
    %794 = vector.load %arg15[%c0_292, %c0_293] : memref<4x4xf32, #tpu.memory_space<vmem>>, vector<4x4xf32>
    %cst_294 = arith.constant dense<0.000000e+00> : vector<8x4xf32>
    %795 = tpu.matmul %793, %794, %cst_294 {dimension_numbers = #tpu.dot_dimension_numbers<[1], [0], [0], [1], [0, 0, 1, 1], [], []>} : vector<8x4xf32>, vector<4x4xf32>, vector<8x4xf32> -> vector<8x4xf32>
    %c0_295 = arith.constant 0 : index
    %c0_296 = arith.constant 0 : index
    %796 = vector.load %arg16[%c0_295, %c0_296] : memref<2x4xf32, #tpu.memory_space<vmem>>, vector<2x4xf32>
    %cst_297 = arith.constant dense<0.000000e+00> : vector<8x4xf32>
    %797 = tpu.matmul %789, %796, %cst_297 {dimension_numbers = #tpu.dot_dimension_numbers<[1], [0], [0], [1], [0, 0, 1, 1], [], []>} : vector<8x2xf32>, vector<2x4xf32>, vector<8x4xf32> -> vector<8x4xf32>
    %798 = arith.addf %795, %797 : vector<8x4xf32>
    %c8_i32_298 = arith.constant 8 : i32
    %799 = arith.muli %c3_i32_272, %c8_i32_298 : i32
    %800 = tpu.assume_multiple %799, 8 : i32
    %801 = arith.index_cast %800 : i32 to index
    %c0_299 = arith.constant 0 : index
    %802 = vector.load %arg35[%801, %c0_299] : memref<64x4xf32, #tpu.memory_space<vmem>>, vector<8x4xf32>
    tpu.vector_store %arg35[%801, %c0_299], %798 {strides = array<i32>} : memref<64x4xf32, #tpu.memory_space<vmem>>, vector<8x4xf32>,
    %c1_i32_300 = arith.constant 1 : i32
    %803 = arith.subi %c3_i32_272, %c1_i32_300 : i32
    %c8_i32_301 = arith.constant 8 : i32
    %804 = arith.muli %803, %c8_i32_301 : i32
    %805 = tpu.assume_multiple %804, 8 : i32
    %806 = arith.index_cast %805 : i32 to index
    %c0_302 = arith.constant 0 : index
    %807 = vector.load %arg34[%806, %c0_302] : memref<64x128xf32, #tpu.memory_space<vmem>>, vector<8x128xf32>
    %c0_303 = arith.constant 0 : index
    %c0_304 = arith.constant 0 : index
    %808 = vector.load %arg23[%c0_303, %c0_304] : memref<4x128xf32, #tpu.memory_space<vmem>>, vector<4x128xf32>
    %cst_305 = arith.constant dense<0.000000e+00> : vector<8x128xf32>
    %809 = tpu.matmul %686, %808, %cst_305 {dimension_numbers = #tpu.dot_dimension_numbers<[1], [0], [0], [1], [0, 0, 1, 1], [], []>} : vector<8x4xf32>, vector<4x128xf32>, vector<8x128xf32> -> vector<8x128xf32>
    %810 = arith.addf %807, %809 : vector<8x128xf32>
    %c0_306 = arith.constant 0 : index
    %c0_307 = arith.constant 0 : index
    %811 = vector.load %arg24[%c0_306, %c0_307] : memref<32x128xf32, #tpu.memory_space<vmem>>, vector<32x128xf32>
    %cst_308 = arith.constant dense<0.000000e+00> : vector<8x128xf32>
    %812 = tpu.matmul %716, %811, %cst_308 {dimension_numbers = #tpu.dot_dimension_numbers<[1], [0], [0], [1], [0, 0, 1, 1], [], []>} : vector<8x32xf32>, vector<32x128xf32>, vector<8x128xf32> -> vector<8x128xf32>
    %813 = arith.addf %810, %812 : vector<8x128xf32>
    %814 = arith.negf %813 : vector<8x128xf32>
    %815 = math.exp %814 : vector<8x128xf32>
    %cst_309 = arith.constant 1.000000e+00 : f32
    %816 = vector.broadcast %cst_309 : f32 to vector<8x128xf32>
    %817 = arith.addf %816, %815 : vector<8x128xf32>
    %818 = arith.divf %816, %817 : vector<8x128xf32>
    %819 = vector.extract_strided_slice %818 {offsets = [0, 0], sizes = [8, 32], strides = [1, 1]} : vector<8x128xf32> to vector<8x32xf32>
    %820 = vector.extract_strided_slice %818 {offsets = [0, 32], sizes = [8, 32], strides = [1, 1]} : vector<8x128xf32> to vector<8x32xf32>
    %821 = vector.extract_strided_slice %818 {offsets = [0, 96], sizes = [8, 32], strides = [1, 1]} : vector<8x128xf32> to vector<8x32xf32>
    %822 = vector.extract_strided_slice %813 {offsets = [0, 64], sizes = [8, 32], strides = [1, 1]} : vector<8x128xf32> to vector<8x32xf32>
    %823 = math.tanh %822 : vector<8x32xf32>
    %824 = arith.mulf %820, %714 : vector<8x32xf32>
    %825 = arith.mulf %819, %823 : vector<8x32xf32>
    %826 = arith.addf %824, %825 : vector<8x32xf32>
    %827 = math.tanh %826 : vector<8x32xf32>
    %828 = arith.mulf %821, %827 : vector<8x32xf32>
    %829 = tpu.concatenate %828, %737 in 1 : vector<8x32xf32>, vector<8x32xf32> -> vector<8x64xf32>
    %c0_310 = arith.constant 0 : index
    %c0_311 = arith.constant 0 : index
    %830 = vector.load %arg26[%c0_310, %c0_311] : memref<64x128xf32, #tpu.memory_space<vmem>>, vector<64x128xf32>
    %cst_312 = arith.constant dense<0.000000e+00> : vector<8x128xf32>
    %831 = tpu.matmul %829, %830, %cst_312 {dimension_numbers = #tpu.dot_dimension_numbers<[1], [0], [0], [1], [0, 0, 1, 1], [], []>} : vector<8x64xf32>, vector<64x128xf32>, vector<8x128xf32> -> vector<8x128xf32>
    %c0_313 = arith.constant 0 : index
    %c0_314 = arith.constant 0 : index
    %832 = vector.load %arg27[%c0_313, %c0_314] : memref<1x128xf32, #tpu.memory_space<vmem>>, vector<1x128xf32>
    %833 = vector.broadcast %832 : vector<1x128xf32> to vector<8x128xf32>
    %834 = arith.addf %831, %833 : vector<8x128xf32>
    %835 = arith.negf %834 : vector<8x128xf32>
    %836 = math.exp %835 : vector<8x128xf32>
    %cst_315 = arith.constant 1.000000e+00 : f32
    %837 = vector.broadcast %cst_315 : f32 to vector<8x128xf32>
    %838 = arith.addf %837, %836 : vector<8x128xf32>
    %839 = arith.divf %837, %838 : vector<8x128xf32>
    %840 = vector.extract_strided_slice %839 {offsets = [0, 0], sizes = [8, 32], strides = [1, 1]} : vector<8x128xf32> to vector<8x32xf32>
    %841 = vector.extract_strided_slice %839 {offsets = [0, 32], sizes = [8, 32], strides = [1, 1]} : vector<8x128xf32> to vector<8x32xf32>
    %842 = vector.extract_strided_slice %839 {offsets = [0, 96], sizes = [8, 32], strides = [1, 1]} : vector<8x128xf32> to vector<8x32xf32>
    %843 = vector.extract_strided_slice %834 {offsets = [0, 64], sizes = [8, 32], strides = [1, 1]} : vector<8x128xf32> to vector<8x32xf32>
    %844 = math.tanh %843 : vector<8x32xf32>
    %845 = arith.mulf %841, %735 : vector<8x32xf32>
    %846 = arith.mulf %840, %844 : vector<8x32xf32>
    %847 = arith.addf %845, %846 : vector<8x32xf32>
    %848 = math.tanh %847 : vector<8x32xf32>
    %849 = arith.mulf %842, %848 : vector<8x32xf32>
    %c8_i32_316 = arith.constant 8 : i32
    %850 = arith.muli %803, %c8_i32_316 : i32
    %851 = tpu.assume_multiple %850, 8 : i32
    %852 = arith.index_cast %851 : i32 to index
    %c0_317 = arith.constant 0 : index
    %853 = vector.load %arg36[%852, %c0_317] : memref<64x32xf32, #tpu.memory_space<vmem>>, vector<8x32xf32>
    tpu.vector_store %arg36[%852, %c0_317], %849 {strides = array<i32>} : memref<64x32xf32, #tpu.memory_space<vmem>>, vector<8x32xf32>,
    %c4_i32_318 = arith.constant 4 : i32
    %c8_i32_319 = arith.constant 8 : i32
    %854 = arith.muli %c4_i32_318, %c8_i32_319 : i32
    %855 = tpu.assume_multiple %854, 8 : i32
    %856 = arith.index_cast %855 : i32 to index
    %c0_320 = arith.constant 0 : index
    %857 = vector.load %arg33[%856, %c0_320] : memref<64x128xf32, #tpu.memory_space<vmem>>, vector<8x128xf32>
    %c0_321 = arith.constant 0 : index
    %c0_322 = arith.constant 0 : index
    %858 = vector.load %arg9[%c0_321, %c0_322] : memref<32x128xf32, #tpu.memory_space<vmem>>, vector<32x128xf32>
    %cst_323 = arith.constant dense<0.000000e+00> : vector<8x128xf32>
    %859 = tpu.matmul %763, %858, %cst_323 {dimension_numbers = #tpu.dot_dimension_numbers<[1], [0], [0], [1], [0, 0, 1, 1], [], []>} : vector<8x32xf32>, vector<32x128xf32>, vector<8x128xf32> -> vector<8x128xf32>
    %860 = arith.addf %857, %859 : vector<8x128xf32>
    %861 = arith.negf %860 : vector<8x128xf32>
    %862 = math.exp %861 : vector<8x128xf32>
    %cst_324 = arith.constant 1.000000e+00 : f32
    %863 = vector.broadcast %cst_324 : f32 to vector<8x128xf32>
    %864 = arith.addf %863, %862 : vector<8x128xf32>
    %865 = arith.divf %863, %864 : vector<8x128xf32>
    %866 = vector.extract_strided_slice %865 {offsets = [0, 0], sizes = [8, 32], strides = [1, 1]} : vector<8x128xf32> to vector<8x32xf32>
    %867 = vector.extract_strided_slice %865 {offsets = [0, 32], sizes = [8, 32], strides = [1, 1]} : vector<8x128xf32> to vector<8x32xf32>
    %868 = vector.extract_strided_slice %865 {offsets = [0, 96], sizes = [8, 32], strides = [1, 1]} : vector<8x128xf32> to vector<8x32xf32>
    %869 = vector.extract_strided_slice %860 {offsets = [0, 64], sizes = [8, 32], strides = [1, 1]} : vector<8x128xf32> to vector<8x32xf32>
    %870 = math.tanh %869 : vector<8x32xf32>
    %871 = arith.mulf %867, %761 : vector<8x32xf32>
    %872 = arith.mulf %866, %870 : vector<8x32xf32>
    %873 = arith.addf %871, %872 : vector<8x32xf32>
    %874 = math.tanh %873 : vector<8x32xf32>
    %875 = arith.mulf %868, %874 : vector<8x32xf32>
    %876 = tpu.concatenate %875, %784 in 1 : vector<8x32xf32>, vector<8x32xf32> -> vector<8x64xf32>
    %c0_325 = arith.constant 0 : index
    %c0_326 = arith.constant 0 : index
    %877 = vector.load %arg11[%c0_325, %c0_326] : memref<64x128xf32, #tpu.memory_space<vmem>>, vector<64x128xf32>
    %cst_327 = arith.constant dense<0.000000e+00> : vector<8x128xf32>
    %878 = tpu.matmul %876, %877, %cst_327 {dimension_numbers = #tpu.dot_dimension_numbers<[1], [0], [0], [1], [0, 0, 1, 1], [], []>} : vector<8x64xf32>, vector<64x128xf32>, vector<8x128xf32> -> vector<8x128xf32>
    %c0_328 = arith.constant 0 : index
    %c0_329 = arith.constant 0 : index
    %879 = vector.load %arg12[%c0_328, %c0_329] : memref<1x128xf32, #tpu.memory_space<vmem>>, vector<1x128xf32>
    %880 = vector.broadcast %879 : vector<1x128xf32> to vector<8x128xf32>
    %881 = arith.addf %878, %880 : vector<8x128xf32>
    %882 = arith.negf %881 : vector<8x128xf32>
    %883 = math.exp %882 : vector<8x128xf32>
    %cst_330 = arith.constant 1.000000e+00 : f32
    %884 = vector.broadcast %cst_330 : f32 to vector<8x128xf32>
    %885 = arith.addf %884, %883 : vector<8x128xf32>
    %886 = arith.divf %884, %885 : vector<8x128xf32>
    %887 = vector.extract_strided_slice %886 {offsets = [0, 0], sizes = [8, 32], strides = [1, 1]} : vector<8x128xf32> to vector<8x32xf32>
    %888 = vector.extract_strided_slice %886 {offsets = [0, 32], sizes = [8, 32], strides = [1, 1]} : vector<8x128xf32> to vector<8x32xf32>
    %889 = vector.extract_strided_slice %886 {offsets = [0, 96], sizes = [8, 32], strides = [1, 1]} : vector<8x128xf32> to vector<8x32xf32>
    %890 = vector.extract_strided_slice %881 {offsets = [0, 64], sizes = [8, 32], strides = [1, 1]} : vector<8x128xf32> to vector<8x32xf32>
    %891 = math.tanh %890 : vector<8x32xf32>
    %892 = arith.mulf %888, %782 : vector<8x32xf32>
    %893 = arith.mulf %887, %891 : vector<8x32xf32>
    %894 = arith.addf %892, %893 : vector<8x32xf32>
    %895 = math.tanh %894 : vector<8x32xf32>
    %896 = arith.mulf %889, %895 : vector<8x32xf32>
    %c0_331 = arith.constant 0 : index
    %c0_332 = arith.constant 0 : index
    %897 = vector.load %arg13[%c0_331, %c0_332] : memref<32x2xf32, #tpu.memory_space<vmem>>, vector<32x2xf32>
    %cst_333 = arith.constant dense<0.000000e+00> : vector<8x2xf32>
    %898 = tpu.matmul %896, %897, %cst_333 {dimension_numbers = #tpu.dot_dimension_numbers<[1], [0], [0], [1], [0, 0, 1, 1], [], []>} : vector<8x32xf32>, vector<32x2xf32>, vector<8x2xf32> -> vector<8x2xf32>
    %c0_334 = arith.constant 0 : index
    %c0_335 = arith.constant 0 : index
    %899 = vector.load %arg14[%c0_334, %c0_335] : memref<1x2xf32, #tpu.memory_space<vmem>>, vector<1x2xf32>
    %900 = vector.broadcast %899 : vector<1x2xf32> to vector<8x2xf32>
    %901 = arith.addf %898, %900 : vector<8x2xf32>
    %c8_i32_336 = arith.constant 8 : i32
    %902 = arith.muli %c4_i32_318, %c8_i32_336 : i32
    %903 = tpu.assume_multiple %902, 8 : i32
    %904 = arith.index_cast %903 : i32 to index
    %c0_337 = arith.constant 0 : index
    %905 = vector.load %arg2[%904, %c0_337] : memref<64x4xf32, #tpu.memory_space<vmem>>, vector<8x4xf32>
    %c0_338 = arith.constant 0 : index
    %c0_339 = arith.constant 0 : index
    %906 = vector.load %arg15[%c0_338, %c0_339] : memref<4x4xf32, #tpu.memory_space<vmem>>, vector<4x4xf32>
    %cst_340 = arith.constant dense<0.000000e+00> : vector<8x4xf32>
    %907 = tpu.matmul %905, %906, %cst_340 {dimension_numbers = #tpu.dot_dimension_numbers<[1], [0], [0], [1], [0, 0, 1, 1], [], []>} : vector<8x4xf32>, vector<4x4xf32>, vector<8x4xf32> -> vector<8x4xf32>
    %c0_341 = arith.constant 0 : index
    %c0_342 = arith.constant 0 : index
    %908 = vector.load %arg16[%c0_341, %c0_342] : memref<2x4xf32, #tpu.memory_space<vmem>>, vector<2x4xf32>
    %cst_343 = arith.constant dense<0.000000e+00> : vector<8x4xf32>
    %909 = tpu.matmul %901, %908, %cst_343 {dimension_numbers = #tpu.dot_dimension_numbers<[1], [0], [0], [1], [0, 0, 1, 1], [], []>} : vector<8x2xf32>, vector<2x4xf32>, vector<8x4xf32> -> vector<8x4xf32>
    %910 = arith.addf %907, %909 : vector<8x4xf32>
    %c8_i32_344 = arith.constant 8 : i32
    %911 = arith.muli %c4_i32_318, %c8_i32_344 : i32
    %912 = tpu.assume_multiple %911, 8 : i32
    %913 = arith.index_cast %912 : i32 to index
    %c0_345 = arith.constant 0 : index
    %914 = vector.load %arg35[%913, %c0_345] : memref<64x4xf32, #tpu.memory_space<vmem>>, vector<8x4xf32>
    tpu.vector_store %arg35[%913, %c0_345], %910 {strides = array<i32>} : memref<64x4xf32, #tpu.memory_space<vmem>>, vector<8x4xf32>,
    %c1_i32_346 = arith.constant 1 : i32
    %915 = arith.subi %c4_i32_318, %c1_i32_346 : i32
    %c8_i32_347 = arith.constant 8 : i32
    %916 = arith.muli %915, %c8_i32_347 : i32
    %917 = tpu.assume_multiple %916, 8 : i32
    %918 = arith.index_cast %917 : i32 to index
    %c0_348 = arith.constant 0 : index
    %919 = vector.load %arg34[%918, %c0_348] : memref<64x128xf32, #tpu.memory_space<vmem>>, vector<8x128xf32>
    %c0_349 = arith.constant 0 : index
    %c0_350 = arith.constant 0 : index
    %920 = vector.load %arg23[%c0_349, %c0_350] : memref<4x128xf32, #tpu.memory_space<vmem>>, vector<4x128xf32>
    %cst_351 = arith.constant dense<0.000000e+00> : vector<8x128xf32>
    %921 = tpu.matmul %798, %920, %cst_351 {dimension_numbers = #tpu.dot_dimension_numbers<[1], [0], [0], [1], [0, 0, 1, 1], [], []>} : vector<8x4xf32>, vector<4x128xf32>, vector<8x128xf32> -> vector<8x128xf32>
    %922 = arith.addf %919, %921 : vector<8x128xf32>
    %c0_352 = arith.constant 0 : index
    %c0_353 = arith.constant 0 : index
    %923 = vector.load %arg24[%c0_352, %c0_353] : memref<32x128xf32, #tpu.memory_space<vmem>>, vector<32x128xf32>
    %cst_354 = arith.constant dense<0.000000e+00> : vector<8x128xf32>
    %924 = tpu.matmul %828, %923, %cst_354 {dimension_numbers = #tpu.dot_dimension_numbers<[1], [0], [0], [1], [0, 0, 1, 1], [], []>} : vector<8x32xf32>, vector<32x128xf32>, vector<8x128xf32> -> vector<8x128xf32>
    %925 = arith.addf %922, %924 : vector<8x128xf32>
    %926 = arith.negf %925 : vector<8x128xf32>
    %927 = math.exp %926 : vector<8x128xf32>
    %cst_355 = arith.constant 1.000000e+00 : f32
    %928 = vector.broadcast %cst_355 : f32 to vector<8x128xf32>
    %929 = arith.addf %928, %927 : vector<8x128xf32>
    %930 = arith.divf %928, %929 : vector<8x128xf32>
    %931 = vector.extract_strided_slice %930 {offsets = [0, 0], sizes = [8, 32], strides = [1, 1]} : vector<8x128xf32> to vector<8x32xf32>
    %932 = vector.extract_strided_slice %930 {offsets = [0, 32], sizes = [8, 32], strides = [1, 1]} : vector<8x128xf32> to vector<8x32xf32>
    %933 = vector.extract_strided_slice %930 {offsets = [0, 96], sizes = [8, 32], strides = [1, 1]} : vector<8x128xf32> to vector<8x32xf32>
    %934 = vector.extract_strided_slice %925 {offsets = [0, 64], sizes = [8, 32], strides = [1, 1]} : vector<8x128xf32> to vector<8x32xf32>
    %935 = math.tanh %934 : vector<8x32xf32>
    %936 = arith.mulf %932, %826 : vector<8x32xf32>
    %937 = arith.mulf %931, %935 : vector<8x32xf32>
    %938 = arith.addf %936, %937 : vector<8x32xf32>
    %939 = math.tanh %938 : vector<8x32xf32>
    %940 = arith.mulf %933, %939 : vector<8x32xf32>
    %941 = tpu.concatenate %940, %849 in 1 : vector<8x32xf32>, vector<8x32xf32> -> vector<8x64xf32>
    %c0_356 = arith.constant 0 : index
    %c0_357 = arith.constant 0 : index
    %942 = vector.load %arg26[%c0_356, %c0_357] : memref<64x128xf32, #tpu.memory_space<vmem>>, vector<64x128xf32>
    %cst_358 = arith.constant dense<0.000000e+00> : vector<8x128xf32>
    %943 = tpu.matmul %941, %942, %cst_358 {dimension_numbers = #tpu.dot_dimension_numbers<[1], [0], [0], [1], [0, 0, 1, 1], [], []>} : vector<8x64xf32>, vector<64x128xf32>, vector<8x128xf32> -> vector<8x128xf32>
    %c0_359 = arith.constant 0 : index
    %c0_360 = arith.constant 0 : index
    %944 = vector.load %arg27[%c0_359, %c0_360] : memref<1x128xf32, #tpu.memory_space<vmem>>, vector<1x128xf32>
    %945 = vector.broadcast %944 : vector<1x128xf32> to vector<8x128xf32>
    %946 = arith.addf %943, %945 : vector<8x128xf32>
    %947 = arith.negf %946 : vector<8x128xf32>
    %948 = math.exp %947 : vector<8x128xf32>
    %cst_361 = arith.constant 1.000000e+00 : f32
    %949 = vector.broadcast %cst_361 : f32 to vector<8x128xf32>
    %950 = arith.addf %949, %948 : vector<8x128xf32>
    %951 = arith.divf %949, %950 : vector<8x128xf32>
    %952 = vector.extract_strided_slice %951 {offsets = [0, 0], sizes = [8, 32], strides = [1, 1]} : vector<8x128xf32> to vector<8x32xf32>
    %953 = vector.extract_strided_slice %951 {offsets = [0, 32], sizes = [8, 32], strides = [1, 1]} : vector<8x128xf32> to vector<8x32xf32>
    %954 = vector.extract_strided_slice %951 {offsets = [0, 96], sizes = [8, 32], strides = [1, 1]} : vector<8x128xf32> to vector<8x32xf32>
    %955 = vector.extract_strided_slice %946 {offsets = [0, 64], sizes = [8, 32], strides = [1, 1]} : vector<8x128xf32> to vector<8x32xf32>
    %956 = math.tanh %955 : vector<8x32xf32>
    %957 = arith.mulf %953, %847 : vector<8x32xf32>
    %958 = arith.mulf %952, %956 : vector<8x32xf32>
    %959 = arith.addf %957, %958 : vector<8x32xf32>
    %960 = math.tanh %959 : vector<8x32xf32>
    %961 = arith.mulf %954, %960 : vector<8x32xf32>
    %c8_i32_362 = arith.constant 8 : i32
    %962 = arith.muli %915, %c8_i32_362 : i32
    %963 = tpu.assume_multiple %962, 8 : i32
    %964 = arith.index_cast %963 : i32 to index
    %c0_363 = arith.constant 0 : index
    %965 = vector.load %arg36[%964, %c0_363] : memref<64x32xf32, #tpu.memory_space<vmem>>, vector<8x32xf32>
    tpu.vector_store %arg36[%964, %c0_363], %961 {strides = array<i32>} : memref<64x32xf32, #tpu.memory_space<vmem>>, vector<8x32xf32>,
    %c5_i32_364 = arith.constant 5 : i32
    %c8_i32_365 = arith.constant 8 : i32
    %966 = arith.muli %c5_i32_364, %c8_i32_365 : i32
    %967 = tpu.assume_multiple %966, 8 : i32
    %968 = arith.index_cast %967 : i32 to index
    %c0_366 = arith.constant 0 : index
    %969 = vector.load %arg33[%968, %c0_366] : memref<64x128xf32, #tpu.memory_space<vmem>>, vector<8x128xf32>
    %c0_367 = arith.constant 0 : index
    %c0_368 = arith.constant 0 : index
    %970 = vector.load %arg9[%c0_367, %c0_368] : memref<32x128xf32, #tpu.memory_space<vmem>>, vector<32x128xf32>
    %cst_369 = arith.constant dense<0.000000e+00> : vector<8x128xf32>
    %971 = tpu.matmul %875, %970, %cst_369 {dimension_numbers = #tpu.dot_dimension_numbers<[1], [0], [0], [1], [0, 0, 1, 1], [], []>} : vector<8x32xf32>, vector<32x128xf32>, vector<8x128xf32> -> vector<8x128xf32>
    %972 = arith.addf %969, %971 : vector<8x128xf32>
    %973 = arith.negf %972 : vector<8x128xf32>
    %974 = math.exp %973 : vector<8x128xf32>
    %cst_370 = arith.constant 1.000000e+00 : f32
    %975 = vector.broadcast %cst_370 : f32 to vector<8x128xf32>
    %976 = arith.addf %975, %974 : vector<8x128xf32>
    %977 = arith.divf %975, %976 : vector<8x128xf32>
    %978 = vector.extract_strided_slice %977 {offsets = [0, 0], sizes = [8, 32], strides = [1, 1]} : vector<8x128xf32> to vector<8x32xf32>
    %979 = vector.extract_strided_slice %977 {offsets = [0, 32], sizes = [8, 32], strides = [1, 1]} : vector<8x128xf32> to vector<8x32xf32>
    %980 = vector.extract_strided_slice %977 {offsets = [0, 96], sizes = [8, 32], strides = [1, 1]} : vector<8x128xf32> to vector<8x32xf32>
    %981 = vector.extract_strided_slice %972 {offsets = [0, 64], sizes = [8, 32], strides = [1, 1]} : vector<8x128xf32> to vector<8x32xf32>
    %982 = math.tanh %981 : vector<8x32xf32>
    %983 = arith.mulf %979, %873 : vector<8x32xf32>
    %984 = arith.mulf %978, %982 : vector<8x32xf32>
    %985 = arith.addf %983, %984 : vector<8x32xf32>
    %986 = math.tanh %985 : vector<8x32xf32>
    %987 = arith.mulf %980, %986 : vector<8x32xf32>
    %988 = tpu.concatenate %987, %896 in 1 : vector<8x32xf32>, vector<8x32xf32> -> vector<8x64xf32>
    %c0_371 = arith.constant 0 : index
    %c0_372 = arith.constant 0 : index
    %989 = vector.load %arg11[%c0_371, %c0_372] : memref<64x128xf32, #tpu.memory_space<vmem>>, vector<64x128xf32>
    %cst_373 = arith.constant dense<0.000000e+00> : vector<8x128xf32>
    %990 = tpu.matmul %988, %989, %cst_373 {dimension_numbers = #tpu.dot_dimension_numbers<[1], [0], [0], [1], [0, 0, 1, 1], [], []>} : vector<8x64xf32>, vector<64x128xf32>, vector<8x128xf32> -> vector<8x128xf32>
    %c0_374 = arith.constant 0 : index
    %c0_375 = arith.constant 0 : index
    %991 = vector.load %arg12[%c0_374, %c0_375] : memref<1x128xf32, #tpu.memory_space<vmem>>, vector<1x128xf32>
    %992 = vector.broadcast %991 : vector<1x128xf32> to vector<8x128xf32>
    %993 = arith.addf %990, %992 : vector<8x128xf32>
    %994 = arith.negf %993 : vector<8x128xf32>
    %995 = math.exp %994 : vector<8x128xf32>
    %cst_376 = arith.constant 1.000000e+00 : f32
    %996 = vector.broadcast %cst_376 : f32 to vector<8x128xf32>
    %997 = arith.addf %996, %995 : vector<8x128xf32>
    %998 = arith.divf %996, %997 : vector<8x128xf32>
    %999 = vector.extract_strided_slice %998 {offsets = [0, 0], sizes = [8, 32], strides = [1, 1]} : vector<8x128xf32> to vector<8x32xf32>
    %1000 = vector.extract_strided_slice %998 {offsets = [0, 32], sizes = [8, 32], strides = [1, 1]} : vector<8x128xf32> to vector<8x32xf32>
    %1001 = vector.extract_strided_slice %998 {offsets = [0, 96], sizes = [8, 32], strides = [1, 1]} : vector<8x128xf32> to vector<8x32xf32>
    %1002 = vector.extract_strided_slice %993 {offsets = [0, 64], sizes = [8, 32], strides = [1, 1]} : vector<8x128xf32> to vector<8x32xf32>
    %1003 = math.tanh %1002 : vector<8x32xf32>
    %1004 = arith.mulf %1000, %894 : vector<8x32xf32>
    %1005 = arith.mulf %999, %1003 : vector<8x32xf32>
    %1006 = arith.addf %1004, %1005 : vector<8x32xf32>
    %1007 = math.tanh %1006 : vector<8x32xf32>
    %1008 = arith.mulf %1001, %1007 : vector<8x32xf32>
    %c0_377 = arith.constant 0 : index
    %c0_378 = arith.constant 0 : index
    %1009 = vector.load %arg13[%c0_377, %c0_378] : memref<32x2xf32, #tpu.memory_space<vmem>>, vector<32x2xf32>
    %cst_379 = arith.constant dense<0.000000e+00> : vector<8x2xf32>
    %1010 = tpu.matmul %1008, %1009, %cst_379 {dimension_numbers = #tpu.dot_dimension_numbers<[1], [0], [0], [1], [0, 0, 1, 1], [], []>} : vector<8x32xf32>, vector<32x2xf32>, vector<8x2xf32> -> vector<8x2xf32>
    %c0_380 = arith.constant 0 : index
    %c0_381 = arith.constant 0 : index
    %1011 = vector.load %arg14[%c0_380, %c0_381] : memref<1x2xf32, #tpu.memory_space<vmem>>, vector<1x2xf32>
    %1012 = vector.broadcast %1011 : vector<1x2xf32> to vector<8x2xf32>
    %1013 = arith.addf %1010, %1012 : vector<8x2xf32>
    %c8_i32_382 = arith.constant 8 : i32
    %1014 = arith.muli %c5_i32_364, %c8_i32_382 : i32
    %1015 = tpu.assume_multiple %1014, 8 : i32
    %1016 = arith.index_cast %1015 : i32 to index
    %c0_383 = arith.constant 0 : index
    %1017 = vector.load %arg2[%1016, %c0_383] : memref<64x4xf32, #tpu.memory_space<vmem>>, vector<8x4xf32>
    %c0_384 = arith.constant 0 : index
    %c0_385 = arith.constant 0 : index
    %1018 = vector.load %arg15[%c0_384, %c0_385] : memref<4x4xf32, #tpu.memory_space<vmem>>, vector<4x4xf32>
    %cst_386 = arith.constant dense<0.000000e+00> : vector<8x4xf32>
    %1019 = tpu.matmul %1017, %1018, %cst_386 {dimension_numbers = #tpu.dot_dimension_numbers<[1], [0], [0], [1], [0, 0, 1, 1], [], []>} : vector<8x4xf32>, vector<4x4xf32>, vector<8x4xf32> -> vector<8x4xf32>
    %c0_387 = arith.constant 0 : index
    %c0_388 = arith.constant 0 : index
    %1020 = vector.load %arg16[%c0_387, %c0_388] : memref<2x4xf32, #tpu.memory_space<vmem>>, vector<2x4xf32>
    %cst_389 = arith.constant dense<0.000000e+00> : vector<8x4xf32>
    %1021 = tpu.matmul %1013, %1020, %cst_389 {dimension_numbers = #tpu.dot_dimension_numbers<[1], [0], [0], [1], [0, 0, 1, 1], [], []>} : vector<8x2xf32>, vector<2x4xf32>, vector<8x4xf32> -> vector<8x4xf32>
    %1022 = arith.addf %1019, %1021 : vector<8x4xf32>
    %c8_i32_390 = arith.constant 8 : i32
    %1023 = arith.muli %c5_i32_364, %c8_i32_390 : i32
    %1024 = tpu.assume_multiple %1023, 8 : i32
    %1025 = arith.index_cast %1024 : i32 to index
    %c0_391 = arith.constant 0 : index
    %1026 = vector.load %arg35[%1025, %c0_391] : memref<64x4xf32, #tpu.memory_space<vmem>>, vector<8x4xf32>
    tpu.vector_store %arg35[%1025, %c0_391], %1022 {strides = array<i32>} : memref<64x4xf32, #tpu.memory_space<vmem>>, vector<8x4xf32>,
    %c1_i32_392 = arith.constant 1 : i32
    %1027 = arith.subi %c5_i32_364, %c1_i32_392 : i32
    %c8_i32_393 = arith.constant 8 : i32
    %1028 = arith.muli %1027, %c8_i32_393 : i32
    %1029 = tpu.assume_multiple %1028, 8 : i32
    %1030 = arith.index_cast %1029 : i32 to index
    %c0_394 = arith.constant 0 : index
    %1031 = vector.load %arg34[%1030, %c0_394] : memref<64x128xf32, #tpu.memory_space<vmem>>, vector<8x128xf32>
    %c0_395 = arith.constant 0 : index
    %c0_396 = arith.constant 0 : index
    %1032 = vector.load %arg23[%c0_395, %c0_396] : memref<4x128xf32, #tpu.memory_space<vmem>>, vector<4x128xf32>
    %cst_397 = arith.constant dense<0.000000e+00> : vector<8x128xf32>
    %1033 = tpu.matmul %910, %1032, %cst_397 {dimension_numbers = #tpu.dot_dimension_numbers<[1], [0], [0], [1], [0, 0, 1, 1], [], []>} : vector<8x4xf32>, vector<4x128xf32>, vector<8x128xf32> -> vector<8x128xf32>
    %1034 = arith.addf %1031, %1033 : vector<8x128xf32>
    %c0_398 = arith.constant 0 : index
    %c0_399 = arith.constant 0 : index
    %1035 = vector.load %arg24[%c0_398, %c0_399] : memref<32x128xf32, #tpu.memory_space<vmem>>, vector<32x128xf32>
    %cst_400 = arith.constant dense<0.000000e+00> : vector<8x128xf32>
    %1036 = tpu.matmul %940, %1035, %cst_400 {dimension_numbers = #tpu.dot_dimension_numbers<[1], [0], [0], [1], [0, 0, 1, 1], [], []>} : vector<8x32xf32>, vector<32x128xf32>, vector<8x128xf32> -> vector<8x128xf32>
    %1037 = arith.addf %1034, %1036 : vector<8x128xf32>
    %1038 = arith.negf %1037 : vector<8x128xf32>
    %1039 = math.exp %1038 : vector<8x128xf32>
    %cst_401 = arith.constant 1.000000e+00 : f32
    %1040 = vector.broadcast %cst_401 : f32 to vector<8x128xf32>
    %1041 = arith.addf %1040, %1039 : vector<8x128xf32>
    %1042 = arith.divf %1040, %1041 : vector<8x128xf32>
    %1043 = vector.extract_strided_slice %1042 {offsets = [0, 0], sizes = [8, 32], strides = [1, 1]} : vector<8x128xf32> to vector<8x32xf32>
    %1044 = vector.extract_strided_slice %1042 {offsets = [0, 32], sizes = [8, 32], strides = [1, 1]} : vector<8x128xf32> to vector<8x32xf32>
    %1045 = vector.extract_strided_slice %1042 {offsets = [0, 96], sizes = [8, 32], strides = [1, 1]} : vector<8x128xf32> to vector<8x32xf32>
    %1046 = vector.extract_strided_slice %1037 {offsets = [0, 64], sizes = [8, 32], strides = [1, 1]} : vector<8x128xf32> to vector<8x32xf32>
    %1047 = math.tanh %1046 : vector<8x32xf32>
    %1048 = arith.mulf %1044, %938 : vector<8x32xf32>
    %1049 = arith.mulf %1043, %1047 : vector<8x32xf32>
    %1050 = arith.addf %1048, %1049 : vector<8x32xf32>
    %1051 = math.tanh %1050 : vector<8x32xf32>
    %1052 = arith.mulf %1045, %1051 : vector<8x32xf32>
    %1053 = tpu.concatenate %1052, %961 in 1 : vector<8x32xf32>, vector<8x32xf32> -> vector<8x64xf32>
    %c0_402 = arith.constant 0 : index
    %c0_403 = arith.constant 0 : index
    %1054 = vector.load %arg26[%c0_402, %c0_403] : memref<64x128xf32, #tpu.memory_space<vmem>>, vector<64x128xf32>
    %cst_404 = arith.constant dense<0.000000e+00> : vector<8x128xf32>
    %1055 = tpu.matmul %1053, %1054, %cst_404 {dimension_numbers = #tpu.dot_dimension_numbers<[1], [0], [0], [1], [0, 0, 1, 1], [], []>} : vector<8x64xf32>, vector<64x128xf32>, vector<8x128xf32> -> vector<8x128xf32>
    %c0_405 = arith.constant 0 : index
    %c0_406 = arith.constant 0 : index
    %1056 = vector.load %arg27[%c0_405, %c0_406] : memref<1x128xf32, #tpu.memory_space<vmem>>, vector<1x128xf32>
    %1057 = vector.broadcast %1056 : vector<1x128xf32> to vector<8x128xf32>
    %1058 = arith.addf %1055, %1057 : vector<8x128xf32>
    %1059 = arith.negf %1058 : vector<8x128xf32>
    %1060 = math.exp %1059 : vector<8x128xf32>
    %cst_407 = arith.constant 1.000000e+00 : f32
    %1061 = vector.broadcast %cst_407 : f32 to vector<8x128xf32>
    %1062 = arith.addf %1061, %1060 : vector<8x128xf32>
    %1063 = arith.divf %1061, %1062 : vector<8x128xf32>
    %1064 = vector.extract_strided_slice %1063 {offsets = [0, 0], sizes = [8, 32], strides = [1, 1]} : vector<8x128xf32> to vector<8x32xf32>
    %1065 = vector.extract_strided_slice %1063 {offsets = [0, 32], sizes = [8, 32], strides = [1, 1]} : vector<8x128xf32> to vector<8x32xf32>
    %1066 = vector.extract_strided_slice %1063 {offsets = [0, 96], sizes = [8, 32], strides = [1, 1]} : vector<8x128xf32> to vector<8x32xf32>
    %1067 = vector.extract_strided_slice %1058 {offsets = [0, 64], sizes = [8, 32], strides = [1, 1]} : vector<8x128xf32> to vector<8x32xf32>
    %1068 = math.tanh %1067 : vector<8x32xf32>
    %1069 = arith.mulf %1065, %959 : vector<8x32xf32>
    %1070 = arith.mulf %1064, %1068 : vector<8x32xf32>
    %1071 = arith.addf %1069, %1070 : vector<8x32xf32>
    %1072 = math.tanh %1071 : vector<8x32xf32>
    %1073 = arith.mulf %1066, %1072 : vector<8x32xf32>
    %c8_i32_408 = arith.constant 8 : i32
    %1074 = arith.muli %1027, %c8_i32_408 : i32
    %1075 = tpu.assume_multiple %1074, 8 : i32
    %1076 = arith.index_cast %1075 : i32 to index
    %c0_409 = arith.constant 0 : index
    %1077 = vector.load %arg36[%1076, %c0_409] : memref<64x32xf32, #tpu.memory_space<vmem>>, vector<8x32xf32>
    tpu.vector_store %arg36[%1076, %c0_409], %1073 {strides = array<i32>} : memref<64x32xf32, #tpu.memory_space<vmem>>, vector<8x32xf32>,
    %c6_i32 = arith.constant 6 : i32
    %c8_i32_410 = arith.constant 8 : i32
    %1078 = arith.muli %c6_i32, %c8_i32_410 : i32
    %1079 = tpu.assume_multiple %1078, 8 : i32
    %1080 = arith.index_cast %1079 : i32 to index
    %c0_411 = arith.constant 0 : index
    %1081 = vector.load %arg33[%1080, %c0_411] : memref<64x128xf32, #tpu.memory_space<vmem>>, vector<8x128xf32>
    %c0_412 = arith.constant 0 : index
    %c0_413 = arith.constant 0 : index
    %1082 = vector.load %arg9[%c0_412, %c0_413] : memref<32x128xf32, #tpu.memory_space<vmem>>, vector<32x128xf32>
    %cst_414 = arith.constant dense<0.000000e+00> : vector<8x128xf32>
    %1083 = tpu.matmul %987, %1082, %cst_414 {dimension_numbers = #tpu.dot_dimension_numbers<[1], [0], [0], [1], [0, 0, 1, 1], [], []>} : vector<8x32xf32>, vector<32x128xf32>, vector<8x128xf32> -> vector<8x128xf32>
    %1084 = arith.addf %1081, %1083 : vector<8x128xf32>
    %1085 = arith.negf %1084 : vector<8x128xf32>
    %1086 = math.exp %1085 : vector<8x128xf32>
    %cst_415 = arith.constant 1.000000e+00 : f32
    %1087 = vector.broadcast %cst_415 : f32 to vector<8x128xf32>
    %1088 = arith.addf %1087, %1086 : vector<8x128xf32>
    %1089 = arith.divf %1087, %1088 : vector<8x128xf32>
    %1090 = vector.extract_strided_slice %1089 {offsets = [0, 0], sizes = [8, 32], strides = [1, 1]} : vector<8x128xf32> to vector<8x32xf32>
    %1091 = vector.extract_strided_slice %1089 {offsets = [0, 32], sizes = [8, 32], strides = [1, 1]} : vector<8x128xf32> to vector<8x32xf32>
    %1092 = vector.extract_strided_slice %1089 {offsets = [0, 96], sizes = [8, 32], strides = [1, 1]} : vector<8x128xf32> to vector<8x32xf32>
    %1093 = vector.extract_strided_slice %1084 {offsets = [0, 64], sizes = [8, 32], strides = [1, 1]} : vector<8x128xf32> to vector<8x32xf32>
    %1094 = math.tanh %1093 : vector<8x32xf32>
    %1095 = arith.mulf %1091, %985 : vector<8x32xf32>
    %1096 = arith.mulf %1090, %1094 : vector<8x32xf32>
    %1097 = arith.addf %1095, %1096 : vector<8x32xf32>
    %1098 = math.tanh %1097 : vector<8x32xf32>
    %1099 = arith.mulf %1092, %1098 : vector<8x32xf32>
    %1100 = tpu.concatenate %1099, %1008 in 1 : vector<8x32xf32>, vector<8x32xf32> -> vector<8x64xf32>
    %c0_416 = arith.constant 0 : index
    %c0_417 = arith.constant 0 : index
    %1101 = vector.load %arg11[%c0_416, %c0_417] : memref<64x128xf32, #tpu.memory_space<vmem>>, vector<64x128xf32>
    %cst_418 = arith.constant dense<0.000000e+00> : vector<8x128xf32>
    %1102 = tpu.matmul %1100, %1101, %cst_418 {dimension_numbers = #tpu.dot_dimension_numbers<[1], [0], [0], [1], [0, 0, 1, 1], [], []>} : vector<8x64xf32>, vector<64x128xf32>, vector<8x128xf32> -> vector<8x128xf32>
    %c0_419 = arith.constant 0 : index
    %c0_420 = arith.constant 0 : index
    %1103 = vector.load %arg12[%c0_419, %c0_420] : memref<1x128xf32, #tpu.memory_space<vmem>>, vector<1x128xf32>
    %1104 = vector.broadcast %1103 : vector<1x128xf32> to vector<8x128xf32>
    %1105 = arith.addf %1102, %1104 : vector<8x128xf32>
    %1106 = arith.negf %1105 : vector<8x128xf32>
    %1107 = math.exp %1106 : vector<8x128xf32>
    %cst_421 = arith.constant 1.000000e+00 : f32
    %1108 = vector.broadcast %cst_421 : f32 to vector<8x128xf32>
    %1109 = arith.addf %1108, %1107 : vector<8x128xf32>
    %1110 = arith.divf %1108, %1109 : vector<8x128xf32>
    %1111 = vector.extract_strided_slice %1110 {offsets = [0, 0], sizes = [8, 32], strides = [1, 1]} : vector<8x128xf32> to vector<8x32xf32>
    %1112 = vector.extract_strided_slice %1110 {offsets = [0, 32], sizes = [8, 32], strides = [1, 1]} : vector<8x128xf32> to vector<8x32xf32>
    %1113 = vector.extract_strided_slice %1110 {offsets = [0, 96], sizes = [8, 32], strides = [1, 1]} : vector<8x128xf32> to vector<8x32xf32>
    %1114 = vector.extract_strided_slice %1105 {offsets = [0, 64], sizes = [8, 32], strides = [1, 1]} : vector<8x128xf32> to vector<8x32xf32>
    %1115 = math.tanh %1114 : vector<8x32xf32>
    %1116 = arith.mulf %1112, %1006 : vector<8x32xf32>
    %1117 = arith.mulf %1111, %1115 : vector<8x32xf32>
    %1118 = arith.addf %1116, %1117 : vector<8x32xf32>
    %1119 = math.tanh %1118 : vector<8x32xf32>
    %1120 = arith.mulf %1113, %1119 : vector<8x32xf32>
    %c0_422 = arith.constant 0 : index
    %c0_423 = arith.constant 0 : index
    %1121 = vector.load %arg13[%c0_422, %c0_423] : memref<32x2xf32, #tpu.memory_space<vmem>>, vector<32x2xf32>
    %cst_424 = arith.constant dense<0.000000e+00> : vector<8x2xf32>
    %1122 = tpu.matmul %1120, %1121, %cst_424 {dimension_numbers = #tpu.dot_dimension_numbers<[1], [0], [0], [1], [0, 0, 1, 1], [], []>} : vector<8x32xf32>, vector<32x2xf32>, vector<8x2xf32> -> vector<8x2xf32>
    %c0_425 = arith.constant 0 : index
    %c0_426 = arith.constant 0 : index
    %1123 = vector.load %arg14[%c0_425, %c0_426] : memref<1x2xf32, #tpu.memory_space<vmem>>, vector<1x2xf32>
    %1124 = vector.broadcast %1123 : vector<1x2xf32> to vector<8x2xf32>
    %1125 = arith.addf %1122, %1124 : vector<8x2xf32>
    %c8_i32_427 = arith.constant 8 : i32
    %1126 = arith.muli %c6_i32, %c8_i32_427 : i32
    %1127 = tpu.assume_multiple %1126, 8 : i32
    %1128 = arith.index_cast %1127 : i32 to index
    %c0_428 = arith.constant 0 : index
    %1129 = vector.load %arg2[%1128, %c0_428] : memref<64x4xf32, #tpu.memory_space<vmem>>, vector<8x4xf32>
    %c0_429 = arith.constant 0 : index
    %c0_430 = arith.constant 0 : index
    %1130 = vector.load %arg15[%c0_429, %c0_430] : memref<4x4xf32, #tpu.memory_space<vmem>>, vector<4x4xf32>
    %cst_431 = arith.constant dense<0.000000e+00> : vector<8x4xf32>
    %1131 = tpu.matmul %1129, %1130, %cst_431 {dimension_numbers = #tpu.dot_dimension_numbers<[1], [0], [0], [1], [0, 0, 1, 1], [], []>} : vector<8x4xf32>, vector<4x4xf32>, vector<8x4xf32> -> vector<8x4xf32>
    %c0_432 = arith.constant 0 : index
    %c0_433 = arith.constant 0 : index
    %1132 = vector.load %arg16[%c0_432, %c0_433] : memref<2x4xf32, #tpu.memory_space<vmem>>, vector<2x4xf32>
    %cst_434 = arith.constant dense<0.000000e+00> : vector<8x4xf32>
    %1133 = tpu.matmul %1125, %1132, %cst_434 {dimension_numbers = #tpu.dot_dimension_numbers<[1], [0], [0], [1], [0, 0, 1, 1], [], []>} : vector<8x2xf32>, vector<2x4xf32>, vector<8x4xf32> -> vector<8x4xf32>
    %1134 = arith.addf %1131, %1133 : vector<8x4xf32>
    %c8_i32_435 = arith.constant 8 : i32
    %1135 = arith.muli %c6_i32, %c8_i32_435 : i32
    %1136 = tpu.assume_multiple %1135, 8 : i32
    %1137 = arith.index_cast %1136 : i32 to index
    %c0_436 = arith.constant 0 : index
    %1138 = vector.load %arg35[%1137, %c0_436] : memref<64x4xf32, #tpu.memory_space<vmem>>, vector<8x4xf32>
    tpu.vector_store %arg35[%1137, %c0_436], %1134 {strides = array<i32>} : memref<64x4xf32, #tpu.memory_space<vmem>>, vector<8x4xf32>,
    %c1_i32_437 = arith.constant 1 : i32
    %1139 = arith.subi %c6_i32, %c1_i32_437 : i32
    %c8_i32_438 = arith.constant 8 : i32
    %1140 = arith.muli %1139, %c8_i32_438 : i32
    %1141 = tpu.assume_multiple %1140, 8 : i32
    %1142 = arith.index_cast %1141 : i32 to index
    %c0_439 = arith.constant 0 : index
    %1143 = vector.load %arg34[%1142, %c0_439] : memref<64x128xf32, #tpu.memory_space<vmem>>, vector<8x128xf32>
    %c0_440 = arith.constant 0 : index
    %c0_441 = arith.constant 0 : index
    %1144 = vector.load %arg23[%c0_440, %c0_441] : memref<4x128xf32, #tpu.memory_space<vmem>>, vector<4x128xf32>
    %cst_442 = arith.constant dense<0.000000e+00> : vector<8x128xf32>
    %1145 = tpu.matmul %1022, %1144, %cst_442 {dimension_numbers = #tpu.dot_dimension_numbers<[1], [0], [0], [1], [0, 0, 1, 1], [], []>} : vector<8x4xf32>, vector<4x128xf32>, vector<8x128xf32> -> vector<8x128xf32>
    %1146 = arith.addf %1143, %1145 : vector<8x128xf32>
    %c0_443 = arith.constant 0 : index
    %c0_444 = arith.constant 0 : index
    %1147 = vector.load %arg24[%c0_443, %c0_444] : memref<32x128xf32, #tpu.memory_space<vmem>>, vector<32x128xf32>
    %cst_445 = arith.constant dense<0.000000e+00> : vector<8x128xf32>
    %1148 = tpu.matmul %1052, %1147, %cst_445 {dimension_numbers = #tpu.dot_dimension_numbers<[1], [0], [0], [1], [0, 0, 1, 1], [], []>} : vector<8x32xf32>, vector<32x128xf32>, vector<8x128xf32> -> vector<8x128xf32>
    %1149 = arith.addf %1146, %1148 : vector<8x128xf32>
    %1150 = arith.negf %1149 : vector<8x128xf32>
    %1151 = math.exp %1150 : vector<8x128xf32>
    %cst_446 = arith.constant 1.000000e+00 : f32
    %1152 = vector.broadcast %cst_446 : f32 to vector<8x128xf32>
    %1153 = arith.addf %1152, %1151 : vector<8x128xf32>
    %1154 = arith.divf %1152, %1153 : vector<8x128xf32>
    %1155 = vector.extract_strided_slice %1154 {offsets = [0, 0], sizes = [8, 32], strides = [1, 1]} : vector<8x128xf32> to vector<8x32xf32>
    %1156 = vector.extract_strided_slice %1154 {offsets = [0, 32], sizes = [8, 32], strides = [1, 1]} : vector<8x128xf32> to vector<8x32xf32>
    %1157 = vector.extract_strided_slice %1154 {offsets = [0, 96], sizes = [8, 32], strides = [1, 1]} : vector<8x128xf32> to vector<8x32xf32>
    %1158 = vector.extract_strided_slice %1149 {offsets = [0, 64], sizes = [8, 32], strides = [1, 1]} : vector<8x128xf32> to vector<8x32xf32>
    %1159 = math.tanh %1158 : vector<8x32xf32>
    %1160 = arith.mulf %1156, %1050 : vector<8x32xf32>
    %1161 = arith.mulf %1155, %1159 : vector<8x32xf32>
    %1162 = arith.addf %1160, %1161 : vector<8x32xf32>
    %1163 = math.tanh %1162 : vector<8x32xf32>
    %1164 = arith.mulf %1157, %1163 : vector<8x32xf32>
    %1165 = tpu.concatenate %1164, %1073 in 1 : vector<8x32xf32>, vector<8x32xf32> -> vector<8x64xf32>
    %c0_447 = arith.constant 0 : index
    %c0_448 = arith.constant 0 : index
    %1166 = vector.load %arg26[%c0_447, %c0_448] : memref<64x128xf32, #tpu.memory_space<vmem>>, vector<64x128xf32>
    %cst_449 = arith.constant dense<0.000000e+00> : vector<8x128xf32>
    %1167 = tpu.matmul %1165, %1166, %cst_449 {dimension_numbers = #tpu.dot_dimension_numbers<[1], [0], [0], [1], [0, 0, 1, 1], [], []>} : vector<8x64xf32>, vector<64x128xf32>, vector<8x128xf32> -> vector<8x128xf32>
    %c0_450 = arith.constant 0 : index
    %c0_451 = arith.constant 0 : index
    %1168 = vector.load %arg27[%c0_450, %c0_451] : memref<1x128xf32, #tpu.memory_space<vmem>>, vector<1x128xf32>
    %1169 = vector.broadcast %1168 : vector<1x128xf32> to vector<8x128xf32>
    %1170 = arith.addf %1167, %1169 : vector<8x128xf32>
    %1171 = arith.negf %1170 : vector<8x128xf32>
    %1172 = math.exp %1171 : vector<8x128xf32>
    %cst_452 = arith.constant 1.000000e+00 : f32
    %1173 = vector.broadcast %cst_452 : f32 to vector<8x128xf32>
    %1174 = arith.addf %1173, %1172 : vector<8x128xf32>
    %1175 = arith.divf %1173, %1174 : vector<8x128xf32>
    %1176 = vector.extract_strided_slice %1175 {offsets = [0, 0], sizes = [8, 32], strides = [1, 1]} : vector<8x128xf32> to vector<8x32xf32>
    %1177 = vector.extract_strided_slice %1175 {offsets = [0, 32], sizes = [8, 32], strides = [1, 1]} : vector<8x128xf32> to vector<8x32xf32>
    %1178 = vector.extract_strided_slice %1175 {offsets = [0, 96], sizes = [8, 32], strides = [1, 1]} : vector<8x128xf32> to vector<8x32xf32>
    %1179 = vector.extract_strided_slice %1170 {offsets = [0, 64], sizes = [8, 32], strides = [1, 1]} : vector<8x128xf32> to vector<8x32xf32>
    %1180 = math.tanh %1179 : vector<8x32xf32>
    %1181 = arith.mulf %1177, %1071 : vector<8x32xf32>
    %1182 = arith.mulf %1176, %1180 : vector<8x32xf32>
    %1183 = arith.addf %1181, %1182 : vector<8x32xf32>
    %1184 = math.tanh %1183 : vector<8x32xf32>
    %1185 = arith.mulf %1178, %1184 : vector<8x32xf32>
    %c8_i32_453 = arith.constant 8 : i32
    %1186 = arith.muli %1139, %c8_i32_453 : i32
    %1187 = tpu.assume_multiple %1186, 8 : i32
    %1188 = arith.index_cast %1187 : i32 to index
    %c0_454 = arith.constant 0 : index
    %1189 = vector.load %arg36[%1188, %c0_454] : memref<64x32xf32, #tpu.memory_space<vmem>>, vector<8x32xf32>
    tpu.vector_store %arg36[%1188, %c0_454], %1185 {strides = array<i32>} : memref<64x32xf32, #tpu.memory_space<vmem>>, vector<8x32xf32>,
    %c7_i32 = arith.constant 7 : i32
    %c8_i32_455 = arith.constant 8 : i32
    %1190 = arith.muli %c7_i32, %c8_i32_455 : i32
    %1191 = tpu.assume_multiple %1190, 8 : i32
    %1192 = arith.index_cast %1191 : i32 to index
    %c0_456 = arith.constant 0 : index
    %1193 = vector.load %arg33[%1192, %c0_456] : memref<64x128xf32, #tpu.memory_space<vmem>>, vector<8x128xf32>
    %c0_457 = arith.constant 0 : index
    %c0_458 = arith.constant 0 : index
    %1194 = vector.load %arg9[%c0_457, %c0_458] : memref<32x128xf32, #tpu.memory_space<vmem>>, vector<32x128xf32>
    %cst_459 = arith.constant dense<0.000000e+00> : vector<8x128xf32>
    %1195 = tpu.matmul %1099, %1194, %cst_459 {dimension_numbers = #tpu.dot_dimension_numbers<[1], [0], [0], [1], [0, 0, 1, 1], [], []>} : vector<8x32xf32>, vector<32x128xf32>, vector<8x128xf32> -> vector<8x128xf32>
    %1196 = arith.addf %1193, %1195 : vector<8x128xf32>
    %1197 = arith.negf %1196 : vector<8x128xf32>
    %1198 = math.exp %1197 : vector<8x128xf32>
    %cst_460 = arith.constant 1.000000e+00 : f32
    %1199 = vector.broadcast %cst_460 : f32 to vector<8x128xf32>
    %1200 = arith.addf %1199, %1198 : vector<8x128xf32>
    %1201 = arith.divf %1199, %1200 : vector<8x128xf32>
    %1202 = vector.extract_strided_slice %1201 {offsets = [0, 0], sizes = [8, 32], strides = [1, 1]} : vector<8x128xf32> to vector<8x32xf32>
    %1203 = vector.extract_strided_slice %1201 {offsets = [0, 32], sizes = [8, 32], strides = [1, 1]} : vector<8x128xf32> to vector<8x32xf32>
    %1204 = vector.extract_strided_slice %1201 {offsets = [0, 96], sizes = [8, 32], strides = [1, 1]} : vector<8x128xf32> to vector<8x32xf32>
    %1205 = vector.extract_strided_slice %1196 {offsets = [0, 64], sizes = [8, 32], strides = [1, 1]} : vector<8x128xf32> to vector<8x32xf32>
    %1206 = math.tanh %1205 : vector<8x32xf32>
    %1207 = arith.mulf %1203, %1097 : vector<8x32xf32>
    %1208 = arith.mulf %1202, %1206 : vector<8x32xf32>
    %1209 = arith.addf %1207, %1208 : vector<8x32xf32>
    %1210 = math.tanh %1209 : vector<8x32xf32>
    %1211 = arith.mulf %1204, %1210 : vector<8x32xf32>
    %1212 = tpu.concatenate %1211, %1120 in 1 : vector<8x32xf32>, vector<8x32xf32> -> vector<8x64xf32>
    %c0_461 = arith.constant 0 : index
    %c0_462 = arith.constant 0 : index
    %1213 = vector.load %arg11[%c0_461, %c0_462] : memref<64x128xf32, #tpu.memory_space<vmem>>, vector<64x128xf32>
    %cst_463 = arith.constant dense<0.000000e+00> : vector<8x128xf32>
    %1214 = tpu.matmul %1212, %1213, %cst_463 {dimension_numbers = #tpu.dot_dimension_numbers<[1], [0], [0], [1], [0, 0, 1, 1], [], []>} : vector<8x64xf32>, vector<64x128xf32>, vector<8x128xf32> -> vector<8x128xf32>
    %c0_464 = arith.constant 0 : index
    %c0_465 = arith.constant 0 : index
    %1215 = vector.load %arg12[%c0_464, %c0_465] : memref<1x128xf32, #tpu.memory_space<vmem>>, vector<1x128xf32>
    %1216 = vector.broadcast %1215 : vector<1x128xf32> to vector<8x128xf32>
    %1217 = arith.addf %1214, %1216 : vector<8x128xf32>
    %1218 = arith.negf %1217 : vector<8x128xf32>
    %1219 = math.exp %1218 : vector<8x128xf32>
    %cst_466 = arith.constant 1.000000e+00 : f32
    %1220 = vector.broadcast %cst_466 : f32 to vector<8x128xf32>
    %1221 = arith.addf %1220, %1219 : vector<8x128xf32>
    %1222 = arith.divf %1220, %1221 : vector<8x128xf32>
    %1223 = vector.extract_strided_slice %1222 {offsets = [0, 0], sizes = [8, 32], strides = [1, 1]} : vector<8x128xf32> to vector<8x32xf32>
    %1224 = vector.extract_strided_slice %1222 {offsets = [0, 32], sizes = [8, 32], strides = [1, 1]} : vector<8x128xf32> to vector<8x32xf32>
    %1225 = vector.extract_strided_slice %1222 {offsets = [0, 96], sizes = [8, 32], strides = [1, 1]} : vector<8x128xf32> to vector<8x32xf32>
    %1226 = vector.extract_strided_slice %1217 {offsets = [0, 64], sizes = [8, 32], strides = [1, 1]} : vector<8x128xf32> to vector<8x32xf32>
    %1227 = math.tanh %1226 : vector<8x32xf32>
    %1228 = arith.mulf %1224, %1118 : vector<8x32xf32>
    %1229 = arith.mulf %1223, %1227 : vector<8x32xf32>
    %1230 = arith.addf %1228, %1229 : vector<8x32xf32>
    %1231 = math.tanh %1230 : vector<8x32xf32>
    %1232 = arith.mulf %1225, %1231 : vector<8x32xf32>
    %c0_467 = arith.constant 0 : index
    %c0_468 = arith.constant 0 : index
    %1233 = vector.load %arg13[%c0_467, %c0_468] : memref<32x2xf32, #tpu.memory_space<vmem>>, vector<32x2xf32>
    %cst_469 = arith.constant dense<0.000000e+00> : vector<8x2xf32>
    %1234 = tpu.matmul %1232, %1233, %cst_469 {dimension_numbers = #tpu.dot_dimension_numbers<[1], [0], [0], [1], [0, 0, 1, 1], [], []>} : vector<8x32xf32>, vector<32x2xf32>, vector<8x2xf32> -> vector<8x2xf32>
    %c0_470 = arith.constant 0 : index
    %c0_471 = arith.constant 0 : index
    %1235 = vector.load %arg14[%c0_470, %c0_471] : memref<1x2xf32, #tpu.memory_space<vmem>>, vector<1x2xf32>
    %1236 = vector.broadcast %1235 : vector<1x2xf32> to vector<8x2xf32>
    %1237 = arith.addf %1234, %1236 : vector<8x2xf32>
    %c8_i32_472 = arith.constant 8 : i32
    %1238 = arith.muli %c7_i32, %c8_i32_472 : i32
    %1239 = tpu.assume_multiple %1238, 8 : i32
    %1240 = arith.index_cast %1239 : i32 to index
    %c0_473 = arith.constant 0 : index
    %1241 = vector.load %arg2[%1240, %c0_473] : memref<64x4xf32, #tpu.memory_space<vmem>>, vector<8x4xf32>
    %c0_474 = arith.constant 0 : index
    %c0_475 = arith.constant 0 : index
    %1242 = vector.load %arg15[%c0_474, %c0_475] : memref<4x4xf32, #tpu.memory_space<vmem>>, vector<4x4xf32>
    %cst_476 = arith.constant dense<0.000000e+00> : vector<8x4xf32>
    %1243 = tpu.matmul %1241, %1242, %cst_476 {dimension_numbers = #tpu.dot_dimension_numbers<[1], [0], [0], [1], [0, 0, 1, 1], [], []>} : vector<8x4xf32>, vector<4x4xf32>, vector<8x4xf32> -> vector<8x4xf32>
    %c0_477 = arith.constant 0 : index
    %c0_478 = arith.constant 0 : index
    %1244 = vector.load %arg16[%c0_477, %c0_478] : memref<2x4xf32, #tpu.memory_space<vmem>>, vector<2x4xf32>
    %cst_479 = arith.constant dense<0.000000e+00> : vector<8x4xf32>
    %1245 = tpu.matmul %1237, %1244, %cst_479 {dimension_numbers = #tpu.dot_dimension_numbers<[1], [0], [0], [1], [0, 0, 1, 1], [], []>} : vector<8x2xf32>, vector<2x4xf32>, vector<8x4xf32> -> vector<8x4xf32>
    %1246 = arith.addf %1243, %1245 : vector<8x4xf32>
    %c8_i32_480 = arith.constant 8 : i32
    %1247 = arith.muli %c7_i32, %c8_i32_480 : i32
    %1248 = tpu.assume_multiple %1247, 8 : i32
    %1249 = arith.index_cast %1248 : i32 to index
    %c0_481 = arith.constant 0 : index
    %1250 = vector.load %arg35[%1249, %c0_481] : memref<64x4xf32, #tpu.memory_space<vmem>>, vector<8x4xf32>
    tpu.vector_store %arg35[%1249, %c0_481], %1246 {strides = array<i32>} : memref<64x4xf32, #tpu.memory_space<vmem>>, vector<8x4xf32>,
    %c1_i32_482 = arith.constant 1 : i32
    %1251 = arith.subi %c7_i32, %c1_i32_482 : i32
    %c8_i32_483 = arith.constant 8 : i32
    %1252 = arith.muli %1251, %c8_i32_483 : i32
    %1253 = tpu.assume_multiple %1252, 8 : i32
    %1254 = arith.index_cast %1253 : i32 to index
    %c0_484 = arith.constant 0 : index
    %1255 = vector.load %arg34[%1254, %c0_484] : memref<64x128xf32, #tpu.memory_space<vmem>>, vector<8x128xf32>
    %c0_485 = arith.constant 0 : index
    %c0_486 = arith.constant 0 : index
    %1256 = vector.load %arg23[%c0_485, %c0_486] : memref<4x128xf32, #tpu.memory_space<vmem>>, vector<4x128xf32>
    %cst_487 = arith.constant dense<0.000000e+00> : vector<8x128xf32>
    %1257 = tpu.matmul %1134, %1256, %cst_487 {dimension_numbers = #tpu.dot_dimension_numbers<[1], [0], [0], [1], [0, 0, 1, 1], [], []>} : vector<8x4xf32>, vector<4x128xf32>, vector<8x128xf32> -> vector<8x128xf32>
    %1258 = arith.addf %1255, %1257 : vector<8x128xf32>
    %c0_488 = arith.constant 0 : index
    %c0_489 = arith.constant 0 : index
    %1259 = vector.load %arg24[%c0_488, %c0_489] : memref<32x128xf32, #tpu.memory_space<vmem>>, vector<32x128xf32>
    %cst_490 = arith.constant dense<0.000000e+00> : vector<8x128xf32>
    %1260 = tpu.matmul %1164, %1259, %cst_490 {dimension_numbers = #tpu.dot_dimension_numbers<[1], [0], [0], [1], [0, 0, 1, 1], [], []>} : vector<8x32xf32>, vector<32x128xf32>, vector<8x128xf32> -> vector<8x128xf32>
    %1261 = arith.addf %1258, %1260 : vector<8x128xf32>
    %1262 = arith.negf %1261 : vector<8x128xf32>
    %1263 = math.exp %1262 : vector<8x128xf32>
    %cst_491 = arith.constant 1.000000e+00 : f32
    %1264 = vector.broadcast %cst_491 : f32 to vector<8x128xf32>
    %1265 = arith.addf %1264, %1263 : vector<8x128xf32>
    %1266 = arith.divf %1264, %1265 : vector<8x128xf32>
    %1267 = vector.extract_strided_slice %1266 {offsets = [0, 0], sizes = [8, 32], strides = [1, 1]} : vector<8x128xf32> to vector<8x32xf32>
    %1268 = vector.extract_strided_slice %1266 {offsets = [0, 32], sizes = [8, 32], strides = [1, 1]} : vector<8x128xf32> to vector<8x32xf32>
    %1269 = vector.extract_strided_slice %1266 {offsets = [0, 96], sizes = [8, 32], strides = [1, 1]} : vector<8x128xf32> to vector<8x32xf32>
    %1270 = vector.extract_strided_slice %1261 {offsets = [0, 64], sizes = [8, 32], strides = [1, 1]} : vector<8x128xf32> to vector<8x32xf32>
    %1271 = math.tanh %1270 : vector<8x32xf32>
    %1272 = arith.mulf %1268, %1162 : vector<8x32xf32>
    %1273 = arith.mulf %1267, %1271 : vector<8x32xf32>
    %1274 = arith.addf %1272, %1273 : vector<8x32xf32>
    %1275 = math.tanh %1274 : vector<8x32xf32>
    %1276 = arith.mulf %1269, %1275 : vector<8x32xf32>
    %1277 = tpu.concatenate %1276, %1185 in 1 : vector<8x32xf32>, vector<8x32xf32> -> vector<8x64xf32>
    %c0_492 = arith.constant 0 : index
    %c0_493 = arith.constant 0 : index
    %1278 = vector.load %arg26[%c0_492, %c0_493] : memref<64x128xf32, #tpu.memory_space<vmem>>, vector<64x128xf32>
    %cst_494 = arith.constant dense<0.000000e+00> : vector<8x128xf32>
    %1279 = tpu.matmul %1277, %1278, %cst_494 {dimension_numbers = #tpu.dot_dimension_numbers<[1], [0], [0], [1], [0, 0, 1, 1], [], []>} : vector<8x64xf32>, vector<64x128xf32>, vector<8x128xf32> -> vector<8x128xf32>
    %c0_495 = arith.constant 0 : index
    %c0_496 = arith.constant 0 : index
    %1280 = vector.load %arg27[%c0_495, %c0_496] : memref<1x128xf32, #tpu.memory_space<vmem>>, vector<1x128xf32>
    %1281 = vector.broadcast %1280 : vector<1x128xf32> to vector<8x128xf32>
    %1282 = arith.addf %1279, %1281 : vector<8x128xf32>
    %1283 = arith.negf %1282 : vector<8x128xf32>
    %1284 = math.exp %1283 : vector<8x128xf32>
    %cst_497 = arith.constant 1.000000e+00 : f32
    %1285 = vector.broadcast %cst_497 : f32 to vector<8x128xf32>
    %1286 = arith.addf %1285, %1284 : vector<8x128xf32>
    %1287 = arith.divf %1285, %1286 : vector<8x128xf32>
    %1288 = vector.extract_strided_slice %1287 {offsets = [0, 0], sizes = [8, 32], strides = [1, 1]} : vector<8x128xf32> to vector<8x32xf32>
    %1289 = vector.extract_strided_slice %1287 {offsets = [0, 32], sizes = [8, 32], strides = [1, 1]} : vector<8x128xf32> to vector<8x32xf32>
    %1290 = vector.extract_strided_slice %1287 {offsets = [0, 96], sizes = [8, 32], strides = [1, 1]} : vector<8x128xf32> to vector<8x32xf32>
    %1291 = vector.extract_strided_slice %1282 {offsets = [0, 64], sizes = [8, 32], strides = [1, 1]} : vector<8x128xf32> to vector<8x32xf32>
    %1292 = math.tanh %1291 : vector<8x32xf32>
    %1293 = arith.mulf %1289, %1183 : vector<8x32xf32>
    %1294 = arith.mulf %1288, %1292 : vector<8x32xf32>
    %1295 = arith.addf %1293, %1294 : vector<8x32xf32>
    %1296 = math.tanh %1295 : vector<8x32xf32>
    %1297 = arith.mulf %1290, %1296 : vector<8x32xf32>
    %c8_i32_498 = arith.constant 8 : i32
    %1298 = arith.muli %1251, %c8_i32_498 : i32
    %1299 = tpu.assume_multiple %1298, 8 : i32
    %1300 = arith.index_cast %1299 : i32 to index
    %c0_499 = arith.constant 0 : index
    %1301 = vector.load %arg36[%1300, %c0_499] : memref<64x32xf32, #tpu.memory_space<vmem>>, vector<8x32xf32>
    tpu.vector_store %arg36[%1300, %c0_499], %1297 {strides = array<i32>} : memref<64x32xf32, #tpu.memory_space<vmem>>, vector<8x32xf32>,
    %c7_i32_500 = arith.constant 7 : i32
    %c56_i32 = arith.constant 56 : i32
    %1302 = tpu.assume_multiple %c56_i32, 8 : i32
    %1303 = arith.index_cast %1302 : i32 to index
    %c0_501 = arith.constant 0 : index
    %1304 = vector.load %arg34[%1303, %c0_501] : memref<64x128xf32, #tpu.memory_space<vmem>>, vector<8x128xf32>
    %c0_502 = arith.constant 0 : index
    %c0_503 = arith.constant 0 : index
    %1305 = vector.load %arg23[%c0_502, %c0_503] : memref<4x128xf32, #tpu.memory_space<vmem>>, vector<4x128xf32>
    %cst_504 = arith.constant dense<0.000000e+00> : vector<8x128xf32>
    %1306 = tpu.matmul %1246, %1305, %cst_504 {dimension_numbers = #tpu.dot_dimension_numbers<[1], [0], [0], [1], [0, 0, 1, 1], [], []>} : vector<8x4xf32>, vector<4x128xf32>, vector<8x128xf32> -> vector<8x128xf32>
    %1307 = arith.addf %1304, %1306 : vector<8x128xf32>
    %c0_505 = arith.constant 0 : index
    %c0_506 = arith.constant 0 : index
    %1308 = vector.load %arg24[%c0_505, %c0_506] : memref<32x128xf32, #tpu.memory_space<vmem>>, vector<32x128xf32>
    %cst_507 = arith.constant dense<0.000000e+00> : vector<8x128xf32>
    %1309 = tpu.matmul %1276, %1308, %cst_507 {dimension_numbers = #tpu.dot_dimension_numbers<[1], [0], [0], [1], [0, 0, 1, 1], [], []>} : vector<8x32xf32>, vector<32x128xf32>, vector<8x128xf32> -> vector<8x128xf32>
    %1310 = arith.addf %1307, %1309 : vector<8x128xf32>
    %1311 = arith.negf %1310 : vector<8x128xf32>
    %1312 = math.exp %1311 : vector<8x128xf32>
    %cst_508 = arith.constant 1.000000e+00 : f32
    %1313 = vector.broadcast %cst_508 : f32 to vector<8x128xf32>
    %1314 = arith.addf %1313, %1312 : vector<8x128xf32>
    %1315 = arith.divf %1313, %1314 : vector<8x128xf32>
    %1316 = vector.extract_strided_slice %1315 {offsets = [0, 0], sizes = [8, 32], strides = [1, 1]} : vector<8x128xf32> to vector<8x32xf32>
    %1317 = vector.extract_strided_slice %1315 {offsets = [0, 32], sizes = [8, 32], strides = [1, 1]} : vector<8x128xf32> to vector<8x32xf32>
    %1318 = vector.extract_strided_slice %1315 {offsets = [0, 96], sizes = [8, 32], strides = [1, 1]} : vector<8x128xf32> to vector<8x32xf32>
    %1319 = vector.extract_strided_slice %1310 {offsets = [0, 64], sizes = [8, 32], strides = [1, 1]} : vector<8x128xf32> to vector<8x32xf32>
    %1320 = math.tanh %1319 : vector<8x32xf32>
    %1321 = arith.mulf %1317, %1274 : vector<8x32xf32>
    %1322 = arith.mulf %1316, %1320 : vector<8x32xf32>
    %1323 = arith.addf %1321, %1322 : vector<8x32xf32>
    %1324 = math.tanh %1323 : vector<8x32xf32>
    %1325 = arith.mulf %1318, %1324 : vector<8x32xf32>
    %1326 = tpu.concatenate %1325, %1297 in 1 : vector<8x32xf32>, vector<8x32xf32> -> vector<8x64xf32>
    %c0_509 = arith.constant 0 : index
    %c0_510 = arith.constant 0 : index
    %1327 = vector.load %arg26[%c0_509, %c0_510] : memref<64x128xf32, #tpu.memory_space<vmem>>, vector<64x128xf32>
    %cst_511 = arith.constant dense<0.000000e+00> : vector<8x128xf32>
    %1328 = tpu.matmul %1326, %1327, %cst_511 {dimension_numbers = #tpu.dot_dimension_numbers<[1], [0], [0], [1], [0, 0, 1, 1], [], []>} : vector<8x64xf32>, vector<64x128xf32>, vector<8x128xf32> -> vector<8x128xf32>
    %c0_512 = arith.constant 0 : index
    %c0_513 = arith.constant 0 : index
    %1329 = vector.load %arg27[%c0_512, %c0_513] : memref<1x128xf32, #tpu.memory_space<vmem>>, vector<1x128xf32>
    %1330 = vector.broadcast %1329 : vector<1x128xf32> to vector<8x128xf32>
    %1331 = arith.addf %1328, %1330 : vector<8x128xf32>
    %1332 = arith.negf %1331 : vector<8x128xf32>
    %1333 = math.exp %1332 : vector<8x128xf32>
    %cst_514 = arith.constant 1.000000e+00 : f32
    %1334 = vector.broadcast %cst_514 : f32 to vector<8x128xf32>
    %1335 = arith.addf %1334, %1333 : vector<8x128xf32>
    %1336 = arith.divf %1334, %1335 : vector<8x128xf32>
    %1337 = vector.extract_strided_slice %1336 {offsets = [0, 0], sizes = [8, 32], strides = [1, 1]} : vector<8x128xf32> to vector<8x32xf32>
    %1338 = vector.extract_strided_slice %1336 {offsets = [0, 32], sizes = [8, 32], strides = [1, 1]} : vector<8x128xf32> to vector<8x32xf32>
    %1339 = vector.extract_strided_slice %1336 {offsets = [0, 96], sizes = [8, 32], strides = [1, 1]} : vector<8x128xf32> to vector<8x32xf32>
    %1340 = vector.extract_strided_slice %1331 {offsets = [0, 64], sizes = [8, 32], strides = [1, 1]} : vector<8x128xf32> to vector<8x32xf32>
    %1341 = math.tanh %1340 : vector<8x32xf32>
    %1342 = arith.mulf %1338, %1295 : vector<8x32xf32>
    %1343 = arith.mulf %1337, %1341 : vector<8x32xf32>
    %1344 = arith.addf %1342, %1343 : vector<8x32xf32>
    %1345 = math.tanh %1344 : vector<8x32xf32>
    %1346 = arith.mulf %1339, %1345 : vector<8x32xf32>
    %c56_i32_515 = arith.constant 56 : i32
    %1347 = tpu.assume_multiple %c56_i32_515, 8 : i32
    %1348 = arith.index_cast %1347 : i32 to index
    %c0_516 = arith.constant 0 : index
    %1349 = vector.load %arg36[%1348, %c0_516] : memref<64x32xf32, #tpu.memory_space<vmem>>, vector<8x32xf32>
    tpu.vector_store %arg36[%1348, %c0_516], %1346 {strides = array<i32>} : memref<64x32xf32, #tpu.memory_space<vmem>>, vector<8x32xf32>,
    %c0_517 = arith.constant 0 : index
    %c0_518 = arith.constant 0 : index
    %1350 = vector.load %arg36[%c0_517, %c0_518] : memref<64x32xf32, #tpu.memory_space<vmem>>, vector<64x32xf32>
    %c0_519 = arith.constant 0 : index
    %c0_520 = arith.constant 0 : index
    %1351 = vector.load %arg28[%c0_519, %c0_520] : memref<32x4xf32, #tpu.memory_space<vmem>>, vector<32x4xf32>
    %cst_521 = arith.constant dense<0.000000e+00> : vector<64x4xf32>
    %1352 = tpu.matmul %1350, %1351, %cst_521 {dimension_numbers = #tpu.dot_dimension_numbers<[1], [0], [0], [1], [0, 0, 1, 1], [], []>} : vector<64x32xf32>, vector<32x4xf32>, vector<64x4xf32> -> vector<64x4xf32>
    %c0_522 = arith.constant 0 : index
    %c0_523 = arith.constant 0 : index
    %1353 = vector.load %arg29[%c0_522, %c0_523] : memref<1x4xf32, #tpu.memory_space<vmem>>, vector<1x4xf32>
    %1354 = vector.broadcast %1353 : vector<1x4xf32> to vector<64x4xf32>
    %1355 = arith.addf %1352, %1354 : vector<64x4xf32>
    %c0_524 = arith.constant 0 : index
    %c0_525 = arith.constant 0 : index
    %1356 = vector.load %arg35[%c0_524, %c0_525] : memref<64x4xf32, #tpu.memory_space<vmem>>, vector<64x4xf32>
    %1357 = arith.addf %1356, %1355 : vector<64x4xf32>
    %c0_526 = arith.constant 0 : index
    %c0_527 = arith.constant 0 : index
    %1358 = vector.load %arg30[%c0_526, %c0_527] : memref<64x4xf32, #tpu.memory_space<vmem>>, vector<64x4xf32>
    tpu.vector_store %arg30[%c0_526, %c0_527], %1357 {strides = array<i32>} : memref<64x4xf32, #tpu.memory_space<vmem>>, vector<64x4xf32>,
    return
  }
}

</mosaic_0001>

<llo_original>
// kernel: serial_parallel_forward_teacher.1
$region0: #{serial_parallel_forward_teacher.1}
  #allocation0 [shape = 'u32[]', space=smem, size = 0x4, offset = 0x4, fixed_abs, tag = 'smem constant byte address 0x4 - core index']
  #allocation1 [shape = 'u32[144,128]{1,0:T(1,128)}', space=vmem, size = 0x12000, scoped, tag = 'internal scratch']
  #allocation2 [shape = 'f32[40,128]{1,0:T(8,128)}', space=vmem, size = 0x5000, scoped, tag = 'scratch operand']
  #allocation3 [shape = 'f32[40,128]{1,0:T(8,128)}', space=vmem, size = 0x5000, scoped, tag = 'scratch operand']
  #allocation4 [shape = 'f32[64,128]{1,0:T(8,128)}', space=vmem, size = 0x8000, scoped, tag = 'scratch operand']
  #allocation5 [shape = 'f32[64,128]{1,0:T(8,128)}', space=vmem, size = 0x8000, scoped, tag = 'scratch operand']
  #allocation6 [shape = 'f32[64,4]{1,0:T(8,128)}', space=vmem, size = 0x8000, scoped, tag = 'scratch operand']
  #allocation7 [shape = 'f32[64,32]{1,0:T(8,128)}', space=vmem, size = 0x8000, scoped, tag = 'scratch operand']
  %s0 = inlined_call_operand.smem [shape: u32[31], index: -1, kind: input, shape index: {}]
  %s1 = sld [smem:[%s0]]
  %s2 = scalar_lea.smem %s0, 1
  %s3 = sld [smem:[%s2]]
  %s4 = scalar_lea.smem %s0, 2
  %s5 = sld [smem:[%s4]]
  %s6 = scalar_lea.smem %s0, 3
  %s7 = sld [smem:[%s6]]
  %s8 = scalar_lea.smem %s0, 4
  %s9 = sld [smem:[%s8]]
  %s10 = scalar_lea.smem %s0, 5
  %s11 = sld [smem:[%s10]]
  %s12 = scalar_lea.smem %s0, 6
  %s13 = sld [smem:[%s12]]
  %s14 = scalar_lea.smem %s0, 7
  %s15 = sld [smem:[%s14]]
  %s16 = scalar_lea.smem %s0, 8
  %s17 = sld [smem:[%s16]]
  %s18 = scalar_lea.smem %s0, 9
  %s19 = sld [smem:[%s18]]
  %s20 = scalar_lea.smem %s0, 10
  %s21 = sld [smem:[%s20]]
  %s22 = scalar_lea.smem %s0, 11
  %s23 = sld [smem:[%s22]]
  %s24 = scalar_lea.smem %s0, 12
  %s25 = sld [smem:[%s24]]
  %s26 = scalar_lea.smem %s0, 13
  %s27 = sld [smem:[%s26]]
  %s28 = scalar_lea.smem %s0, 14
  %s29 = sld [smem:[%s28]]
  %s30 = scalar_lea.smem %s0, 15
  %s31 = sld [smem:[%s30]]
  %s32 = scalar_lea.smem %s0, 16
  %s33 = sld [smem:[%s32]]
  %s34 = scalar_lea.smem %s0, 17
  %s35 = sld [smem:[%s34]]
  %s36 = scalar_lea.smem %s0, 18
  %s37 = sld [smem:[%s36]]
  %s38 = scalar_lea.smem %s0, 19
  %s39 = sld [smem:[%s38]]
  %s40 = scalar_lea.smem %s0, 20
  %s41 = sld [smem:[%s40]]
  %s42 = scalar_lea.smem %s0, 21
  %s43 = sld [smem:[%s42]]
  %s44 = scalar_lea.smem %s0, 22
  %s45 = sld [smem:[%s44]]
  %s46 = scalar_lea.smem %s0, 23
  %s47 = sld [smem:[%s46]]
  %s48 = scalar_lea.smem %s0, 24
  %s49 = sld [smem:[%s48]]
  %s50 = scalar_lea.smem %s0, 25
  %s51 = sld [smem:[%s50]]
  %s52 = scalar_lea.smem %s0, 26
  %s53 = sld [smem:[%s52]]
  %s54 = scalar_lea.smem %s0, 27
  %s55 = sld [smem:[%s54]]
  %s56 = scalar_lea.smem %s0, 28
  %s57 = sld [smem:[%s56]]
  %s58 = scalar_lea.smem %s0, 29
  %s59 = sld [smem:[%s58]]
  %s60 = scalar_lea.smem %s0, 30
  %s61 = sld [smem:[%s60]]
  %s62 = sld [smem:[#allocation0]]
  $region134: #{serial_parallel_forward_teacher.1} parent=0
    _
  %s64 = ssub.s32 1, %s62
  %s65 = scalar_select 0, %s64, %s62
  $region1: #{serial_parallel_forward_teacher.1} parent=0
    #allocation8 [shape = 'u8[512]{0}', space=vmem, size = 0x400, scoped, tag = 'input window, operand 14, single buffered']
    #allocation9 [shape = 's32[1]{0}', space=sflag, size = 0x4, scoped, tag = 'scoped memory for serial_parallel_forward_teacher.1']
    %66 = vsyncpa [#allocation9], 0
    // Predicated region
    $region2: #{serial_parallel_forward_teacher.1} parent=1 // pred_check
      _
    $region3: #{serial_parallel_forward_teacher.1} parent=1 // pred_check_branch
      %68 = sbr.rel (0) target = $region5
    $region4: #{serial_parallel_forward_teacher.1} parent=1 // pred_region
      _
    $region5: #{serial_parallel_forward_teacher.1} parent=1 // pred_fallthru
      _
    // Predicated region
    $region6: #{serial_parallel_forward_teacher.1} parent=1 // pred_check
      _
    $region7: #{serial_parallel_forward_teacher.1} parent=1 // pred_check_branch
      %70 = sbr.rel (0) target = $region9
    $region8: #{serial_parallel_forward_teacher.1} parent=1 // pred_region
      _
    $region9: #{serial_parallel_forward_teacher.1} parent=1 // pred_fallthru
      _
    // Predicated region
    $region10: #{serial_parallel_forward_teacher.1} parent=1 // pred_check
      _
    $region11: #{serial_parallel_forward_teacher.1} parent=1 // pred_check_branch
      %72 = sbr.rel (0) target = $region13
    $region12: #{serial_parallel_forward_teacher.1} parent=1 // pred_region
      _
    $region13: #{serial_parallel_forward_teacher.1} parent=1 // pred_fallthru
      _
    // Predicated region
    $region14: #{serial_parallel_forward_teacher.1} parent=1 // pred_check
      _
    $region15: #{serial_parallel_forward_teacher.1} parent=1 // pred_check_branch
      %74 = sbr.rel (0) target = $region17
    $region16: #{serial_parallel_forward_teacher.1} parent=1 // pred_region
      _
    $region17: #{serial_parallel_forward_teacher.1} parent=1 // pred_fallthru
      _
    // Predicated region
    $region18: #{serial_parallel_forward_teacher.1} parent=1 // pred_check
      _
    $region19: #{serial_parallel_forward_teacher.1} parent=1 // pred_check_branch
      %76 = sbr.rel (0) target = $region21
    $region20: #{serial_parallel_forward_teacher.1} parent=1 // pred_region
      _
    $region21: #{serial_parallel_forward_teacher.1} parent=1 // pred_fallthru
      _
    // Predicated region
    $region22: #{serial_parallel_forward_teacher.1} parent=1 // pred_check
      _
    $region23: #{serial_parallel_forward_teacher.1} parent=1 // pred_check_branch
      %78 = sbr.rel (0) target = $region25
    $region24: #{serial_parallel_forward_teacher.1} parent=1 // pred_region
      _
    $region25: #{serial_parallel_forward_teacher.1} parent=1 // pred_fallthru
      _
    // Predicated region
    $region26: #{serial_parallel_forward_teacher.1} parent=1 // pred_check
      _
    $region27: #{serial_parallel_forward_teacher.1} parent=1 // pred_check_branch
      %80 = sbr.rel (0) target = $region29
    $region28: #{serial_parallel_forward_teacher.1} parent=1 // pred_region
      _
    $region29: #{serial_parallel_forward_teacher.1} parent=1 // pred_fallthru
      _
    // Predicated region
    $region30: #{serial_parallel_forward_teacher.1} parent=1 // pred_check
      _
    $region31: #{serial_parallel_forward_teacher.1} parent=1 // pred_check_branch
      %82 = sbr.rel (0) target = $region33
    $region32: #{serial_parallel_forward_teacher.1} parent=1 // pred_region
      _
    $region33: #{serial_parallel_forward_teacher.1} parent=1 // pred_fallthru
      _
    // Predicated region
    $region34: #{serial_parallel_forward_teacher.1} parent=1 // pred_check
      _
    $region35: #{serial_parallel_forward_teacher.1} parent=1 // pred_check_branch
      %84 = sbr.rel (0) target = $region37
    $region36: #{serial_parallel_forward_teacher.1} parent=1 // pred_region
      _
    $region37: #{serial_parallel_forward_teacher.1} parent=1 // pred_fallthru
      _
    // Predicated region
    $region38: #{serial_parallel_forward_teacher.1} parent=1 // pred_check
      _
    $region39: #{serial_parallel_forward_teacher.1} parent=1 // pred_check_branch
      %86 = sbr.rel (0) target = $region41
    $region40: #{serial_parallel_forward_teacher.1} parent=1 // pred_region
      _
    $region41: #{serial_parallel_forward_teacher.1} parent=1 // pred_fallthru
      _
    // Predicated region
    $region42: #{serial_parallel_forward_teacher.1} parent=1 // pred_check
      _
    $region43: #{serial_parallel_forward_teacher.1} parent=1 // pred_check_branch
      %88 = sbr.rel (0) target = $region45
    $region44: #{serial_parallel_forward_teacher.1} parent=1 // pred_region
      _
    $region45: #{serial_parallel_forward_teacher.1} parent=1 // pred_fallthru
      _
    // Predicated region
    $region46: #{serial_parallel_forward_teacher.1} parent=1 // pred_check
      _
    $region47: #{serial_parallel_forward_teacher.1} parent=1 // pred_check_branch
      %90 = sbr.rel (0) target = $region49
    $region48: #{serial_parallel_forward_teacher.1} parent=1 // pred_region
      _
    $region49: #{serial_parallel_forward_teacher.1} parent=1 // pred_fallthru
      _
    // Predicated region
    $region50: #{serial_parallel_forward_teacher.1} parent=1 // pred_check
      _
    $region51: #{serial_parallel_forward_teacher.1} parent=1 // pred_check_branch
      %92 = sbr.rel (0) target = $region53
    $region52: #{serial_parallel_forward_teacher.1} parent=1 // pred_region
      _
    $region53: #{serial_parallel_forward_teacher.1} parent=1 // pred_fallthru
      _
    // Predicated region
    $region54: #{serial_parallel_forward_teacher.1} parent=1 // pred_check
      _
    $region55: #{serial_parallel_forward_teacher.1} parent=1 // pred_check_branch
      %94 = sbr.rel (0) target = $region57
    $region56: #{serial_parallel_forward_teacher.1} parent=1 // pred_region
      _
    $region57: #{serial_parallel_forward_teacher.1} parent=1 // pred_fallthru
      _
    // Predicated region
    $region58: #{serial_parallel_forward_teacher.1} parent=1 // pred_check
      _
    $region59: #{serial_parallel_forward_teacher.1} parent=1 // pred_check_branch
      %96 = sbr.rel (0) target = $region61
    $region60: #{serial_parallel_forward_teacher.1} parent=1 // pred_region
      %s98 = ssub.s32 16, 16
      %99 = vsyncadd [#allocation9], %s98
      %s101 = sshll.u32 [#allocation8], 4
      %s102 = int_to_ptr.vmem [resolvable:$true] %s101
      %104 = dma.hbm_to_vmem [thread:$0]  %s29, 16, %s102, [#allocation9]
    $region61: #{serial_parallel_forward_teacher.1} parent=1 // pred_fallthru
      _
    // Predicated region
    $region62: #{serial_parallel_forward_teacher.1} parent=1 // pred_check
      _
    $region63: #{serial_parallel_forward_teacher.1} parent=1 // pred_check_branch
      %106 = sbr.rel (0) target = $region65
    $region64: #{serial_parallel_forward_teacher.1} parent=1 // pred_region
      _
    $region65: #{serial_parallel_forward_teacher.1} parent=1 // pred_fallthru
      _
    // Predicated region
    $region66: #{serial_parallel_forward_teacher.1} parent=1 // pred_check
      _
    $region67: #{serial_parallel_forward_teacher.1} parent=1 // pred_check_branch
      %108 = sbr.rel (0) target = $region69
    $region68: #{serial_parallel_forward_teacher.1} parent=1 // pred_region
      _
    $region69: #{serial_parallel_forward_teacher.1} parent=1 // pred_fallthru
      _
    // Predicated region
    $region70: #{serial_parallel_forward_teacher.1} parent=1 // pred_check
      _
    $region71: #{serial_parallel_forward_teacher.1} parent=1 // pred_check_branch
      %110 = sbr.rel (0) target = $region73
    $region72: #{serial_parallel_forward_teacher.1} parent=1 // pred_region
      _
    $region73: #{serial_parallel_forward_teacher.1} parent=1 // pred_fallthru
      _
    // Predicated region
    $region74: #{serial_parallel_forward_teacher.1} parent=1 // pred_check
      _
    $region75: #{serial_parallel_forward_teacher.1} parent=1 // pred_check_branch
      %112 = sbr.rel (0) target = $region77
    $region76: #{serial_parallel_forward_teacher.1} parent=1 // pred_region
      _
    $region77: #{serial_parallel_forward_teacher.1} parent=1 // pred_fallthru
      _
    // Predicated region
    $region78: #{serial_parallel_forward_teacher.1} parent=1 // pred_check
      _
    $region79: #{serial_parallel_forward_teacher.1} parent=1 // pred_check_branch
      %114 = sbr.rel (0) target = $region81
    $region80: #{serial_parallel_forward_teacher.1} parent=1 // pred_region
      _
    $region81: #{serial_parallel_forward_teacher.1} parent=1 // pred_fallthru
      _
    // Predicated region
    $region82: #{serial_parallel_forward_teacher.1} parent=1 // pred_check
      _
    $region83: #{serial_parallel_forward_teacher.1} parent=1 // pred_check_branch
      %116 = sbr.rel (0) target = $region85
    $region84: #{serial_parallel_forward_teacher.1} parent=1 // pred_region
      _
    $region85: #{serial_parallel_forward_teacher.1} parent=1 // pred_fallthru
      _
    // Predicated region
    $region86: #{serial_parallel_forward_teacher.1} parent=1 // pred_check
      _
    $region87: #{serial_parallel_forward_teacher.1} parent=1 // pred_check_branch
      %118 = sbr.rel (0) target = $region89
    $region88: #{serial_parallel_forward_teacher.1} parent=1 // pred_region
      _
    $region89: #{serial_parallel_forward_teacher.1} parent=1 // pred_fallthru
      _
    // Predicated region
    $region90: #{serial_parallel_forward_teacher.1} parent=1 // pred_check
      _
    $region91: #{serial_parallel_forward_teacher.1} parent=1 // pred_check_branch
      %120 = sbr.rel (0) target = $region93
    $region92: #{serial_parallel_forward_teacher.1} parent=1 // pred_region
      _
    $region93: #{serial_parallel_forward_teacher.1} parent=1 // pred_fallthru
      _
    // Predicated region
    $region94: #{serial_parallel_forward_teacher.1} parent=1 // pred_check
      _
    $region95: #{serial_parallel_forward_teacher.1} parent=1 // pred_check_branch
      %122 = sbr.rel (0) target = $region97
    $region96: #{serial_parallel_forward_teacher.1} parent=1 // pred_region
      _
    $region97: #{serial_parallel_forward_teacher.1} parent=1 // pred_fallthru
      _
    // Predicated region
    $region98: #{serial_parallel_forward_teacher.1} parent=1 // pred_check
      _
    $region99: #{serial_parallel_forward_teacher.1} parent=1 // pred_check_branch
      %124 = sbr.rel (0) target = $region101
    $region100: #{serial_parallel_forward_teacher.1} parent=1 // pred_region
      _
    $region101: #{serial_parallel_forward_teacher.1} parent=1 // pred_fallthru
      _
    // Predicated region
    $region102: #{serial_parallel_forward_teacher.1} parent=1 // pred_check
      _
    $region103: #{serial_parallel_forward_teacher.1} parent=1 // pred_check_branch
      %126 = sbr.rel (0) target = $region105
    $region104: #{serial_parallel_forward_teacher.1} parent=1 // pred_region
      _
    $region105: #{serial_parallel_forward_teacher.1} parent=1 // pred_fallthru
      _
    // Predicated region
    $region106: #{serial_parallel_forward_teacher.1} parent=1 // pred_check
      _
    $region107: #{serial_parallel_forward_teacher.1} parent=1 // pred_check_branch
      %128 = sbr.rel (0) target = $region109
    $region108: #{serial_parallel_forward_teacher.1} parent=1 // pred_region
      _
    $region109: #{serial_parallel_forward_teacher.1} parent=1 // pred_fallthru
      _
    // Predicated region
    $region110: #{serial_parallel_forward_teacher.1} parent=1 // pred_check
      _
    $region111: #{serial_parallel_forward_teacher.1} parent=1 // pred_check_branch
      %130 = sbr.rel (0) target = $region113
    $region112: #{serial_parallel_forward_teacher.1} parent=1 // pred_region
      _
    $region113: #{serial_parallel_forward_teacher.1} parent=1 // pred_fallthru
      _
    // Predicated region
    $region114: #{serial_parallel_forward_teacher.1} parent=1 // pred_check
      _
    $region115: #{serial_parallel_forward_teacher.1} parent=1 // pred_check_branch
      %132 = sbr.rel (0) target = $region117
    $region116: #{serial_parallel_forward_teacher.1} parent=1 // pred_region
      _
    $region117: #{serial_parallel_forward_teacher.1} parent=1 // pred_fallthru
      _
    // Predicated region
    $region118: #{serial_parallel_forward_teacher.1} parent=1 // pred_check
      _
    $region119: #{serial_parallel_forward_teacher.1} parent=1 // pred_check_branch
      %134 = sbr.rel (0) target = $region121
    $region120: #{serial_parallel_forward_teacher.1} parent=1 // pred_region
      _
    $region121: #{serial_parallel_forward_teacher.1} parent=1 // pred_fallthru
      _
    // Predicated region
    $region122: #{serial_parallel_forward_teacher.1} parent=1 // pred_check
      _
    $region123: #{serial_parallel_forward_teacher.1} parent=1 // pred_check_branch
      %136 = sbr.rel (0) target = $region125
    $region124: #{serial_parallel_forward_teacher.1} parent=1 // pred_region
      %137 = dma.done [#allocation9], 16
    $region125: #{serial_parallel_forward_teacher.1} parent=1 // pred_fallthru
      _
    %v138 = vld [vmem:[%s1] sm:$0xff]
    %v139 = vld [vmem:[%s1 + $0x8] sm:$0xff]
    %v140 = vld [vmem:[%s1 + $0x10] sm:$0xff]
    %v141 = vld [vmem:[%s1 + $0x18] sm:$0xff]
    %v142 = vld [vmem:[%s1 + $0x20] sm:$0xff]
    %v143 = vld [vmem:[%s3] sm:$0xff]
    %v144 = vld [vmem:[%s3 + $0x8] sm:$0xff]
    %v145 = vld [vmem:[%s3 + $0x10] sm:$0xff]
    %v146 = vld [vmem:[%s3 + $0x18] sm:$0xff]
    %v147 = vld [vmem:[%s3 + $0x20] sm:$0xff]
    %v148 = vld [vmem:[%s3 + $0x28] sm:$0xff]
    %v149 = vld [vmem:[%s3 + $0x30] sm:$0xff]
    %v150 = vld [vmem:[%s3 + $0x38] sm:$0xff]
    %v151 = vld [vmem:[%s7] sm:$0x7f]
    %v152 = vld [vmem:[%s11] sm:$0x1]
    %v154 = vlaneseq
    %v155 = vshrl.u32 %v154, 7
    %v156 = vsub.s32 0, %v155
    %v157 = vrot.slane %v152, %v156
    %vm159 = vcmask 56320
    %v161 = vsel %vm159, %v138, 0
    %v164 = vsel %vm159, %v139, 0
    %v167 = vsel %vm159, %v140, 0
    %v170 = vsel %vm159, %v141, 0
    %v173 = vsel %vm159, %v142, 0
    %vm175 = vcmask 1046528
    %v177 = vsel %vm175, %v151, 0
    %179 = vmatprep.subr.mxu0 0.0
    %180 = vmatpush1.msra.mxu0 %v177
    %181 = vmatprep.subr.mxu0 0.0
    %182 = vmatpush1.msra.mxu0 0.0
    %183 = vmatprep.subr.mxu0 0.0
    %184 = vmatpush1.msra.mxu0 0.0
    %185 = vmatprep.subr.mxu0 0.0
    %186 = vmatpush1.msra.mxu0 0.0
    %187 = vmatprep.subr.mxu0 0.0
    %188 = vmatpush1.msra.mxu0 0.0
    %189 = vmatprep.subr.mxu0 0.0
    %190 = vmatpush1.msra.mxu0 0.0
    %191 = vmatprep.subr.mxu0 0.0
    %192 = vmatpush1.msra.mxu0 0.0
    %193 = vmatprep.subr.mxu0 0.0
    %194 = vmatpush1.msra.mxu0 0.0
    %195 = vmatprep.subr.mxu0 0.0
    %196 = vmatpush1.msra.mxu0 0.0
    %197 = vmatprep.subr.mxu0 0.0
    %198 = vmatpush1.msra.mxu0 0.0
    %199 = vmatprep.subr.mxu0 0.0
    %200 = vmatpush1.msra.mxu0 0.0
    %201 = vmatprep.subr.mxu0 0.0
    %202 = vmatpush1.msra.mxu0 0.0
    %203 = vmatprep.subr.mxu0 0.0
    %204 = vmatpush1.msra.mxu0 0.0
    %205 = vmatprep.subr.mxu0 0.0
    %206 = vmatpush1.msra.mxu0 0.0
    %207 = vmatprep.subr.mxu0 0.0
    %208 = vmatpush1.msra.mxu0 0.0
    %209 = vmatprep.subr.mxu0 0.0
    %210 = vmatpush1.msra.mxu0 0.0
    %211 = vmatprep.subr.mxu0 0.0
    %212 = vmatpush1.msra.mxu0 0.0
    %213 = vmatprep.subr.mxu0 0.0
    %214 = vmatpush1.msra.mxu0 0.0
    %215 = vmatprep.subr.mxu0 0.0
    %216 = vmatpush1.msra.mxu0 0.0
    %217 = vmatprep.subr.mxu0 0.0
    %218 = vmatpush1.msra.mxu0 0.0
    %219 = vmatprep.subr.mxu0 0.0
    %220 = vmatpush1.msra.mxu0 0.0
    %221 = vmatprep.subr.mxu0 0.0
    %222 = vmatpush1.msra.mxu0 0.0
    %223 = vmatprep.subr.mxu0 0.0
    %224 = vmatpush1.msra.mxu0 0.0
    %225 = vmatprep.subr.mxu0 0.0
    %226 = vmatpush1.msra.mxu0 0.0
    %227 = vmatprep.subr.mxu0 0.0
    %228 = vmatpush1.msra.mxu0 0.0
    %229 = vmatprep.subr.mxu0 0.0
    %230 = vmatpush1.msra.mxu0 0.0
    %231 = vmatprep.subr.mxu0 0.0
    %232 = vmatpush1.msra.mxu0 0.0
    %233 = vmatprep.subr.mxu0 0.0
    %234 = vmatpush1.msra.mxu0 0.0
    %235 = vmatprep.subr.mxu0 0.0
    %236 = vmatpush1.msra.mxu0 0.0
    %237 = vmatprep.subr.mxu0 0.0
    %238 = vmatpush1.msra.mxu0 0.0
    %239 = vmatprep.subr.mxu0 0.0
    %240 = vmatpush1.msra.mxu0 0.0
    %241 = vmatprep.subr.mxu0 0.0
    %242 = vmatpush1.msra.mxu0 0.0
    %243 = vmatprep.mubr.f32.mxu0 0.0
    %244 = vmatmul.mubr.f32.gmra.mrb[0].mxu0 %v161
    %v245 = vpop.f32.mrb[0].mxu0
    %v246 = vadd.f32 %v157, %v245
    %v247 = vpop.f32.mrb[0].mxu0
    %248 = vmatprep.mubr.f32.mxu0 0.0
    %249 = vmatmul.mubr.f32.gmra.mrb[0].mxu0 %v164
    %v250 = vpop.f32.mrb[0].mxu0
    %v251 = vadd.f32 %v157, %v250
    %v252 = vpop.f32.mrb[0].mxu0
    %253 = vmatprep.mubr.f32.mxu0 0.0
    %254 = vmatmul.mubr.f32.gmra.mrb[0].mxu0 %v167
    %v255 = vpop.f32.mrb[0].mxu0
    %v256 = vadd.f32 %v157, %v255
    %v257 = vpop.f32.mrb[0].mxu0
    %258 = vmatprep.mubr.f32.mxu0 0.0
    %259 = vmatmul.mubr.f32.gmra.mrb[0].mxu0 %v170
    %v260 = vpop.f32.mrb[0].mxu0
    %v261 = vadd.f32 %v157, %v260
    %v262 = vpop.f32.mrb[0].mxu0
    %263 = vmatprep.mubr.f32.mxu0 0.0
    %264 = vmatmul.mubr.f32.gmra.mrb[0].mxu0 %v173
    %v265 = vpop.f32.mrb[0].mxu0
    %v266 = vadd.f32 %v157, %v265
    %v267 = vpop.f32.mrb[0].mxu0
    %268 = vdwg.mxu0
    %269 = vst [vmem:[#allocation2] sm:$0xff] %v246
    %270 = vst [vmem:[#allocation2 + $0x8] sm:$0xff] %v251
    %271 = vst [vmem:[#allocation2 + $0x10] sm:$0xff] %v256
    %272 = vst [vmem:[#allocation2 + $0x18] sm:$0xff] %v261
    %273 = vst [vmem:[#allocation2 + $0x20] sm:$0xff] %v266
    %v274 = vld [vmem:[%s35] sm:$0x7f]
    %v275 = vld [vmem:[%s39] sm:$0x1]
    %v277 = vlaneseq
    %v278 = vshrl.u32 %v277, 7
    %v279 = vsub.s32 0, %v278
    %v280 = vrot.slane %v275, %v279
    %v283 = vsel %vm175, %v274, 0
    %285 = vmatprep.subr.mxu0 0.0
    %286 = vmatpush1.msra.mxu0 %v283
    %287 = vmatprep.subr.mxu0 0.0
    %288 = vmatpush1.msra.mxu0 0.0
    %289 = vmatprep.subr.mxu0 0.0
    %290 = vmatpush1.msra.mxu0 0.0
    %291 = vmatprep.subr.mxu0 0.0
    %292 = vmatpush1.msra.mxu0 0.0
    %293 = vmatprep.subr.mxu0 0.0
    %294 = vmatpush1.msra.mxu0 0.0
    %295 = vmatprep.subr.mxu0 0.0
    %296 = vmatpush1.msra.mxu0 0.0
    %297 = vmatprep.subr.mxu0 0.0
    %298 = vmatpush1.msra.mxu0 0.0
    %299 = vmatprep.subr.mxu0 0.0
    %300 = vmatpush1.msra.mxu0 0.0
    %301 = vmatprep.subr.mxu0 0.0
    %302 = vmatpush1.msra.mxu0 0.0
    %303 = vmatprep.subr.mxu0 0.0
    %304 = vmatpush1.msra.mxu0 0.0
    %305 = vmatprep.subr.mxu0 0.0
    %306 = vmatpush1.msra.mxu0 0.0
    %307 = vmatprep.subr.mxu0 0.0
    %308 = vmatpush1.msra.mxu0 0.0
    %309 = vmatprep.subr.mxu0 0.0
    %310 = vmatpush1.msra.mxu0 0.0
    %311 = vmatprep.subr.mxu0 0.0
    %312 = vmatpush1.msra.mxu0 0.0
    %313 = vmatprep.subr.mxu0 0.0
    %314 = vmatpush1.msra.mxu0 0.0
    %315 = vmatprep.subr.mxu0 0.0
    %316 = vmatpush1.msra.mxu0 0.0
    %317 = vmatprep.subr.mxu0 0.0
    %318 = vmatpush1.msra.mxu0 0.0
    %319 = vmatprep.subr.mxu0 0.0
    %320 = vmatpush1.msra.mxu0 0.0
    %321 = vmatprep.subr.mxu0 0.0
    %322 = vmatpush1.msra.mxu0 0.0
    %323 = vmatprep.subr.mxu0 0.0
    %324 = vmatpush1.msra.mxu0 0.0
    %325 = vmatprep.subr.mxu0 0.0
    %326 = vmatpush1.msra.mxu0 0.0
    %327 = vmatprep.subr.mxu0 0.0
    %328 = vmatpush1.msra.mxu0 0.0
    %329 = vmatprep.subr.mxu0 0.0
    %330 = vmatpush1.msra.mxu0 0.0
    %331 = vmatprep.subr.mxu0 0.0
    %332 = vmatpush1.msra.mxu0 0.0
    %333 = vmatprep.subr.mxu0 0.0
    %334 = vmatpush1.msra.mxu0 0.0
    %335 = vmatprep.subr.mxu0 0.0
    %336 = vmatpush1.msra.mxu0 0.0
    %337 = vmatprep.subr.mxu0 0.0
    %338 = vmatpush1.msra.mxu0 0.0
    %339 = vmatprep.subr.mxu0 0.0
    %340 = vmatpush1.msra.mxu0 0.0
    %341 = vmatprep.subr.mxu0 0.0
    %342 = vmatpush1.msra.mxu0 0.0
    %343 = vmatprep.subr.mxu0 0.0
    %344 = vmatpush1.msra.mxu0 0.0
    %345 = vmatprep.subr.mxu0 0.0
    %346 = vmatpush1.msra.mxu0 0.0
    %347 = vmatprep.subr.mxu0 0.0
    %348 = vmatpush1.msra.mxu0 0.0
    %349 = vmatprep.mubr.f32.mxu0 0.0
    %350 = vmatmul.mubr.f32.gmra.mrb[0].mxu0 %v161
    %v351 = vpop.f32.mrb[0].mxu0
    %v352 = vadd.f32 %v280, %v351
    %v353 = vpop.f32.mrb[0].mxu0
    %354 = vmatprep.mubr.f32.mxu0 0.0
    %355 = vmatmul.mubr.f32.gmra.mrb[0].mxu0 %v164
    %v356 = vpop.f32.mrb[0].mxu0
    %v357 = vadd.f32 %v280, %v356
    %v358 = vpop.f32.mrb[0].mxu0
    %359 = vmatprep.mubr.f32.mxu0 0.0
    %360 = vmatmul.mubr.f32.gmra.mrb[0].mxu0 %v167
    %v361 = vpop.f32.mrb[0].mxu0
    %v362 = vadd.f32 %v280, %v361
    %v363 = vpop.f32.mrb[0].mxu0
    %364 = vmatprep.mubr.f32.mxu0 0.0
    %365 = vmatmul.mubr.f32.gmra.mrb[0].mxu0 %v170
    %v366 = vpop.f32.mrb[0].mxu0
    %v367 = vadd.f32 %v280, %v366
    %v368 = vpop.f32.mrb[0].mxu0
    %369 = vmatprep.mubr.f32.mxu0 0.0
    %370 = vmatmul.mubr.f32.gmra.mrb[0].mxu0 %v173
    %v371 = vpop.f32.mrb[0].mxu0
    %v372 = vadd.f32 %v280, %v371
    %v373 = vpop.f32.mrb[0].mxu0
    %374 = vdwg.mxu0
    %375 = vst [vmem:[#allocation3] sm:$0xff] %v352
    %376 = vst [vmem:[#allocation3 + $0x8] sm:$0xff] %v357
    %377 = vst [vmem:[#allocation3 + $0x10] sm:$0xff] %v362
    %378 = vst [vmem:[#allocation3 + $0x18] sm:$0xff] %v367
    %379 = vst [vmem:[#allocation3 + $0x20] sm:$0xff] %v372
    %v380 = vld [vmem:[%s17] sm:$0x7f]
    %v381 = vld [vmem:[%s21] sm:$0x1]
    %v383 = vlaneseq
    %v384 = vshrl.u32 %v383, 7
    %v385 = vsub.s32 0, %v384
    %v386 = vrot.slane %v381, %v385
    %v389 = vsel %vm159, %v143, 0
    %v392 = vsel %vm159, %v144, 0
    %v395 = vsel %vm159, %v145, 0
    %v398 = vsel %vm159, %v146, 0
    %v401 = vsel %vm159, %v147, 0
    %v404 = vsel %vm159, %v148, 0
    %v407 = vsel %vm159, %v149, 0
    %v410 = vsel %vm159, %v150, 0
    %v413 = vsel %vm175, %v380, 0
    %415 = vmatprep.subr.mxu0 0.0
    %416 = vmatpush1.msra.mxu0 %v413
    %417 = vmatprep.subr.mxu0 0.0
    %418 = vmatpush1.msra.mxu0 0.0
    %419 = vmatprep.subr.mxu0 0.0
    %420 = vmatpush1.msra.mxu0 0.0
    %421 = vmatprep.subr.mxu0 0.0
    %422 = vmatpush1.msra.mxu0 0.0
    %423 = vmatprep.subr.mxu0 0.0
    %424 = vmatpush1.msra.mxu0 0.0
    %425 = vmatprep.subr.mxu0 0.0
    %426 = vmatpush1.msra.mxu0 0.0
    %427 = vmatprep.subr.mxu0 0.0
    %428 = vmatpush1.msra.mxu0 0.0
    %429 = vmatprep.subr.mxu0 0.0
    %430 = vmatpush1.msra.mxu0 0.0
    %431 = vmatprep.subr.mxu0 0.0
    %432 = vmatpush1.msra.mxu0 0.0
    %433 = vmatprep.subr.mxu0 0.0
    %434 = vmatpush1.msra.mxu0 0.0
    %435 = vmatprep.subr.mxu0 0.0
    %436 = vmatpush1.msra.mxu0 0.0
    %437 = vmatprep.subr.mxu0 0.0
    %438 = vmatpush1.msra.mxu0 0.0
    %439 = vmatprep.subr.mxu0 0.0
    %440 = vmatpush1.msra.mxu0 0.0
    %441 = vmatprep.subr.mxu0 0.0
    %442 = vmatpush1.msra.mxu0 0.0
    %443 = vmatprep.subr.mxu0 0.0
    %444 = vmatpush1.msra.mxu0 0.0
    %445 = vmatprep.subr.mxu0 0.0
    %446 = vmatpush1.msra.mxu0 0.0
    %447 = vmatprep.subr.mxu0 0.0
    %448 = vmatpush1.msra.mxu0 0.0
    %449 = vmatprep.subr.mxu0 0.0
    %450 = vmatpush1.msra.mxu0 0.0
    %451 = vmatprep.subr.mxu0 0.0
    %452 = vmatpush1.msra.mxu0 0.0
    %453 = vmatprep.subr.mxu0 0.0
    %454 = vmatpush1.msra.mxu0 0.0
    %455 = vmatprep.subr.mxu0 0.0
    %456 = vmatpush1.msra.mxu0 0.0
    %457 = vmatprep.subr.mxu0 0.0
    %458 = vmatpush1.msra.mxu0 0.0
    %459 = vmatprep.subr.mxu0 0.0
    %460 = vmatpush1.msra.mxu0 0.0
    %461 = vmatprep.subr.mxu0 0.0
    %462 = vmatpush1.msra.mxu0 0.0
    %463 = vmatprep.subr.mxu0 0.0
    %464 = vmatpush1.msra.mxu0 0.0
    %465 = vmatprep.subr.mxu0 0.0
    %466 = vmatpush1.msra.mxu0 0.0
    %467 = vmatprep.subr.mxu0 0.0
    %468 = vmatpush1.msra.mxu0 0.0
    %469 = vmatprep.subr.mxu0 0.0
    %470 = vmatpush1.msra.mxu0 0.0
    %471 = vmatprep.subr.mxu0 0.0
    %472 = vmatpush1.msra.mxu0 0.0
    %473 = vmatprep.subr.mxu0 0.0
    %474 = vmatpush1.msra.mxu0 0.0
    %475 = vmatprep.subr.mxu0 0.0
    %476 = vmatpush1.msra.mxu0 0.0
    %477 = vmatprep.subr.mxu0 0.0
    %478 = vmatpush1.msra.mxu0 0.0
    %479 = vmatprep.mubr.f32.mxu0 0.0
    %480 = vmatmul.mubr.f32.gmra.mrb[0].mxu0 %v389
    %v481 = vpop.f32.mrb[0].mxu0
    %v482 = vadd.f32 %v386, %v481
    %v483 = vpop.f32.mrb[0].mxu0
    %484 = vmatprep.mubr.f32.mxu0 0.0
    %485 = vmatmul.mubr.f32.gmra.mrb[0].mxu0 %v392
    %v486 = vpop.f32.mrb[0].mxu0
    %v487 = vadd.f32 %v386, %v486
    %v488 = vpop.f32.mrb[0].mxu0
    %489 = vmatprep.mubr.f32.mxu0 0.0
    %490 = vmatmul.mubr.f32.gmra.mrb[0].mxu0 %v395
    %v491 = vpop.f32.mrb[0].mxu0
    %v492 = vadd.f32 %v386, %v491
    %v493 = vpop.f32.mrb[0].mxu0
    %494 = vmatprep.mubr.f32.mxu0 0.0
    %495 = vmatmul.mubr.f32.gmra.mrb[0].mxu0 %v398
    %v496 = vpop.f32.mrb[0].mxu0
    %v497 = vadd.f32 %v386, %v496
    %v498 = vpop.f32.mrb[0].mxu0
    %499 = vmatprep.mubr.f32.mxu0 0.0
    %500 = vmatmul.mubr.f32.gmra.mrb[0].mxu0 %v401
    %v501 = vpop.f32.mrb[0].mxu0
    %v502 = vadd.f32 %v386, %v501
    %v503 = vpop.f32.mrb[0].mxu0
    %504 = vmatprep.mubr.f32.mxu0 0.0
    %505 = vmatmul.mubr.f32.gmra.mrb[0].mxu0 %v404
    %v506 = vpop.f32.mrb[0].mxu0
    %v507 = vadd.f32 %v386, %v506
    %v508 = vpop.f32.mrb[0].mxu0
    %509 = vmatprep.mubr.f32.mxu0 0.0
    %510 = vmatmul.mubr.f32.gmra.mrb[0].mxu0 %v407
    %v511 = vpop.f32.mrb[0].mxu0
    %v512 = vadd.f32 %v386, %v511
    %v513 = vpop.f32.mrb[0].mxu0
    %514 = vmatprep.mubr.f32.mxu0 0.0
    %515 = vmatmul.mubr.f32.gmra.mrb[0].mxu0 %v410
    %v516 = vpop.f32.mrb[0].mxu0
    %v517 = vadd.f32 %v386, %v516
    %v518 = vpop.f32.mrb[0].mxu0
    %519 = vdwg.mxu0
    %520 = vst [vmem:[#allocation4] sm:$0xff] %v482
    %521 = vst [vmem:[#allocation4 + $0x8] sm:$0xff] %v487
    %522 = vst [vmem:[#allocation4 + $0x10] sm:$0xff] %v492
    %523 = vst [vmem:[#allocation4 + $0x18] sm:$0xff] %v497
    %524 = vst [vmem:[#allocation4 + $0x20] sm:$0xff] %v502
    %525 = vst [vmem:[#allocation4 + $0x28] sm:$0xff] %v507
    %526 = vst [vmem:[#allocation4 + $0x30] sm:$0xff] %v512
    %527 = vst [vmem:[#allocation4 + $0x38] sm:$0xff] %v517
    %v528 = vld [vmem:[%s45] sm:$0x7f]
    %v529 = vld [vmem:[%s51] sm:$0x1]
    %v531 = vlaneseq
    %v532 = vshrl.u32 %v531, 7
    %v533 = vsub.s32 0, %v532
    %v534 = vrot.slane %v529, %v533
    %v537 = vsel %vm175, %v528, 0
    %539 = vmatprep.subr.mxu0 0.0
    %540 = vmatpush1.msra.mxu0 %v537
    %541 = vmatprep.subr.mxu0 0.0
    %542 = vmatpush1.msra.mxu0 0.0
    %543 = vmatprep.subr.mxu0 0.0
    %544 = vmatpush1.msra.mxu0 0.0
    %545 = vmatprep.subr.mxu0 0.0
    %546 = vmatpush1.msra.mxu0 0.0
    %547 = vmatprep.subr.mxu0 0.0
    %548 = vmatpush1.msra.mxu0 0.0
    %549 = vmatprep.subr.mxu0 0.0
    %550 = vmatpush1.msra.mxu0 0.0
    %551 = vmatprep.subr.mxu0 0.0
    %552 = vmatpush1.msra.mxu0 0.0
    %553 = vmatprep.subr.mxu0 0.0
    %554 = vmatpush1.msra.mxu0 0.0
    %555 = vmatprep.subr.mxu0 0.0
    %556 = vmatpush1.msra.mxu0 0.0
    %557 = vmatprep.subr.mxu0 0.0
    %558 = vmatpush1.msra.mxu0 0.0
    %559 = vmatprep.subr.mxu0 0.0
    %560 = vmatpush1.msra.mxu0 0.0
    %561 = vmatprep.subr.mxu0 0.0
    %562 = vmatpush1.msra.mxu0 0.0
    %563 = vmatprep.subr.mxu0 0.0
    %564 = vmatpush1.msra.mxu0 0.0
    %565 = vmatprep.subr.mxu0 0.0
    %566 = vmatpush1.msra.mxu0 0.0
    %567 = vmatprep.subr.mxu0 0.0
    %568 = vmatpush1.msra.mxu0 0.0
    %569 = vmatprep.subr.mxu0 0.0
    %570 = vmatpush1.msra.mxu0 0.0
    %571 = vmatprep.subr.mxu0 0.0
    %572 = vmatpush1.msra.mxu0 0.0
    %573 = vmatprep.subr.mxu0 0.0
    %574 = vmatpush1.msra.mxu0 0.0
    %575 = vmatprep.subr.mxu0 0.0
    %576 = vmatpush1.msra.mxu0 0.0
    %577 = vmatprep.subr.mxu0 0.0
    %578 = vmatpush1.msra.mxu0 0.0
    %579 = vmatprep.subr.mxu0 0.0
    %580 = vmatpush1.msra.mxu0 0.0
    %581 = vmatprep.subr.mxu0 0.0
    %582 = vmatpush1.msra.mxu0 0.0
    %583 = vmatprep.subr.mxu0 0.0
    %584 = vmatpush1.msra.mxu0 0.0
    %585 = vmatprep.subr.mxu0 0.0
    %586 = vmatpush1.msra.mxu0 0.0
    %587 = vmatprep.subr.mxu0 0.0
    %588 = vmatpush1.msra.mxu0 0.0
    %589 = vmatprep.subr.mxu0 0.0
    %590 = vmatpush1.msra.mxu0 0.0
    %591 = vmatprep.subr.mxu0 0.0
    %592 = vmatpush1.msra.mxu0 0.0
    %593 = vmatprep.subr.mxu0 0.0
    %594 = vmatpush1.msra.mxu0 0.0
    %595 = vmatprep.subr.mxu0 0.0
    %596 = vmatpush1.msra.mxu0 0.0
    %597 = vmatprep.subr.mxu0 0.0
    %598 = vmatpush1.msra.mxu0 0.0
    %599 = vmatprep.subr.mxu0 0.0
    %600 = vmatpush1.msra.mxu0 0.0
    %601 = vmatprep.subr.mxu0 0.0
    %602 = vmatpush1.msra.mxu0 0.0
    %603 = vmatprep.mubr.f32.mxu0 0.0
    %604 = vmatmul.mubr.f32.gmra.mrb[0].mxu0 %v389
    %v605 = vpop.f32.mrb[0].mxu0
    %v606 = vadd.f32 %v534, %v605
    %v607 = vpop.f32.mrb[0].mxu0
    %608 = vmatprep.mubr.f32.mxu0 0.0
    %609 = vmatmul.mubr.f32.gmra.mrb[0].mxu0 %v392
    %v610 = vpop.f32.mrb[0].mxu0
    %v611 = vadd.f32 %v534, %v610
    %v612 = vpop.f32.mrb[0].mxu0
    %613 = vmatprep.mubr.f32.mxu0 0.0
    %614 = vmatmul.mubr.f32.gmra.mrb[0].mxu0 %v395
    %v615 = vpop.f32.mrb[0].mxu0
    %v616 = vadd.f32 %v534, %v615
    %v617 = vpop.f32.mrb[0].mxu0
    %618 = vmatprep.mubr.f32.mxu0 0.0
    %619 = vmatmul.mubr.f32.gmra.mrb[0].mxu0 %v398
    %v620 = vpop.f32.mrb[0].mxu0
    %v621 = vadd.f32 %v534, %v620
    %v622 = vpop.f32.mrb[0].mxu0
    %623 = vmatprep.mubr.f32.mxu0 0.0
    %624 = vmatmul.mubr.f32.gmra.mrb[0].mxu0 %v401
    %v625 = vpop.f32.mrb[0].mxu0
    %v626 = vadd.f32 %v534, %v625
    %v627 = vpop.f32.mrb[0].mxu0
    %628 = vmatprep.mubr.f32.mxu0 0.0
    %629 = vmatmul.mubr.f32.gmra.mrb[0].mxu0 %v404
    %v630 = vpop.f32.mrb[0].mxu0
    %v631 = vadd.f32 %v534, %v630
    %v632 = vpop.f32.mrb[0].mxu0
    %633 = vmatprep.mubr.f32.mxu0 0.0
    %634 = vmatmul.mubr.f32.gmra.mrb[0].mxu0 %v407
    %v635 = vpop.f32.mrb[0].mxu0
    %v636 = vadd.f32 %v534, %v635
    %v637 = vpop.f32.mrb[0].mxu0
    %638 = vmatprep.mubr.f32.mxu0 0.0
    %639 = vmatmul.mubr.f32.gmra.mrb[0].mxu0 %v410
    %v640 = vpop.f32.mrb[0].mxu0
    %v641 = vadd.f32 %v534, %v640
    %v642 = vpop.f32.mrb[0].mxu0
    %643 = vdwg.mxu0
    %644 = vst [vmem:[#allocation5] sm:$0xff] %v606
    %645 = vst [vmem:[#allocation5 + $0x8] sm:$0xff] %v611
    %646 = vst [vmem:[#allocation5 + $0x10] sm:$0xff] %v616
    %647 = vst [vmem:[#allocation5 + $0x18] sm:$0xff] %v621
    %648 = vst [vmem:[#allocation5 + $0x20] sm:$0xff] %v626
    %649 = vst [vmem:[#allocation5 + $0x28] sm:$0xff] %v631
    %650 = vst [vmem:[#allocation5 + $0x30] sm:$0xff] %v636
    %651 = vst [vmem:[#allocation5 + $0x38] sm:$0xff] %v641
    %v652 = vld [vmem:[#allocation2] sm:$0xff]
    %v653 = vld [vmem:[#allocation3] sm:$0xff]
    %v654 = vld [vmem:[%s9] sm:$0xff]
    %v655 = vld [vmem:[%s9 + $0x8] sm:$0xff]
    %v656 = vld [vmem:[%s9 + $0x10] sm:$0xff]
    %v657 = vld [vmem:[%s9 + $0x18] sm:$0xff]
    %vm658 = vcmask 261120
    %v660 = vsel %vm658, 0.0, 0
    %662 = vmatprep.subr.mxu0 0.0
    %663 = vmatpush1.msra.mxu0 %v654
    %664 = vmatprep.subr.mxu0 0.0
    %665 = vmatpush1.msra.mxu0 %v655
    %666 = vmatprep.subr.mxu0 0.0
    %667 = vmatpush1.msra.mxu0 %v656
    %668 = vmatprep.subr.mxu0 0.0
    %669 = vmatpush1.msra.mxu0 %v657
    %670 = vmatprep.subr.mxu0 0.0
    %671 = vmatpush1.msra.mxu0 0.0
    %672 = vmatprep.subr.mxu0 0.0
    %673 = vmatpush1.msra.mxu0 0.0
    %674 = vmatprep.subr.mxu0 0.0
    %675 = vmatpush1.msra.mxu0 0.0
    %676 = vmatprep.subr.mxu0 0.0
    %677 = vmatpush1.msra.mxu0 0.0
    %678 = vmatprep.subr.mxu0 0.0
    %679 = vmatpush1.msra.mxu0 0.0
    %680 = vmatprep.subr.mxu0 0.0
    %681 = vmatpush1.msra.mxu0 0.0
    %682 = vmatprep.subr.mxu0 0.0
    %683 = vmatpush1.msra.mxu0 0.0
    %684 = vmatprep.subr.mxu0 0.0
    %685 = vmatpush1.msra.mxu0 0.0
    %686 = vmatprep.subr.mxu0 0.0
    %687 = vmatpush1.msra.mxu0 0.0
    %688 = vmatprep.subr.mxu0 0.0
    %689 = vmatpush1.msra.mxu0 0.0
    %690 = vmatprep.subr.mxu0 0.0
    %691 = vmatpush1.msra.mxu0 0.0
    %692 = vmatprep.subr.mxu0 0.0
    %693 = vmatpush1.msra.mxu0 0.0
    %694 = vmatprep.subr.mxu0 0.0
    %695 = vmatpush1.msra.mxu0 0.0
    %696 = vmatprep.subr.mxu0 0.0
    %697 = vmatpush1.msra.mxu0 0.0
    %698 = vmatprep.subr.mxu0 0.0
    %699 = vmatpush1.msra.mxu0 0.0
    %700 = vmatprep.subr.mxu0 0.0
    %701 = vmatpush1.msra.mxu0 0.0
    %702 = vmatprep.subr.mxu0 0.0
    %703 = vmatpush1.msra.mxu0 0.0
    %704 = vmatprep.subr.mxu0 0.0
    %705 = vmatpush1.msra.mxu0 0.0
    %706 = vmatprep.subr.mxu0 0.0
    %707 = vmatpush1.msra.mxu0 0.0
    %708 = vmatprep.subr.mxu0 0.0
    %709 = vmatpush1.msra.mxu0 0.0
    %710 = vmatprep.subr.mxu0 0.0
    %711 = vmatpush1.msra.mxu0 0.0
    %712 = vmatprep.subr.mxu0 0.0
    %713 = vmatpush1.msra.mxu0 0.0
    %714 = vmatprep.subr.mxu0 0.0
    %715 = vmatpush1.msra.mxu0 0.0
    %716 = vmatprep.subr.mxu0 0.0
    %717 = vmatpush1.msra.mxu0 0.0
    %718 = vmatprep.subr.mxu0 0.0
    %719 = vmatpush1.msra.mxu0 0.0
    %720 = vmatprep.subr.mxu0 0.0
    %721 = vmatpush1.msra.mxu0 0.0
    %722 = vmatprep.subr.mxu0 0.0
    %723 = vmatpush1.msra.mxu0 0.0
    %724 = vmatprep.subr.mxu0 0.0
    %725 = vmatpush1.msra.mxu0 0.0
    %726 = vmatprep.mubr.f32.mxu0 0.0
    %727 = vmatmul.mubr.f32.gmra.mrb[0].mxu0 %v660
    %v728 = vpop.f32.mrb[0].mxu0
    %v729 = vadd.f32 0.0, %v728
    %v730 = vpop.f32.mrb[0].mxu0
    %731 = vdwg.mxu0
    %v732 = vadd.f32 %v652, %v729
    %v733 = vxor.u32 %v732, 2147483648
    %v734 = vmul.f32 %v733, 1.442695
    %v735 = vpow.pop %v734
    %v736 = vadd.f32 %v735, 1.0
    %v737 = vrcp.pop %v736
    %v738 = vmul.f32 1.0, %v737
    %v739 = vtanh.pop %v732
    %v740 = vmul.f32 %v738, 0.0
    %742 = vrot.lane.b32.xlu0 %v739, 64
    %v743 = vpop.permute.xlu0 %742
    %v745 = vmul.f32 %v738, %v743
    %747 = vrot.lane.b32.xlu0 %v745, 32
    %v748 = vpop.permute.xlu0 %747
    %v750 = vadd.f32 %v740, %v748
    %v751 = vtanh.pop %v750
    %753 = vrot.lane.b32.xlu0 %v751, 64
    %v754 = vpop.permute.xlu0 %753
    %v756 = vmul.f32 %v738, %v754
    %758 = vrot.lane.b32.xlu0 %v756, 32
    %v759 = vpop.permute.xlu0 %758
    %v761 = vsel %vm658, %v759, 0.0
    %v762 = vld [vmem:[%s13] sm:$0xff]
    %v763 = vld [vmem:[%s13 + $0x8] sm:$0xff]
    %v764 = vld [vmem:[%s13 + $0x10] sm:$0xff]
    %v765 = vld [vmem:[%s13 + $0x18] sm:$0xff]
    %v766 = vld [vmem:[%s13 + $0x20] sm:$0xff]
    %v767 = vld [vmem:[%s13 + $0x28] sm:$0xff]
    %v768 = vld [vmem:[%s13 + $0x30] sm:$0xff]
    %v769 = vld [vmem:[%s13 + $0x38] sm:$0xff]
    %v770 = vld [vmem:[%s15] sm:$0x1]
    %v772 = vlaneseq
    %v773 = vshrl.u32 %v772, 7
    %v774 = vsub.s32 0, %v773
    %v775 = vrot.slane %v770, %v774
    %vm777 = vcmask 523264
    %v779 = vsel %vm777, %v761, 0
    %781 = vmatprep.subr.mxu0 0.0
    %782 = vmatpush1.msra.mxu0 %v762
    %783 = vmatprep.subr.mxu0 0.0
    %784 = vmatpush1.msra.mxu0 %v763
    %785 = vmatprep.subr.mxu0 0.0
    %786 = vmatpush1.msra.mxu0 %v764
    %787 = vmatprep.subr.mxu0 0.0
    %788 = vmatpush1.msra.mxu0 %v765
    %789 = vmatprep.subr.mxu0 0.0
    %790 = vmatpush1.msra.mxu0 %v766
    %791 = vmatprep.subr.mxu0 0.0
    %792 = vmatpush1.msra.mxu0 %v767
    %793 = vmatprep.subr.mxu0 0.0
    %794 = vmatpush1.msra.mxu0 %v768
    %795 = vmatprep.subr.mxu0 0.0
    %796 = vmatpush1.msra.mxu0 %v769
    %797 = vmatprep.subr.mxu0 0.0
    %798 = vmatpush1.msra.mxu0 0.0
    %799 = vmatprep.subr.mxu0 0.0
    %800 = vmatpush1.msra.mxu0 0.0
    %801 = vmatprep.subr.mxu0 0.0
    %802 = vmatpush1.msra.mxu0 0.0
    %803 = vmatprep.subr.mxu0 0.0
    %804 = vmatpush1.msra.mxu0 0.0
    %805 = vmatprep.subr.mxu0 0.0
    %806 = vmatpush1.msra.mxu0 0.0
    %807 = vmatprep.subr.mxu0 0.0
    %808 = vmatpush1.msra.mxu0 0.0
    %809 = vmatprep.subr.mxu0 0.0
    %810 = vmatpush1.msra.mxu0 0.0
    %811 = vmatprep.subr.mxu0 0.0
    %812 = vmatpush1.msra.mxu0 0.0
    %813 = vmatprep.subr.mxu0 0.0
    %814 = vmatpush1.msra.mxu0 0.0
    %815 = vmatprep.subr.mxu0 0.0
    %816 = vmatpush1.msra.mxu0 0.0
    %817 = vmatprep.subr.mxu0 0.0
    %818 = vmatpush1.msra.mxu0 0.0
    %819 = vmatprep.subr.mxu0 0.0
    %820 = vmatpush1.msra.mxu0 0.0
    %821 = vmatprep.subr.mxu0 0.0
    %822 = vmatpush1.msra.mxu0 0.0
    %823 = vmatprep.subr.mxu0 0.0
    %824 = vmatpush1.msra.mxu0 0.0
    %825 = vmatprep.subr.mxu0 0.0
    %826 = vmatpush1.msra.mxu0 0.0
    %827 = vmatprep.subr.mxu0 0.0
    %828 = vmatpush1.msra.mxu0 0.0
    %829 = vmatprep.subr.mxu0 0.0
    %830 = vmatpush1.msra.mxu0 0.0
    %831 = vmatprep.subr.mxu0 0.0
    %832 = vmatpush1.msra.mxu0 0.0
    %833 = vmatprep.subr.mxu0 0.0
    %834 = vmatpush1.msra.mxu0 0.0
    %835 = vmatprep.subr.mxu0 0.0
    %836 = vmatpush1.msra.mxu0 0.0
    %837 = vmatprep.subr.mxu0 0.0
    %838 = vmatpush1.msra.mxu0 0.0
    %839 = vmatprep.subr.mxu0 0.0
    %840 = vmatpush1.msra.mxu0 0.0
    %841 = vmatprep.subr.mxu0 0.0
    %842 = vmatpush1.msra.mxu0 0.0
    %843 = vmatprep.subr.mxu0 0.0
    %844 = vmatpush1.msra.mxu0 0.0
    %845 = vmatprep.mubr.f32.mxu0 0.0
    %846 = vmatmul.mubr.f32.gmra.mrb[0].mxu0 %v779
    %v847 = vpop.f32.mrb[0].mxu0
    %v848 = vadd.f32 %v775, %v847
    %v849 = vpop.f32.mrb[0].mxu0
    %850 = vdwg.mxu0
    %v851 = vxor.u32 %v848, 2147483648
    %v852 = vmul.f32 %v851, 1.442695
    %v853 = vpow.pop %v852
    %v854 = vadd.f32 %v853, 1.0
    %v855 = vrcp.pop %v854
    %v856 = vmul.f32 1.0, %v855
    %v857 = vtanh.pop %v848
    %v858 = vmul.f32 %v856, 0.0
    %860 = vrot.lane.b32.xlu0 %v857, 64
    %v861 = vpop.permute.xlu0 %860
    %v863 = vmul.f32 %v856, %v861
    %865 = vrot.lane.b32.xlu0 %v863, 32
    %v866 = vpop.permute.xlu0 %865
    %v868 = vadd.f32 %v858, %v866
    %v869 = vtanh.pop %v868
    %871 = vrot.lane.b32.xlu0 %v869, 64
    %v872 = vpop.permute.xlu0 %871
    %v874 = vmul.f32 %v856, %v872
    %v875 = vld [vmem:[%s37] sm:$0xff]
    %v876 = vld [vmem:[%s37 + $0x8] sm:$0xff]
    %v877 = vld [vmem:[%s37 + $0x10] sm:$0xff]
    %v878 = vld [vmem:[%s37 + $0x18] sm:$0xff]
    %879 = vmatprep.subr.mxu0 0.0
    %880 = vmatpush1.msra.mxu0 %v875
    %881 = vmatprep.subr.mxu0 0.0
    %882 = vmatpush1.msra.mxu0 %v876
    %883 = vmatprep.subr.mxu0 0.0
    %884 = vmatpush1.msra.mxu0 %v877
    %885 = vmatprep.subr.mxu0 0.0
    %886 = vmatpush1.msra.mxu0 %v878
    %887 = vmatprep.subr.mxu0 0.0
    %888 = vmatpush1.msra.mxu0 0.0
    %889 = vmatprep.subr.mxu0 0.0
    %890 = vmatpush1.msra.mxu0 0.0
    %891 = vmatprep.subr.mxu0 0.0
    %892 = vmatpush1.msra.mxu0 0.0
    %893 = vmatprep.subr.mxu0 0.0
    %894 = vmatpush1.msra.mxu0 0.0
    %895 = vmatprep.subr.mxu0 0.0
    %896 = vmatpush1.msra.mxu0 0.0
    %897 = vmatprep.subr.mxu0 0.0
    %898 = vmatpush1.msra.mxu0 0.0
    %899 = vmatprep.subr.mxu0 0.0
    %900 = vmatpush1.msra.mxu0 0.0
    %901 = vmatprep.subr.mxu0 0.0
    %902 = vmatpush1.msra.mxu0 0.0
    %903 = vmatprep.subr.mxu0 0.0
    %904 = vmatpush1.msra.mxu0 0.0
    %905 = vmatprep.subr.mxu0 0.0
    %906 = vmatpush1.msra.mxu0 0.0
    %907 = vmatprep.subr.mxu0 0.0
    %908 = vmatpush1.msra.mxu0 0.0
    %909 = vmatprep.subr.mxu0 0.0
    %910 = vmatpush1.msra.mxu0 0.0
    %911 = vmatprep.subr.mxu0 0.0
    %912 = vmatpush1.msra.mxu0 0.0
    %913 = vmatprep.subr.mxu0 0.0
    %914 = vmatpush1.msra.mxu0 0.0
    %915 = vmatprep.subr.mxu0 0.0
    %916 = vmatpush1.msra.mxu0 0.0
    %917 = vmatprep.subr.mxu0 0.0
    %918 = vmatpush1.msra.mxu0 0.0
    %919 = vmatprep.subr.mxu0 0.0
    %920 = vmatpush1.msra.mxu0 0.0
    %921 = vmatprep.subr.mxu0 0.0
    %922 = vmatpush1.msra.mxu0 0.0
    %923 = vmatprep.subr.mxu0 0.0
    %924 = vmatpush1.msra.mxu0 0.0
    %925 = vmatprep.subr.mxu0 0.0
    %926 = vmatpush1.msra.mxu0 0.0
    %927 = vmatprep.subr.mxu0 0.0
    %928 = vmatpush1.msra.mxu0 0.0
    %929 = vmatprep.subr.mxu0 0.0
    %930 = vmatpush1.msra.mxu0 0.0
    %931 = vmatprep.subr.mxu0 0.0
    %932 = vmatpush1.msra.mxu0 0.0
    %933 = vmatprep.subr.mxu0 0.0
    %934 = vmatpush1.msra.mxu0 0.0
    %935 = vmatprep.subr.mxu0 0.0
    %936 = vmatpush1.msra.mxu0 0.0
    %937 = vmatprep.subr.mxu0 0.0
    %938 = vmatpush1.msra.mxu0 0.0
    %939 = vmatprep.subr.mxu0 0.0
    %940 = vmatpush1.msra.mxu0 0.0
    %941 = vmatprep.subr.mxu0 0.0
    %942 = vmatpush1.msra.mxu0 0.0
    %943 = vmatprep.mubr.f32.mxu0 0.0
    %944 = vmatmul.mubr.f32.gmra.mrb[0].mxu0 %v660
    %v945 = vpop.f32.mrb[0].mxu0
    %v946 = vadd.f32 0.0, %v945
    %v947 = vpop.f32.mrb[0].mxu0
    %948 = vdwg.mxu0
    %v949 = vadd.f32 %v653, %v946
    %v950 = vxor.u32 %v949, 2147483648
    %v951 = vmul.f32 %v950, 1.442695
    %v952 = vpow.pop %v951
    %v953 = vadd.f32 %v952, 1.0
    %v954 = vrcp.pop %v953
    %v955 = vmul.f32 1.0, %v954
    %v956 = vtanh.pop %v949
    %v957 = vmul.f32 %v955, 0.0
    %959 = vrot.lane.b32.xlu0 %v956, 64
    %v960 = vpop.permute.xlu0 %959
    %v962 = vmul.f32 %v955, %v960
    %964 = vrot.lane.b32.xlu0 %v962, 32
    %v965 = vpop.permute.xlu0 %964
    %v967 = vadd.f32 %v957, %v965
    %v968 = vtanh.pop %v967
    %970 = vrot.lane.b32.xlu0 %v968, 64
    %v971 = vpop.permute.xlu0 %970
    %v973 = vmul.f32 %v955, %v971
    %975 = vrot.lane.b32.xlu0 %v973, 32
    %v976 = vpop.permute.xlu0 %975
    %v978 = vsel %vm658, %v976, 0.0
    %v979 = vld [vmem:[%s41] sm:$0xff]
    %v980 = vld [vmem:[%s41 + $0x8] sm:$0xff]
    %v981 = vld [vmem:[%s41 + $0x10] sm:$0xff]
    %v982 = vld [vmem:[%s41 + $0x18] sm:$0xff]
    %v983 = vld [vmem:[%s41 + $0x20] sm:$0xff]
    %v984 = vld [vmem:[%s41 + $0x28] sm:$0xff]
    %v985 = vld [vmem:[%s41 + $0x30] sm:$0xff]
    %v986 = vld [vmem:[%s41 + $0x38] sm:$0xff]
    %v987 = vld [vmem:[%s43] sm:$0x1]
    %v989 = vlaneseq
    %v990 = vshrl.u32 %v989, 7
    %v991 = vsub.s32 0, %v990
    %v992 = vrot.slane %v987, %v991
    %v995 = vsel %vm777, %v978, 0
    %997 = vmatprep.subr.mxu0 0.0
    %998 = vmatpush1.msra.mxu0 %v979
    %999 = vmatprep.subr.mxu0 0.0
    %1000 = vmatpush1.msra.mxu0 %v980
    %1001 = vmatprep.subr.mxu0 0.0
    %1002 = vmatpush1.msra.mxu0 %v981
    %1003 = vmatprep.subr.mxu0 0.0
    %1004 = vmatpush1.msra.mxu0 %v982
    %1005 = vmatprep.subr.mxu0 0.0
    %1006 = vmatpush1.msra.mxu0 %v983
    %1007 = vmatprep.subr.mxu0 0.0
    %1008 = vmatpush1.msra.mxu0 %v984
    %1009 = vmatprep.subr.mxu0 0.0
    %1010 = vmatpush1.msra.mxu0 %v985
    %1011 = vmatprep.subr.mxu0 0.0
    %1012 = vmatpush1.msra.mxu0 %v986
    %1013 = vmatprep.subr.mxu0 0.0
    %1014 = vmatpush1.msra.mxu0 0.0
    %1015 = vmatprep.subr.mxu0 0.0
    %1016 = vmatpush1.msra.mxu0 0.0
    %1017 = vmatprep.subr.mxu0 0.0
    %1018 = vmatpush1.msra.mxu0 0.0
    %1019 = vmatprep.subr.mxu0 0.0
    %1020 = vmatpush1.msra.mxu0 0.0
    %1021 = vmatprep.subr.mxu0 0.0
    %1022 = vmatpush1.msra.mxu0 0.0
    %1023 = vmatprep.subr.mxu0 0.0
    %1024 = vmatpush1.msra.mxu0 0.0
    %1025 = vmatprep.subr.mxu0 0.0
    %1026 = vmatpush1.msra.mxu0 0.0
    %1027 = vmatprep.subr.mxu0 0.0
    %1028 = vmatpush1.msra.mxu0 0.0
    %1029 = vmatprep.subr.mxu0 0.0
    %1030 = vmatpush1.msra.mxu0 0.0
    %1031 = vmatprep.subr.mxu0 0.0
    %1032 = vmatpush1.msra.mxu0 0.0
    %1033 = vmatprep.subr.mxu0 0.0
    %1034 = vmatpush1.msra.mxu0 0.0
    %1035 = vmatprep.subr.mxu0 0.0
    %1036 = vmatpush1.msra.mxu0 0.0
    %1037 = vmatprep.subr.mxu0 0.0
    %1038 = vmatpush1.msra.mxu0 0.0
    %1039 = vmatprep.subr.mxu0 0.0
    %1040 = vmatpush1.msra.mxu0 0.0
    %1041 = vmatprep.subr.mxu0 0.0
    %1042 = vmatpush1.msra.mxu0 0.0
    %1043 = vmatprep.subr.mxu0 0.0
    %1044 = vmatpush1.msra.mxu0 0.0
    %1045 = vmatprep.subr.mxu0 0.0
    %1046 = vmatpush1.msra.mxu0 0.0
    %1047 = vmatprep.subr.mxu0 0.0
    %1048 = vmatpush1.msra.mxu0 0.0
    %1049 = vmatprep.subr.mxu0 0.0
    %1050 = vmatpush1.msra.mxu0 0.0
    %1051 = vmatprep.subr.mxu0 0.0
    %1052 = vmatpush1.msra.mxu0 0.0
    %1053 = vmatprep.subr.mxu0 0.0
    %1054 = vmatpush1.msra.mxu0 0.0
    %1055 = vmatprep.subr.mxu0 0.0
    %1056 = vmatpush1.msra.mxu0 0.0
    %1057 = vmatprep.subr.mxu0 0.0
    %1058 = vmatpush1.msra.mxu0 0.0
    %1059 = vmatprep.subr.mxu0 0.0
    %1060 = vmatpush1.msra.mxu0 0.0
    %1061 = vmatprep.mubr.f32.mxu0 0.0
    %1062 = vmatmul.mubr.f32.gmra.mrb[0].mxu0 %v995
    %v1063 = vpop.f32.mrb[0].mxu0
    %v1064 = vadd.f32 %v992, %v1063
    %v1065 = vpop.f32.mrb[0].mxu0
    %1066 = vdwg.mxu0
    %v1067 = vxor.u32 %v1064, 2147483648
    %v1068 = vmul.f32 %v1067, 1.442695
    %v1069 = vpow.pop %v1068
    %v1070 = vadd.f32 %v1069, 1.0
    %v1071 = vrcp.pop %v1070
    %v1072 = vmul.f32 1.0, %v1071
    %v1073 = vtanh.pop %v1064
    %v1074 = vmul.f32 %v1072, 0.0
    %1076 = vrot.lane.b32.xlu0 %v1073, 64
    %v1077 = vpop.permute.xlu0 %1076
    %v1079 = vmul.f32 %v1072, %v1077
    %1081 = vrot.lane.b32.xlu0 %v1079, 32
    %v1082 = vpop.permute.xlu0 %1081
    %v1084 = vadd.f32 %v1074, %v1082
    %v1085 = vtanh.pop %v1084
    %1087 = vrot.lane.b32.xlu0 %v1085, 64
    %v1088 = vpop.permute.xlu0 %1087
    %v1090 = vmul.f32 %v1072, %v1088
    %s1091 = scalar_lea.vmem [#allocation2], 8
    %v1092 = vld [vmem:[%s1091] sm:$0xff]
    %s1093 = scalar_lea.vmem [#allocation3], 8
    %v1094 = vld [vmem:[%s1093] sm:$0xff]
    %v1095 = vsel %vm658, %v759, 0
    %1097 = vmatprep.subr.mxu0 0.0
    %1098 = vmatpush1.msra.mxu0 %v654
    %1099 = vmatprep.subr.mxu0 0.0
    %1100 = vmatpush1.msra.mxu0 %v655
    %1101 = vmatprep.subr.mxu0 0.0
    %1102 = vmatpush1.msra.mxu0 %v656
    %1103 = vmatprep.subr.mxu0 0.0
    %1104 = vmatpush1.msra.mxu0 %v657
    %1105 = vmatprep.subr.mxu0 0.0
    %1106 = vmatpush1.msra.mxu0 0.0
    %1107 = vmatprep.subr.mxu0 0.0
    %1108 = vmatpush1.msra.mxu0 0.0
    %1109 = vmatprep.subr.mxu0 0.0
    %1110 = vmatpush1.msra.mxu0 0.0
    %1111 = vmatprep.subr.mxu0 0.0
    %1112 = vmatpush1.msra.mxu0 0.0
    %1113 = vmatprep.subr.mxu0 0.0
    %1114 = vmatpush1.msra.mxu0 0.0
    %1115 = vmatprep.subr.mxu0 0.0
    %1116 = vmatpush1.msra.mxu0 0.0
    %1117 = vmatprep.subr.mxu0 0.0
    %1118 = vmatpush1.msra.mxu0 0.0
    %1119 = vmatprep.subr.mxu0 0.0
    %1120 = vmatpush1.msra.mxu0 0.0
    %1121 = vmatprep.subr.mxu0 0.0
    %1122 = vmatpush1.msra.mxu0 0.0
    %1123 = vmatprep.subr.mxu0 0.0
    %1124 = vmatpush1.msra.mxu0 0.0
    %1125 = vmatprep.subr.mxu0 0.0
    %1126 = vmatpush1.msra.mxu0 0.0
    %1127 = vmatprep.subr.mxu0 0.0
    %1128 = vmatpush1.msra.mxu0 0.0
    %1129 = vmatprep.subr.mxu0 0.0
    %1130 = vmatpush1.msra.mxu0 0.0
    %1131 = vmatprep.subr.mxu0 0.0
    %1132 = vmatpush1.msra.mxu0 0.0
    %1133 = vmatprep.subr.mxu0 0.0
    %1134 = vmatpush1.msra.mxu0 0.0
    %1135 = vmatprep.subr.mxu0 0.0
    %1136 = vmatpush1.msra.mxu0 0.0
    %1137 = vmatprep.subr.mxu0 0.0
    %1138 = vmatpush1.msra.mxu0 0.0
    %1139 = vmatprep.subr.mxu0 0.0
    %1140 = vmatpush1.msra.mxu0 0.0
    %1141 = vmatprep.subr.mxu0 0.0
    %1142 = vmatpush1.msra.mxu0 0.0
    %1143 = vmatprep.subr.mxu0 0.0
    %1144 = vmatpush1.msra.mxu0 0.0
    %1145 = vmatprep.subr.mxu0 0.0
    %1146 = vmatpush1.msra.mxu0 0.0
    %1147 = vmatprep.subr.mxu0 0.0
    %1148 = vmatpush1.msra.mxu0 0.0
    %1149 = vmatprep.subr.mxu0 0.0
    %1150 = vmatpush1.msra.mxu0 0.0
    %1151 = vmatprep.subr.mxu0 0.0
    %1152 = vmatpush1.msra.mxu0 0.0
    %1153 = vmatprep.subr.mxu0 0.0
    %1154 = vmatpush1.msra.mxu0 0.0
    %1155 = vmatprep.subr.mxu0 0.0
    %1156 = vmatpush1.msra.mxu0 0.0
    %1157 = vmatprep.subr.mxu0 0.0
    %1158 = vmatpush1.msra.mxu0 0.0
    %1159 = vmatprep.subr.mxu0 0.0
    %1160 = vmatpush1.msra.mxu0 0.0
    %1161 = vmatprep.mubr.f32.mxu0 0.0
    %1162 = vmatmul.mubr.f32.gmra.mrb[0].mxu0 %v1095
    %v1163 = vpop.f32.mrb[0].mxu0
    %v1164 = vadd.f32 0.0, %v1163
    %v1165 = vpop.f32.mrb[0].mxu0
    %1166 = vdwg.mxu0
    %v1167 = vadd.f32 %v1092, %v1164
    %v1168 = vxor.u32 %v1167, 2147483648
    %v1169 = vmul.f32 %v1168, 1.442695
    %v1170 = vpow.pop %v1169
    %v1171 = vadd.f32 %v1170, 1.0
    %v1172 = vrcp.pop %v1171
    %v1173 = vmul.f32 1.0, %v1172
    %v1174 = vtanh.pop %v1167
    %v1175 = vmul.f32 %v1173, %v750
    %1177 = vrot.lane.b32.xlu0 %v1174, 64
    %v1178 = vpop.permute.xlu0 %1177
    %v1180 = vmul.f32 %v1173, %v1178
    %1182 = vrot.lane.b32.xlu0 %v1180, 32
    %v1183 = vpop.permute.xlu0 %1182
    %v1185 = vadd.f32 %v1175, %v1183
    %v1186 = vtanh.pop %v1185
    %1188 = vrot.lane.b32.xlu0 %v1186, 64
    %v1189 = vpop.permute.xlu0 %1188
    %v1191 = vmul.f32 %v1173, %v1189
    %1193 = vrot.lane.b32.xlu0 %v1191, 32
    %v1194 = vpop.permute.xlu0 %1193
    %1197 = vrot.lane.b32.xlu0 %v874, 64
    %v1198 = vpop.permute.xlu0 %1197
    %v1200 = vsel %vm658, %v1194, %v1198
    %v1202 = vsel %vm777, %v1200, 0
    %1204 = vmatprep.subr.mxu0 0.0
    %1205 = vmatpush1.msra.mxu0 %v762
    %1206 = vmatprep.subr.mxu0 0.0
    %1207 = vmatpush1.msra.mxu0 %v763
    %1208 = vmatprep.subr.mxu0 0.0
    %1209 = vmatpush1.msra.mxu0 %v764
    %1210 = vmatprep.subr.mxu0 0.0
    %1211 = vmatpush1.msra.mxu0 %v765
    %1212 = vmatprep.subr.mxu0 0.0
    %1213 = vmatpush1.msra.mxu0 %v766
    %1214 = vmatprep.subr.mxu0 0.0
    %1215 = vmatpush1.msra.mxu0 %v767
    %1216 = vmatprep.subr.mxu0 0.0
    %1217 = vmatpush1.msra.mxu0 %v768
    %1218 = vmatprep.subr.mxu0 0.0
    %1219 = vmatpush1.msra.mxu0 %v769
    %1220 = vmatprep.subr.mxu0 0.0
    %1221 = vmatpush1.msra.mxu0 0.0
    %1222 = vmatprep.subr.mxu0 0.0
    %1223 = vmatpush1.msra.mxu0 0.0
    %1224 = vmatprep.subr.mxu0 0.0
    %1225 = vmatpush1.msra.mxu0 0.0
    %1226 = vmatprep.subr.mxu0 0.0
    %1227 = vmatpush1.msra.mxu0 0.0
    %1228 = vmatprep.subr.mxu0 0.0
    %1229 = vmatpush1.msra.mxu0 0.0
    %1230 = vmatprep.subr.mxu0 0.0
    %1231 = vmatpush1.msra.mxu0 0.0
    %1232 = vmatprep.subr.mxu0 0.0
    %1233 = vmatpush1.msra.mxu0 0.0
    %1234 = vmatprep.subr.mxu0 0.0
    %1235 = vmatpush1.msra.mxu0 0.0
    %1236 = vmatprep.subr.mxu0 0.0
    %1237 = vmatpush1.msra.mxu0 0.0
    %1238 = vmatprep.subr.mxu0 0.0
    %1239 = vmatpush1.msra.mxu0 0.0
    %1240 = vmatprep.subr.mxu0 0.0
    %1241 = vmatpush1.msra.mxu0 0.0
    %1242 = vmatprep.subr.mxu0 0.0
    %1243 = vmatpush1.msra.mxu0 0.0
    %1244 = vmatprep.subr.mxu0 0.0
    %1245 = vmatpush1.msra.mxu0 0.0
    %1246 = vmatprep.subr.mxu0 0.0
    %1247 = vmatpush1.msra.mxu0 0.0
    %1248 = vmatprep.subr.mxu0 0.0
    %1249 = vmatpush1.msra.mxu0 0.0
    %1250 = vmatprep.subr.mxu0 0.0
    %1251 = vmatpush1.msra.mxu0 0.0
    %1252 = vmatprep.subr.mxu0 0.0
    %1253 = vmatpush1.msra.mxu0 0.0
    %1254 = vmatprep.subr.mxu0 0.0
    %1255 = vmatpush1.msra.mxu0 0.0
    %1256 = vmatprep.subr.mxu0 0.0
    %1257 = vmatpush1.msra.mxu0 0.0
    %1258 = vmatprep.subr.mxu0 0.0
    %1259 = vmatpush1.msra.mxu0 0.0
    %1260 = vmatprep.subr.mxu0 0.0
    %1261 = vmatpush1.msra.mxu0 0.0
    %1262 = vmatprep.subr.mxu0 0.0
    %1263 = vmatpush1.msra.mxu0 0.0
    %1264 = vmatprep.subr.mxu0 0.0
    %1265 = vmatpush1.msra.mxu0 0.0
    %1266 = vmatprep.subr.mxu0 0.0
    %1267 = vmatpush1.msra.mxu0 0.0
    %1268 = vmatprep.mubr.f32.mxu0 0.0
    %1269 = vmatmul.mubr.f32.gmra.mrb[0].mxu0 %v1202
    %v1270 = vpop.f32.mrb[0].mxu0
    %v1271 = vadd.f32 %v775, %v1270
    %v1272 = vpop.f32.mrb[0].mxu0
    %1273 = vdwg.mxu0
    %v1274 = vxor.u32 %v1271, 2147483648
    %v1275 = vmul.f32 %v1274, 1.442695
    %v1276 = vpow.pop %v1275
    %v1277 = vadd.f32 %v1276, 1.0
    %v1278 = vrcp.pop %v1277
    %v1279 = vmul.f32 1.0, %v1278
    %v1280 = vtanh.pop %v1271
    %v1281 = vmul.f32 %v1279, %v868
    %1283 = vrot.lane.b32.xlu0 %v1280, 64
    %v1284 = vpop.permute.xlu0 %1283
    %v1286 = vmul.f32 %v1279, %v1284
    %1288 = vrot.lane.b32.xlu0 %v1286, 32
    %v1289 = vpop.permute.xlu0 %1288
    %v1291 = vadd.f32 %v1281, %v1289
    %v1292 = vtanh.pop %v1291
    %1294 = vrot.lane.b32.xlu0 %v1292, 64
    %v1295 = vpop.permute.xlu0 %1294
    %v1297 = vmul.f32 %v1279, %v1295
    %v1298 = vsel %vm658, %v976, 0
    %1300 = vmatprep.subr.mxu0 0.0
    %1301 = vmatpush1.msra.mxu0 %v875
    %1302 = vmatprep.subr.mxu0 0.0
    %1303 = vmatpush1.msra.mxu0 %v876
    %1304 = vmatprep.subr.mxu0 0.0
    %1305 = vmatpush1.msra.mxu0 %v877
    %1306 = vmatprep.subr.mxu0 0.0
    %1307 = vmatpush1.msra.mxu0 %v878
    %1308 = vmatprep.subr.mxu0 0.0
    %1309 = vmatpush1.msra.mxu0 0.0
    %1310 = vmatprep.subr.mxu0 0.0
    %1311 = vmatpush1.msra.mxu0 0.0
    %1312 = vmatprep.subr.mxu0 0.0
    %1313 = vmatpush1.msra.mxu0 0.0
    %1314 = vmatprep.subr.mxu0 0.0
    %1315 = vmatpush1.msra.mxu0 0.0
    %1316 = vmatprep.subr.mxu0 0.0
    %1317 = vmatpush1.msra.mxu0 0.0
    %1318 = vmatprep.subr.mxu0 0.0
    %1319 = vmatpush1.msra.mxu0 0.0
    %1320 = vmatprep.subr.mxu0 0.0
    %1321 = vmatpush1.msra.mxu0 0.0
    %1322 = vmatprep.subr.mxu0 0.0
    %1323 = vmatpush1.msra.mxu0 0.0
    %1324 = vmatprep.subr.mxu0 0.0
    %1325 = vmatpush1.msra.mxu0 0.0
    %1326 = vmatprep.subr.mxu0 0.0
    %1327 = vmatpush1.msra.mxu0 0.0
    %1328 = vmatprep.subr.mxu0 0.0
    %1329 = vmatpush1.msra.mxu0 0.0
    %1330 = vmatprep.subr.mxu0 0.0
    %1331 = vmatpush1.msra.mxu0 0.0
    %1332 = vmatprep.subr.mxu0 0.0
    %1333 = vmatpush1.msra.mxu0 0.0
    %1334 = vmatprep.subr.mxu0 0.0
    %1335 = vmatpush1.msra.mxu0 0.0
    %1336 = vmatprep.subr.mxu0 0.0
    %1337 = vmatpush1.msra.mxu0 0.0
    %1338 = vmatprep.subr.mxu0 0.0
    %1339 = vmatpush1.msra.mxu0 0.0
    %1340 = vmatprep.subr.mxu0 0.0
    %1341 = vmatpush1.msra.mxu0 0.0
    %1342 = vmatprep.subr.mxu0 0.0
    %1343 = vmatpush1.msra.mxu0 0.0
    %1344 = vmatprep.subr.mxu0 0.0
    %1345 = vmatpush1.msra.mxu0 0.0
    %1346 = vmatprep.subr.mxu0 0.0
    %1347 = vmatpush1.msra.mxu0 0.0
    %1348 = vmatprep.subr.mxu0 0.0
    %1349 = vmatpush1.msra.mxu0 0.0
    %1350 = vmatprep.subr.mxu0 0.0
    %1351 = vmatpush1.msra.mxu0 0.0
    %1352 = vmatprep.subr.mxu0 0.0
    %1353 = vmatpush1.msra.mxu0 0.0
    %1354 = vmatprep.subr.mxu0 0.0
    %1355 = vmatpush1.msra.mxu0 0.0
    %1356 = vmatprep.subr.mxu0 0.0
    %1357 = vmatpush1.msra.mxu0 0.0
    %1358 = vmatprep.subr.mxu0 0.0
    %1359 = vmatpush1.msra.mxu0 0.0
    %1360 = vmatprep.subr.mxu0 0.0
    %1361 = vmatpush1.msra.mxu0 0.0
    %1362 = vmatprep.subr.mxu0 0.0
    %1363 = vmatpush1.msra.mxu0 0.0
    %1364 = vmatprep.mubr.f32.mxu0 0.0
    %1365 = vmatmul.mubr.f32.gmra.mrb[0].mxu0 %v1298
    %v1366 = vpop.f32.mrb[0].mxu0
    %v1367 = vadd.f32 0.0, %v1366
    %v1368 = vpop.f32.mrb[0].mxu0
    %1369 = vdwg.mxu0
    %v1370 = vadd.f32 %v1094, %v1367
    %v1371 = vxor.u32 %v1370, 2147483648
    %v1372 = vmul.f32 %v1371, 1.442695
    %v1373 = vpow.pop %v1372
    %v1374 = vadd.f32 %v1373, 1.0
    %v1375 = vrcp.pop %v1374
    %v1376 = vmul.f32 1.0, %v1375
    %v1377 = vtanh.pop %v1370
    %v1378 = vmul.f32 %v1376, %v967
    %1380 = vrot.lane.b32.xlu0 %v1377, 64
    %v1381 = vpop.permute.xlu0 %1380
    %v1383 = vmul.f32 %v1376, %v1381
    %1385 = vrot.lane.b32.xlu0 %v1383, 32
    %v1386 = vpop.permute.xlu0 %1385
    %v1388 = vadd.f32 %v1378, %v1386
    %v1389 = vtanh.pop %v1388
    %1391 = vrot.lane.b32.xlu0 %v1389, 64
    %v1392 = vpop.permute.xlu0 %1391
    %v1394 = vmul.f32 %v1376, %v1392
    %1396 = vrot.lane.b32.xlu0 %v1394, 32
    %v1397 = vpop.permute.xlu0 %1396
    %1400 = vrot.lane.b32.xlu0 %v1090, 64
    %v1401 = vpop.permute.xlu0 %1400
    %v1403 = vsel %vm658, %v1397, %v1401
    %v1405 = vsel %vm777, %v1403, 0
    %1407 = vmatprep.subr.mxu0 0.0
    %1408 = vmatpush1.msra.mxu0 %v979
    %1409 = vmatprep.subr.mxu0 0.0
    %1410 = vmatpush1.msra.mxu0 %v980
    %1411 = vmatprep.subr.mxu0 0.0
    %1412 = vmatpush1.msra.mxu0 %v981
    %1413 = vmatprep.subr.mxu0 0.0
    %1414 = vmatpush1.msra.mxu0 %v982
    %1415 = vmatprep.subr.mxu0 0.0
    %1416 = vmatpush1.msra.mxu0 %v983
    %1417 = vmatprep.subr.mxu0 0.0
    %1418 = vmatpush1.msra.mxu0 %v984
    %1419 = vmatprep.subr.mxu0 0.0
    %1420 = vmatpush1.msra.mxu0 %v985
    %1421 = vmatprep.subr.mxu0 0.0
    %1422 = vmatpush1.msra.mxu0 %v986
    %1423 = vmatprep.subr.mxu0 0.0
    %1424 = vmatpush1.msra.mxu0 0.0
    %1425 = vmatprep.subr.mxu0 0.0
    %1426 = vmatpush1.msra.mxu0 0.0
    %1427 = vmatprep.subr.mxu0 0.0
    %1428 = vmatpush1.msra.mxu0 0.0
    %1429 = vmatprep.subr.mxu0 0.0
    %1430 = vmatpush1.msra.mxu0 0.0
    %1431 = vmatprep.subr.mxu0 0.0
    %1432 = vmatpush1.msra.mxu0 0.0
    %1433 = vmatprep.subr.mxu0 0.0
    %1434 = vmatpush1.msra.mxu0 0.0
    %1435 = vmatprep.subr.mxu0 0.0
    %1436 = vmatpush1.msra.mxu0 0.0
    %1437 = vmatprep.subr.mxu0 0.0
    %1438 = vmatpush1.msra.mxu0 0.0
    %1439 = vmatprep.subr.mxu0 0.0
    %1440 = vmatpush1.msra.mxu0 0.0
    %1441 = vmatprep.subr.mxu0 0.0
    %1442 = vmatpush1.msra.mxu0 0.0
    %1443 = vmatprep.subr.mxu0 0.0
    %1444 = vmatpush1.msra.mxu0 0.0
    %1445 = vmatprep.subr.mxu0 0.0
    %1446 = vmatpush1.msra.mxu0 0.0
    %1447 = vmatprep.subr.mxu0 0.0
    %1448 = vmatpush1.msra.mxu0 0.0
    %1449 = vmatprep.subr.mxu0 0.0
    %1450 = vmatpush1.msra.mxu0 0.0
    %1451 = vmatprep.subr.mxu0 0.0
    %1452 = vmatpush1.msra.mxu0 0.0
    %1453 = vmatprep.subr.mxu0 0.0
    %1454 = vmatpush1.msra.mxu0 0.0
    %1455 = vmatprep.subr.mxu0 0.0
    %1456 = vmatpush1.msra.mxu0 0.0
    %1457 = vmatprep.subr.mxu0 0.0
    %1458 = vmatpush1.msra.mxu0 0.0
    %1459 = vmatprep.subr.mxu0 0.0
    %1460 = vmatpush1.msra.mxu0 0.0
    %1461 = vmatprep.subr.mxu0 0.0
    %1462 = vmatpush1.msra.mxu0 0.0
    %1463 = vmatprep.subr.mxu0 0.0
    %1464 = vmatpush1.msra.mxu0 0.0
    %1465 = vmatprep.subr.mxu0 0.0
    %1466 = vmatpush1.msra.mxu0 0.0
    %1467 = vmatprep.subr.mxu0 0.0
    %1468 = vmatpush1.msra.mxu0 0.0
    %1469 = vmatprep.subr.mxu0 0.0
    %1470 = vmatpush1.msra.mxu0 0.0
    %1471 = vmatprep.mubr.f32.mxu0 0.0
    %1472 = vmatmul.mubr.f32.gmra.mrb[0].mxu0 %v1405
    %v1473 = vpop.f32.mrb[0].mxu0
    %v1474 = vadd.f32 %v992, %v1473
    %v1475 = vpop.f32.mrb[0].mxu0
    %1476 = vdwg.mxu0
    %v1477 = vxor.u32 %v1474, 2147483648
    %v1478 = vmul.f32 %v1477, 1.442695
    %v1479 = vpow.pop %v1478
    %v1480 = vadd.f32 %v1479, 1.0
    %v1481 = vrcp.pop %v1480
    %v1482 = vmul.f32 1.0, %v1481
    %v1483 = vtanh.pop %v1474
    %v1484 = vmul.f32 %v1482, %v1084
    %1486 = vrot.lane.b32.xlu0 %v1483, 64
    %v1487 = vpop.permute.xlu0 %1486
    %v1489 = vmul.f32 %v1482, %v1487
    %1491 = vrot.lane.b32.xlu0 %v1489, 32
    %v1492 = vpop.permute.xlu0 %1491
    %v1494 = vadd.f32 %v1484, %v1492
    %v1495 = vtanh.pop %v1494
    %1497 = vrot.lane.b32.xlu0 %v1495, 64
    %v1498 = vpop.permute.xlu0 %1497
    %v1500 = vmul.f32 %v1482, %v1498
    %s1501 = scalar_lea.vmem [#allocation2], 16
    %v1502 = vld [vmem:[%s1501] sm:$0xff]
    %s1503 = scalar_lea.vmem [#allocation3], 16
    %v1504 = vld [vmem:[%s1503] sm:$0xff]
    %v1505 = vsel %vm658, %v1194, 0
    %1507 = vmatprep.subr.mxu0 0.0
    %1508 = vmatpush1.msra.mxu0 %v654
    %1509 = vmatprep.subr.mxu0 0.0
    %1510 = vmatpush1.msra.mxu0 %v655
    %1511 = vmatprep.subr.mxu0 0.0
    %1512 = vmatpush1.msra.mxu0 %v656
    %1513 = vmatprep.subr.mxu0 0.0
    %1514 = vmatpush1.msra.mxu0 %v657
    %1515 = vmatprep.subr.mxu0 0.0
    %1516 = vmatpush1.msra.mxu0 0.0
    %1517 = vmatprep.subr.mxu0 0.0
    %1518 = vmatpush1.msra.mxu0 0.0
    %1519 = vmatprep.subr.mxu0 0.0
    %1520 = vmatpush1.msra.mxu0 0.0
    %1521 = vmatprep.subr.mxu0 0.0
    %1522 = vmatpush1.msra.mxu0 0.0
    %1523 = vmatprep.subr.mxu0 0.0
    %1524 = vmatpush1.msra.mxu0 0.0
    %1525 = vmatprep.subr.mxu0 0.0
    %1526 = vmatpush1.msra.mxu0 0.0
    %1527 = vmatprep.subr.mxu0 0.0
    %1528 = vmatpush1.msra.mxu0 0.0
    %1529 = vmatprep.subr.mxu0 0.0
    %1530 = vmatpush1.msra.mxu0 0.0
    %1531 = vmatprep.subr.mxu0 0.0
    %1532 = vmatpush1.msra.mxu0 0.0
    %1533 = vmatprep.subr.mxu0 0.0
    %1534 = vmatpush1.msra.mxu0 0.0
    %1535 = vmatprep.subr.mxu0 0.0
    %1536 = vmatpush1.msra.mxu0 0.0
    %1537 = vmatprep.subr.mxu0 0.0
    %1538 = vmatpush1.msra.mxu0 0.0
    %1539 = vmatprep.subr.mxu0 0.0
    %1540 = vmatpush1.msra.mxu0 0.0
    %1541 = vmatprep.subr.mxu0 0.0
    %1542 = vmatpush1.msra.mxu0 0.0
    %1543 = vmatprep.subr.mxu0 0.0
    %1544 = vmatpush1.msra.mxu0 0.0
    %1545 = vmatprep.subr.mxu0 0.0
    %1546 = vmatpush1.msra.mxu0 0.0
    %1547 = vmatprep.subr.mxu0 0.0
    %1548 = vmatpush1.msra.mxu0 0.0
    %1549 = vmatprep.subr.mxu0 0.0
    %1550 = vmatpush1.msra.mxu0 0.0
    %1551 = vmatprep.subr.mxu0 0.0
    %1552 = vmatpush1.msra.mxu0 0.0
    %1553 = vmatprep.subr.mxu0 0.0
    %1554 = vmatpush1.msra.mxu0 0.0
    %1555 = vmatprep.subr.mxu0 0.0
    %1556 = vmatpush1.msra.mxu0 0.0
    %1557 = vmatprep.subr.mxu0 0.0
    %1558 = vmatpush1.msra.mxu0 0.0
    %1559 = vmatprep.subr.mxu0 0.0
    %1560 = vmatpush1.msra.mxu0 0.0
    %1561 = vmatprep.subr.mxu0 0.0
    %1562 = vmatpush1.msra.mxu0 0.0
    %1563 = vmatprep.subr.mxu0 0.0
    %1564 = vmatpush1.msra.mxu0 0.0
    %1565 = vmatprep.subr.mxu0 0.0
    %1566 = vmatpush1.msra.mxu0 0.0
    %1567 = vmatprep.subr.mxu0 0.0
    %1568 = vmatpush1.msra.mxu0 0.0
    %1569 = vmatprep.subr.mxu0 0.0
    %1570 = vmatpush1.msra.mxu0 0.0
    %1571 = vmatprep.mubr.f32.mxu0 0.0
    %1572 = vmatmul.mubr.f32.gmra.mrb[0].mxu0 %v1505
    %v1573 = vpop.f32.mrb[0].mxu0
    %v1574 = vadd.f32 0.0, %v1573
    %v1575 = vpop.f32.mrb[0].mxu0
    %1576 = vdwg.mxu0
    %v1577 = vadd.f32 %v1502, %v1574
    %v1578 = vxor.u32 %v1577, 2147483648
    %v1579 = vmul.f32 %v1578, 1.442695
    %v1580 = vpow.pop %v1579
    %v1581 = vadd.f32 %v1580, 1.0
    %v1582 = vrcp.pop %v1581
    %v1583 = vmul.f32 1.0, %v1582
    %v1584 = vtanh.pop %v1577
    %v1585 = vmul.f32 %v1583, %v1185
    %1587 = vrot.lane.b32.xlu0 %v1584, 64
    %v1588 = vpop.permute.xlu0 %1587
    %v1590 = vmul.f32 %v1583, %v1588
    %1592 = vrot.lane.b32.xlu0 %v1590, 32
    %v1593 = vpop.permute.xlu0 %1592
    %v1595 = vadd.f32 %v1585, %v1593
    %v1596 = vtanh.pop %v1595
    %1598 = vrot.lane.b32.xlu0 %v1596, 64
    %v1599 = vpop.permute.xlu0 %1598
    %v1601 = vmul.f32 %v1583, %v1599
    %1603 = vrot.lane.b32.xlu0 %v1601, 32
    %v1604 = vpop.permute.xlu0 %1603
    %1607 = vrot.lane.b32.xlu0 %v1297, 64
    %v1608 = vpop.permute.xlu0 %1607
    %v1610 = vsel %vm658, %v1604, %v1608
    %v1612 = vsel %vm777, %v1610, 0
    %1614 = vmatprep.subr.mxu0 0.0
    %1615 = vmatpush1.msra.mxu0 %v762
    %1616 = vmatprep.subr.mxu0 0.0
    %1617 = vmatpush1.msra.mxu0 %v763
    %1618 = vmatprep.subr.mxu0 0.0
    %1619 = vmatpush1.msra.mxu0 %v764
    %1620 = vmatprep.subr.mxu0 0.0
    %1621 = vmatpush1.msra.mxu0 %v765
    %1622 = vmatprep.subr.mxu0 0.0
    %1623 = vmatpush1.msra.mxu0 %v766
    %1624 = vmatprep.subr.mxu0 0.0
    %1625 = vmatpush1.msra.mxu0 %v767
    %1626 = vmatprep.subr.mxu0 0.0
    %1627 = vmatpush1.msra.mxu0 %v768
    %1628 = vmatprep.subr.mxu0 0.0
    %1629 = vmatpush1.msra.mxu0 %v769
    %1630 = vmatprep.subr.mxu0 0.0
    %1631 = vmatpush1.msra.mxu0 0.0
    %1632 = vmatprep.subr.mxu0 0.0
    %1633 = vmatpush1.msra.mxu0 0.0
    %1634 = vmatprep.subr.mxu0 0.0
    %1635 = vmatpush1.msra.mxu0 0.0
    %1636 = vmatprep.subr.mxu0 0.0
    %1637 = vmatpush1.msra.mxu0 0.0
    %1638 = vmatprep.subr.mxu0 0.0
    %1639 = vmatpush1.msra.mxu0 0.0
    %1640 = vmatprep.subr.mxu0 0.0
    %1641 = vmatpush1.msra.mxu0 0.0
    %1642 = vmatprep.subr.mxu0 0.0
    %1643 = vmatpush1.msra.mxu0 0.0
    %1644 = vmatprep.subr.mxu0 0.0
    %1645 = vmatpush1.msra.mxu0 0.0
    %1646 = vmatprep.subr.mxu0 0.0
    %1647 = vmatpush1.msra.mxu0 0.0
    %1648 = vmatprep.subr.mxu0 0.0
    %1649 = vmatpush1.msra.mxu0 0.0
    %1650 = vmatprep.subr.mxu0 0.0
    %1651 = vmatpush1.msra.mxu0 0.0
    %1652 = vmatprep.subr.mxu0 0.0
    %1653 = vmatpush1.msra.mxu0 0.0
    %1654 = vmatprep.subr.mxu0 0.0
    %1655 = vmatpush1.msra.mxu0 0.0
    %1656 = vmatprep.subr.mxu0 0.0
    %1657 = vmatpush1.msra.mxu0 0.0
    %1658 = vmatprep.subr.mxu0 0.0
    %1659 = vmatpush1.msra.mxu0 0.0
    %1660 = vmatprep.subr.mxu0 0.0
    %1661 = vmatpush1.msra.mxu0 0.0
    %1662 = vmatprep.subr.mxu0 0.0
    %1663 = vmatpush1.msra.mxu0 0.0
    %1664 = vmatprep.subr.mxu0 0.0
    %1665 = vmatpush1.msra.mxu0 0.0
    %1666 = vmatprep.subr.mxu0 0.0
    %1667 = vmatpush1.msra.mxu0 0.0
    %1668 = vmatprep.subr.mxu0 0.0
    %1669 = vmatpush1.msra.mxu0 0.0
    %1670 = vmatprep.subr.mxu0 0.0
    %1671 = vmatpush1.msra.mxu0 0.0
    %1672 = vmatprep.subr.mxu0 0.0
    %1673 = vmatpush1.msra.mxu0 0.0
    %1674 = vmatprep.subr.mxu0 0.0
    %1675 = vmatpush1.msra.mxu0 0.0
    %1676 = vmatprep.subr.mxu0 0.0
    %1677 = vmatpush1.msra.mxu0 0.0
    %1678 = vmatprep.mubr.f32.mxu0 0.0
    %1679 = vmatmul.mubr.f32.gmra.mrb[0].mxu0 %v1612
    %v1680 = vpop.f32.mrb[0].mxu0
    %v1681 = vadd.f32 %v775, %v1680
    %v1682 = vpop.f32.mrb[0].mxu0
    %1683 = vdwg.mxu0
    %v1684 = vxor.u32 %v1681, 2147483648
    %v1685 = vmul.f32 %v1684, 1.442695
    %v1686 = vpow.pop %v1685
    %v1687 = vadd.f32 %v1686, 1.0
    %v1688 = vrcp.pop %v1687
    %v1689 = vmul.f32 1.0, %v1688
    %v1690 = vtanh.pop %v1681
    %v1691 = vmul.f32 %v1689, %v1291
    %1693 = vrot.lane.b32.xlu0 %v1690, 64
    %v1694 = vpop.permute.xlu0 %1693
    %v1696 = vmul.f32 %v1689, %v1694
    %1698 = vrot.lane.b32.xlu0 %v1696, 32
    %v1699 = vpop.permute.xlu0 %1698
    %v1701 = vadd.f32 %v1691, %v1699
    %v1702 = vtanh.pop %v1701
    %1704 = vrot.lane.b32.xlu0 %v1702, 64
    %v1705 = vpop.permute.xlu0 %1704
    %v1707 = vmul.f32 %v1689, %v1705
    %v1708 = vsel %vm658, %v1397, 0
    %1710 = vmatprep.subr.mxu0 0.0
    %1711 = vmatpush1.msra.mxu0 %v875
    %1712 = vmatprep.subr.mxu0 0.0
    %1713 = vmatpush1.msra.mxu0 %v876
    %1714 = vmatprep.subr.mxu0 0.0
    %1715 = vmatpush1.msra.mxu0 %v877
    %1716 = vmatprep.subr.mxu0 0.0
    %1717 = vmatpush1.msra.mxu0 %v878
    %1718 = vmatprep.subr.mxu0 0.0
    %1719 = vmatpush1.msra.mxu0 0.0
    %1720 = vmatprep.subr.mxu0 0.0
    %1721 = vmatpush1.msra.mxu0 0.0
    %1722 = vmatprep.subr.mxu0 0.0
    %1723 = vmatpush1.msra.mxu0 0.0
    %1724 = vmatprep.subr.mxu0 0.0
    %1725 = vmatpush1.msra.mxu0 0.0
    %1726 = vmatprep.subr.mxu0 0.0
    %1727 = vmatpush1.msra.mxu0 0.0
    %1728 = vmatprep.subr.mxu0 0.0
    %1729 = vmatpush1.msra.mxu0 0.0
    %1730 = vmatprep.subr.mxu0 0.0
    %1731 = vmatpush1.msra.mxu0 0.0
    %1732 = vmatprep.subr.mxu0 0.0
    %1733 = vmatpush1.msra.mxu0 0.0
    %1734 = vmatprep.subr.mxu0 0.0
    %1735 = vmatpush1.msra.mxu0 0.0
    %1736 = vmatprep.subr.mxu0 0.0
    %1737 = vmatpush1.msra.mxu0 0.0
    %1738 = vmatprep.subr.mxu0 0.0
    %1739 = vmatpush1.msra.mxu0 0.0
    %1740 = vmatprep.subr.mxu0 0.0
    %1741 = vmatpush1.msra.mxu0 0.0
    %1742 = vmatprep.subr.mxu0 0.0
    %1743 = vmatpush1.msra.mxu0 0.0
    %1744 = vmatprep.subr.mxu0 0.0
    %1745 = vmatpush1.msra.mxu0 0.0
    %1746 = vmatprep.subr.mxu0 0.0
    %1747 = vmatpush1.msra.mxu0 0.0
    %1748 = vmatprep.subr.mxu0 0.0
    %1749 = vmatpush1.msra.mxu0 0.0
    %1750 = vmatprep.subr.mxu0 0.0
    %1751 = vmatpush1.msra.mxu0 0.0
    %1752 = vmatprep.subr.mxu0 0.0
    %1753 = vmatpush1.msra.mxu0 0.0
    %1754 = vmatprep.subr.mxu0 0.0
    %1755 = vmatpush1.msra.mxu0 0.0
    %1756 = vmatprep.subr.mxu0 0.0
    %1757 = vmatpush1.msra.mxu0 0.0
    %1758 = vmatprep.subr.mxu0 0.0
    %1759 = vmatpush1.msra.mxu0 0.0
    %1760 = vmatprep.subr.mxu0 0.0
    %1761 = vmatpush1.msra.mxu0 0.0
    %1762 = vmatprep.subr.mxu0 0.0
    %1763 = vmatpush1.msra.mxu0 0.0
    %1764 = vmatprep.subr.mxu0 0.0
    %1765 = vmatpush1.msra.mxu0 0.0
    %1766 = vmatprep.subr.mxu0 0.0
    %1767 = vmatpush1.msra.mxu0 0.0
    %1768 = vmatprep.subr.mxu0 0.0
    %1769 = vmatpush1.msra.mxu0 0.0
    %1770 = vmatprep.subr.mxu0 0.0
    %1771 = vmatpush1.msra.mxu0 0.0
    %1772 = vmatprep.subr.mxu0 0.0
    %1773 = vmatpush1.msra.mxu0 0.0
    %1774 = vmatprep.mubr.f32.mxu0 0.0
    %1775 = vmatmul.mubr.f32.gmra.mrb[0].mxu0 %v1708
    %v1776 = vpop.f32.mrb[0].mxu0
    %v1777 = vadd.f32 0.0, %v1776
    %v1778 = vpop.f32.mrb[0].mxu0
    %1779 = vdwg.mxu0
    %v1780 = vadd.f32 %v1504, %v1777
    %v1781 = vxor.u32 %v1780, 2147483648
    %v1782 = vmul.f32 %v1781, 1.442695
    %v1783 = vpow.pop %v1782
    %v1784 = vadd.f32 %v1783, 1.0
    %v1785 = vrcp.pop %v1784
    %v1786 = vmul.f32 1.0, %v1785
    %v1787 = vtanh.pop %v1780
    %v1788 = vmul.f32 %v1786, %v1388
    %1790 = vrot.lane.b32.xlu0 %v1787, 64
    %v1791 = vpop.permute.xlu0 %1790
    %v1793 = vmul.f32 %v1786, %v1791
    %1795 = vrot.lane.b32.xlu0 %v1793, 32
    %v1796 = vpop.permute.xlu0 %1795
    %v1798 = vadd.f32 %v1788, %v1796
    %v1799 = vtanh.pop %v1798
    %1801 = vrot.lane.b32.xlu0 %v1799, 64
    %v1802 = vpop.permute.xlu0 %1801
    %v1804 = vmul.f32 %v1786, %v1802
    %1806 = vrot.lane.b32.xlu0 %v1804, 32
    %v1807 = vpop.permute.xlu0 %1806
    %1810 = vrot.lane.b32.xlu0 %v1500, 64
    %v1811 = vpop.permute.xlu0 %1810
    %v1813 = vsel %vm658, %v1807, %v1811
    %v1815 = vsel %vm777, %v1813, 0
    %1817 = vmatprep.subr.mxu0 0.0
    %1818 = vmatpush1.msra.mxu0 %v979
    %1819 = vmatprep.subr.mxu0 0.0
    %1820 = vmatpush1.msra.mxu0 %v980
    %1821 = vmatprep.subr.mxu0 0.0
    %1822 = vmatpush1.msra.mxu0 %v981
    %1823 = vmatprep.subr.mxu0 0.0
    %1824 = vmatpush1.msra.mxu0 %v982
    %1825 = vmatprep.subr.mxu0 0.0
    %1826 = vmatpush1.msra.mxu0 %v983
    %1827 = vmatprep.subr.mxu0 0.0
    %1828 = vmatpush1.msra.mxu0 %v984
    %1829 = vmatprep.subr.mxu0 0.0
    %1830 = vmatpush1.msra.mxu0 %v985
    %1831 = vmatprep.subr.mxu0 0.0
    %1832 = vmatpush1.msra.mxu0 %v986
    %1833 = vmatprep.subr.mxu0 0.0
    %1834 = vmatpush1.msra.mxu0 0.0
    %1835 = vmatprep.subr.mxu0 0.0
    %1836 = vmatpush1.msra.mxu0 0.0
    %1837 = vmatprep.subr.mxu0 0.0
    %1838 = vmatpush1.msra.mxu0 0.0
    %1839 = vmatprep.subr.mxu0 0.0
    %1840 = vmatpush1.msra.mxu0 0.0
    %1841 = vmatprep.subr.mxu0 0.0
    %1842 = vmatpush1.msra.mxu0 0.0
    %1843 = vmatprep.subr.mxu0 0.0
    %1844 = vmatpush1.msra.mxu0 0.0
    %1845 = vmatprep.subr.mxu0 0.0
    %1846 = vmatpush1.msra.mxu0 0.0
    %1847 = vmatprep.subr.mxu0 0.0
    %1848 = vmatpush1.msra.mxu0 0.0
    %1849 = vmatprep.subr.mxu0 0.0
    %1850 = vmatpush1.msra.mxu0 0.0
    %1851 = vmatprep.subr.mxu0 0.0
    %1852 = vmatpush1.msra.mxu0 0.0
    %1853 = vmatprep.subr.mxu0 0.0
    %1854 = vmatpush1.msra.mxu0 0.0
    %1855 = vmatprep.subr.mxu0 0.0
    %1856 = vmatpush1.msra.mxu0 0.0
    %1857 = vmatprep.subr.mxu0 0.0
    %1858 = vmatpush1.msra.mxu0 0.0
    %1859 = vmatprep.subr.mxu0 0.0
    %1860 = vmatpush1.msra.mxu0 0.0
    %1861 = vmatprep.subr.mxu0 0.0
    %1862 = vmatpush1.msra.mxu0 0.0
    %1863 = vmatprep.subr.mxu0 0.0
    %1864 = vmatpush1.msra.mxu0 0.0
    %1865 = vmatprep.subr.mxu0 0.0
    %1866 = vmatpush1.msra.mxu0 0.0
    %1867 = vmatprep.subr.mxu0 0.0
    %1868 = vmatpush1.msra.mxu0 0.0
    %1869 = vmatprep.subr.mxu0 0.0
    %1870 = vmatpush1.msra.mxu0 0.0
    %1871 = vmatprep.subr.mxu0 0.0
    %1872 = vmatpush1.msra.mxu0 0.0
    %1873 = vmatprep.subr.mxu0 0.0
    %1874 = vmatpush1.msra.mxu0 0.0
    %1875 = vmatprep.subr.mxu0 0.0
    %1876 = vmatpush1.msra.mxu0 0.0
    %1877 = vmatprep.subr.mxu0 0.0
    %1878 = vmatpush1.msra.mxu0 0.0
    %1879 = vmatprep.subr.mxu0 0.0
    %1880 = vmatpush1.msra.mxu0 0.0
    %1881 = vmatprep.mubr.f32.mxu0 0.0
    %1882 = vmatmul.mubr.f32.gmra.mrb[0].mxu0 %v1815
    %v1883 = vpop.f32.mrb[0].mxu0
    %v1884 = vadd.f32 %v992, %v1883
    %v1885 = vpop.f32.mrb[0].mxu0
    %1886 = vdwg.mxu0
    %v1887 = vxor.u32 %v1884, 2147483648
    %v1888 = vmul.f32 %v1887, 1.442695
    %v1889 = vpow.pop %v1888
    %v1890 = vadd.f32 %v1889, 1.0
    %v1891 = vrcp.pop %v1890
    %v1892 = vmul.f32 1.0, %v1891
    %v1893 = vtanh.pop %v1884
    %v1894 = vmul.f32 %v1892, %v1494
    %1896 = vrot.lane.b32.xlu0 %v1893, 64
    %v1897 = vpop.permute.xlu0 %1896
    %v1899 = vmul.f32 %v1892, %v1897
    %1901 = vrot.lane.b32.xlu0 %v1899, 32
    %v1902 = vpop.permute.xlu0 %1901
    %v1904 = vadd.f32 %v1894, %v1902
    %v1905 = vtanh.pop %v1904
    %1907 = vrot.lane.b32.xlu0 %v1905, 64
    %v1908 = vpop.permute.xlu0 %1907
    %v1910 = vmul.f32 %v1892, %v1908
    %s1911 = scalar_lea.vmem [#allocation2], 24
    %v1912 = vld [vmem:[%s1911] sm:$0xff]
    %s1913 = scalar_lea.vmem [#allocation3], 24
    %v1914 = vld [vmem:[%s1913] sm:$0xff]
    %v1915 = vsel %vm658, %v1604, 0
    %1917 = vmatprep.subr.mxu0 0.0
    %1918 = vmatpush1.msra.mxu0 %v654
    %1919 = vmatprep.subr.mxu0 0.0
    %1920 = vmatpush1.msra.mxu0 %v655
    %1921 = vmatprep.subr.mxu0 0.0
    %1922 = vmatpush1.msra.mxu0 %v656
    %1923 = vmatprep.subr.mxu0 0.0
    %1924 = vmatpush1.msra.mxu0 %v657
    %1925 = vmatprep.subr.mxu0 0.0
    %1926 = vmatpush1.msra.mxu0 0.0
    %1927 = vmatprep.subr.mxu0 0.0
    %1928 = vmatpush1.msra.mxu0 0.0
    %1929 = vmatprep.subr.mxu0 0.0
    %1930 = vmatpush1.msra.mxu0 0.0
    %1931 = vmatprep.subr.mxu0 0.0
    %1932 = vmatpush1.msra.mxu0 0.0
    %1933 = vmatprep.subr.mxu0 0.0
    %1934 = vmatpush1.msra.mxu0 0.0
    %1935 = vmatprep.subr.mxu0 0.0
    %1936 = vmatpush1.msra.mxu0 0.0
    %1937 = vmatprep.subr.mxu0 0.0
    %1938 = vmatpush1.msra.mxu0 0.0
    %1939 = vmatprep.subr.mxu0 0.0
    %1940 = vmatpush1.msra.mxu0 0.0
    %1941 = vmatprep.subr.mxu0 0.0
    %1942 = vmatpush1.msra.mxu0 0.0
    %1943 = vmatprep.subr.mxu0 0.0
    %1944 = vmatpush1.msra.mxu0 0.0
    %1945 = vmatprep.subr.mxu0 0.0
    %1946 = vmatpush1.msra.mxu0 0.0
    %1947 = vmatprep.subr.mxu0 0.0
    %1948 = vmatpush1.msra.mxu0 0.0
    %1949 = vmatprep.subr.mxu0 0.0
    %1950 = vmatpush1.msra.mxu0 0.0
    %1951 = vmatprep.subr.mxu0 0.0
    %1952 = vmatpush1.msra.mxu0 0.0
    %1953 = vmatprep.subr.mxu0 0.0
    %1954 = vmatpush1.msra.mxu0 0.0
    %1955 = vmatprep.subr.mxu0 0.0
    %1956 = vmatpush1.msra.mxu0 0.0
    %1957 = vmatprep.subr.mxu0 0.0
    %1958 = vmatpush1.msra.mxu0 0.0
    %1959 = vmatprep.subr.mxu0 0.0
    %1960 = vmatpush1.msra.mxu0 0.0
    %1961 = vmatprep.subr.mxu0 0.0
    %1962 = vmatpush1.msra.mxu0 0.0
    %1963 = vmatprep.subr.mxu0 0.0
    %1964 = vmatpush1.msra.mxu0 0.0
    %1965 = vmatprep.subr.mxu0 0.0
    %1966 = vmatpush1.msra.mxu0 0.0
    %1967 = vmatprep.subr.mxu0 0.0
    %1968 = vmatpush1.msra.mxu0 0.0
    %1969 = vmatprep.subr.mxu0 0.0
    %1970 = vmatpush1.msra.mxu0 0.0
    %1971 = vmatprep.subr.mxu0 0.0
    %1972 = vmatpush1.msra.mxu0 0.0
    %1973 = vmatprep.subr.mxu0 0.0
    %1974 = vmatpush1.msra.mxu0 0.0
    %1975 = vmatprep.subr.mxu0 0.0
    %1976 = vmatpush1.msra.mxu0 0.0
    %1977 = vmatprep.subr.mxu0 0.0
    %1978 = vmatpush1.msra.mxu0 0.0
    %1979 = vmatprep.subr.mxu0 0.0
    %1980 = vmatpush1.msra.mxu0 0.0
    %1981 = vmatprep.mubr.f32.mxu0 0.0
    %1982 = vmatmul.mubr.f32.gmra.mrb[0].mxu0 %v1915
    %v1983 = vpop.f32.mrb[0].mxu0
    %v1984 = vadd.f32 0.0, %v1983
    %v1985 = vpop.f32.mrb[0].mxu0
    %1986 = vdwg.mxu0
    %v1987 = vadd.f32 %v1912, %v1984
    %v1988 = vxor.u32 %v1987, 2147483648
    %v1989 = vmul.f32 %v1988, 1.442695
    %v1990 = vpow.pop %v1989
    %v1991 = vadd.f32 %v1990, 1.0
    %v1992 = vrcp.pop %v1991
    %v1993 = vmul.f32 1.0, %v1992
    %v1994 = vtanh.pop %v1987
    %v1995 = vmul.f32 %v1993, %v1595
    %1997 = vrot.lane.b32.xlu0 %v1994, 64
    %v1998 = vpop.permute.xlu0 %1997
    %v2000 = vmul.f32 %v1993, %v1998
    %2002 = vrot.lane.b32.xlu0 %v2000, 32
    %v2003 = vpop.permute.xlu0 %2002
    %v2005 = vadd.f32 %v1995, %v2003
    %v2006 = vtanh.pop %v2005
    %2008 = vrot.lane.b32.xlu0 %v2006, 64
    %v2009 = vpop.permute.xlu0 %2008
    %v2011 = vmul.f32 %v1993, %v2009
    %2013 = vrot.lane.b32.xlu0 %v2011, 32
    %v2014 = vpop.permute.xlu0 %2013
    %2017 = vrot.lane.b32.xlu0 %v1707, 64
    %v2018 = vpop.permute.xlu0 %2017
    %v2020 = vsel %vm658, %v2014, %v2018
    %v2022 = vsel %vm777, %v2020, 0
    %2024 = vmatprep.subr.mxu0 0.0
    %2025 = vmatpush1.msra.mxu0 %v762
    %2026 = vmatprep.subr.mxu0 0.0
    %2027 = vmatpush1.msra.mxu0 %v763
    %2028 = vmatprep.subr.mxu0 0.0
    %2029 = vmatpush1.msra.mxu0 %v764
    %2030 = vmatprep.subr.mxu0 0.0
    %2031 = vmatpush1.msra.mxu0 %v765
    %2032 = vmatprep.subr.mxu0 0.0
    %2033 = vmatpush1.msra.mxu0 %v766
    %2034 = vmatprep.subr.mxu0 0.0
    %2035 = vmatpush1.msra.mxu0 %v767
    %2036 = vmatprep.subr.mxu0 0.0
    %2037 = vmatpush1.msra.mxu0 %v768
    %2038 = vmatprep.subr.mxu0 0.0
    %2039 = vmatpush1.msra.mxu0 %v769
    %2040 = vmatprep.subr.mxu0 0.0
    %2041 = vmatpush1.msra.mxu0 0.0
    %2042 = vmatprep.subr.mxu0 0.0
    %2043 = vmatpush1.msra.mxu0 0.0
    %2044 = vmatprep.subr.mxu0 0.0
    %2045 = vmatpush1.msra.mxu0 0.0
    %2046 = vmatprep.subr.mxu0 0.0
    %2047 = vmatpush1.msra.mxu0 0.0
    %2048 = vmatprep.subr.mxu0 0.0
    %2049 = vmatpush1.msra.mxu0 0.0
    %2050 = vmatprep.subr.mxu0 0.0
    %2051 = vmatpush1.msra.mxu0 0.0
    %2052 = vmatprep.subr.mxu0 0.0
    %2053 = vmatpush1.msra.mxu0 0.0
    %2054 = vmatprep.subr.mxu0 0.0
    %2055 = vmatpush1.msra.mxu0 0.0
    %2056 = vmatprep.subr.mxu0 0.0
    %2057 = vmatpush1.msra.mxu0 0.0
    %2058 = vmatprep.subr.mxu0 0.0
    %2059 = vmatpush1.msra.mxu0 0.0
    %2060 = vmatprep.subr.mxu0 0.0
    %2061 = vmatpush1.msra.mxu0 0.0
    %2062 = vmatprep.subr.mxu0 0.0
    %2063 = vmatpush1.msra.mxu0 0.0
    %2064 = vmatprep.subr.mxu0 0.0
    %2065 = vmatpush1.msra.mxu0 0.0
    %2066 = vmatprep.subr.mxu0 0.0
    %2067 = vmatpush1.msra.mxu0 0.0
    %2068 = vmatprep.subr.mxu0 0.0
    %2069 = vmatpush1.msra.mxu0 0.0
    %2070 = vmatprep.subr.mxu0 0.0
    %2071 = vmatpush1.msra.mxu0 0.0
    %2072 = vmatprep.subr.mxu0 0.0
    %2073 = vmatpush1.msra.mxu0 0.0
    %2074 = vmatprep.subr.mxu0 0.0
    %2075 = vmatpush1.msra.mxu0 0.0
    %2076 = vmatprep.subr.mxu0 0.0
    %2077 = vmatpush1.msra.mxu0 0.0
    %2078 = vmatprep.subr.mxu0 0.0
    %2079 = vmatpush1.msra.mxu0 0.0
    %2080 = vmatprep.subr.mxu0 0.0
    %2081 = vmatpush1.msra.mxu0 0.0
    %2082 = vmatprep.subr.mxu0 0.0
    %2083 = vmatpush1.msra.mxu0 0.0
    %2084 = vmatprep.subr.mxu0 0.0
    %2085 = vmatpush1.msra.mxu0 0.0
    %2086 = vmatprep.subr.mxu0 0.0
    %2087 = vmatpush1.msra.mxu0 0.0
    %2088 = vmatprep.mubr.f32.mxu0 0.0
    %2089 = vmatmul.mubr.f32.gmra.mrb[0].mxu0 %v2022
    %v2090 = vpop.f32.mrb[0].mxu0
    %v2091 = vadd.f32 %v775, %v2090
    %v2092 = vpop.f32.mrb[0].mxu0
    %2093 = vdwg.mxu0
    %v2094 = vxor.u32 %v2091, 2147483648
    %v2095 = vmul.f32 %v2094, 1.442695
    %v2096 = vpow.pop %v2095
    %v2097 = vadd.f32 %v2096, 1.0
    %v2098 = vrcp.pop %v2097
    %v2099 = vmul.f32 1.0, %v2098
    %v2100 = vtanh.pop %v2091
    %v2101 = vmul.f32 %v2099, %v1701
    %2103 = vrot.lane.b32.xlu0 %v2100, 64
    %v2104 = vpop.permute.xlu0 %2103
    %v2106 = vmul.f32 %v2099, %v2104
    %2108 = vrot.lane.b32.xlu0 %v2106, 32
    %v2109 = vpop.permute.xlu0 %2108
    %v2111 = vadd.f32 %v2101, %v2109
    %v2112 = vtanh.pop %v2111
    %2114 = vrot.lane.b32.xlu0 %v2112, 64
    %v2115 = vpop.permute.xlu0 %2114
    %v2117 = vmul.f32 %v2099, %v2115
    %v2118 = vsel %vm658, %v1807, 0
    %2120 = vmatprep.subr.mxu0 0.0
    %2121 = vmatpush1.msra.mxu0 %v875
    %2122 = vmatprep.subr.mxu0 0.0
    %2123 = vmatpush1.msra.mxu0 %v876
    %2124 = vmatprep.subr.mxu0 0.0
    %2125 = vmatpush1.msra.mxu0 %v877
    %2126 = vmatprep.subr.mxu0 0.0
    %2127 = vmatpush1.msra.mxu0 %v878
    %2128 = vmatprep.subr.mxu0 0.0
    %2129 = vmatpush1.msra.mxu0 0.0
    %2130 = vmatprep.subr.mxu0 0.0
    %2131 = vmatpush1.msra.mxu0 0.0
    %2132 = vmatprep.subr.mxu0 0.0
    %2133 = vmatpush1.msra.mxu0 0.0
    %2134 = vmatprep.subr.mxu0 0.0
    %2135 = vmatpush1.msra.mxu0 0.0
    %2136 = vmatprep.subr.mxu0 0.0
    %2137 = vmatpush1.msra.mxu0 0.0
    %2138 = vmatprep.subr.mxu0 0.0
    %2139 = vmatpush1.msra.mxu0 0.0
    %2140 = vmatprep.subr.mxu0 0.0
    %2141 = vmatpush1.msra.mxu0 0.0
    %2142 = vmatprep.subr.mxu0 0.0
    %2143 = vmatpush1.msra.mxu0 0.0
    %2144 = vmatprep.subr.mxu0 0.0
    %2145 = vmatpush1.msra.mxu0 0.0
    %2146 = vmatprep.subr.mxu0 0.0
    %2147 = vmatpush1.msra.mxu0 0.0
    %2148 = vmatprep.subr.mxu0 0.0
    %2149 = vmatpush1.msra.mxu0 0.0
    %2150 = vmatprep.subr.mxu0 0.0
    %2151 = vmatpush1.msra.mxu0 0.0
    %2152 = vmatprep.subr.mxu0 0.0
    %2153 = vmatpush1.msra.mxu0 0.0
    %2154 = vmatprep.subr.mxu0 0.0
    %2155 = vmatpush1.msra.mxu0 0.0
    %2156 = vmatprep.subr.mxu0 0.0
    %2157 = vmatpush1.msra.mxu0 0.0
    %2158 = vmatprep.subr.mxu0 0.0
    %2159 = vmatpush1.msra.mxu0 0.0
    %2160 = vmatprep.subr.mxu0 0.0
    %2161 = vmatpush1.msra.mxu0 0.0
    %2162 = vmatprep.subr.mxu0 0.0
    %2163 = vmatpush1.msra.mxu0 0.0
    %2164 = vmatprep.subr.mxu0 0.0
    %2165 = vmatpush1.msra.mxu0 0.0
    %2166 = vmatprep.subr.mxu0 0.0
    %2167 = vmatpush1.msra.mxu0 0.0
    %2168 = vmatprep.subr.mxu0 0.0
    %2169 = vmatpush1.msra.mxu0 0.0
    %2170 = vmatprep.subr.mxu0 0.0
    %2171 = vmatpush1.msra.mxu0 0.0
    %2172 = vmatprep.subr.mxu0 0.0
    %2173 = vmatpush1.msra.mxu0 0.0
    %2174 = vmatprep.subr.mxu0 0.0
    %2175 = vmatpush1.msra.mxu0 0.0
    %2176 = vmatprep.subr.mxu0 0.0
    %2177 = vmatpush1.msra.mxu0 0.0
    %2178 = vmatprep.subr.mxu0 0.0
    %2179 = vmatpush1.msra.mxu0 0.0
    %2180 = vmatprep.subr.mxu0 0.0
    %2181 = vmatpush1.msra.mxu0 0.0
    %2182 = vmatprep.subr.mxu0 0.0
    %2183 = vmatpush1.msra.mxu0 0.0
    %2184 = vmatprep.mubr.f32.mxu0 0.0
    %2185 = vmatmul.mubr.f32.gmra.mrb[0].mxu0 %v2118
    %v2186 = vpop.f32.mrb[0].mxu0
    %v2187 = vadd.f32 0.0, %v2186
    %v2188 = vpop.f32.mrb[0].mxu0
    %2189 = vdwg.mxu0
    %v2190 = vadd.f32 %v1914, %v2187
    %v2191 = vxor.u32 %v2190, 2147483648
    %v2192 = vmul.f32 %v2191, 1.442695
    %v2193 = vpow.pop %v2192
    %v2194 = vadd.f32 %v2193, 1.0
    %v2195 = vrcp.pop %v2194
    %v2196 = vmul.f32 1.0, %v2195
    %v2197 = vtanh.pop %v2190
    %v2198 = vmul.f32 %v2196, %v1798
    %2200 = vrot.lane.b32.xlu0 %v2197, 64
    %v2201 = vpop.permute.xlu0 %2200
    %v2203 = vmul.f32 %v2196, %v2201
    %2205 = vrot.lane.b32.xlu0 %v2203, 32
    %v2206 = vpop.permute.xlu0 %2205
    %v2208 = vadd.f32 %v2198, %v2206
    %v2209 = vtanh.pop %v2208
    %2211 = vrot.lane.b32.xlu0 %v2209, 64
    %v2212 = vpop.permute.xlu0 %2211
    %v2214 = vmul.f32 %v2196, %v2212
    %2216 = vrot.lane.b32.xlu0 %v2214, 32
    %v2217 = vpop.permute.xlu0 %2216
    %2220 = vrot.lane.b32.xlu0 %v1910, 64
    %v2221 = vpop.permute.xlu0 %2220
    %v2223 = vsel %vm658, %v2217, %v2221
    %v2225 = vsel %vm777, %v2223, 0
    %2227 = vmatprep.subr.mxu0 0.0
    %2228 = vmatpush1.msra.mxu0 %v979
    %2229 = vmatprep.subr.mxu0 0.0
    %2230 = vmatpush1.msra.mxu0 %v980
    %2231 = vmatprep.subr.mxu0 0.0
    %2232 = vmatpush1.msra.mxu0 %v981
    %2233 = vmatprep.subr.mxu0 0.0
    %2234 = vmatpush1.msra.mxu0 %v982
    %2235 = vmatprep.subr.mxu0 0.0
    %2236 = vmatpush1.msra.mxu0 %v983
    %2237 = vmatprep.subr.mxu0 0.0
    %2238 = vmatpush1.msra.mxu0 %v984
    %2239 = vmatprep.subr.mxu0 0.0
    %2240 = vmatpush1.msra.mxu0 %v985
    %2241 = vmatprep.subr.mxu0 0.0
    %2242 = vmatpush1.msra.mxu0 %v986
    %2243 = vmatprep.subr.mxu0 0.0
    %2244 = vmatpush1.msra.mxu0 0.0
    %2245 = vmatprep.subr.mxu0 0.0
    %2246 = vmatpush1.msra.mxu0 0.0
    %2247 = vmatprep.subr.mxu0 0.0
    %2248 = vmatpush1.msra.mxu0 0.0
    %2249 = vmatprep.subr.mxu0 0.0
    %2250 = vmatpush1.msra.mxu0 0.0
    %2251 = vmatprep.subr.mxu0 0.0
    %2252 = vmatpush1.msra.mxu0 0.0
    %2253 = vmatprep.subr.mxu0 0.0
    %2254 = vmatpush1.msra.mxu0 0.0
    %2255 = vmatprep.subr.mxu0 0.0
    %2256 = vmatpush1.msra.mxu0 0.0
    %2257 = vmatprep.subr.mxu0 0.0
    %2258 = vmatpush1.msra.mxu0 0.0
    %2259 = vmatprep.subr.mxu0 0.0
    %2260 = vmatpush1.msra.mxu0 0.0
    %2261 = vmatprep.subr.mxu0 0.0
    %2262 = vmatpush1.msra.mxu0 0.0
    %2263 = vmatprep.subr.mxu0 0.0
    %2264 = vmatpush1.msra.mxu0 0.0
    %2265 = vmatprep.subr.mxu0 0.0
    %2266 = vmatpush1.msra.mxu0 0.0
    %2267 = vmatprep.subr.mxu0 0.0
    %2268 = vmatpush1.msra.mxu0 0.0
    %2269 = vmatprep.subr.mxu0 0.0
    %2270 = vmatpush1.msra.mxu0 0.0
    %2271 = vmatprep.subr.mxu0 0.0
    %2272 = vmatpush1.msra.mxu0 0.0
    %2273 = vmatprep.subr.mxu0 0.0
    %2274 = vmatpush1.msra.mxu0 0.0
    %2275 = vmatprep.subr.mxu0 0.0
    %2276 = vmatpush1.msra.mxu0 0.0
    %2277 = vmatprep.subr.mxu0 0.0
    %2278 = vmatpush1.msra.mxu0 0.0
    %2279 = vmatprep.subr.mxu0 0.0
    %2280 = vmatpush1.msra.mxu0 0.0
    %2281 = vmatprep.subr.mxu0 0.0
    %2282 = vmatpush1.msra.mxu0 0.0
    %2283 = vmatprep.subr.mxu0 0.0
    %2284 = vmatpush1.msra.mxu0 0.0
    %2285 = vmatprep.subr.mxu0 0.0
    %2286 = vmatpush1.msra.mxu0 0.0
    %2287 = vmatprep.subr.mxu0 0.0
    %2288 = vmatpush1.msra.mxu0 0.0
    %2289 = vmatprep.subr.mxu0 0.0
    %2290 = vmatpush1.msra.mxu0 0.0
    %2291 = vmatprep.mubr.f32.mxu0 0.0
    %2292 = vmatmul.mubr.f32.gmra.mrb[0].mxu0 %v2225
    %v2293 = vpop.f32.mrb[0].mxu0
    %v2294 = vadd.f32 %v992, %v2293
    %v2295 = vpop.f32.mrb[0].mxu0
    %2296 = vdwg.mxu0
    %v2297 = vxor.u32 %v2294, 2147483648
    %v2298 = vmul.f32 %v2297, 1.442695
    %v2299 = vpow.pop %v2298
    %v2300 = vadd.f32 %v2299, 1.0
    %v2301 = vrcp.pop %v2300
    %v2302 = vmul.f32 1.0, %v2301
    %v2303 = vtanh.pop %v2294
    %v2304 = vmul.f32 %v2302, %v1904
    %2306 = vrot.lane.b32.xlu0 %v2303, 64
    %v2307 = vpop.permute.xlu0 %2306
    %v2309 = vmul.f32 %v2302, %v2307
    %2311 = vrot.lane.b32.xlu0 %v2309, 32
    %v2312 = vpop.permute.xlu0 %2311
    %v2314 = vadd.f32 %v2304, %v2312
    %v2315 = vtanh.pop %v2314
    %2317 = vrot.lane.b32.xlu0 %v2315, 64
    %v2318 = vpop.permute.xlu0 %2317
    %v2320 = vmul.f32 %v2302, %v2318
    %s2321 = scalar_lea.vmem [#allocation2], 32
    %v2322 = vld [vmem:[%s2321] sm:$0xff]
    %s2323 = scalar_lea.vmem [#allocation3], 32
    %v2324 = vld [vmem:[%s2323] sm:$0xff]
    %v2325 = vsel %vm658, %v2014, 0
    %2327 = vmatprep.subr.mxu0 0.0
    %2328 = vmatpush1.msra.mxu0 %v654
    %2329 = vmatprep.subr.mxu0 0.0
    %2330 = vmatpush1.msra.mxu0 %v655
    %2331 = vmatprep.subr.mxu0 0.0
    %2332 = vmatpush1.msra.mxu0 %v656
    %2333 = vmatprep.subr.mxu0 0.0
    %2334 = vmatpush1.msra.mxu0 %v657
    %2335 = vmatprep.subr.mxu0 0.0
    %2336 = vmatpush1.msra.mxu0 0.0
    %2337 = vmatprep.subr.mxu0 0.0
    %2338 = vmatpush1.msra.mxu0 0.0
    %2339 = vmatprep.subr.mxu0 0.0
    %2340 = vmatpush1.msra.mxu0 0.0
    %2341 = vmatprep.subr.mxu0 0.0
    %2342 = vmatpush1.msra.mxu0 0.0
    %2343 = vmatprep.subr.mxu0 0.0
    %2344 = vmatpush1.msra.mxu0 0.0
    %2345 = vmatprep.subr.mxu0 0.0
    %2346 = vmatpush1.msra.mxu0 0.0
    %2347 = vmatprep.subr.mxu0 0.0
    %2348 = vmatpush1.msra.mxu0 0.0
    %2349 = vmatprep.subr.mxu0 0.0
    %2350 = vmatpush1.msra.mxu0 0.0
    %2351 = vmatprep.subr.mxu0 0.0
    %2352 = vmatpush1.msra.mxu0 0.0
    %2353 = vmatprep.subr.mxu0 0.0
    %2354 = vmatpush1.msra.mxu0 0.0
    %2355 = vmatprep.subr.mxu0 0.0
    %2356 = vmatpush1.msra.mxu0 0.0
    %2357 = vmatprep.subr.mxu0 0.0
    %2358 = vmatpush1.msra.mxu0 0.0
    %2359 = vmatprep.subr.mxu0 0.0
    %2360 = vmatpush1.msra.mxu0 0.0
    %2361 = vmatprep.subr.mxu0 0.0
    %2362 = vmatpush1.msra.mxu0 0.0
    %2363 = vmatprep.subr.mxu0 0.0
    %2364 = vmatpush1.msra.mxu0 0.0
    %2365 = vmatprep.subr.mxu0 0.0
    %2366 = vmatpush1.msra.mxu0 0.0
    %2367 = vmatprep.subr.mxu0 0.0
    %2368 = vmatpush1.msra.mxu0 0.0
    %2369 = vmatprep.subr.mxu0 0.0
    %2370 = vmatpush1.msra.mxu0 0.0
    %2371 = vmatprep.subr.mxu0 0.0
    %2372 = vmatpush1.msra.mxu0 0.0
    %2373 = vmatprep.subr.mxu0 0.0
    %2374 = vmatpush1.msra.mxu0 0.0
    %2375 = vmatprep.subr.mxu0 0.0
    %2376 = vmatpush1.msra.mxu0 0.0
    %2377 = vmatprep.subr.mxu0 0.0
    %2378 = vmatpush1.msra.mxu0 0.0
    %2379 = vmatprep.subr.mxu0 0.0
    %2380 = vmatpush1.msra.mxu0 0.0
    %2381 = vmatprep.subr.mxu0 0.0
    %2382 = vmatpush1.msra.mxu0 0.0
    %2383 = vmatprep.subr.mxu0 0.0
    %2384 = vmatpush1.msra.mxu0 0.0
    %2385 = vmatprep.subr.mxu0 0.0
    %2386 = vmatpush1.msra.mxu0 0.0
    %2387 = vmatprep.subr.mxu0 0.0
    %2388 = vmatpush1.msra.mxu0 0.0
    %2389 = vmatprep.subr.mxu0 0.0
    %2390 = vmatpush1.msra.mxu0 0.0
    %2391 = vmatprep.mubr.f32.mxu0 0.0
    %2392 = vmatmul.mubr.f32.gmra.mrb[0].mxu0 %v2325
    %v2393 = vpop.f32.mrb[0].mxu0
    %v2394 = vadd.f32 0.0, %v2393
    %v2395 = vpop.f32.mrb[0].mxu0
    %2396 = vdwg.mxu0
    %v2397 = vadd.f32 %v2322, %v2394
    %v2398 = vxor.u32 %v2397, 2147483648
    %v2399 = vmul.f32 %v2398, 1.442695
    %v2400 = vpow.pop %v2399
    %v2401 = vadd.f32 %v2400, 1.0
    %v2402 = vrcp.pop %v2401
    %v2403 = vmul.f32 1.0, %v2402
    %v2404 = vtanh.pop %v2397
    %v2405 = vmul.f32 %v2403, %v2005
    %2407 = vrot.lane.b32.xlu0 %v2404, 64
    %v2408 = vpop.permute.xlu0 %2407
    %v2410 = vmul.f32 %v2403, %v2408
    %2412 = vrot.lane.b32.xlu0 %v2410, 32
    %v2413 = vpop.permute.xlu0 %2412
    %v2415 = vadd.f32 %v2405, %v2413
    %v2416 = vtanh.pop %v2415
    %2418 = vrot.lane.b32.xlu0 %v2416, 64
    %v2419 = vpop.permute.xlu0 %2418
    %v2421 = vmul.f32 %v2403, %v2419
    %2423 = vrot.lane.b32.xlu0 %v2421, 32
    %v2424 = vpop.permute.xlu0 %2423
    %2427 = vrot.lane.b32.xlu0 %v2117, 64
    %v2428 = vpop.permute.xlu0 %2427
    %v2430 = vsel %vm658, %v2424, %v2428
    %v2432 = vsel %vm777, %v2430, 0
    %2434 = vmatprep.subr.mxu0 0.0
    %2435 = vmatpush1.msra.mxu0 %v762
    %2436 = vmatprep.subr.mxu0 0.0
    %2437 = vmatpush1.msra.mxu0 %v763
    %2438 = vmatprep.subr.mxu0 0.0
    %2439 = vmatpush1.msra.mxu0 %v764
    %2440 = vmatprep.subr.mxu0 0.0
    %2441 = vmatpush1.msra.mxu0 %v765
    %2442 = vmatprep.subr.mxu0 0.0
    %2443 = vmatpush1.msra.mxu0 %v766
    %2444 = vmatprep.subr.mxu0 0.0
    %2445 = vmatpush1.msra.mxu0 %v767
    %2446 = vmatprep.subr.mxu0 0.0
    %2447 = vmatpush1.msra.mxu0 %v768
    %2448 = vmatprep.subr.mxu0 0.0
    %2449 = vmatpush1.msra.mxu0 %v769
    %2450 = vmatprep.subr.mxu0 0.0
    %2451 = vmatpush1.msra.mxu0 0.0
    %2452 = vmatprep.subr.mxu0 0.0
    %2453 = vmatpush1.msra.mxu0 0.0
    %2454 = vmatprep.subr.mxu0 0.0
    %2455 = vmatpush1.msra.mxu0 0.0
    %2456 = vmatprep.subr.mxu0 0.0
    %2457 = vmatpush1.msra.mxu0 0.0
    %2458 = vmatprep.subr.mxu0 0.0
    %2459 = vmatpush1.msra.mxu0 0.0
    %2460 = vmatprep.subr.mxu0 0.0
    %2461 = vmatpush1.msra.mxu0 0.0
    %2462 = vmatprep.subr.mxu0 0.0
    %2463 = vmatpush1.msra.mxu0 0.0
    %2464 = vmatprep.subr.mxu0 0.0
    %2465 = vmatpush1.msra.mxu0 0.0
    %2466 = vmatprep.subr.mxu0 0.0
    %2467 = vmatpush1.msra.mxu0 0.0
    %2468 = vmatprep.subr.mxu0 0.0
    %2469 = vmatpush1.msra.mxu0 0.0
    %2470 = vmatprep.subr.mxu0 0.0
    %2471 = vmatpush1.msra.mxu0 0.0
    %2472 = vmatprep.subr.mxu0 0.0
    %2473 = vmatpush1.msra.mxu0 0.0
    %2474 = vmatprep.subr.mxu0 0.0
    %2475 = vmatpush1.msra.mxu0 0.0
    %2476 = vmatprep.subr.mxu0 0.0
    %2477 = vmatpush1.msra.mxu0 0.0
    %2478 = vmatprep.subr.mxu0 0.0
    %2479 = vmatpush1.msra.mxu0 0.0
    %2480 = vmatprep.subr.mxu0 0.0
    %2481 = vmatpush1.msra.mxu0 0.0
    %2482 = vmatprep.subr.mxu0 0.0
    %2483 = vmatpush1.msra.mxu0 0.0
    %2484 = vmatprep.subr.mxu0 0.0
    %2485 = vmatpush1.msra.mxu0 0.0
    %2486 = vmatprep.subr.mxu0 0.0
    %2487 = vmatpush1.msra.mxu0 0.0
    %2488 = vmatprep.subr.mxu0 0.0
    %2489 = vmatpush1.msra.mxu0 0.0
    %2490 = vmatprep.subr.mxu0 0.0
    %2491 = vmatpush1.msra.mxu0 0.0
    %2492 = vmatprep.subr.mxu0 0.0
    %2493 = vmatpush1.msra.mxu0 0.0
    %2494 = vmatprep.subr.mxu0 0.0
    %2495 = vmatpush1.msra.mxu0 0.0
    %2496 = vmatprep.subr.mxu0 0.0
    %2497 = vmatpush1.msra.mxu0 0.0
    %2498 = vmatprep.mubr.f32.mxu0 0.0
    %2499 = vmatmul.mubr.f32.gmra.mrb[0].mxu0 %v2432
    %v2500 = vpop.f32.mrb[0].mxu0
    %v2501 = vadd.f32 %v775, %v2500
    %v2502 = vpop.f32.mrb[0].mxu0
    %2503 = vdwg.mxu0
    %v2504 = vxor.u32 %v2501, 2147483648
    %v2505 = vmul.f32 %v2504, 1.442695
    %v2506 = vpow.pop %v2505
    %v2507 = vadd.f32 %v2506, 1.0
    %v2508 = vrcp.pop %v2507
    %v2509 = vmul.f32 1.0, %v2508
    %v2510 = vtanh.pop %v2501
    %v2511 = vmul.f32 %v2509, %v2111
    %2513 = vrot.lane.b32.xlu0 %v2510, 64
    %v2514 = vpop.permute.xlu0 %2513
    %v2516 = vmul.f32 %v2509, %v2514
    %2518 = vrot.lane.b32.xlu0 %v2516, 32
    %v2519 = vpop.permute.xlu0 %2518
    %v2521 = vadd.f32 %v2511, %v2519
    %v2522 = vtanh.pop %v2521
    %2524 = vrot.lane.b32.xlu0 %v2522, 64
    %v2525 = vpop.permute.xlu0 %2524
    %v2527 = vmul.f32 %v2509, %v2525
    %v2528 = vsel %vm658, %v2217, 0
    %2530 = vmatprep.subr.mxu0 0.0
    %2531 = vmatpush1.msra.mxu0 %v875
    %2532 = vmatprep.subr.mxu0 0.0
    %2533 = vmatpush1.msra.mxu0 %v876
    %2534 = vmatprep.subr.mxu0 0.0
    %2535 = vmatpush1.msra.mxu0 %v877
    %2536 = vmatprep.subr.mxu0 0.0
    %2537 = vmatpush1.msra.mxu0 %v878
    %2538 = vmatprep.subr.mxu0 0.0
    %2539 = vmatpush1.msra.mxu0 0.0
    %2540 = vmatprep.subr.mxu0 0.0
    %2541 = vmatpush1.msra.mxu0 0.0
    %2542 = vmatprep.subr.mxu0 0.0
    %2543 = vmatpush1.msra.mxu0 0.0
    %2544 = vmatprep.subr.mxu0 0.0
    %2545 = vmatpush1.msra.mxu0 0.0
    %2546 = vmatprep.subr.mxu0 0.0
    %2547 = vmatpush1.msra.mxu0 0.0
    %2548 = vmatprep.subr.mxu0 0.0
    %2549 = vmatpush1.msra.mxu0 0.0
    %2550 = vmatprep.subr.mxu0 0.0
    %2551 = vmatpush1.msra.mxu0 0.0
    %2552 = vmatprep.subr.mxu0 0.0
    %2553 = vmatpush1.msra.mxu0 0.0
    %2554 = vmatprep.subr.mxu0 0.0
    %2555 = vmatpush1.msra.mxu0 0.0
    %2556 = vmatprep.subr.mxu0 0.0
    %2557 = vmatpush1.msra.mxu0 0.0
    %2558 = vmatprep.subr.mxu0 0.0
    %2559 = vmatpush1.msra.mxu0 0.0
    %2560 = vmatprep.subr.mxu0 0.0
    %2561 = vmatpush1.msra.mxu0 0.0
    %2562 = vmatprep.subr.mxu0 0.0
    %2563 = vmatpush1.msra.mxu0 0.0
    %2564 = vmatprep.subr.mxu0 0.0
    %2565 = vmatpush1.msra.mxu0 0.0
    %2566 = vmatprep.subr.mxu0 0.0
    %2567 = vmatpush1.msra.mxu0 0.0
    %2568 = vmatprep.subr.mxu0 0.0
    %2569 = vmatpush1.msra.mxu0 0.0
    %2570 = vmatprep.subr.mxu0 0.0
    %2571 = vmatpush1.msra.mxu0 0.0
    %2572 = vmatprep.subr.mxu0 0.0
    %2573 = vmatpush1.msra.mxu0 0.0
    %2574 = vmatprep.subr.mxu0 0.0
    %2575 = vmatpush1.msra.mxu0 0.0
    %2576 = vmatprep.subr.mxu0 0.0
    %2577 = vmatpush1.msra.mxu0 0.0
    %2578 = vmatprep.subr.mxu0 0.0
    %2579 = vmatpush1.msra.mxu0 0.0
    %2580 = vmatprep.subr.mxu0 0.0
    %2581 = vmatpush1.msra.mxu0 0.0
    %2582 = vmatprep.subr.mxu0 0.0
    %2583 = vmatpush1.msra.mxu0 0.0
    %2584 = vmatprep.subr.mxu0 0.0
    %2585 = vmatpush1.msra.mxu0 0.0
    %2586 = vmatprep.subr.mxu0 0.0
    %2587 = vmatpush1.msra.mxu0 0.0
    %2588 = vmatprep.subr.mxu0 0.0
    %2589 = vmatpush1.msra.mxu0 0.0
    %2590 = vmatprep.subr.mxu0 0.0
    %2591 = vmatpush1.msra.mxu0 0.0
    %2592 = vmatprep.subr.mxu0 0.0
    %2593 = vmatpush1.msra.mxu0 0.0
    %2594 = vmatprep.mubr.f32.mxu0 0.0
    %2595 = vmatmul.mubr.f32.gmra.mrb[0].mxu0 %v2528
    %v2596 = vpop.f32.mrb[0].mxu0
    %v2597 = vadd.f32 0.0, %v2596
    %v2598 = vpop.f32.mrb[0].mxu0
    %2599 = vdwg.mxu0
    %v2600 = vadd.f32 %v2324, %v2597
    %v2601 = vxor.u32 %v2600, 2147483648
    %v2602 = vmul.f32 %v2601, 1.442695
    %v2603 = vpow.pop %v2602
    %v2604 = vadd.f32 %v2603, 1.0
    %v2605 = vrcp.pop %v2604
    %v2606 = vmul.f32 1.0, %v2605
    %v2607 = vtanh.pop %v2600
    %v2608 = vmul.f32 %v2606, %v2208
    %2610 = vrot.lane.b32.xlu0 %v2607, 64
    %v2611 = vpop.permute.xlu0 %2610
    %v2613 = vmul.f32 %v2606, %v2611
    %2615 = vrot.lane.b32.xlu0 %v2613, 32
    %v2616 = vpop.permute.xlu0 %2615
    %v2618 = vadd.f32 %v2608, %v2616
    %v2619 = vtanh.pop %v2618
    %2621 = vrot.lane.b32.xlu0 %v2619, 64
    %v2622 = vpop.permute.xlu0 %2621
    %v2624 = vmul.f32 %v2606, %v2622
    %2626 = vrot.lane.b32.xlu0 %v2624, 32
    %v2627 = vpop.permute.xlu0 %2626
    %2630 = vrot.lane.b32.xlu0 %v2320, 64
    %v2631 = vpop.permute.xlu0 %2630
    %v2633 = vsel %vm658, %v2627, %v2631
    %v2635 = vsel %vm777, %v2633, 0
    %2637 = vmatprep.subr.mxu0 0.0
    %2638 = vmatpush1.msra.mxu0 %v979
    %2639 = vmatprep.subr.mxu0 0.0
    %2640 = vmatpush1.msra.mxu0 %v980
    %2641 = vmatprep.subr.mxu0 0.0
    %2642 = vmatpush1.msra.mxu0 %v981
    %2643 = vmatprep.subr.mxu0 0.0
    %2644 = vmatpush1.msra.mxu0 %v982
    %2645 = vmatprep.subr.mxu0 0.0
    %2646 = vmatpush1.msra.mxu0 %v983
    %2647 = vmatprep.subr.mxu0 0.0
    %2648 = vmatpush1.msra.mxu0 %v984
    %2649 = vmatprep.subr.mxu0 0.0
    %2650 = vmatpush1.msra.mxu0 %v985
    %2651 = vmatprep.subr.mxu0 0.0
    %2652 = vmatpush1.msra.mxu0 %v986
    %2653 = vmatprep.subr.mxu0 0.0
    %2654 = vmatpush1.msra.mxu0 0.0
    %2655 = vmatprep.subr.mxu0 0.0
    %2656 = vmatpush1.msra.mxu0 0.0
    %2657 = vmatprep.subr.mxu0 0.0
    %2658 = vmatpush1.msra.mxu0 0.0
    %2659 = vmatprep.subr.mxu0 0.0
    %2660 = vmatpush1.msra.mxu0 0.0
    %2661 = vmatprep.subr.mxu0 0.0
    %2662 = vmatpush1.msra.mxu0 0.0
    %2663 = vmatprep.subr.mxu0 0.0
    %2664 = vmatpush1.msra.mxu0 0.0
    %2665 = vmatprep.subr.mxu0 0.0
    %2666 = vmatpush1.msra.mxu0 0.0
    %2667 = vmatprep.subr.mxu0 0.0
    %2668 = vmatpush1.msra.mxu0 0.0
    %2669 = vmatprep.subr.mxu0 0.0
    %2670 = vmatpush1.msra.mxu0 0.0
    %2671 = vmatprep.subr.mxu0 0.0
    %2672 = vmatpush1.msra.mxu0 0.0
    %2673 = vmatprep.subr.mxu0 0.0
    %2674 = vmatpush1.msra.mxu0 0.0
    %2675 = vmatprep.subr.mxu0 0.0
    %2676 = vmatpush1.msra.mxu0 0.0
    %2677 = vmatprep.subr.mxu0 0.0
    %2678 = vmatpush1.msra.mxu0 0.0
    %2679 = vmatprep.subr.mxu0 0.0
    %2680 = vmatpush1.msra.mxu0 0.0
    %2681 = vmatprep.subr.mxu0 0.0
    %2682 = vmatpush1.msra.mxu0 0.0
    %2683 = vmatprep.subr.mxu0 0.0
    %2684 = vmatpush1.msra.mxu0 0.0
    %2685 = vmatprep.subr.mxu0 0.0
    %2686 = vmatpush1.msra.mxu0 0.0
    %2687 = vmatprep.subr.mxu0 0.0
    %2688 = vmatpush1.msra.mxu0 0.0
    %2689 = vmatprep.subr.mxu0 0.0
    %2690 = vmatpush1.msra.mxu0 0.0
    %2691 = vmatprep.subr.mxu0 0.0
    %2692 = vmatpush1.msra.mxu0 0.0
    %2693 = vmatprep.subr.mxu0 0.0
    %2694 = vmatpush1.msra.mxu0 0.0
    %2695 = vmatprep.subr.mxu0 0.0
    %2696 = vmatpush1.msra.mxu0 0.0
    %2697 = vmatprep.subr.mxu0 0.0
    %2698 = vmatpush1.msra.mxu0 0.0
    %2699 = vmatprep.subr.mxu0 0.0
    %2700 = vmatpush1.msra.mxu0 0.0
    %2701 = vmatprep.mubr.f32.mxu0 0.0
    %2702 = vmatmul.mubr.f32.gmra.mrb[0].mxu0 %v2635
    %v2703 = vpop.f32.mrb[0].mxu0
    %v2704 = vadd.f32 %v992, %v2703
    %v2705 = vpop.f32.mrb[0].mxu0
    %2706 = vdwg.mxu0
    %v2707 = vxor.u32 %v2704, 2147483648
    %v2708 = vmul.f32 %v2707, 1.442695
    %v2709 = vpow.pop %v2708
    %v2710 = vadd.f32 %v2709, 1.0
    %v2711 = vrcp.pop %v2710
    %v2712 = vmul.f32 1.0, %v2711
    %v2713 = vtanh.pop %v2704
    %v2714 = vmul.f32 %v2712, %v2314
    %2716 = vrot.lane.b32.xlu0 %v2713, 64
    %v2717 = vpop.permute.xlu0 %2716
    %v2719 = vmul.f32 %v2712, %v2717
    %2721 = vrot.lane.b32.xlu0 %v2719, 32
    %v2722 = vpop.permute.xlu0 %2721
    %v2724 = vadd.f32 %v2714, %v2722
    %v2725 = vtanh.pop %v2724
    %2727 = vrot.lane.b32.xlu0 %v2725, 64
    %v2728 = vpop.permute.xlu0 %2727
    %v2730 = vmul.f32 %v2712, %v2728
    %v2731 = vld [vmem:[#allocation4] sm:$0xff]
    %v2732 = vld [vmem:[%s19] sm:$0xff]
    %v2733 = vld [vmem:[%s19 + $0x8] sm:$0xff]
    %v2734 = vld [vmem:[%s19 + $0x10] sm:$0xff]
    %v2735 = vld [vmem:[%s19 + $0x18] sm:$0xff]
    %v2736 = vsel %vm658, %v2424, 0
    %2738 = vmatprep.subr.mxu0 0.0
    %2739 = vmatpush1.msra.mxu0 %v2732
    %2740 = vmatprep.subr.mxu0 0.0
    %2741 = vmatpush1.msra.mxu0 %v2733
    %2742 = vmatprep.subr.mxu0 0.0
    %2743 = vmatpush1.msra.mxu0 %v2734
    %2744 = vmatprep.subr.mxu0 0.0
    %2745 = vmatpush1.msra.mxu0 %v2735
    %2746 = vmatprep.subr.mxu0 0.0
    %2747 = vmatpush1.msra.mxu0 0.0
    %2748 = vmatprep.subr.mxu0 0.0
    %2749 = vmatpush1.msra.mxu0 0.0
    %2750 = vmatprep.subr.mxu0 0.0
    %2751 = vmatpush1.msra.mxu0 0.0
    %2752 = vmatprep.subr.mxu0 0.0
    %2753 = vmatpush1.msra.mxu0 0.0
    %2754 = vmatprep.subr.mxu0 0.0
    %2755 = vmatpush1.msra.mxu0 0.0
    %2756 = vmatprep.subr.mxu0 0.0
    %2757 = vmatpush1.msra.mxu0 0.0
    %2758 = vmatprep.subr.mxu0 0.0
    %2759 = vmatpush1.msra.mxu0 0.0
    %2760 = vmatprep.subr.mxu0 0.0
    %2761 = vmatpush1.msra.mxu0 0.0
    %2762 = vmatprep.subr.mxu0 0.0
    %2763 = vmatpush1.msra.mxu0 0.0
    %2764 = vmatprep.subr.mxu0 0.0
    %2765 = vmatpush1.msra.mxu0 0.0
    %2766 = vmatprep.subr.mxu0 0.0
    %2767 = vmatpush1.msra.mxu0 0.0
    %2768 = vmatprep.subr.mxu0 0.0
    %2769 = vmatpush1.msra.mxu0 0.0
    %2770 = vmatprep.subr.mxu0 0.0
    %2771 = vmatpush1.msra.mxu0 0.0
    %2772 = vmatprep.subr.mxu0 0.0
    %2773 = vmatpush1.msra.mxu0 0.0
    %2774 = vmatprep.subr.mxu0 0.0
    %2775 = vmatpush1.msra.mxu0 0.0
    %2776 = vmatprep.subr.mxu0 0.0
    %2777 = vmatpush1.msra.mxu0 0.0
    %2778 = vmatprep.subr.mxu0 0.0
    %2779 = vmatpush1.msra.mxu0 0.0
    %2780 = vmatprep.subr.mxu0 0.0
    %2781 = vmatpush1.msra.mxu0 0.0
    %2782 = vmatprep.subr.mxu0 0.0
    %2783 = vmatpush1.msra.mxu0 0.0
    %2784 = vmatprep.subr.mxu0 0.0
    %2785 = vmatpush1.msra.mxu0 0.0
    %2786 = vmatprep.subr.mxu0 0.0
    %2787 = vmatpush1.msra.mxu0 0.0
    %2788 = vmatprep.subr.mxu0 0.0
    %2789 = vmatpush1.msra.mxu0 0.0
    %2790 = vmatprep.subr.mxu0 0.0
    %2791 = vmatpush1.msra.mxu0 0.0
    %2792 = vmatprep.subr.mxu0 0.0
    %2793 = vmatpush1.msra.mxu0 0.0
    %2794 = vmatprep.subr.mxu0 0.0
    %2795 = vmatpush1.msra.mxu0 0.0
    %2796 = vmatprep.subr.mxu0 0.0
    %2797 = vmatpush1.msra.mxu0 0.0
    %2798 = vmatprep.subr.mxu0 0.0
    %2799 = vmatpush1.msra.mxu0 0.0
    %2800 = vmatprep.subr.mxu0 0.0
    %2801 = vmatpush1.msra.mxu0 0.0
    %2802 = vmatprep.mubr.f32.mxu0 0.0
    %2803 = vmatmul.mubr.f32.gmra.mrb[0].mxu0 %v2736
    %v2804 = vpop.f32.mrb[0].mxu0
    %v2805 = vadd.f32 0.0, %v2804
    %v2806 = vpop.f32.mrb[0].mxu0
    %2807 = vdwg.mxu0
    %v2808 = vadd.f32 %v2731, %v2805
    %v2809 = vxor.u32 %v2808, 2147483648
    %v2810 = vmul.f32 %v2809, 1.442695
    %v2811 = vpow.pop %v2810
    %v2812 = vadd.f32 %v2811, 1.0
    %v2813 = vrcp.pop %v2812
    %v2814 = vmul.f32 1.0, %v2813
    %v2815 = vtanh.pop %v2808
    %v2816 = vmul.f32 %v2814, %v2415
    %2818 = vrot.lane.b32.xlu0 %v2815, 64
    %v2819 = vpop.permute.xlu0 %2818
    %v2821 = vmul.f32 %v2814, %v2819
    %2823 = vrot.lane.b32.xlu0 %v2821, 32
    %v2824 = vpop.permute.xlu0 %2823
    %v2826 = vadd.f32 %v2816, %v2824
    %v2827 = vtanh.pop %v2826
    %2829 = vrot.lane.b32.xlu0 %v2827, 64
    %v2830 = vpop.permute.xlu0 %2829
    %v2832 = vmul.f32 %v2814, %v2830
    %2834 = vrot.lane.b32.xlu0 %v2832, 32
    %v2835 = vpop.permute.xlu0 %2834
    %2838 = vrot.lane.b32.xlu0 %v2527, 64
    %v2839 = vpop.permute.xlu0 %2838
    %v2841 = vsel %vm658, %v2835, %v2839
    %v2842 = vld [vmem:[%s23] sm:$0xff]
    %v2843 = vld [vmem:[%s23 + $0x8] sm:$0xff]
    %v2844 = vld [vmem:[%s23 + $0x10] sm:$0xff]
    %v2845 = vld [vmem:[%s23 + $0x18] sm:$0xff]
    %v2846 = vld [vmem:[%s23 + $0x20] sm:$0xff]
    %v2847 = vld [vmem:[%s23 + $0x28] sm:$0xff]
    %v2848 = vld [vmem:[%s23 + $0x30] sm:$0xff]
    %v2849 = vld [vmem:[%s23 + $0x38] sm:$0xff]
    %v2850 = vld [vmem:[%s25] sm:$0x1]
    %v2852 = vlaneseq
    %v2853 = vshrl.u32 %v2852, 7
    %v2854 = vsub.s32 0, %v2853
    %v2855 = vrot.slane %v2850, %v2854
    %v2858 = vsel %vm777, %v2841, 0
    %2860 = vmatprep.subr.mxu0 0.0
    %2861 = vmatpush1.msra.mxu0 %v2842
    %2862 = vmatprep.subr.mxu0 0.0
    %2863 = vmatpush1.msra.mxu0 %v2843
    %2864 = vmatprep.subr.mxu0 0.0
    %2865 = vmatpush1.msra.mxu0 %v2844
    %2866 = vmatprep.subr.mxu0 0.0
    %2867 = vmatpush1.msra.mxu0 %v2845
    %2868 = vmatprep.subr.mxu0 0.0
    %2869 = vmatpush1.msra.mxu0 %v2846
    %2870 = vmatprep.subr.mxu0 0.0
    %2871 = vmatpush1.msra.mxu0 %v2847
    %2872 = vmatprep.subr.mxu0 0.0
    %2873 = vmatpush1.msra.mxu0 %v2848
    %2874 = vmatprep.subr.mxu0 0.0
    %2875 = vmatpush1.msra.mxu0 %v2849
    %2876 = vmatprep.subr.mxu0 0.0
    %2877 = vmatpush1.msra.mxu0 0.0
    %2878 = vmatprep.subr.mxu0 0.0
    %2879 = vmatpush1.msra.mxu0 0.0
    %2880 = vmatprep.subr.mxu0 0.0
    %2881 = vmatpush1.msra.mxu0 0.0
    %2882 = vmatprep.subr.mxu0 0.0
    %2883 = vmatpush1.msra.mxu0 0.0
    %2884 = vmatprep.subr.mxu0 0.0
    %2885 = vmatpush1.msra.mxu0 0.0
    %2886 = vmatprep.subr.mxu0 0.0
    %2887 = vmatpush1.msra.mxu0 0.0
    %2888 = vmatprep.subr.mxu0 0.0
    %2889 = vmatpush1.msra.mxu0 0.0
    %2890 = vmatprep.subr.mxu0 0.0
    %2891 = vmatpush1.msra.mxu0 0.0
    %2892 = vmatprep.subr.mxu0 0.0
    %2893 = vmatpush1.msra.mxu0 0.0
    %2894 = vmatprep.subr.mxu0 0.0
    %2895 = vmatpush1.msra.mxu0 0.0
    %2896 = vmatprep.subr.mxu0 0.0
    %2897 = vmatpush1.msra.mxu0 0.0
    %2898 = vmatprep.subr.mxu0 0.0
    %2899 = vmatpush1.msra.mxu0 0.0
    %2900 = vmatprep.subr.mxu0 0.0
    %2901 = vmatpush1.msra.mxu0 0.0
    %2902 = vmatprep.subr.mxu0 0.0
    %2903 = vmatpush1.msra.mxu0 0.0
    %2904 = vmatprep.subr.mxu0 0.0
    %2905 = vmatpush1.msra.mxu0 0.0
    %2906 = vmatprep.subr.mxu0 0.0
    %2907 = vmatpush1.msra.mxu0 0.0
    %2908 = vmatprep.subr.mxu0 0.0
    %2909 = vmatpush1.msra.mxu0 0.0
    %2910 = vmatprep.subr.mxu0 0.0
    %2911 = vmatpush1.msra.mxu0 0.0
    %2912 = vmatprep.subr.mxu0 0.0
    %2913 = vmatpush1.msra.mxu0 0.0
    %2914 = vmatprep.subr.mxu0 0.0
    %2915 = vmatpush1.msra.mxu0 0.0
    %2916 = vmatprep.subr.mxu0 0.0
    %2917 = vmatpush1.msra.mxu0 0.0
    %2918 = vmatprep.subr.mxu0 0.0
    %2919 = vmatpush1.msra.mxu0 0.0
    %2920 = vmatprep.subr.mxu0 0.0
    %2921 = vmatpush1.msra.mxu0 0.0
    %2922 = vmatprep.subr.mxu0 0.0
    %2923 = vmatpush1.msra.mxu0 0.0
    %2924 = vmatprep.mubr.f32.mxu0 0.0
    %2925 = vmatmul.mubr.f32.gmra.mrb[0].mxu0 %v2858
    %v2926 = vpop.f32.mrb[0].mxu0
    %v2927 = vadd.f32 %v2855, %v2926
    %v2928 = vpop.f32.mrb[0].mxu0
    %2929 = vdwg.mxu0
    %v2930 = vxor.u32 %v2927, 2147483648
    %v2931 = vmul.f32 %v2930, 1.442695
    %v2932 = vpow.pop %v2931
    %v2933 = vadd.f32 %v2932, 1.0
    %v2934 = vrcp.pop %v2933
    %v2935 = vmul.f32 1.0, %v2934
    %v2936 = vtanh.pop %v2927
    %v2937 = vmul.f32 %v2935, %v2521
    %2939 = vrot.lane.b32.xlu0 %v2936, 64
    %v2940 = vpop.permute.xlu0 %2939
    %v2942 = vmul.f32 %v2935, %v2940
    %2944 = vrot.lane.b32.xlu0 %v2942, 32
    %v2945 = vpop.permute.xlu0 %2944
    %v2947 = vadd.f32 %v2937, %v2945
    %v2948 = vtanh.pop %v2947
    %2950 = vrot.lane.b32.xlu0 %v2948, 64
    %v2951 = vpop.permute.xlu0 %2950
    %v2953 = vmul.f32 %v2935, %v2951
    %v2954 = vld [vmem:[%s27] sm:$0xff]
    %v2955 = vld [vmem:[%s27 + $0x8] sm:$0xff]
    %v2956 = vld [vmem:[%s27 + $0x10] sm:$0xff]
    %v2957 = vld [vmem:[%s27 + $0x18] sm:$0xff]
    %v2958 = vld [vmem:[#allocation8] sm:$0x1]
    %v2960 = vlaneseq
    %v2961 = vshrl.u32 %v2960, 7
    %v2962 = vsub.s32 0, %v2961
    %v2963 = vrot.slane %v2958, %v2962
    %2966 = vrot.lane.b32.xlu0 %v2953, 32
    %v2967 = vpop.permute.xlu0 %2966
    %v2968 = vsel %vm658, %v2967, 0
    %2970 = vmatprep.subr.mxu0 0.0
    %2971 = vmatpush1.msra.mxu0 %v2954
    %2972 = vmatprep.subr.mxu0 0.0
    %2973 = vmatpush1.msra.mxu0 %v2955
    %2974 = vmatprep.subr.mxu0 0.0
    %2975 = vmatpush1.msra.mxu0 %v2956
    %2976 = vmatprep.subr.mxu0 0.0
    %2977 = vmatpush1.msra.mxu0 %v2957
    %2978 = vmatprep.subr.mxu0 0.0
    %2979 = vmatpush1.msra.mxu0 0.0
    %2980 = vmatprep.subr.mxu0 0.0
    %2981 = vmatpush1.msra.mxu0 0.0
    %2982 = vmatprep.subr.mxu0 0.0
    %2983 = vmatpush1.msra.mxu0 0.0
    %2984 = vmatprep.subr.mxu0 0.0
    %2985 = vmatpush1.msra.mxu0 0.0
    %2986 = vmatprep.subr.mxu0 0.0
    %2987 = vmatpush1.msra.mxu0 0.0
    %2988 = vmatprep.subr.mxu0 0.0
    %2989 = vmatpush1.msra.mxu0 0.0
    %2990 = vmatprep.subr.mxu0 0.0
    %2991 = vmatpush1.msra.mxu0 0.0
    %2992 = vmatprep.subr.mxu0 0.0
    %2993 = vmatpush1.msra.mxu0 0.0
    %2994 = vmatprep.subr.mxu0 0.0
    %2995 = vmatpush1.msra.mxu0 0.0
    %2996 = vmatprep.subr.mxu0 0.0
    %2997 = vmatpush1.msra.mxu0 0.0
    %2998 = vmatprep.subr.mxu0 0.0
    %2999 = vmatpush1.msra.mxu0 0.0
    %3000 = vmatprep.subr.mxu0 0.0
    %3001 = vmatpush1.msra.mxu0 0.0
    %3002 = vmatprep.subr.mxu0 0.0
    %3003 = vmatpush1.msra.mxu0 0.0
    %3004 = vmatprep.subr.mxu0 0.0
    %3005 = vmatpush1.msra.mxu0 0.0
    %3006 = vmatprep.subr.mxu0 0.0
    %3007 = vmatpush1.msra.mxu0 0.0
    %3008 = vmatprep.subr.mxu0 0.0
    %3009 = vmatpush1.msra.mxu0 0.0
    %3010 = vmatprep.subr.mxu0 0.0
    %3011 = vmatpush1.msra.mxu0 0.0
    %3012 = vmatprep.subr.mxu0 0.0
    %3013 = vmatpush1.msra.mxu0 0.0
    %3014 = vmatprep.subr.mxu0 0.0
    %3015 = vmatpush1.msra.mxu0 0.0
    %3016 = vmatprep.subr.mxu0 0.0
    %3017 = vmatpush1.msra.mxu0 0.0
    %3018 = vmatprep.subr.mxu0 0.0
    %3019 = vmatpush1.msra.mxu0 0.0
    %3020 = vmatprep.subr.mxu0 0.0
    %3021 = vmatpush1.msra.mxu0 0.0
    %3022 = vmatprep.subr.mxu0 0.0
    %3023 = vmatpush1.msra.mxu0 0.0
    %3024 = vmatprep.subr.mxu0 0.0
    %3025 = vmatpush1.msra.mxu0 0.0
    %3026 = vmatprep.subr.mxu0 0.0
    %3027 = vmatpush1.msra.mxu0 0.0
    %3028 = vmatprep.subr.mxu0 0.0
    %3029 = vmatpush1.msra.mxu0 0.0
    %3030 = vmatprep.subr.mxu0 0.0
    %3031 = vmatpush1.msra.mxu0 0.0
    %3032 = vmatprep.subr.mxu0 0.0
    %3033 = vmatpush1.msra.mxu0 0.0
    %3034 = vmatprep.mubr.f32.mxu0 0.0
    %3035 = vmatmul.mubr.f32.gmra.mrb[0].mxu0 %v2968
    %v3036 = vpop.f32.mrb[0].mxu0
    %v3037 = vadd.f32 %v2963, %v3036
    %v3038 = vpop.f32.mrb[0].mxu0
    %3039 = vdwg.mxu0
    %v3040 = vld [vmem:[%s5] sm:$0xff]
    %v3041 = vld [vmem:[%s31] sm:$0xf]
    %v3042 = vld [vmem:[%s33] sm:$0x3]
    %vm3043 = vcmask 15360
    %v3045 = vsel %vm3043, %v3037, 0
    %vm3047 = vcmask 1041408
    %v3049 = vsel %vm3047, %v3042, 0
    %3051 = vmatprep.subr.mxu0 0.0
    %3052 = vmatpush1.msra.mxu0 %v3049
    %3053 = vmatprep.subr.mxu0 0.0
    %3054 = vmatpush1.msra.mxu0 0.0
    %3055 = vmatprep.subr.mxu0 0.0
    %3056 = vmatpush1.msra.mxu0 0.0
    %3057 = vmatprep.subr.mxu0 0.0
    %3058 = vmatpush1.msra.mxu0 0.0
    %3059 = vmatprep.subr.mxu0 0.0
    %3060 = vmatpush1.msra.mxu0 0.0
    %3061 = vmatprep.subr.mxu0 0.0
    %3062 = vmatpush1.msra.mxu0 0.0
    %3063 = vmatprep.subr.mxu0 0.0
    %3064 = vmatpush1.msra.mxu0 0.0
    %3065 = vmatprep.subr.mxu0 0.0
    %3066 = vmatpush1.msra.mxu0 0.0
    %3067 = vmatprep.subr.mxu0 0.0
    %3068 = vmatpush1.msra.mxu0 0.0
    %3069 = vmatprep.subr.mxu0 0.0
    %3070 = vmatpush1.msra.mxu0 0.0
    %3071 = vmatprep.subr.mxu0 0.0
    %3072 = vmatpush1.msra.mxu0 0.0
    %3073 = vmatprep.subr.mxu0 0.0
    %3074 = vmatpush1.msra.mxu0 0.0
    %3075 = vmatprep.subr.mxu0 0.0
    %3076 = vmatpush1.msra.mxu0 0.0
    %3077 = vmatprep.subr.mxu0 0.0
    %3078 = vmatpush1.msra.mxu0 0.0
    %3079 = vmatprep.subr.mxu0 0.0
    %3080 = vmatpush1.msra.mxu0 0.0
    %3081 = vmatprep.subr.mxu0 0.0
    %3082 = vmatpush1.msra.mxu0 0.0
    %3083 = vmatprep.subr.mxu0 0.0
    %3084 = vmatpush1.msra.mxu0 0.0
    %3085 = vmatprep.subr.mxu0 0.0
    %3086 = vmatpush1.msra.mxu0 0.0
    %3087 = vmatprep.subr.mxu0 0.0
    %3088 = vmatpush1.msra.mxu0 0.0
    %3089 = vmatprep.subr.mxu0 0.0
    %3090 = vmatpush1.msra.mxu0 0.0
    %3091 = vmatprep.subr.mxu0 0.0
    %3092 = vmatpush1.msra.mxu0 0.0
    %3093 = vmatprep.subr.mxu0 0.0
    %3094 = vmatpush1.msra.mxu0 0.0
    %3095 = vmatprep.subr.mxu0 0.0
    %3096 = vmatpush1.msra.mxu0 0.0
    %3097 = vmatprep.subr.mxu0 0.0
    %3098 = vmatpush1.msra.mxu0 0.0
    %3099 = vmatprep.subr.mxu0 0.0
    %3100 = vmatpush1.msra.mxu0 0.0
    %3101 = vmatprep.subr.mxu0 0.0
    %3102 = vmatpush1.msra.mxu0 0.0
    %3103 = vmatprep.subr.mxu0 0.0
    %3104 = vmatpush1.msra.mxu0 0.0
    %3105 = vmatprep.subr.mxu0 0.0
    %3106 = vmatpush1.msra.mxu0 0.0
    %3107 = vmatprep.subr.mxu0 0.0
    %3108 = vmatpush1.msra.mxu0 0.0
    %3109 = vmatprep.subr.mxu0 0.0
    %3110 = vmatpush1.msra.mxu0 0.0
    %3111 = vmatprep.subr.mxu0 0.0
    %3112 = vmatpush1.msra.mxu0 0.0
    %3113 = vmatprep.subr.mxu0 0.0
    %3114 = vmatpush1.msra.mxu0 0.0
    %3115 = vmatprep.mubr.f32.mxu0 0.0
    %3116 = vmatmul.mubr.f32.gmra.mrb[0].mxu0 %v3045
    %v3117 = vpop.f32.mrb[0].mxu0
    %v3118 = vadd.f32 0.0, %v3117
    %v3119 = vpop.f32.mrb[0].mxu0
    %3120 = vdwg.mxu0
    %vm3121 = vcmask 31744
    %v3123 = vsel %vm3121, %v3040, 0
    %vm3125 = vcmask 1043456
    %v3127 = vsel %vm3125, %v3041, 0
    %3129 = vmatprep.subr.mxu0 0.0
    %3130 = vmatpush1.msra.mxu0 %v3127
    %3131 = vmatprep.subr.mxu0 0.0
    %3132 = vmatpush1.msra.mxu0 0.0
    %3133 = vmatprep.subr.mxu0 0.0
    %3134 = vmatpush1.msra.mxu0 0.0
    %3135 = vmatprep.subr.mxu0 0.0
    %3136 = vmatpush1.msra.mxu0 0.0
    %3137 = vmatprep.subr.mxu0 0.0
    %3138 = vmatpush1.msra.mxu0 0.0
    %3139 = vmatprep.subr.mxu0 0.0
    %3140 = vmatpush1.msra.mxu0 0.0
    %3141 = vmatprep.subr.mxu0 0.0
    %3142 = vmatpush1.msra.mxu0 0.0
    %3143 = vmatprep.subr.mxu0 0.0
    %3144 = vmatpush1.msra.mxu0 0.0
    %3145 = vmatprep.subr.mxu0 0.0
    %3146 = vmatpush1.msra.mxu0 0.0
    %3147 = vmatprep.subr.mxu0 0.0
    %3148 = vmatpush1.msra.mxu0 0.0
    %3149 = vmatprep.subr.mxu0 0.0
    %3150 = vmatpush1.msra.mxu0 0.0
    %3151 = vmatprep.subr.mxu0 0.0
    %3152 = vmatpush1.msra.mxu0 0.0
    %3153 = vmatprep.subr.mxu0 0.0
    %3154 = vmatpush1.msra.mxu0 0.0
    %3155 = vmatprep.subr.mxu0 0.0
    %3156 = vmatpush1.msra.mxu0 0.0
    %3157 = vmatprep.subr.mxu0 0.0
    %3158 = vmatpush1.msra.mxu0 0.0
    %3159 = vmatprep.subr.mxu0 0.0
    %3160 = vmatpush1.msra.mxu0 0.0
    %3161 = vmatprep.subr.mxu0 0.0
    %3162 = vmatpush1.msra.mxu0 0.0
    %3163 = vmatprep.subr.mxu0 0.0
    %3164 = vmatpush1.msra.mxu0 0.0
    %3165 = vmatprep.subr.mxu0 0.0
    %3166 = vmatpush1.msra.mxu0 0.0
    %3167 = vmatprep.subr.mxu0 0.0
    %3168 = vmatpush1.msra.mxu0 0.0
    %3169 = vmatprep.subr.mxu0 0.0
    %3170 = vmatpush1.msra.mxu0 0.0
    %3171 = vmatprep.subr.mxu0 0.0
    %3172 = vmatpush1.msra.mxu0 0.0
    %3173 = vmatprep.subr.mxu0 0.0
    %3174 = vmatpush1.msra.mxu0 0.0
    %3175 = vmatprep.subr.mxu0 0.0
    %3176 = vmatpush1.msra.mxu0 0.0
    %3177 = vmatprep.subr.mxu0 0.0
    %3178 = vmatpush1.msra.mxu0 0.0
    %3179 = vmatprep.subr.mxu0 0.0
    %3180 = vmatpush1.msra.mxu0 0.0
    %3181 = vmatprep.subr.mxu0 0.0
    %3182 = vmatpush1.msra.mxu0 0.0
    %3183 = vmatprep.subr.mxu0 0.0
    %3184 = vmatpush1.msra.mxu0 0.0
    %3185 = vmatprep.subr.mxu0 0.0
    %3186 = vmatpush1.msra.mxu0 0.0
    %3187 = vmatprep.subr.mxu0 0.0
    %3188 = vmatpush1.msra.mxu0 0.0
    %3189 = vmatprep.subr.mxu0 0.0
    %3190 = vmatpush1.msra.mxu0 0.0
    %3191 = vmatprep.subr.mxu0 0.0
    %3192 = vmatpush1.msra.mxu0 0.0
    %3193 = vmatprep.mubr.f32.mxu0 0.0
    %3194 = vmatmul.mubr.f32.gmra.mrb[0].mxu0 %v3123
    %v3195 = vpop.f32.mrb[0].mxu0
    %v3196 = vadd.f32 %v3118, %v3195
    %v3197 = vpop.f32.mrb[0].mxu0
    %3198 = vdwg.mxu0
    %3199 = vst.msk [vmem:[#allocation6] sm:$0xff] %vm3121, %v3196
    %s3200 = scalar_lea.vmem [#allocation4], 8
    %v3201 = vld [vmem:[%s3200] sm:$0xff]
    %v3202 = vld [vmem:[%s19] sm:$0xff]
    %v3203 = vld [vmem:[%s19 + $0x8] sm:$0xff]
    %v3204 = vld [vmem:[%s19 + $0x10] sm:$0xff]
    %v3205 = vld [vmem:[%s19 + $0x18] sm:$0xff]
    %v3206 = vsel %vm658, %v2835, 0
    %3208 = vmatprep.subr.mxu0 0.0
    %3209 = vmatpush1.msra.mxu0 %v3202
    %3210 = vmatprep.subr.mxu0 0.0
    %3211 = vmatpush1.msra.mxu0 %v3203
    %3212 = vmatprep.subr.mxu0 0.0
    %3213 = vmatpush1.msra.mxu0 %v3204
    %3214 = vmatprep.subr.mxu0 0.0
    %3215 = vmatpush1.msra.mxu0 %v3205
    %3216 = vmatprep.subr.mxu0 0.0
    %3217 = vmatpush1.msra.mxu0 0.0
    %3218 = vmatprep.subr.mxu0 0.0
    %3219 = vmatpush1.msra.mxu0 0.0
    %3220 = vmatprep.subr.mxu0 0.0
    %3221 = vmatpush1.msra.mxu0 0.0
    %3222 = vmatprep.subr.mxu0 0.0
    %3223 = vmatpush1.msra.mxu0 0.0
    %3224 = vmatprep.subr.mxu0 0.0
    %3225 = vmatpush1.msra.mxu0 0.0
    %3226 = vmatprep.subr.mxu0 0.0
    %3227 = vmatpush1.msra.mxu0 0.0
    %3228 = vmatprep.subr.mxu0 0.0
    %3229 = vmatpush1.msra.mxu0 0.0
    %3230 = vmatprep.subr.mxu0 0.0
    %3231 = vmatpush1.msra.mxu0 0.0
    %3232 = vmatprep.subr.mxu0 0.0
    %3233 = vmatpush1.msra.mxu0 0.0
    %3234 = vmatprep.subr.mxu0 0.0
    %3235 = vmatpush1.msra.mxu0 0.0
    %3236 = vmatprep.subr.mxu0 0.0
    %3237 = vmatpush1.msra.mxu0 0.0
    %3238 = vmatprep.subr.mxu0 0.0
    %3239 = vmatpush1.msra.mxu0 0.0
    %3240 = vmatprep.subr.mxu0 0.0
    %3241 = vmatpush1.msra.mxu0 0.0
    %3242 = vmatprep.subr.mxu0 0.0
    %3243 = vmatpush1.msra.mxu0 0.0
    %3244 = vmatprep.subr.mxu0 0.0
    %3245 = vmatpush1.msra.mxu0 0.0
    %3246 = vmatprep.subr.mxu0 0.0
    %3247 = vmatpush1.msra.mxu0 0.0
    %3248 = vmatprep.subr.mxu0 0.0
    %3249 = vmatpush1.msra.mxu0 0.0
    %3250 = vmatprep.subr.mxu0 0.0
    %3251 = vmatpush1.msra.mxu0 0.0
    %3252 = vmatprep.subr.mxu0 0.0
    %3253 = vmatpush1.msra.mxu0 0.0
    %3254 = vmatprep.subr.mxu0 0.0
    %3255 = vmatpush1.msra.mxu0 0.0
    %3256 = vmatprep.subr.mxu0 0.0
    %3257 = vmatpush1.msra.mxu0 0.0
    %3258 = vmatprep.subr.mxu0 0.0
    %3259 = vmatpush1.msra.mxu0 0.0
    %3260 = vmatprep.subr.mxu0 0.0
    %3261 = vmatpush1.msra.mxu0 0.0
    %3262 = vmatprep.subr.mxu0 0.0
    %3263 = vmatpush1.msra.mxu0 0.0
    %3264 = vmatprep.subr.mxu0 0.0
    %3265 = vmatpush1.msra.mxu0 0.0
    %3266 = vmatprep.subr.mxu0 0.0
    %3267 = vmatpush1.msra.mxu0 0.0
    %3268 = vmatprep.subr.mxu0 0.0
    %3269 = vmatpush1.msra.mxu0 0.0
    %3270 = vmatprep.subr.mxu0 0.0
    %3271 = vmatpush1.msra.mxu0 0.0
    %3272 = vmatprep.mubr.f32.mxu0 0.0
    %3273 = vmatmul.mubr.f32.gmra.mrb[0].mxu0 %v3206
    %v3274 = vpop.f32.mrb[0].mxu0
    %v3275 = vadd.f32 0.0, %v3274
    %v3276 = vpop.f32.mrb[0].mxu0
    %3277 = vdwg.mxu0
    %v3278 = vadd.f32 %v3201, %v3275
    %v3279 = vxor.u32 %v3278, 2147483648
    %v3280 = vmul.f32 %v3279, 1.442695
    %v3281 = vpow.pop %v3280
    %v3282 = vadd.f32 %v3281, 1.0
    %v3283 = vrcp.pop %v3282
    %v3284 = vmul.f32 1.0, %v3283
    %v3285 = vtanh.pop %v3278
    %v3286 = vmul.f32 %v3284, %v2826
    %3288 = vrot.lane.b32.xlu0 %v3285, 64
    %v3289 = vpop.permute.xlu0 %3288
    %v3291 = vmul.f32 %v3284, %v3289
    %3293 = vrot.lane.b32.xlu0 %v3291, 32
    %v3294 = vpop.permute.xlu0 %3293
    %v3296 = vadd.f32 %v3286, %v3294
    %v3297 = vtanh.pop %v3296
    %3299 = vrot.lane.b32.xlu0 %v3297, 64
    %v3300 = vpop.permute.xlu0 %3299
    %v3302 = vmul.f32 %v3284, %v3300
    %3304 = vrot.lane.b32.xlu0 %v3302, 32
    %v3305 = vpop.permute.xlu0 %3304
    %3307 = vrot.lane.b32.xlu0 %v2953, 64
    %v3308 = vpop.permute.xlu0 %3307
    %v3310 = vsel %vm658, %v3305, %v3308
    %v3311 = vld [vmem:[%s23] sm:$0xff]
    %v3312 = vld [vmem:[%s23 + $0x8] sm:$0xff]
    %v3313 = vld [vmem:[%s23 + $0x10] sm:$0xff]
    %v3314 = vld [vmem:[%s23 + $0x18] sm:$0xff]
    %v3315 = vld [vmem:[%s23 + $0x20] sm:$0xff]
    %v3316 = vld [vmem:[%s23 + $0x28] sm:$0xff]
    %v3317 = vld [vmem:[%s23 + $0x30] sm:$0xff]
    %v3318 = vld [vmem:[%s23 + $0x38] sm:$0xff]
    %v3319 = vld [vmem:[%s25] sm:$0x1]
    %v3321 = vlaneseq
    %v3322 = vshrl.u32 %v3321, 7
    %v3323 = vsub.s32 0, %v3322
    %v3324 = vrot.slane %v3319, %v3323
    %v3327 = vsel %vm777, %v3310, 0
    %3329 = vmatprep.subr.mxu0 0.0
    %3330 = vmatpush1.msra.mxu0 %v3311
    %3331 = vmatprep.subr.mxu0 0.0
    %3332 = vmatpush1.msra.mxu0 %v3312
    %3333 = vmatprep.subr.mxu0 0.0
    %3334 = vmatpush1.msra.mxu0 %v3313
    %3335 = vmatprep.subr.mxu0 0.0
    %3336 = vmatpush1.msra.mxu0 %v3314
    %3337 = vmatprep.subr.mxu0 0.0
    %3338 = vmatpush1.msra.mxu0 %v3315
    %3339 = vmatprep.subr.mxu0 0.0
    %3340 = vmatpush1.msra.mxu0 %v3316
    %3341 = vmatprep.subr.mxu0 0.0
    %3342 = vmatpush1.msra.mxu0 %v3317
    %3343 = vmatprep.subr.mxu0 0.0
    %3344 = vmatpush1.msra.mxu0 %v3318
    %3345 = vmatprep.subr.mxu0 0.0
    %3346 = vmatpush1.msra.mxu0 0.0
    %3347 = vmatprep.subr.mxu0 0.0
    %3348 = vmatpush1.msra.mxu0 0.0
    %3349 = vmatprep.subr.mxu0 0.0
    %3350 = vmatpush1.msra.mxu0 0.0
    %3351 = vmatprep.subr.mxu0 0.0
    %3352 = vmatpush1.msra.mxu0 0.0
    %3353 = vmatprep.subr.mxu0 0.0
    %3354 = vmatpush1.msra.mxu0 0.0
    %3355 = vmatprep.subr.mxu0 0.0
    %3356 = vmatpush1.msra.mxu0 0.0
    %3357 = vmatprep.subr.mxu0 0.0
    %3358 = vmatpush1.msra.mxu0 0.0
    %3359 = vmatprep.subr.mxu0 0.0
    %3360 = vmatpush1.msra.mxu0 0.0
    %3361 = vmatprep.subr.mxu0 0.0
    %3362 = vmatpush1.msra.mxu0 0.0
    %3363 = vmatprep.subr.mxu0 0.0
    %3364 = vmatpush1.msra.mxu0 0.0
    %3365 = vmatprep.subr.mxu0 0.0
    %3366 = vmatpush1.msra.mxu0 0.0
    %3367 = vmatprep.subr.mxu0 0.0
    %3368 = vmatpush1.msra.mxu0 0.0
    %3369 = vmatprep.subr.mxu0 0.0
    %3370 = vmatpush1.msra.mxu0 0.0
    %3371 = vmatprep.subr.mxu0 0.0
    %3372 = vmatpush1.msra.mxu0 0.0
    %3373 = vmatprep.subr.mxu0 0.0
    %3374 = vmatpush1.msra.mxu0 0.0
    %3375 = vmatprep.subr.mxu0 0.0
    %3376 = vmatpush1.msra.mxu0 0.0
    %3377 = vmatprep.subr.mxu0 0.0
    %3378 = vmatpush1.msra.mxu0 0.0
    %3379 = vmatprep.subr.mxu0 0.0
    %3380 = vmatpush1.msra.mxu0 0.0
    %3381 = vmatprep.subr.mxu0 0.0
    %3382 = vmatpush1.msra.mxu0 0.0
    %3383 = vmatprep.subr.mxu0 0.0
    %3384 = vmatpush1.msra.mxu0 0.0
    %3385 = vmatprep.subr.mxu0 0.0
    %3386 = vmatpush1.msra.mxu0 0.0
    %3387 = vmatprep.subr.mxu0 0.0
    %3388 = vmatpush1.msra.mxu0 0.0
    %3389 = vmatprep.subr.mxu0 0.0
    %3390 = vmatpush1.msra.mxu0 0.0
    %3391 = vmatprep.subr.mxu0 0.0
    %3392 = vmatpush1.msra.mxu0 0.0
    %3393 = vmatprep.mubr.f32.mxu0 0.0
    %3394 = vmatmul.mubr.f32.gmra.mrb[0].mxu0 %v3327
    %v3395 = vpop.f32.mrb[0].mxu0
    %v3396 = vadd.f32 %v3324, %v3395
    %v3397 = vpop.f32.mrb[0].mxu0
    %3398 = vdwg.mxu0
    %v3399 = vxor.u32 %v3396, 2147483648
    %v3400 = vmul.f32 %v3399, 1.442695
    %v3401 = vpow.pop %v3400
    %v3402 = vadd.f32 %v3401, 1.0
    %v3403 = vrcp.pop %v3402
    %v3404 = vmul.f32 1.0, %v3403
    %v3405 = vtanh.pop %v3396
    %v3406 = vmul.f32 %v3404, %v2947
    %3408 = vrot.lane.b32.xlu0 %v3405, 64
    %v3409 = vpop.permute.xlu0 %3408
    %v3411 = vmul.f32 %v3404, %v3409
    %3413 = vrot.lane.b32.xlu0 %v3411, 32
    %v3414 = vpop.permute.xlu0 %3413
    %v3416 = vadd.f32 %v3406, %v3414
    %v3417 = vtanh.pop %v3416
    %3419 = vrot.lane.b32.xlu0 %v3417, 64
    %v3420 = vpop.permute.xlu0 %3419
    %v3422 = vmul.f32 %v3404, %v3420
    %v3423 = vld [vmem:[%s27] sm:$0xff]
    %v3424 = vld [vmem:[%s27 + $0x8] sm:$0xff]
    %v3425 = vld [vmem:[%s27 + $0x10] sm:$0xff]
    %v3426 = vld [vmem:[%s27 + $0x18] sm:$0xff]
    %v3427 = vld [vmem:[#allocation8] sm:$0x1]
    %v3429 = vlaneseq
    %v3430 = vshrl.u32 %v3429, 7
    %v3431 = vsub.s32 0, %v3430
    %v3432 = vrot.slane %v3427, %v3431
    %3435 = vrot.lane.b32.xlu0 %v3422, 32
    %v3436 = vpop.permute.xlu0 %3435
    %v3437 = vsel %vm658, %v3436, 0
    %3439 = vmatprep.subr.mxu0 0.0
    %3440 = vmatpush1.msra.mxu0 %v3423
    %3441 = vmatprep.subr.mxu0 0.0
    %3442 = vmatpush1.msra.mxu0 %v3424
    %3443 = vmatprep.subr.mxu0 0.0
    %3444 = vmatpush1.msra.mxu0 %v3425
    %3445 = vmatprep.subr.mxu0 0.0
    %3446 = vmatpush1.msra.mxu0 %v3426
    %3447 = vmatprep.subr.mxu0 0.0
    %3448 = vmatpush1.msra.mxu0 0.0
    %3449 = vmatprep.subr.mxu0 0.0
    %3450 = vmatpush1.msra.mxu0 0.0
    %3451 = vmatprep.subr.mxu0 0.0
    %3452 = vmatpush1.msra.mxu0 0.0
    %3453 = vmatprep.subr.mxu0 0.0
    %3454 = vmatpush1.msra.mxu0 0.0
    %3455 = vmatprep.subr.mxu0 0.0
    %3456 = vmatpush1.msra.mxu0 0.0
    %3457 = vmatprep.subr.mxu0 0.0
    %3458 = vmatpush1.msra.mxu0 0.0
    %3459 = vmatprep.subr.mxu0 0.0
    %3460 = vmatpush1.msra.mxu0 0.0
    %3461 = vmatprep.subr.mxu0 0.0
    %3462 = vmatpush1.msra.mxu0 0.0
    %3463 = vmatprep.subr.mxu0 0.0
    %3464 = vmatpush1.msra.mxu0 0.0
    %3465 = vmatprep.subr.mxu0 0.0
    %3466 = vmatpush1.msra.mxu0 0.0
    %3467 = vmatprep.subr.mxu0 0.0
    %3468 = vmatpush1.msra.mxu0 0.0
    %3469 = vmatprep.subr.mxu0 0.0
    %3470 = vmatpush1.msra.mxu0 0.0
    %3471 = vmatprep.subr.mxu0 0.0
    %3472 = vmatpush1.msra.mxu0 0.0
    %3473 = vmatprep.subr.mxu0 0.0
    %3474 = vmatpush1.msra.mxu0 0.0
    %3475 = vmatprep.subr.mxu0 0.0
    %3476 = vmatpush1.msra.mxu0 0.0
    %3477 = vmatprep.subr.mxu0 0.0
    %3478 = vmatpush1.msra.mxu0 0.0
    %3479 = vmatprep.subr.mxu0 0.0
    %3480 = vmatpush1.msra.mxu0 0.0
    %3481 = vmatprep.subr.mxu0 0.0
    %3482 = vmatpush1.msra.mxu0 0.0
    %3483 = vmatprep.subr.mxu0 0.0
    %3484 = vmatpush1.msra.mxu0 0.0
    %3485 = vmatprep.subr.mxu0 0.0
    %3486 = vmatpush1.msra.mxu0 0.0
    %3487 = vmatprep.subr.mxu0 0.0
    %3488 = vmatpush1.msra.mxu0 0.0
    %3489 = vmatprep.subr.mxu0 0.0
    %3490 = vmatpush1.msra.mxu0 0.0
    %3491 = vmatprep.subr.mxu0 0.0
    %3492 = vmatpush1.msra.mxu0 0.0
    %3493 = vmatprep.subr.mxu0 0.0
    %3494 = vmatpush1.msra.mxu0 0.0
    %3495 = vmatprep.subr.mxu0 0.0
    %3496 = vmatpush1.msra.mxu0 0.0
    %3497 = vmatprep.subr.mxu0 0.0
    %3498 = vmatpush1.msra.mxu0 0.0
    %3499 = vmatprep.subr.mxu0 0.0
    %3500 = vmatpush1.msra.mxu0 0.0
    %3501 = vmatprep.subr.mxu0 0.0
    %3502 = vmatpush1.msra.mxu0 0.0
    %3503 = vmatprep.mubr.f32.mxu0 0.0
    %3504 = vmatmul.mubr.f32.gmra.mrb[0].mxu0 %v3437
    %v3505 = vpop.f32.mrb[0].mxu0
    %v3506 = vadd.f32 %v3432, %v3505
    %v3507 = vpop.f32.mrb[0].mxu0
    %3508 = vdwg.mxu0
    %s3509 = scalar_lea.vmem %s5, 8
    %v3510 = vld [vmem:[%s3509] sm:$0xff]
    %v3511 = vld [vmem:[%s31] sm:$0xf]
    %v3512 = vld [vmem:[%s33] sm:$0x3]
    %v3514 = vsel %vm3043, %v3506, 0
    %v3517 = vsel %vm3047, %v3512, 0
    %3519 = vmatprep.subr.mxu0 0.0
    %3520 = vmatpush1.msra.mxu0 %v3517
    %3521 = vmatprep.subr.mxu0 0.0
    %3522 = vmatpush1.msra.mxu0 0.0
    %3523 = vmatprep.subr.mxu0 0.0
    %3524 = vmatpush1.msra.mxu0 0.0
    %3525 = vmatprep.subr.mxu0 0.0
    %3526 = vmatpush1.msra.mxu0 0.0
    %3527 = vmatprep.subr.mxu0 0.0
    %3528 = vmatpush1.msra.mxu0 0.0
    %3529 = vmatprep.subr.mxu0 0.0
    %3530 = vmatpush1.msra.mxu0 0.0
    %3531 = vmatprep.subr.mxu0 0.0
    %3532 = vmatpush1.msra.mxu0 0.0
    %3533 = vmatprep.subr.mxu0 0.0
    %3534 = vmatpush1.msra.mxu0 0.0
    %3535 = vmatprep.subr.mxu0 0.0
    %3536 = vmatpush1.msra.mxu0 0.0
    %3537 = vmatprep.subr.mxu0 0.0
    %3538 = vmatpush1.msra.mxu0 0.0
    %3539 = vmatprep.subr.mxu0 0.0
    %3540 = vmatpush1.msra.mxu0 0.0
    %3541 = vmatprep.subr.mxu0 0.0
    %3542 = vmatpush1.msra.mxu0 0.0
    %3543 = vmatprep.subr.mxu0 0.0
    %3544 = vmatpush1.msra.mxu0 0.0
    %3545 = vmatprep.subr.mxu0 0.0
    %3546 = vmatpush1.msra.mxu0 0.0
    %3547 = vmatprep.subr.mxu0 0.0
    %3548 = vmatpush1.msra.mxu0 0.0
    %3549 = vmatprep.subr.mxu0 0.0
    %3550 = vmatpush1.msra.mxu0 0.0
    %3551 = vmatprep.subr.mxu0 0.0
    %3552 = vmatpush1.msra.mxu0 0.0
    %3553 = vmatprep.subr.mxu0 0.0
    %3554 = vmatpush1.msra.mxu0 0.0
    %3555 = vmatprep.subr.mxu0 0.0
    %3556 = vmatpush1.msra.mxu0 0.0
    %3557 = vmatprep.subr.mxu0 0.0
    %3558 = vmatpush1.msra.mxu0 0.0
    %3559 = vmatprep.subr.mxu0 0.0
    %3560 = vmatpush1.msra.mxu0 0.0
    %3561 = vmatprep.subr.mxu0 0.0
    %3562 = vmatpush1.msra.mxu0 0.0
    %3563 = vmatprep.subr.mxu0 0.0
    %3564 = vmatpush1.msra.mxu0 0.0
    %3565 = vmatprep.subr.mxu0 0.0
    %3566 = vmatpush1.msra.mxu0 0.0
    %3567 = vmatprep.subr.mxu0 0.0
    %3568 = vmatpush1.msra.mxu0 0.0
    %3569 = vmatprep.subr.mxu0 0.0
    %3570 = vmatpush1.msra.mxu0 0.0
    %3571 = vmatprep.subr.mxu0 0.0
    %3572 = vmatpush1.msra.mxu0 0.0
    %3573 = vmatprep.subr.mxu0 0.0
    %3574 = vmatpush1.msra.mxu0 0.0
    %3575 = vmatprep.subr.mxu0 0.0
    %3576 = vmatpush1.msra.mxu0 0.0
    %3577 = vmatprep.subr.mxu0 0.0
    %3578 = vmatpush1.msra.mxu0 0.0
    %3579 = vmatprep.subr.mxu0 0.0
    %3580 = vmatpush1.msra.mxu0 0.0
    %3581 = vmatprep.subr.mxu0 0.0
    %3582 = vmatpush1.msra.mxu0 0.0
    %3583 = vmatprep.mubr.f32.mxu0 0.0
    %3584 = vmatmul.mubr.f32.gmra.mrb[0].mxu0 %v3514
    %v3585 = vpop.f32.mrb[0].mxu0
    %v3586 = vadd.f32 0.0, %v3585
    %v3587 = vpop.f32.mrb[0].mxu0
    %3588 = vdwg.mxu0
    %v3590 = vsel %vm3121, %v3510, 0
    %v3593 = vsel %vm3125, %v3511, 0
    %3595 = vmatprep.subr.mxu0 0.0
    %3596 = vmatpush1.msra.mxu0 %v3593
    %3597 = vmatprep.subr.mxu0 0.0
    %3598 = vmatpush1.msra.mxu0 0.0
    %3599 = vmatprep.subr.mxu0 0.0
    %3600 = vmatpush1.msra.mxu0 0.0
    %3601 = vmatprep.subr.mxu0 0.0
    %3602 = vmatpush1.msra.mxu0 0.0
    %3603 = vmatprep.subr.mxu0 0.0
    %3604 = vmatpush1.msra.mxu0 0.0
    %3605 = vmatprep.subr.mxu0 0.0
    %3606 = vmatpush1.msra.mxu0 0.0
    %3607 = vmatprep.subr.mxu0 0.0
    %3608 = vmatpush1.msra.mxu0 0.0
    %3609 = vmatprep.subr.mxu0 0.0
    %3610 = vmatpush1.msra.mxu0 0.0
    %3611 = vmatprep.subr.mxu0 0.0
    %3612 = vmatpush1.msra.mxu0 0.0
    %3613 = vmatprep.subr.mxu0 0.0
    %3614 = vmatpush1.msra.mxu0 0.0
    %3615 = vmatprep.subr.mxu0 0.0
    %3616 = vmatpush1.msra.mxu0 0.0
    %3617 = vmatprep.subr.mxu0 0.0
    %3618 = vmatpush1.msra.mxu0 0.0
    %3619 = vmatprep.subr.mxu0 0.0
    %3620 = vmatpush1.msra.mxu0 0.0
    %3621 = vmatprep.subr.mxu0 0.0
    %3622 = vmatpush1.msra.mxu0 0.0
    %3623 = vmatprep.subr.mxu0 0.0
    %3624 = vmatpush1.msra.mxu0 0.0
    %3625 = vmatprep.subr.mxu0 0.0
    %3626 = vmatpush1.msra.mxu0 0.0
    %3627 = vmatprep.subr.mxu0 0.0
    %3628 = vmatpush1.msra.mxu0 0.0
    %3629 = vmatprep.subr.mxu0 0.0
    %3630 = vmatpush1.msra.mxu0 0.0
    %3631 = vmatprep.subr.mxu0 0.0
    %3632 = vmatpush1.msra.mxu0 0.0
    %3633 = vmatprep.subr.mxu0 0.0
    %3634 = vmatpush1.msra.mxu0 0.0
    %3635 = vmatprep.subr.mxu0 0.0
    %3636 = vmatpush1.msra.mxu0 0.0
    %3637 = vmatprep.subr.mxu0 0.0
    %3638 = vmatpush1.msra.mxu0 0.0
    %3639 = vmatprep.subr.mxu0 0.0
    %3640 = vmatpush1.msra.mxu0 0.0
    %3641 = vmatprep.subr.mxu0 0.0
    %3642 = vmatpush1.msra.mxu0 0.0
    %3643 = vmatprep.subr.mxu0 0.0
    %3644 = vmatpush1.msra.mxu0 0.0
    %3645 = vmatprep.subr.mxu0 0.0
    %3646 = vmatpush1.msra.mxu0 0.0
    %3647 = vmatprep.subr.mxu0 0.0
    %3648 = vmatpush1.msra.mxu0 0.0
    %3649 = vmatprep.subr.mxu0 0.0
    %3650 = vmatpush1.msra.mxu0 0.0
    %3651 = vmatprep.subr.mxu0 0.0
    %3652 = vmatpush1.msra.mxu0 0.0
    %3653 = vmatprep.subr.mxu0 0.0
    %3654 = vmatpush1.msra.mxu0 0.0
    %3655 = vmatprep.subr.mxu0 0.0
    %3656 = vmatpush1.msra.mxu0 0.0
    %3657 = vmatprep.subr.mxu0 0.0
    %3658 = vmatpush1.msra.mxu0 0.0
    %3659 = vmatprep.mubr.f32.mxu0 0.0
    %3660 = vmatmul.mubr.f32.gmra.mrb[0].mxu0 %v3590
    %v3661 = vpop.f32.mrb[0].mxu0
    %v3662 = vadd.f32 %v3586, %v3661
    %v3663 = vpop.f32.mrb[0].mxu0
    %3664 = vdwg.mxu0
    %s3665 = scalar_lea.vmem [#allocation6], 8
    %3666 = vst.msk [vmem:[%s3665] sm:$0xff] %vm3121, %v3662
    %v3667 = vld [vmem:[#allocation5] sm:$0xff]
    %v3668 = vld [vmem:[%s47] sm:$0xf]
    %v3670 = vsel %vm3121, %v3196, 0
    %v3673 = vsel %vm3125, %v3668, 0
    %3675 = vmatprep.subr.mxu0 0.0
    %3676 = vmatpush1.msra.mxu0 %v3673
    %3677 = vmatprep.subr.mxu0 0.0
    %3678 = vmatpush1.msra.mxu0 0.0
    %3679 = vmatprep.subr.mxu0 0.0
    %3680 = vmatpush1.msra.mxu0 0.0
    %3681 = vmatprep.subr.mxu0 0.0
    %3682 = vmatpush1.msra.mxu0 0.0
    %3683 = vmatprep.subr.mxu0 0.0
    %3684 = vmatpush1.msra.mxu0 0.0
    %3685 = vmatprep.subr.mxu0 0.0
    %3686 = vmatpush1.msra.mxu0 0.0
    %3687 = vmatprep.subr.mxu0 0.0
    %3688 = vmatpush1.msra.mxu0 0.0
    %3689 = vmatprep.subr.mxu0 0.0
    %3690 = vmatpush1.msra.mxu0 0.0
    %3691 = vmatprep.subr.mxu0 0.0
    %3692 = vmatpush1.msra.mxu0 0.0
    %3693 = vmatprep.subr.mxu0 0.0
    %3694 = vmatpush1.msra.mxu0 0.0
    %3695 = vmatprep.subr.mxu0 0.0
    %3696 = vmatpush1.msra.mxu0 0.0
    %3697 = vmatprep.subr.mxu0 0.0
    %3698 = vmatpush1.msra.mxu0 0.0
    %3699 = vmatprep.subr.mxu0 0.0
    %3700 = vmatpush1.msra.mxu0 0.0
    %3701 = vmatprep.subr.mxu0 0.0
    %3702 = vmatpush1.msra.mxu0 0.0
    %3703 = vmatprep.subr.mxu0 0.0
    %3704 = vmatpush1.msra.mxu0 0.0
    %3705 = vmatprep.subr.mxu0 0.0
    %3706 = vmatpush1.msra.mxu0 0.0
    %3707 = vmatprep.subr.mxu0 0.0
    %3708 = vmatpush1.msra.mxu0 0.0
    %3709 = vmatprep.subr.mxu0 0.0
    %3710 = vmatpush1.msra.mxu0 0.0
    %3711 = vmatprep.subr.mxu0 0.0
    %3712 = vmatpush1.msra.mxu0 0.0
    %3713 = vmatprep.subr.mxu0 0.0
    %3714 = vmatpush1.msra.mxu0 0.0
    %3715 = vmatprep.subr.mxu0 0.0
    %3716 = vmatpush1.msra.mxu0 0.0
    %3717 = vmatprep.subr.mxu0 0.0
    %3718 = vmatpush1.msra.mxu0 0.0
    %3719 = vmatprep.subr.mxu0 0.0
    %3720 = vmatpush1.msra.mxu0 0.0
    %3721 = vmatprep.subr.mxu0 0.0
    %3722 = vmatpush1.msra.mxu0 0.0
    %3723 = vmatprep.subr.mxu0 0.0
    %3724 = vmatpush1.msra.mxu0 0.0
    %3725 = vmatprep.subr.mxu0 0.0
    %3726 = vmatpush1.msra.mxu0 0.0
    %3727 = vmatprep.subr.mxu0 0.0
    %3728 = vmatpush1.msra.mxu0 0.0
    %3729 = vmatprep.subr.mxu0 0.0
    %3730 = vmatpush1.msra.mxu0 0.0
    %3731 = vmatprep.subr.mxu0 0.0
    %3732 = vmatpush1.msra.mxu0 0.0
    %3733 = vmatprep.subr.mxu0 0.0
    %3734 = vmatpush1.msra.mxu0 0.0
    %3735 = vmatprep.subr.mxu0 0.0
    %3736 = vmatpush1.msra.mxu0 0.0
    %3737 = vmatprep.subr.mxu0 0.0
    %3738 = vmatpush1.msra.mxu0 0.0
    %3739 = vmatprep.mubr.f32.mxu0 0.0
    %3740 = vmatmul.mubr.f32.gmra.mrb[0].mxu0 %v3670
    %v3741 = vpop.f32.mrb[0].mxu0
    %v3742 = vadd.f32 0.0, %v3741
    %v3743 = vpop.f32.mrb[0].mxu0
    %3744 = vdwg.mxu0
    %v3745 = vadd.f32 %v3667, %v3742
    %v3746 = vld [vmem:[%s49] sm:$0xff]
    %v3747 = vld [vmem:[%s49 + $0x8] sm:$0xff]
    %v3748 = vld [vmem:[%s49 + $0x10] sm:$0xff]
    %v3749 = vld [vmem:[%s49 + $0x18] sm:$0xff]
    %v3750 = vsel %vm658, %v2627, 0
    %3752 = vmatprep.subr.mxu0 0.0
    %3753 = vmatpush1.msra.mxu0 %v3746
    %3754 = vmatprep.subr.mxu0 0.0
    %3755 = vmatpush1.msra.mxu0 %v3747
    %3756 = vmatprep.subr.mxu0 0.0
    %3757 = vmatpush1.msra.mxu0 %v3748
    %3758 = vmatprep.subr.mxu0 0.0
    %3759 = vmatpush1.msra.mxu0 %v3749
    %3760 = vmatprep.subr.mxu0 0.0
    %3761 = vmatpush1.msra.mxu0 0.0
    %3762 = vmatprep.subr.mxu0 0.0
    %3763 = vmatpush1.msra.mxu0 0.0
    %3764 = vmatprep.subr.mxu0 0.0
    %3765 = vmatpush1.msra.mxu0 0.0
    %3766 = vmatprep.subr.mxu0 0.0
    %3767 = vmatpush1.msra.mxu0 0.0
    %3768 = vmatprep.subr.mxu0 0.0
    %3769 = vmatpush1.msra.mxu0 0.0
    %3770 = vmatprep.subr.mxu0 0.0
    %3771 = vmatpush1.msra.mxu0 0.0
    %3772 = vmatprep.subr.mxu0 0.0
    %3773 = vmatpush1.msra.mxu0 0.0
    %3774 = vmatprep.subr.mxu0 0.0
    %3775 = vmatpush1.msra.mxu0 0.0
    %3776 = vmatprep.subr.mxu0 0.0
    %3777 = vmatpush1.msra.mxu0 0.0
    %3778 = vmatprep.subr.mxu0 0.0
    %3779 = vmatpush1.msra.mxu0 0.0
    %3780 = vmatprep.subr.mxu0 0.0
    %3781 = vmatpush1.msra.mxu0 0.0
    %3782 = vmatprep.subr.mxu0 0.0
    %3783 = vmatpush1.msra.mxu0 0.0
    %3784 = vmatprep.subr.mxu0 0.0
    %3785 = vmatpush1.msra.mxu0 0.0
    %3786 = vmatprep.subr.mxu0 0.0
    %3787 = vmatpush1.msra.mxu0 0.0
    %3788 = vmatprep.subr.mxu0 0.0
    %3789 = vmatpush1.msra.mxu0 0.0
    %3790 = vmatprep.subr.mxu0 0.0
    %3791 = vmatpush1.msra.mxu0 0.0
    %3792 = vmatprep.subr.mxu0 0.0
    %3793 = vmatpush1.msra.mxu0 0.0
    %3794 = vmatprep.subr.mxu0 0.0
    %3795 = vmatpush1.msra.mxu0 0.0
    %3796 = vmatprep.subr.mxu0 0.0
    %3797 = vmatpush1.msra.mxu0 0.0
    %3798 = vmatprep.subr.mxu0 0.0
    %3799 = vmatpush1.msra.mxu0 0.0
    %3800 = vmatprep.subr.mxu0 0.0
    %3801 = vmatpush1.msra.mxu0 0.0
    %3802 = vmatprep.subr.mxu0 0.0
    %3803 = vmatpush1.msra.mxu0 0.0
    %3804 = vmatprep.subr.mxu0 0.0
    %3805 = vmatpush1.msra.mxu0 0.0
    %3806 = vmatprep.subr.mxu0 0.0
    %3807 = vmatpush1.msra.mxu0 0.0
    %3808 = vmatprep.subr.mxu0 0.0
    %3809 = vmatpush1.msra.mxu0 0.0
    %3810 = vmatprep.subr.mxu0 0.0
    %3811 = vmatpush1.msra.mxu0 0.0
    %3812 = vmatprep.subr.mxu0 0.0
    %3813 = vmatpush1.msra.mxu0 0.0
    %3814 = vmatprep.subr.mxu0 0.0
    %3815 = vmatpush1.msra.mxu0 0.0
    %3816 = vmatprep.mubr.f32.mxu0 0.0
    %3817 = vmatmul.mubr.f32.gmra.mrb[0].mxu0 %v3750
    %v3818 = vpop.f32.mrb[0].mxu0
    %v3819 = vadd.f32 0.0, %v3818
    %v3820 = vpop.f32.mrb[0].mxu0
    %3821 = vdwg.mxu0
    %v3822 = vadd.f32 %v3745, %v3819
    %v3823 = vxor.u32 %v3822, 2147483648
    %v3824 = vmul.f32 %v3823, 1.442695
    %v3825 = vpow.pop %v3824
    %v3826 = vadd.f32 %v3825, 1.0
    %v3827 = vrcp.pop %v3826
    %v3828 = vmul.f32 1.0, %v3827
    %v3829 = vtanh.pop %v3822
    %v3830 = vmul.f32 %v3828, %v2618
    %3832 = vrot.lane.b32.xlu0 %v3829, 64
    %v3833 = vpop.permute.xlu0 %3832
    %v3835 = vmul.f32 %v3828, %v3833
    %3837 = vrot.lane.b32.xlu0 %v3835, 32
    %v3838 = vpop.permute.xlu0 %3837
    %v3840 = vadd.f32 %v3830, %v3838
    %v3841 = vtanh.pop %v3840
    %3843 = vrot.lane.b32.xlu0 %v3841, 64
    %v3844 = vpop.permute.xlu0 %3843
    %v3846 = vmul.f32 %v3828, %v3844
    %3848 = vrot.lane.b32.xlu0 %v3846, 32
    %v3849 = vpop.permute.xlu0 %3848
    %3852 = vrot.lane.b32.xlu0 %v2730, 64
    %v3853 = vpop.permute.xlu0 %3852
    %v3855 = vsel %vm658, %v3849, %v3853
    %v3856 = vld [vmem:[%s53] sm:$0xff]
    %v3857 = vld [vmem:[%s53 + $0x8] sm:$0xff]
    %v3858 = vld [vmem:[%s53 + $0x10] sm:$0xff]
    %v3859 = vld [vmem:[%s53 + $0x18] sm:$0xff]
    %v3860 = vld [vmem:[%s53 + $0x20] sm:$0xff]
    %v3861 = vld [vmem:[%s53 + $0x28] sm:$0xff]
    %v3862 = vld [vmem:[%s53 + $0x30] sm:$0xff]
    %v3863 = vld [vmem:[%s53 + $0x38] sm:$0xff]
    %v3864 = vld [vmem:[%s55] sm:$0x1]
    %v3866 = vlaneseq
    %v3867 = vshrl.u32 %v3866, 7
    %v3868 = vsub.s32 0, %v3867
    %v3869 = vrot.slane %v3864, %v3868
    %v3872 = vsel %vm777, %v3855, 0
    %3874 = vmatprep.subr.mxu0 0.0
    %3875 = vmatpush1.msra.mxu0 %v3856
    %3876 = vmatprep.subr.mxu0 0.0
    %3877 = vmatpush1.msra.mxu0 %v3857
    %3878 = vmatprep.subr.mxu0 0.0
    %3879 = vmatpush1.msra.mxu0 %v3858
    %3880 = vmatprep.subr.mxu0 0.0
    %3881 = vmatpush1.msra.mxu0 %v3859
    %3882 = vmatprep.subr.mxu0 0.0
    %3883 = vmatpush1.msra.mxu0 %v3860
    %3884 = vmatprep.subr.mxu0 0.0
    %3885 = vmatpush1.msra.mxu0 %v3861
    %3886 = vmatprep.subr.mxu0 0.0
    %3887 = vmatpush1.msra.mxu0 %v3862
    %3888 = vmatprep.subr.mxu0 0.0
    %3889 = vmatpush1.msra.mxu0 %v3863
    %3890 = vmatprep.subr.mxu0 0.0
    %3891 = vmatpush1.msra.mxu0 0.0
    %3892 = vmatprep.subr.mxu0 0.0
    %3893 = vmatpush1.msra.mxu0 0.0
    %3894 = vmatprep.subr.mxu0 0.0
    %3895 = vmatpush1.msra.mxu0 0.0
    %3896 = vmatprep.subr.mxu0 0.0
    %3897 = vmatpush1.msra.mxu0 0.0
    %3898 = vmatprep.subr.mxu0 0.0
    %3899 = vmatpush1.msra.mxu0 0.0
    %3900 = vmatprep.subr.mxu0 0.0
    %3901 = vmatpush1.msra.mxu0 0.0
    %3902 = vmatprep.subr.mxu0 0.0
    %3903 = vmatpush1.msra.mxu0 0.0
    %3904 = vmatprep.subr.mxu0 0.0
    %3905 = vmatpush1.msra.mxu0 0.0
    %3906 = vmatprep.subr.mxu0 0.0
    %3907 = vmatpush1.msra.mxu0 0.0
    %3908 = vmatprep.subr.mxu0 0.0
    %3909 = vmatpush1.msra.mxu0 0.0
    %3910 = vmatprep.subr.mxu0 0.0
    %3911 = vmatpush1.msra.mxu0 0.0
    %3912 = vmatprep.subr.mxu0 0.0
    %3913 = vmatpush1.msra.mxu0 0.0
    %3914 = vmatprep.subr.mxu0 0.0
    %3915 = vmatpush1.msra.mxu0 0.0
    %3916 = vmatprep.subr.mxu0 0.0
    %3917 = vmatpush1.msra.mxu0 0.0
    %3918 = vmatprep.subr.mxu0 0.0
    %3919 = vmatpush1.msra.mxu0 0.0
    %3920 = vmatprep.subr.mxu0 0.0
    %3921 = vmatpush1.msra.mxu0 0.0
    %3922 = vmatprep.subr.mxu0 0.0
    %3923 = vmatpush1.msra.mxu0 0.0
    %3924 = vmatprep.subr.mxu0 0.0
    %3925 = vmatpush1.msra.mxu0 0.0
    %3926 = vmatprep.subr.mxu0 0.0
    %3927 = vmatpush1.msra.mxu0 0.0
    %3928 = vmatprep.subr.mxu0 0.0
    %3929 = vmatpush1.msra.mxu0 0.0
    %3930 = vmatprep.subr.mxu0 0.0
    %3931 = vmatpush1.msra.mxu0 0.0
    %3932 = vmatprep.subr.mxu0 0.0
    %3933 = vmatpush1.msra.mxu0 0.0
    %3934 = vmatprep.subr.mxu0 0.0
    %3935 = vmatpush1.msra.mxu0 0.0
    %3936 = vmatprep.subr.mxu0 0.0
    %3937 = vmatpush1.msra.mxu0 0.0
    %3938 = vmatprep.mubr.f32.mxu0 0.0
    %3939 = vmatmul.mubr.f32.gmra.mrb[0].mxu0 %v3872
    %v3940 = vpop.f32.mrb[0].mxu0
    %v3941 = vadd.f32 %v3869, %v3940
    %v3942 = vpop.f32.mrb[0].mxu0
    %3943 = vdwg.mxu0
    %v3944 = vxor.u32 %v3941, 2147483648
    %v3945 = vmul.f32 %v3944, 1.442695
    %v3946 = vpow.pop %v3945
    %v3947 = vadd.f32 %v3946, 1.0
    %v3948 = vrcp.pop %v3947
    %v3949 = vmul.f32 1.0, %v3948
    %v3950 = vtanh.pop %v3941
    %v3951 = vmul.f32 %v3949, %v2724
    %3953 = vrot.lane.b32.xlu0 %v3950, 64
    %v3954 = vpop.permute.xlu0 %3953
    %v3956 = vmul.f32 %v3949, %v3954
    %3958 = vrot.lane.b32.xlu0 %v3956, 32
    %v3959 = vpop.permute.xlu0 %3958
    %v3961 = vadd.f32 %v3951, %v3959
    %v3962 = vtanh.pop %v3961
    %3964 = vrot.lane.b32.xlu0 %v3962, 64
    %v3965 = vpop.permute.xlu0 %3964
    %v3967 = vmul.f32 %v3949, %v3965
    %3969 = vrot.lane.b32.xlu0 %v3967, 32
    %v3970 = vpop.permute.xlu0 %3969
    %3972 = vst.msk [vmem:[#allocation7] sm:$0xff] %vm658, %v3970
    %s3973 = scalar_lea.vmem [#allocation4], 16
    %v3974 = vld [vmem:[%s3973] sm:$0xff]
    %v3975 = vld [vmem:[%s19] sm:$0xff]
    %v3976 = vld [vmem:[%s19 + $0x8] sm:$0xff]
    %v3977 = vld [vmem:[%s19 + $0x10] sm:$0xff]
    %v3978 = vld [vmem:[%s19 + $0x18] sm:$0xff]
    %v3979 = vsel %vm658, %v3305, 0
    %3981 = vmatprep.subr.mxu0 0.0
    %3982 = vmatpush1.msra.mxu0 %v3975
    %3983 = vmatprep.subr.mxu0 0.0
    %3984 = vmatpush1.msra.mxu0 %v3976
    %3985 = vmatprep.subr.mxu0 0.0
    %3986 = vmatpush1.msra.mxu0 %v3977
    %3987 = vmatprep.subr.mxu0 0.0
    %3988 = vmatpush1.msra.mxu0 %v3978
    %3989 = vmatprep.subr.mxu0 0.0
    %3990 = vmatpush1.msra.mxu0 0.0
    %3991 = vmatprep.subr.mxu0 0.0
    %3992 = vmatpush1.msra.mxu0 0.0
    %3993 = vmatprep.subr.mxu0 0.0
    %3994 = vmatpush1.msra.mxu0 0.0
    %3995 = vmatprep.subr.mxu0 0.0
    %3996 = vmatpush1.msra.mxu0 0.0
    %3997 = vmatprep.subr.mxu0 0.0
    %3998 = vmatpush1.msra.mxu0 0.0
    %3999 = vmatprep.subr.mxu0 0.0
    %4000 = vmatpush1.msra.mxu0 0.0
    %4001 = vmatprep.subr.mxu0 0.0
    %4002 = vmatpush1.msra.mxu0 0.0
    %4003 = vmatprep.subr.mxu0 0.0
    %4004 = vmatpush1.msra.mxu0 0.0
    %4005 = vmatprep.subr.mxu0 0.0
    %4006 = vmatpush1.msra.mxu0 0.0
    %4007 = vmatprep.subr.mxu0 0.0
    %4008 = vmatpush1.msra.mxu0 0.0
    %4009 = vmatprep.subr.mxu0 0.0
    %4010 = vmatpush1.msra.mxu0 0.0
    %4011 = vmatprep.subr.mxu0 0.0
    %4012 = vmatpush1.msra.mxu0 0.0
    %4013 = vmatprep.subr.mxu0 0.0
    %4014 = vmatpush1.msra.mxu0 0.0
    %4015 = vmatprep.subr.mxu0 0.0
    %4016 = vmatpush1.msra.mxu0 0.0
    %4017 = vmatprep.subr.mxu0 0.0
    %4018 = vmatpush1.msra.mxu0 0.0
    %4019 = vmatprep.subr.mxu0 0.0
    %4020 = vmatpush1.msra.mxu0 0.0
    %4021 = vmatprep.subr.mxu0 0.0
    %4022 = vmatpush1.msra.mxu0 0.0
    %4023 = vmatprep.subr.mxu0 0.0
    %4024 = vmatpush1.msra.mxu0 0.0
    %4025 = vmatprep.subr.mxu0 0.0
    %4026 = vmatpush1.msra.mxu0 0.0
    %4027 = vmatprep.subr.mxu0 0.0
    %4028 = vmatpush1.msra.mxu0 0.0
    %4029 = vmatprep.subr.mxu0 0.0
    %4030 = vmatpush1.msra.mxu0 0.0
    %4031 = vmatprep.subr.mxu0 0.0
    %4032 = vmatpush1.msra.mxu0 0.0
    %4033 = vmatprep.subr.mxu0 0.0
    %4034 = vmatpush1.msra.mxu0 0.0
    %4035 = vmatprep.subr.mxu0 0.0
    %4036 = vmatpush1.msra.mxu0 0.0
    %4037 = vmatprep.subr.mxu0 0.0
    %4038 = vmatpush1.msra.mxu0 0.0
    %4039 = vmatprep.subr.mxu0 0.0
    %4040 = vmatpush1.msra.mxu0 0.0
    %4041 = vmatprep.subr.mxu0 0.0
    %4042 = vmatpush1.msra.mxu0 0.0
    %4043 = vmatprep.subr.mxu0 0.0
    %4044 = vmatpush1.msra.mxu0 0.0
    %4045 = vmatprep.mubr.f32.mxu0 0.0
    %4046 = vmatmul.mubr.f32.gmra.mrb[0].mxu0 %v3979
    %v4047 = vpop.f32.mrb[0].mxu0
    %v4048 = vadd.f32 0.0, %v4047
    %v4049 = vpop.f32.mrb[0].mxu0
    %4050 = vdwg.mxu0
    %v4051 = vadd.f32 %v3974, %v4048
    %v4052 = vxor.u32 %v4051, 2147483648
    %v4053 = vmul.f32 %v4052, 1.442695
    %v4054 = vpow.pop %v4053
    %v4055 = vadd.f32 %v4054, 1.0
    %v4056 = vrcp.pop %v4055
    %v4057 = vmul.f32 1.0, %v4056
    %v4058 = vtanh.pop %v4051
    %v4059 = vmul.f32 %v4057, %v3296
    %4061 = vrot.lane.b32.xlu0 %v4058, 64
    %v4062 = vpop.permute.xlu0 %4061
    %v4064 = vmul.f32 %v4057, %v4062
    %4066 = vrot.lane.b32.xlu0 %v4064, 32
    %v4067 = vpop.permute.xlu0 %4066
    %v4069 = vadd.f32 %v4059, %v4067
    %v4070 = vtanh.pop %v4069
    %4072 = vrot.lane.b32.xlu0 %v4070, 64
    %v4073 = vpop.permute.xlu0 %4072
    %v4075 = vmul.f32 %v4057, %v4073
    %4077 = vrot.lane.b32.xlu0 %v4075, 32
    %v4078 = vpop.permute.xlu0 %4077
    %4080 = vrot.lane.b32.xlu0 %v3422, 64
    %v4081 = vpop.permute.xlu0 %4080
    %v4083 = vsel %vm658, %v4078, %v4081
    %v4084 = vld [vmem:[%s23] sm:$0xff]
    %v4085 = vld [vmem:[%s23 + $0x8] sm:$0xff]
    %v4086 = vld [vmem:[%s23 + $0x10] sm:$0xff]
    %v4087 = vld [vmem:[%s23 + $0x18] sm:$0xff]
    %v4088 = vld [vmem:[%s23 + $0x20] sm:$0xff]
    %v4089 = vld [vmem:[%s23 + $0x28] sm:$0xff]
    %v4090 = vld [vmem:[%s23 + $0x30] sm:$0xff]
    %v4091 = vld [vmem:[%s23 + $0x38] sm:$0xff]
    %v4092 = vld [vmem:[%s25] sm:$0x1]
    %v4094 = vlaneseq
    %v4095 = vshrl.u32 %v4094, 7
    %v4096 = vsub.s32 0, %v4095
    %v4097 = vrot.slane %v4092, %v4096
    %v4100 = vsel %vm777, %v4083, 0
    %4102 = vmatprep.subr.mxu0 0.0
    %4103 = vmatpush1.msra.mxu0 %v4084
    %4104 = vmatprep.subr.mxu0 0.0
    %4105 = vmatpush1.msra.mxu0 %v4085
    %4106 = vmatprep.subr.mxu0 0.0
    %4107 = vmatpush1.msra.mxu0 %v4086
    %4108 = vmatprep.subr.mxu0 0.0
    %4109 = vmatpush1.msra.mxu0 %v4087
    %4110 = vmatprep.subr.mxu0 0.0
    %4111 = vmatpush1.msra.mxu0 %v4088
    %4112 = vmatprep.subr.mxu0 0.0
    %4113 = vmatpush1.msra.mxu0 %v4089
    %4114 = vmatprep.subr.mxu0 0.0
    %4115 = vmatpush1.msra.mxu0 %v4090
    %4116 = vmatprep.subr.mxu0 0.0
    %4117 = vmatpush1.msra.mxu0 %v4091
    %4118 = vmatprep.subr.mxu0 0.0
    %4119 = vmatpush1.msra.mxu0 0.0
    %4120 = vmatprep.subr.mxu0 0.0
    %4121 = vmatpush1.msra.mxu0 0.0
    %4122 = vmatprep.subr.mxu0 0.0
    %4123 = vmatpush1.msra.mxu0 0.0
    %4124 = vmatprep.subr.mxu0 0.0
    %4125 = vmatpush1.msra.mxu0 0.0
    %4126 = vmatprep.subr.mxu0 0.0
    %4127 = vmatpush1.msra.mxu0 0.0
    %4128 = vmatprep.subr.mxu0 0.0
    %4129 = vmatpush1.msra.mxu0 0.0
    %4130 = vmatprep.subr.mxu0 0.0
    %4131 = vmatpush1.msra.mxu0 0.0
    %4132 = vmatprep.subr.mxu0 0.0
    %4133 = vmatpush1.msra.mxu0 0.0
    %4134 = vmatprep.subr.mxu0 0.0
    %4135 = vmatpush1.msra.mxu0 0.0
    %4136 = vmatprep.subr.mxu0 0.0
    %4137 = vmatpush1.msra.mxu0 0.0
    %4138 = vmatprep.subr.mxu0 0.0
    %4139 = vmatpush1.msra.mxu0 0.0
    %4140 = vmatprep.subr.mxu0 0.0
    %4141 = vmatpush1.msra.mxu0 0.0
    %4142 = vmatprep.subr.mxu0 0.0
    %4143 = vmatpush1.msra.mxu0 0.0
    %4144 = vmatprep.subr.mxu0 0.0
    %4145 = vmatpush1.msra.mxu0 0.0
    %4146 = vmatprep.subr.mxu0 0.0
    %4147 = vmatpush1.msra.mxu0 0.0
    %4148 = vmatprep.subr.mxu0 0.0
    %4149 = vmatpush1.msra.mxu0 0.0
    %4150 = vmatprep.subr.mxu0 0.0
    %4151 = vmatpush1.msra.mxu0 0.0
    %4152 = vmatprep.subr.mxu0 0.0
    %4153 = vmatpush1.msra.mxu0 0.0
    %4154 = vmatprep.subr.mxu0 0.0
    %4155 = vmatpush1.msra.mxu0 0.0
    %4156 = vmatprep.subr.mxu0 0.0
    %4157 = vmatpush1.msra.mxu0 0.0
    %4158 = vmatprep.subr.mxu0 0.0
    %4159 = vmatpush1.msra.mxu0 0.0
    %4160 = vmatprep.subr.mxu0 0.0
    %4161 = vmatpush1.msra.mxu0 0.0
    %4162 = vmatprep.subr.mxu0 0.0
    %4163 = vmatpush1.msra.mxu0 0.0
    %4164 = vmatprep.subr.mxu0 0.0
    %4165 = vmatpush1.msra.mxu0 0.0
    %4166 = vmatprep.mubr.f32.mxu0 0.0
    %4167 = vmatmul.mubr.f32.gmra.mrb[0].mxu0 %v4100
    %v4168 = vpop.f32.mrb[0].mxu0
    %v4169 = vadd.f32 %v4097, %v4168
    %v4170 = vpop.f32.mrb[0].mxu0
    %4171 = vdwg.mxu0
    %v4172 = vxor.u32 %v4169, 2147483648
    %v4173 = vmul.f32 %v4172, 1.442695
    %v4174 = vpow.pop %v4173
    %v4175 = vadd.f32 %v4174, 1.0
    %v4176 = vrcp.pop %v4175
    %v4177 = vmul.f32 1.0, %v4176
    %v4178 = vtanh.pop %v4169
    %v4179 = vmul.f32 %v4177, %v3416
    %4181 = vrot.lane.b32.xlu0 %v4178, 64
    %v4182 = vpop.permute.xlu0 %4181
    %v4184 = vmul.f32 %v4177, %v4182
    %4186 = vrot.lane.b32.xlu0 %v4184, 32
    %v4187 = vpop.permute.xlu0 %4186
    %v4189 = vadd.f32 %v4179, %v4187
    %v4190 = vtanh.pop %v4189
    %4192 = vrot.lane.b32.xlu0 %v4190, 64
    %v4193 = vpop.permute.xlu0 %4192
    %v4195 = vmul.f32 %v4177, %v4193
    %v4196 = vld [vmem:[%s27] sm:$0xff]
    %v4197 = vld [vmem:[%s27 + $0x8] sm:$0xff]
    %v4198 = vld [vmem:[%s27 + $0x10] sm:$0xff]
    %v4199 = vld [vmem:[%s27 + $0x18] sm:$0xff]
    %v4200 = vld [vmem:[#allocation8] sm:$0x1]
    %v4202 = vlaneseq
    %v4203 = vshrl.u32 %v4202, 7
    %v4204 = vsub.s32 0, %v4203
    %v4205 = vrot.slane %v4200, %v4204
    %4208 = vrot.lane.b32.xlu0 %v4195, 32
    %v4209 = vpop.permute.xlu0 %4208
    %v4210 = vsel %vm658, %v4209, 0
    %4212 = vmatprep.subr.mxu0 0.0
    %4213 = vmatpush1.msra.mxu0 %v4196
    %4214 = vmatprep.subr.mxu0 0.0
    %4215 = vmatpush1.msra.mxu0 %v4197
    %4216 = vmatprep.subr.mxu0 0.0
    %4217 = vmatpush1.msra.mxu0 %v4198
    %4218 = vmatprep.subr.mxu0 0.0
    %4219 = vmatpush1.msra.mxu0 %v4199
    %4220 = vmatprep.subr.mxu0 0.0
    %4221 = vmatpush1.msra.mxu0 0.0
    %4222 = vmatprep.subr.mxu0 0.0
    %4223 = vmatpush1.msra.mxu0 0.0
    %4224 = vmatprep.subr.mxu0 0.0
    %4225 = vmatpush1.msra.mxu0 0.0
    %4226 = vmatprep.subr.mxu0 0.0
    %4227 = vmatpush1.msra.mxu0 0.0
    %4228 = vmatprep.subr.mxu0 0.0
    %4229 = vmatpush1.msra.mxu0 0.0
    %4230 = vmatprep.subr.mxu0 0.0
    %4231 = vmatpush1.msra.mxu0 0.0
    %4232 = vmatprep.subr.mxu0 0.0
    %4233 = vmatpush1.msra.mxu0 0.0
    %4234 = vmatprep.subr.mxu0 0.0
    %4235 = vmatpush1.msra.mxu0 0.0
    %4236 = vmatprep.subr.mxu0 0.0
    %4237 = vmatpush1.msra.mxu0 0.0
    %4238 = vmatprep.subr.mxu0 0.0
    %4239 = vmatpush1.msra.mxu0 0.0
    %4240 = vmatprep.subr.mxu0 0.0
    %4241 = vmatpush1.msra.mxu0 0.0
    %4242 = vmatprep.subr.mxu0 0.0
    %4243 = vmatpush1.msra.mxu0 0.0
    %4244 = vmatprep.subr.mxu0 0.0
    %4245 = vmatpush1.msra.mxu0 0.0
    %4246 = vmatprep.subr.mxu0 0.0
    %4247 = vmatpush1.msra.mxu0 0.0
    %4248 = vmatprep.subr.mxu0 0.0
    %4249 = vmatpush1.msra.mxu0 0.0
    %4250 = vmatprep.subr.mxu0 0.0
    %4251 = vmatpush1.msra.mxu0 0.0
    %4252 = vmatprep.subr.mxu0 0.0
    %4253 = vmatpush1.msra.mxu0 0.0
    %4254 = vmatprep.subr.mxu0 0.0
    %4255 = vmatpush1.msra.mxu0 0.0
    %4256 = vmatprep.subr.mxu0 0.0
    %4257 = vmatpush1.msra.mxu0 0.0
    %4258 = vmatprep.subr.mxu0 0.0
    %4259 = vmatpush1.msra.mxu0 0.0
    %4260 = vmatprep.subr.mxu0 0.0
    %4261 = vmatpush1.msra.mxu0 0.0
    %4262 = vmatprep.subr.mxu0 0.0
    %4263 = vmatpush1.msra.mxu0 0.0
    %4264 = vmatprep.subr.mxu0 0.0
    %4265 = vmatpush1.msra.mxu0 0.0
    %4266 = vmatprep.subr.mxu0 0.0
    %4267 = vmatpush1.msra.mxu0 0.0
    %4268 = vmatprep.subr.mxu0 0.0
    %4269 = vmatpush1.msra.mxu0 0.0
    %4270 = vmatprep.subr.mxu0 0.0
    %4271 = vmatpush1.msra.mxu0 0.0
    %4272 = vmatprep.subr.mxu0 0.0
    %4273 = vmatpush1.msra.mxu0 0.0
    %4274 = vmatprep.subr.mxu0 0.0
    %4275 = vmatpush1.msra.mxu0 0.0
    %4276 = vmatprep.mubr.f32.mxu0 0.0
    %4277 = vmatmul.mubr.f32.gmra.mrb[0].mxu0 %v4210
    %v4278 = vpop.f32.mrb[0].mxu0
    %v4279 = vadd.f32 %v4205, %v4278
    %v4280 = vpop.f32.mrb[0].mxu0
    %4281 = vdwg.mxu0
    %s4282 = scalar_lea.vmem %s5, 16
    %v4283 = vld [vmem:[%s4282] sm:$0xff]
    %v4284 = vld [vmem:[%s31] sm:$0xf]
    %v4285 = vld [vmem:[%s33] sm:$0x3]
    %v4287 = vsel %vm3043, %v4279, 0
    %v4290 = vsel %vm3047, %v4285, 0
    %4292 = vmatprep.subr.mxu0 0.0
    %4293 = vmatpush1.msra.mxu0 %v4290
    %4294 = vmatprep.subr.mxu0 0.0
    %4295 = vmatpush1.msra.mxu0 0.0
    %4296 = vmatprep.subr.mxu0 0.0
    %4297 = vmatpush1.msra.mxu0 0.0
    %4298 = vmatprep.subr.mxu0 0.0
    %4299 = vmatpush1.msra.mxu0 0.0
    %4300 = vmatprep.subr.mxu0 0.0
    %4301 = vmatpush1.msra.mxu0 0.0
    %4302 = vmatprep.subr.mxu0 0.0
    %4303 = vmatpush1.msra.mxu0 0.0
    %4304 = vmatprep.subr.mxu0 0.0
    %4305 = vmatpush1.msra.mxu0 0.0
    %4306 = vmatprep.subr.mxu0 0.0
    %4307 = vmatpush1.msra.mxu0 0.0
    %4308 = vmatprep.subr.mxu0 0.0
    %4309 = vmatpush1.msra.mxu0 0.0
    %4310 = vmatprep.subr.mxu0 0.0
    %4311 = vmatpush1.msra.mxu0 0.0
    %4312 = vmatprep.subr.mxu0 0.0
    %4313 = vmatpush1.msra.mxu0 0.0
    %4314 = vmatprep.subr.mxu0 0.0
    %4315 = vmatpush1.msra.mxu0 0.0
    %4316 = vmatprep.subr.mxu0 0.0
    %4317 = vmatpush1.msra.mxu0 0.0
    %4318 = vmatprep.subr.mxu0 0.0
    %4319 = vmatpush1.msra.mxu0 0.0
    %4320 = vmatprep.subr.mxu0 0.0
    %4321 = vmatpush1.msra.mxu0 0.0
    %4322 = vmatprep.subr.mxu0 0.0
    %4323 = vmatpush1.msra.mxu0 0.0
    %4324 = vmatprep.subr.mxu0 0.0
    %4325 = vmatpush1.msra.mxu0 0.0
    %4326 = vmatprep.subr.mxu0 0.0
    %4327 = vmatpush1.msra.mxu0 0.0
    %4328 = vmatprep.subr.mxu0 0.0
    %4329 = vmatpush1.msra.mxu0 0.0
    %4330 = vmatprep.subr.mxu0 0.0
    %4331 = vmatpush1.msra.mxu0 0.0
    %4332 = vmatprep.subr.mxu0 0.0
    %4333 = vmatpush1.msra.mxu0 0.0
    %4334 = vmatprep.subr.mxu0 0.0
    %4335 = vmatpush1.msra.mxu0 0.0
    %4336 = vmatprep.subr.mxu0 0.0
    %4337 = vmatpush1.msra.mxu0 0.0
    %4338 = vmatprep.subr.mxu0 0.0
    %4339 = vmatpush1.msra.mxu0 0.0
    %4340 = vmatprep.subr.mxu0 0.0
    %4341 = vmatpush1.msra.mxu0 0.0
    %4342 = vmatprep.subr.mxu0 0.0
    %4343 = vmatpush1.msra.mxu0 0.0
    %4344 = vmatprep.subr.mxu0 0.0
    %4345 = vmatpush1.msra.mxu0 0.0
    %4346 = vmatprep.subr.mxu0 0.0
    %4347 = vmatpush1.msra.mxu0 0.0
    %4348 = vmatprep.subr.mxu0 0.0
    %4349 = vmatpush1.msra.mxu0 0.0
    %4350 = vmatprep.subr.mxu0 0.0
    %4351 = vmatpush1.msra.mxu0 0.0
    %4352 = vmatprep.subr.mxu0 0.0
    %4353 = vmatpush1.msra.mxu0 0.0
    %4354 = vmatprep.subr.mxu0 0.0
    %4355 = vmatpush1.msra.mxu0 0.0
    %4356 = vmatprep.mubr.f32.mxu0 0.0
    %4357 = vmatmul.mubr.f32.gmra.mrb[0].mxu0 %v4287
    %v4358 = vpop.f32.mrb[0].mxu0
    %v4359 = vadd.f32 0.0, %v4358
    %v4360 = vpop.f32.mrb[0].mxu0
    %4361 = vdwg.mxu0
    %v4363 = vsel %vm3121, %v4283, 0
    %v4366 = vsel %vm3125, %v4284, 0
    %4368 = vmatprep.subr.mxu0 0.0
    %4369 = vmatpush1.msra.mxu0 %v4366
    %4370 = vmatprep.subr.mxu0 0.0
    %4371 = vmatpush1.msra.mxu0 0.0
    %4372 = vmatprep.subr.mxu0 0.0
    %4373 = vmatpush1.msra.mxu0 0.0
    %4374 = vmatprep.subr.mxu0 0.0
    %4375 = vmatpush1.msra.mxu0 0.0
    %4376 = vmatprep.subr.mxu0 0.0
    %4377 = vmatpush1.msra.mxu0 0.0
    %4378 = vmatprep.subr.mxu0 0.0
    %4379 = vmatpush1.msra.mxu0 0.0
    %4380 = vmatprep.subr.mxu0 0.0
    %4381 = vmatpush1.msra.mxu0 0.0
    %4382 = vmatprep.subr.mxu0 0.0
    %4383 = vmatpush1.msra.mxu0 0.0
    %4384 = vmatprep.subr.mxu0 0.0
    %4385 = vmatpush1.msra.mxu0 0.0
    %4386 = vmatprep.subr.mxu0 0.0
    %4387 = vmatpush1.msra.mxu0 0.0
    %4388 = vmatprep.subr.mxu0 0.0
    %4389 = vmatpush1.msra.mxu0 0.0
    %4390 = vmatprep.subr.mxu0 0.0
    %4391 = vmatpush1.msra.mxu0 0.0
    %4392 = vmatprep.subr.mxu0 0.0
    %4393 = vmatpush1.msra.mxu0 0.0
    %4394 = vmatprep.subr.mxu0 0.0
    %4395 = vmatpush1.msra.mxu0 0.0
    %4396 = vmatprep.subr.mxu0 0.0
    %4397 = vmatpush1.msra.mxu0 0.0
    %4398 = vmatprep.subr.mxu0 0.0
    %4399 = vmatpush1.msra.mxu0 0.0
    %4400 = vmatprep.subr.mxu0 0.0
    %4401 = vmatpush1.msra.mxu0 0.0
    %4402 = vmatprep.subr.mxu0 0.0
    %4403 = vmatpush1.msra.mxu0 0.0
    %4404 = vmatprep.subr.mxu0 0.0
    %4405 = vmatpush1.msra.mxu0 0.0
    %4406 = vmatprep.subr.mxu0 0.0
    %4407 = vmatpush1.msra.mxu0 0.0
    %4408 = vmatprep.subr.mxu0 0.0
    %4409 = vmatpush1.msra.mxu0 0.0
    %4410 = vmatprep.subr.mxu0 0.0
    %4411 = vmatpush1.msra.mxu0 0.0
    %4412 = vmatprep.subr.mxu0 0.0
    %4413 = vmatpush1.msra.mxu0 0.0
    %4414 = vmatprep.subr.mxu0 0.0
    %4415 = vmatpush1.msra.mxu0 0.0
    %4416 = vmatprep.subr.mxu0 0.0
    %4417 = vmatpush1.msra.mxu0 0.0
    %4418 = vmatprep.subr.mxu0 0.0
    %4419 = vmatpush1.msra.mxu0 0.0
    %4420 = vmatprep.subr.mxu0 0.0
    %4421 = vmatpush1.msra.mxu0 0.0
    %4422 = vmatprep.subr.mxu0 0.0
    %4423 = vmatpush1.msra.mxu0 0.0
    %4424 = vmatprep.subr.mxu0 0.0
    %4425 = vmatpush1.msra.mxu0 0.0
    %4426 = vmatprep.subr.mxu0 0.0
    %4427 = vmatpush1.msra.mxu0 0.0
    %4428 = vmatprep.subr.mxu0 0.0
    %4429 = vmatpush1.msra.mxu0 0.0
    %4430 = vmatprep.subr.mxu0 0.0
    %4431 = vmatpush1.msra.mxu0 0.0
    %4432 = vmatprep.mubr.f32.mxu0 0.0
    %4433 = vmatmul.mubr.f32.gmra.mrb[0].mxu0 %v4363
    %v4434 = vpop.f32.mrb[0].mxu0
    %v4435 = vadd.f32 %v4359, %v4434
    %v4436 = vpop.f32.mrb[0].mxu0
    %4437 = vdwg.mxu0
    %s4438 = scalar_lea.vmem [#allocation6], 16
    %4439 = vst.msk [vmem:[%s4438] sm:$0xff] %vm3121, %v4435
    %s4440 = scalar_lea.vmem [#allocation5], 8
    %v4441 = vld [vmem:[%s4440] sm:$0xff]
    %v4442 = vld [vmem:[%s47] sm:$0xf]
    %v4444 = vsel %vm3121, %v3662, 0
    %v4447 = vsel %vm3125, %v4442, 0
    %4449 = vmatprep.subr.mxu0 0.0
    %4450 = vmatpush1.msra.mxu0 %v4447
    %4451 = vmatprep.subr.mxu0 0.0
    %4452 = vmatpush1.msra.mxu0 0.0
    %4453 = vmatprep.subr.mxu0 0.0
    %4454 = vmatpush1.msra.mxu0 0.0
    %4455 = vmatprep.subr.mxu0 0.0
    %4456 = vmatpush1.msra.mxu0 0.0
    %4457 = vmatprep.subr.mxu0 0.0
    %4458 = vmatpush1.msra.mxu0 0.0
    %4459 = vmatprep.subr.mxu0 0.0
    %4460 = vmatpush1.msra.mxu0 0.0
    %4461 = vmatprep.subr.mxu0 0.0
    %4462 = vmatpush1.msra.mxu0 0.0
    %4463 = vmatprep.subr.mxu0 0.0
    %4464 = vmatpush1.msra.mxu0 0.0
    %4465 = vmatprep.subr.mxu0 0.0
    %4466 = vmatpush1.msra.mxu0 0.0
    %4467 = vmatprep.subr.mxu0 0.0
    %4468 = vmatpush1.msra.mxu0 0.0
    %4469 = vmatprep.subr.mxu0 0.0
    %4470 = vmatpush1.msra.mxu0 0.0
    %4471 = vmatprep.subr.mxu0 0.0
    %4472 = vmatpush1.msra.mxu0 0.0
    %4473 = vmatprep.subr.mxu0 0.0
    %4474 = vmatpush1.msra.mxu0 0.0
    %4475 = vmatprep.subr.mxu0 0.0
    %4476 = vmatpush1.msra.mxu0 0.0
    %4477 = vmatprep.subr.mxu0 0.0
    %4478 = vmatpush1.msra.mxu0 0.0
    %4479 = vmatprep.subr.mxu0 0.0
    %4480 = vmatpush1.msra.mxu0 0.0
    %4481 = vmatprep.subr.mxu0 0.0
    %4482 = vmatpush1.msra.mxu0 0.0
    %4483 = vmatprep.subr.mxu0 0.0
    %4484 = vmatpush1.msra.mxu0 0.0
    %4485 = vmatprep.subr.mxu0 0.0
    %4486 = vmatpush1.msra.mxu0 0.0
    %4487 = vmatprep.subr.mxu0 0.0
    %4488 = vmatpush1.msra.mxu0 0.0
    %4489 = vmatprep.subr.mxu0 0.0
    %4490 = vmatpush1.msra.mxu0 0.0
    %4491 = vmatprep.subr.mxu0 0.0
    %4492 = vmatpush1.msra.mxu0 0.0
    %4493 = vmatprep.subr.mxu0 0.0
    %4494 = vmatpush1.msra.mxu0 0.0
    %4495 = vmatprep.subr.mxu0 0.0
    %4496 = vmatpush1.msra.mxu0 0.0
    %4497 = vmatprep.subr.mxu0 0.0
    %4498 = vmatpush1.msra.mxu0 0.0
    %4499 = vmatprep.subr.mxu0 0.0
    %4500 = vmatpush1.msra.mxu0 0.0
    %4501 = vmatprep.subr.mxu0 0.0
    %4502 = vmatpush1.msra.mxu0 0.0
    %4503 = vmatprep.subr.mxu0 0.0
    %4504 = vmatpush1.msra.mxu0 0.0
    %4505 = vmatprep.subr.mxu0 0.0
    %4506 = vmatpush1.msra.mxu0 0.0
    %4507 = vmatprep.subr.mxu0 0.0
    %4508 = vmatpush1.msra.mxu0 0.0
    %4509 = vmatprep.subr.mxu0 0.0
    %4510 = vmatpush1.msra.mxu0 0.0
    %4511 = vmatprep.subr.mxu0 0.0
    %4512 = vmatpush1.msra.mxu0 0.0
    %4513 = vmatprep.mubr.f32.mxu0 0.0
    %4514 = vmatmul.mubr.f32.gmra.mrb[0].mxu0 %v4444
    %v4515 = vpop.f32.mrb[0].mxu0
    %v4516 = vadd.f32 0.0, %v4515
    %v4517 = vpop.f32.mrb[0].mxu0
    %4518 = vdwg.mxu0
    %v4519 = vadd.f32 %v4441, %v4516
    %v4520 = vld [vmem:[%s49] sm:$0xff]
    %v4521 = vld [vmem:[%s49 + $0x8] sm:$0xff]
    %v4522 = vld [vmem:[%s49 + $0x10] sm:$0xff]
    %v4523 = vld [vmem:[%s49 + $0x18] sm:$0xff]
    %v4524 = vsel %vm658, %v3849, 0
    %4526 = vmatprep.subr.mxu0 0.0
    %4527 = vmatpush1.msra.mxu0 %v4520
    %4528 = vmatprep.subr.mxu0 0.0
    %4529 = vmatpush1.msra.mxu0 %v4521
    %4530 = vmatprep.subr.mxu0 0.0
    %4531 = vmatpush1.msra.mxu0 %v4522
    %4532 = vmatprep.subr.mxu0 0.0
    %4533 = vmatpush1.msra.mxu0 %v4523
    %4534 = vmatprep.subr.mxu0 0.0
    %4535 = vmatpush1.msra.mxu0 0.0
    %4536 = vmatprep.subr.mxu0 0.0
    %4537 = vmatpush1.msra.mxu0 0.0
    %4538 = vmatprep.subr.mxu0 0.0
    %4539 = vmatpush1.msra.mxu0 0.0
    %4540 = vmatprep.subr.mxu0 0.0
    %4541 = vmatpush1.msra.mxu0 0.0
    %4542 = vmatprep.subr.mxu0 0.0
    %4543 = vmatpush1.msra.mxu0 0.0
    %4544 = vmatprep.subr.mxu0 0.0
    %4545 = vmatpush1.msra.mxu0 0.0
    %4546 = vmatprep.subr.mxu0 0.0
    %4547 = vmatpush1.msra.mxu0 0.0
    %4548 = vmatprep.subr.mxu0 0.0
    %4549 = vmatpush1.msra.mxu0 0.0
    %4550 = vmatprep.subr.mxu0 0.0
    %4551 = vmatpush1.msra.mxu0 0.0
    %4552 = vmatprep.subr.mxu0 0.0
    %4553 = vmatpush1.msra.mxu0 0.0
    %4554 = vmatprep.subr.mxu0 0.0
    %4555 = vmatpush1.msra.mxu0 0.0
    %4556 = vmatprep.subr.mxu0 0.0
    %4557 = vmatpush1.msra.mxu0 0.0
    %4558 = vmatprep.subr.mxu0 0.0
    %4559 = vmatpush1.msra.mxu0 0.0
    %4560 = vmatprep.subr.mxu0 0.0
    %4561 = vmatpush1.msra.mxu0 0.0
    %4562 = vmatprep.subr.mxu0 0.0
    %4563 = vmatpush1.msra.mxu0 0.0
    %4564 = vmatprep.subr.mxu0 0.0
    %4565 = vmatpush1.msra.mxu0 0.0
    %4566 = vmatprep.subr.mxu0 0.0
    %4567 = vmatpush1.msra.mxu0 0.0
    %4568 = vmatprep.subr.mxu0 0.0
    %4569 = vmatpush1.msra.mxu0 0.0
    %4570 = vmatprep.subr.mxu0 0.0
    %4571 = vmatpush1.msra.mxu0 0.0
    %4572 = vmatprep.subr.mxu0 0.0
    %4573 = vmatpush1.msra.mxu0 0.0
    %4574 = vmatprep.subr.mxu0 0.0
    %4575 = vmatpush1.msra.mxu0 0.0
    %4576 = vmatprep.subr.mxu0 0.0
    %4577 = vmatpush1.msra.mxu0 0.0
    %4578 = vmatprep.subr.mxu0 0.0
    %4579 = vmatpush1.msra.mxu0 0.0
    %4580 = vmatprep.subr.mxu0 0.0
    %4581 = vmatpush1.msra.mxu0 0.0
    %4582 = vmatprep.subr.mxu0 0.0
    %4583 = vmatpush1.msra.mxu0 0.0
    %4584 = vmatprep.subr.mxu0 0.0
    %4585 = vmatpush1.msra.mxu0 0.0
    %4586 = vmatprep.subr.mxu0 0.0
    %4587 = vmatpush1.msra.mxu0 0.0
    %4588 = vmatprep.subr.mxu0 0.0
    %4589 = vmatpush1.msra.mxu0 0.0
    %4590 = vmatprep.mubr.f32.mxu0 0.0
    %4591 = vmatmul.mubr.f32.gmra.mrb[0].mxu0 %v4524
    %v4592 = vpop.f32.mrb[0].mxu0
    %v4593 = vadd.f32 0.0, %v4592
    %v4594 = vpop.f32.mrb[0].mxu0
    %4595 = vdwg.mxu0
    %v4596 = vadd.f32 %v4519, %v4593
    %v4597 = vxor.u32 %v4596, 2147483648
    %v4598 = vmul.f32 %v4597, 1.442695
    %v4599 = vpow.pop %v4598
    %v4600 = vadd.f32 %v4599, 1.0
    %v4601 = vrcp.pop %v4600
    %v4602 = vmul.f32 1.0, %v4601
    %v4603 = vtanh.pop %v4596
    %v4604 = vmul.f32 %v4602, %v3840
    %4606 = vrot.lane.b32.xlu0 %v4603, 64
    %v4607 = vpop.permute.xlu0 %4606
    %v4609 = vmul.f32 %v4602, %v4607
    %4611 = vrot.lane.b32.xlu0 %v4609, 32
    %v4612 = vpop.permute.xlu0 %4611
    %v4614 = vadd.f32 %v4604, %v4612
    %v4615 = vtanh.pop %v4614
    %4617 = vrot.lane.b32.xlu0 %v4615, 64
    %v4618 = vpop.permute.xlu0 %4617
    %v4620 = vmul.f32 %v4602, %v4618
    %4622 = vrot.lane.b32.xlu0 %v4620, 32
    %v4623 = vpop.permute.xlu0 %4622
    %4625 = vrot.lane.b32.xlu0 %v3967, 64
    %v4626 = vpop.permute.xlu0 %4625
    %v4628 = vsel %vm658, %v4623, %v4626
    %v4629 = vld [vmem:[%s53] sm:$0xff]
    %v4630 = vld [vmem:[%s53 + $0x8] sm:$0xff]
    %v4631 = vld [vmem:[%s53 + $0x10] sm:$0xff]
    %v4632 = vld [vmem:[%s53 + $0x18] sm:$0xff]
    %v4633 = vld [vmem:[%s53 + $0x20] sm:$0xff]
    %v4634 = vld [vmem:[%s53 + $0x28] sm:$0xff]
    %v4635 = vld [vmem:[%s53 + $0x30] sm:$0xff]
    %v4636 = vld [vmem:[%s53 + $0x38] sm:$0xff]
    %v4637 = vld [vmem:[%s55] sm:$0x1]
    %v4639 = vlaneseq
    %v4640 = vshrl.u32 %v4639, 7
    %v4641 = vsub.s32 0, %v4640
    %v4642 = vrot.slane %v4637, %v4641
    %v4645 = vsel %vm777, %v4628, 0
    %4647 = vmatprep.subr.mxu0 0.0
    %4648 = vmatpush1.msra.mxu0 %v4629
    %4649 = vmatprep.subr.mxu0 0.0
    %4650 = vmatpush1.msra.mxu0 %v4630
    %4651 = vmatprep.subr.mxu0 0.0
    %4652 = vmatpush1.msra.mxu0 %v4631
    %4653 = vmatprep.subr.mxu0 0.0
    %4654 = vmatpush1.msra.mxu0 %v4632
    %4655 = vmatprep.subr.mxu0 0.0
    %4656 = vmatpush1.msra.mxu0 %v4633
    %4657 = vmatprep.subr.mxu0 0.0
    %4658 = vmatpush1.msra.mxu0 %v4634
    %4659 = vmatprep.subr.mxu0 0.0
    %4660 = vmatpush1.msra.mxu0 %v4635
    %4661 = vmatprep.subr.mxu0 0.0
    %4662 = vmatpush1.msra.mxu0 %v4636
    %4663 = vmatprep.subr.mxu0 0.0
    %4664 = vmatpush1.msra.mxu0 0.0
    %4665 = vmatprep.subr.mxu0 0.0
    %4666 = vmatpush1.msra.mxu0 0.0
    %4667 = vmatprep.subr.mxu0 0.0
    %4668 = vmatpush1.msra.mxu0 0.0
    %4669 = vmatprep.subr.mxu0 0.0
    %4670 = vmatpush1.msra.mxu0 0.0
    %4671 = vmatprep.subr.mxu0 0.0
    %4672 = vmatpush1.msra.mxu0 0.0
    %4673 = vmatprep.subr.mxu0 0.0
    %4674 = vmatpush1.msra.mxu0 0.0
    %4675 = vmatprep.subr.mxu0 0.0
    %4676 = vmatpush1.msra.mxu0 0.0
    %4677 = vmatprep.subr.mxu0 0.0
    %4678 = vmatpush1.msra.mxu0 0.0
    %4679 = vmatprep.subr.mxu0 0.0
    %4680 = vmatpush1.msra.mxu0 0.0
    %4681 = vmatprep.subr.mxu0 0.0
    %4682 = vmatpush1.msra.mxu0 0.0
    %4683 = vmatprep.subr.mxu0 0.0
    %4684 = vmatpush1.msra.mxu0 0.0
    %4685 = vmatprep.subr.mxu0 0.0
    %4686 = vmatpush1.msra.mxu0 0.0
    %4687 = vmatprep.subr.mxu0 0.0
    %4688 = vmatpush1.msra.mxu0 0.0
    %4689 = vmatprep.subr.mxu0 0.0
    %4690 = vmatpush1.msra.mxu0 0.0
    %4691 = vmatprep.subr.mxu0 0.0
    %4692 = vmatpush1.msra.mxu0 0.0
    %4693 = vmatprep.subr.mxu0 0.0
    %4694 = vmatpush1.msra.mxu0 0.0
    %4695 = vmatprep.subr.mxu0 0.0
    %4696 = vmatpush1.msra.mxu0 0.0
    %4697 = vmatprep.subr.mxu0 0.0
    %4698 = vmatpush1.msra.mxu0 0.0
    %4699 = vmatprep.subr.mxu0 0.0
    %4700 = vmatpush1.msra.mxu0 0.0
    %4701 = vmatprep.subr.mxu0 0.0
    %4702 = vmatpush1.msra.mxu0 0.0
    %4703 = vmatprep.subr.mxu0 0.0
    %4704 = vmatpush1.msra.mxu0 0.0
    %4705 = vmatprep.subr.mxu0 0.0
    %4706 = vmatpush1.msra.mxu0 0.0
    %4707 = vmatprep.subr.mxu0 0.0
    %4708 = vmatpush1.msra.mxu0 0.0
    %4709 = vmatprep.subr.mxu0 0.0
    %4710 = vmatpush1.msra.mxu0 0.0
    %4711 = vmatprep.mubr.f32.mxu0 0.0
    %4712 = vmatmul.mubr.f32.gmra.mrb[0].mxu0 %v4645
    %v4713 = vpop.f32.mrb[0].mxu0
    %v4714 = vadd.f32 %v4642, %v4713
    %v4715 = vpop.f32.mrb[0].mxu0
    %4716 = vdwg.mxu0
    %v4717 = vxor.u32 %v4714, 2147483648
    %v4718 = vmul.f32 %v4717, 1.442695
    %v4719 = vpow.pop %v4718
    %v4720 = vadd.f32 %v4719, 1.0
    %v4721 = vrcp.pop %v4720
    %v4722 = vmul.f32 1.0, %v4721
    %v4723 = vtanh.pop %v4714
    %v4724 = vmul.f32 %v4722, %v3961
    %4726 = vrot.lane.b32.xlu0 %v4723, 64
    %v4727 = vpop.permute.xlu0 %4726
    %v4729 = vmul.f32 %v4722, %v4727
    %4731 = vrot.lane.b32.xlu0 %v4729, 32
    %v4732 = vpop.permute.xlu0 %4731
    %v4734 = vadd.f32 %v4724, %v4732
    %v4735 = vtanh.pop %v4734
    %4737 = vrot.lane.b32.xlu0 %v4735, 64
    %v4738 = vpop.permute.xlu0 %4737
    %v4740 = vmul.f32 %v4722, %v4738
    %4742 = vrot.lane.b32.xlu0 %v4740, 32
    %v4743 = vpop.permute.xlu0 %4742
    %s4745 = scalar_lea.vmem [#allocation7], 8
    %4746 = vst.msk [vmem:[%s4745] sm:$0xff] %vm658, %v4743
    %s4747 = scalar_lea.vmem [#allocation4], 24
    %v4748 = vld [vmem:[%s4747] sm:$0xff]
    %v4749 = vld [vmem:[%s19] sm:$0xff]
    %v4750 = vld [vmem:[%s19 + $0x8] sm:$0xff]
    %v4751 = vld [vmem:[%s19 + $0x10] sm:$0xff]
    %v4752 = vld [vmem:[%s19 + $0x18] sm:$0xff]
    %v4753 = vsel %vm658, %v4078, 0
    %4755 = vmatprep.subr.mxu0 0.0
    %4756 = vmatpush1.msra.mxu0 %v4749
    %4757 = vmatprep.subr.mxu0 0.0
    %4758 = vmatpush1.msra.mxu0 %v4750
    %4759 = vmatprep.subr.mxu0 0.0
    %4760 = vmatpush1.msra.mxu0 %v4751
    %4761 = vmatprep.subr.mxu0 0.0
    %4762 = vmatpush1.msra.mxu0 %v4752
    %4763 = vmatprep.subr.mxu0 0.0
    %4764 = vmatpush1.msra.mxu0 0.0
    %4765 = vmatprep.subr.mxu0 0.0
    %4766 = vmatpush1.msra.mxu0 0.0
    %4767 = vmatprep.subr.mxu0 0.0
    %4768 = vmatpush1.msra.mxu0 0.0
    %4769 = vmatprep.subr.mxu0 0.0
    %4770 = vmatpush1.msra.mxu0 0.0
    %4771 = vmatprep.subr.mxu0 0.0
    %4772 = vmatpush1.msra.mxu0 0.0
    %4773 = vmatprep.subr.mxu0 0.0
    %4774 = vmatpush1.msra.mxu0 0.0
    %4775 = vmatprep.subr.mxu0 0.0
    %4776 = vmatpush1.msra.mxu0 0.0
    %4777 = vmatprep.subr.mxu0 0.0
    %4778 = vmatpush1.msra.mxu0 0.0
    %4779 = vmatprep.subr.mxu0 0.0
    %4780 = vmatpush1.msra.mxu0 0.0
    %4781 = vmatprep.subr.mxu0 0.0
    %4782 = vmatpush1.msra.mxu0 0.0
    %4783 = vmatprep.subr.mxu0 0.0
    %4784 = vmatpush1.msra.mxu0 0.0
    %4785 = vmatprep.subr.mxu0 0.0
    %4786 = vmatpush1.msra.mxu0 0.0
    %4787 = vmatprep.subr.mxu0 0.0
    %4788 = vmatpush1.msra.mxu0 0.0
    %4789 = vmatprep.subr.mxu0 0.0
    %4790 = vmatpush1.msra.mxu0 0.0
    %4791 = vmatprep.subr.mxu0 0.0
    %4792 = vmatpush1.msra.mxu0 0.0
    %4793 = vmatprep.subr.mxu0 0.0
    %4794 = vmatpush1.msra.mxu0 0.0
    %4795 = vmatprep.subr.mxu0 0.0
    %4796 = vmatpush1.msra.mxu0 0.0
    %4797 = vmatprep.subr.mxu0 0.0
    %4798 = vmatpush1.msra.mxu0 0.0
    %4799 = vmatprep.subr.mxu0 0.0
    %4800 = vmatpush1.msra.mxu0 0.0
    %4801 = vmatprep.subr.mxu0 0.0
    %4802 = vmatpush1.msra.mxu0 0.0
    %4803 = vmatprep.subr.mxu0 0.0
    %4804 = vmatpush1.msra.mxu0 0.0
    %4805 = vmatprep.subr.mxu0 0.0
    %4806 = vmatpush1.msra.mxu0 0.0
    %4807 = vmatprep.subr.mxu0 0.0
    %4808 = vmatpush1.msra.mxu0 0.0
    %4809 = vmatprep.subr.mxu0 0.0
    %4810 = vmatpush1.msra.mxu0 0.0
    %4811 = vmatprep.subr.mxu0 0.0
    %4812 = vmatpush1.msra.mxu0 0.0
    %4813 = vmatprep.subr.mxu0 0.0
    %4814 = vmatpush1.msra.mxu0 0.0
    %4815 = vmatprep.subr.mxu0 0.0
    %4816 = vmatpush1.msra.mxu0 0.0
    %4817 = vmatprep.subr.mxu0 0.0
    %4818 = vmatpush1.msra.mxu0 0.0
    %4819 = vmatprep.mubr.f32.mxu0 0.0
    %4820 = vmatmul.mubr.f32.gmra.mrb[0].mxu0 %v4753
    %v4821 = vpop.f32.mrb[0].mxu0
    %v4822 = vadd.f32 0.0, %v4821
    %v4823 = vpop.f32.mrb[0].mxu0
    %4824 = vdwg.mxu0
    %v4825 = vadd.f32 %v4748, %v4822
    %v4826 = vxor.u32 %v4825, 2147483648
    %v4827 = vmul.f32 %v4826, 1.442695
    %v4828 = vpow.pop %v4827
    %v4829 = vadd.f32 %v4828, 1.0
    %v4830 = vrcp.pop %v4829
    %v4831 = vmul.f32 1.0, %v4830
    %v4832 = vtanh.pop %v4825
    %v4833 = vmul.f32 %v4831, %v4069
    %4835 = vrot.lane.b32.xlu0 %v4832, 64
    %v4836 = vpop.permute.xlu0 %4835
    %v4838 = vmul.f32 %v4831, %v4836
    %4840 = vrot.lane.b32.xlu0 %v4838, 32
    %v4841 = vpop.permute.xlu0 %4840
    %v4843 = vadd.f32 %v4833, %v4841
    %v4844 = vtanh.pop %v4843
    %4846 = vrot.lane.b32.xlu0 %v4844, 64
    %v4847 = vpop.permute.xlu0 %4846
    %v4849 = vmul.f32 %v4831, %v4847
    %4851 = vrot.lane.b32.xlu0 %v4849, 32
    %v4852 = vpop.permute.xlu0 %4851
    %4854 = vrot.lane.b32.xlu0 %v4195, 64
    %v4855 = vpop.permute.xlu0 %4854
    %v4857 = vsel %vm658, %v4852, %v4855
    %v4858 = vld [vmem:[%s23] sm:$0xff]
    %v4859 = vld [vmem:[%s23 + $0x8] sm:$0xff]
    %v4860 = vld [vmem:[%s23 + $0x10] sm:$0xff]
    %v4861 = vld [vmem:[%s23 + $0x18] sm:$0xff]
    %v4862 = vld [vmem:[%s23 + $0x20] sm:$0xff]
    %v4863 = vld [vmem:[%s23 + $0x28] sm:$0xff]
    %v4864 = vld [vmem:[%s23 + $0x30] sm:$0xff]
    %v4865 = vld [vmem:[%s23 + $0x38] sm:$0xff]
    %v4866 = vld [vmem:[%s25] sm:$0x1]
    %v4868 = vlaneseq
    %v4869 = vshrl.u32 %v4868, 7
    %v4870 = vsub.s32 0, %v4869
    %v4871 = vrot.slane %v4866, %v4870
    %v4874 = vsel %vm777, %v4857, 0
    %4876 = vmatprep.subr.mxu0 0.0
    %4877 = vmatpush1.msra.mxu0 %v4858
    %4878 = vmatprep.subr.mxu0 0.0
    %4879 = vmatpush1.msra.mxu0 %v4859
    %4880 = vmatprep.subr.mxu0 0.0
    %4881 = vmatpush1.msra.mxu0 %v4860
    %4882 = vmatprep.subr.mxu0 0.0
    %4883 = vmatpush1.msra.mxu0 %v4861
    %4884 = vmatprep.subr.mxu0 0.0
    %4885 = vmatpush1.msra.mxu0 %v4862
    %4886 = vmatprep.subr.mxu0 0.0
    %4887 = vmatpush1.msra.mxu0 %v4863
    %4888 = vmatprep.subr.mxu0 0.0
    %4889 = vmatpush1.msra.mxu0 %v4864
    %4890 = vmatprep.subr.mxu0 0.0
    %4891 = vmatpush1.msra.mxu0 %v4865
    %4892 = vmatprep.subr.mxu0 0.0
    %4893 = vmatpush1.msra.mxu0 0.0
    %4894 = vmatprep.subr.mxu0 0.0
    %4895 = vmatpush1.msra.mxu0 0.0
    %4896 = vmatprep.subr.mxu0 0.0
    %4897 = vmatpush1.msra.mxu0 0.0
    %4898 = vmatprep.subr.mxu0 0.0
    %4899 = vmatpush1.msra.mxu0 0.0
    %4900 = vmatprep.subr.mxu0 0.0
    %4901 = vmatpush1.msra.mxu0 0.0
    %4902 = vmatprep.subr.mxu0 0.0
    %4903 = vmatpush1.msra.mxu0 0.0
    %4904 = vmatprep.subr.mxu0 0.0
    %4905 = vmatpush1.msra.mxu0 0.0
    %4906 = vmatprep.subr.mxu0 0.0
    %4907 = vmatpush1.msra.mxu0 0.0
    %4908 = vmatprep.subr.mxu0 0.0
    %4909 = vmatpush1.msra.mxu0 0.0
    %4910 = vmatprep.subr.mxu0 0.0
    %4911 = vmatpush1.msra.mxu0 0.0
    %4912 = vmatprep.subr.mxu0 0.0
    %4913 = vmatpush1.msra.mxu0 0.0
    %4914 = vmatprep.subr.mxu0 0.0
    %4915 = vmatpush1.msra.mxu0 0.0
    %4916 = vmatprep.subr.mxu0 0.0
    %4917 = vmatpush1.msra.mxu0 0.0
    %4918 = vmatprep.subr.mxu0 0.0
    %4919 = vmatpush1.msra.mxu0 0.0
    %4920 = vmatprep.subr.mxu0 0.0
    %4921 = vmatpush1.msra.mxu0 0.0
    %4922 = vmatprep.subr.mxu0 0.0
    %4923 = vmatpush1.msra.mxu0 0.0
    %4924 = vmatprep.subr.mxu0 0.0
    %4925 = vmatpush1.msra.mxu0 0.0
    %4926 = vmatprep.subr.mxu0 0.0
    %4927 = vmatpush1.msra.mxu0 0.0
    %4928 = vmatprep.subr.mxu0 0.0
    %4929 = vmatpush1.msra.mxu0 0.0
    %4930 = vmatprep.subr.mxu0 0.0
    %4931 = vmatpush1.msra.mxu0 0.0
    %4932 = vmatprep.subr.mxu0 0.0
    %4933 = vmatpush1.msra.mxu0 0.0
    %4934 = vmatprep.subr.mxu0 0.0
    %4935 = vmatpush1.msra.mxu0 0.0
    %4936 = vmatprep.subr.mxu0 0.0
    %4937 = vmatpush1.msra.mxu0 0.0
    %4938 = vmatprep.subr.mxu0 0.0
    %4939 = vmatpush1.msra.mxu0 0.0
    %4940 = vmatprep.mubr.f32.mxu0 0.0
    %4941 = vmatmul.mubr.f32.gmra.mrb[0].mxu0 %v4874
    %v4942 = vpop.f32.mrb[0].mxu0
    %v4943 = vadd.f32 %v4871, %v4942
    %v4944 = vpop.f32.mrb[0].mxu0
    %4945 = vdwg.mxu0
    %v4946 = vxor.u32 %v4943, 2147483648
    %v4947 = vmul.f32 %v4946, 1.442695
    %v4948 = vpow.pop %v4947
    %v4949 = vadd.f32 %v4948, 1.0
    %v4950 = vrcp.pop %v4949
    %v4951 = vmul.f32 1.0, %v4950
    %v4952 = vtanh.pop %v4943
    %v4953 = vmul.f32 %v4951, %v4189
    %4955 = vrot.lane.b32.xlu0 %v4952, 64
    %v4956 = vpop.permute.xlu0 %4955
    %v4958 = vmul.f32 %v4951, %v4956
    %4960 = vrot.lane.b32.xlu0 %v4958, 32
    %v4961 = vpop.permute.xlu0 %4960
    %v4963 = vadd.f32 %v4953, %v4961
    %v4964 = vtanh.pop %v4963
    %4966 = vrot.lane.b32.xlu0 %v4964, 64
    %v4967 = vpop.permute.xlu0 %4966
    %v4969 = vmul.f32 %v4951, %v4967
    %v4970 = vld [vmem:[%s27] sm:$0xff]
    %v4971 = vld [vmem:[%s27 + $0x8] sm:$0xff]
    %v4972 = vld [vmem:[%s27 + $0x10] sm:$0xff]
    %v4973 = vld [vmem:[%s27 + $0x18] sm:$0xff]
    %v4974 = vld [vmem:[#allocation8] sm:$0x1]
    %v4976 = vlaneseq
    %v4977 = vshrl.u32 %v4976, 7
    %v4978 = vsub.s32 0, %v4977
    %v4979 = vrot.slane %v4974, %v4978
    %4982 = vrot.lane.b32.xlu0 %v4969, 32
    %v4983 = vpop.permute.xlu0 %4982
    %v4984 = vsel %vm658, %v4983, 0
    %4986 = vmatprep.subr.mxu0 0.0
    %4987 = vmatpush1.msra.mxu0 %v4970
    %4988 = vmatprep.subr.mxu0 0.0
    %4989 = vmatpush1.msra.mxu0 %v4971
    %4990 = vmatprep.subr.mxu0 0.0
    %4991 = vmatpush1.msra.mxu0 %v4972
    %4992 = vmatprep.subr.mxu0 0.0
    %4993 = vmatpush1.msra.mxu0 %v4973
    %4994 = vmatprep.subr.mxu0 0.0
    %4995 = vmatpush1.msra.mxu0 0.0
    %4996 = vmatprep.subr.mxu0 0.0
    %4997 = vmatpush1.msra.mxu0 0.0
    %4998 = vmatprep.subr.mxu0 0.0
    %4999 = vmatpush1.msra.mxu0 0.0
    %5000 = vmatprep.subr.mxu0 0.0
    %5001 = vmatpush1.msra.mxu0 0.0
    %5002 = vmatprep.subr.mxu0 0.0
    %5003 = vmatpush1.msra.mxu0 0.0
    %5004 = vmatprep.subr.mxu0 0.0
    %5005 = vmatpush1.msra.mxu0 0.0
    %5006 = vmatprep.subr.mxu0 0.0
    %5007 = vmatpush1.msra.mxu0 0.0
    %5008 = vmatprep.subr.mxu0 0.0
    %5009 = vmatpush1.msra.mxu0 0.0
    %5010 = vmatprep.subr.mxu0 0.0
    %5011 = vmatpush1.msra.mxu0 0.0
    %5012 = vmatprep.subr.mxu0 0.0
    %5013 = vmatpush1.msra.mxu0 0.0
    %5014 = vmatprep.subr.mxu0 0.0
    %5015 = vmatpush1.msra.mxu0 0.0
    %5016 = vmatprep.subr.mxu0 0.0
    %5017 = vmatpush1.msra.mxu0 0.0
    %5018 = vmatprep.subr.mxu0 0.0
    %5019 = vmatpush1.msra.mxu0 0.0
    %5020 = vmatprep.subr.mxu0 0.0
    %5021 = vmatpush1.msra.mxu0 0.0
    %5022 = vmatprep.subr.mxu0 0.0
    %5023 = vmatpush1.msra.mxu0 0.0
    %5024 = vmatprep.subr.mxu0 0.0
    %5025 = vmatpush1.msra.mxu0 0.0
    %5026 = vmatprep.subr.mxu0 0.0
    %5027 = vmatpush1.msra.mxu0 0.0
    %5028 = vmatprep.subr.mxu0 0.0
    %5029 = vmatpush1.msra.mxu0 0.0
    %5030 = vmatprep.subr.mxu0 0.0
    %5031 = vmatpush1.msra.mxu0 0.0
    %5032 = vmatprep.subr.mxu0 0.0
    %5033 = vmatpush1.msra.mxu0 0.0
    %5034 = vmatprep.subr.mxu0 0.0
    %5035 = vmatpush1.msra.mxu0 0.0
    %5036 = vmatprep.subr.mxu0 0.0
    %5037 = vmatpush1.msra.mxu0 0.0
    %5038 = vmatprep.subr.mxu0 0.0
    %5039 = vmatpush1.msra.mxu0 0.0
    %5040 = vmatprep.subr.mxu0 0.0
    %5041 = vmatpush1.msra.mxu0 0.0
    %5042 = vmatprep.subr.mxu0 0.0
    %5043 = vmatpush1.msra.mxu0 0.0
    %5044 = vmatprep.subr.mxu0 0.0
    %5045 = vmatpush1.msra.mxu0 0.0
    %5046 = vmatprep.subr.mxu0 0.0
    %5047 = vmatpush1.msra.mxu0 0.0
    %5048 = vmatprep.subr.mxu0 0.0
    %5049 = vmatpush1.msra.mxu0 0.0
    %5050 = vmatprep.mubr.f32.mxu0 0.0
    %5051 = vmatmul.mubr.f32.gmra.mrb[0].mxu0 %v4984
    %v5052 = vpop.f32.mrb[0].mxu0
    %v5053 = vadd.f32 %v4979, %v5052
    %v5054 = vpop.f32.mrb[0].mxu0
    %5055 = vdwg.mxu0
    %s5056 = scalar_lea.vmem %s5, 24
    %v5057 = vld [vmem:[%s5056] sm:$0xff]
    %v5058 = vld [vmem:[%s31] sm:$0xf]
    %v5059 = vld [vmem:[%s33] sm:$0x3]
    %v5061 = vsel %vm3043, %v5053, 0
    %v5064 = vsel %vm3047, %v5059, 0
    %5066 = vmatprep.subr.mxu0 0.0
    %5067 = vmatpush1.msra.mxu0 %v5064
    %5068 = vmatprep.subr.mxu0 0.0
    %5069 = vmatpush1.msra.mxu0 0.0
    %5070 = vmatprep.subr.mxu0 0.0
    %5071 = vmatpush1.msra.mxu0 0.0
    %5072 = vmatprep.subr.mxu0 0.0
    %5073 = vmatpush1.msra.mxu0 0.0
    %5074 = vmatprep.subr.mxu0 0.0
    %5075 = vmatpush1.msra.mxu0 0.0
    %5076 = vmatprep.subr.mxu0 0.0
    %5077 = vmatpush1.msra.mxu0 0.0
    %5078 = vmatprep.subr.mxu0 0.0
    %5079 = vmatpush1.msra.mxu0 0.0
    %5080 = vmatprep.subr.mxu0 0.0
    %5081 = vmatpush1.msra.mxu0 0.0
    %5082 = vmatprep.subr.mxu0 0.0
    %5083 = vmatpush1.msra.mxu0 0.0
    %5084 = vmatprep.subr.mxu0 0.0
    %5085 = vmatpush1.msra.mxu0 0.0
    %5086 = vmatprep.subr.mxu0 0.0
    %5087 = vmatpush1.msra.mxu0 0.0
    %5088 = vmatprep.subr.mxu0 0.0
    %5089 = vmatpush1.msra.mxu0 0.0
    %5090 = vmatprep.subr.mxu0 0.0
    %5091 = vmatpush1.msra.mxu0 0.0
    %5092 = vmatprep.subr.mxu0 0.0
    %5093 = vmatpush1.msra.mxu0 0.0
    %5094 = vmatprep.subr.mxu0 0.0
    %5095 = vmatpush1.msra.mxu0 0.0
    %5096 = vmatprep.subr.mxu0 0.0
    %5097 = vmatpush1.msra.mxu0 0.0
    %5098 = vmatprep.subr.mxu0 0.0
    %5099 = vmatpush1.msra.mxu0 0.0
    %5100 = vmatprep.subr.mxu0 0.0
    %5101 = vmatpush1.msra.mxu0 0.0
    %5102 = vmatprep.subr.mxu0 0.0
    %5103 = vmatpush1.msra.mxu0 0.0
    %5104 = vmatprep.subr.mxu0 0.0
    %5105 = vmatpush1.msra.mxu0 0.0
    %5106 = vmatprep.subr.mxu0 0.0
    %5107 = vmatpush1.msra.mxu0 0.0
    %5108 = vmatprep.subr.mxu0 0.0
    %5109 = vmatpush1.msra.mxu0 0.0
    %5110 = vmatprep.subr.mxu0 0.0
    %5111 = vmatpush1.msra.mxu0 0.0
    %5112 = vmatprep.subr.mxu0 0.0
    %5113 = vmatpush1.msra.mxu0 0.0
    %5114 = vmatprep.subr.mxu0 0.0
    %5115 = vmatpush1.msra.mxu0 0.0
    %5116 = vmatprep.subr.mxu0 0.0
    %5117 = vmatpush1.msra.mxu0 0.0
    %5118 = vmatprep.subr.mxu0 0.0
    %5119 = vmatpush1.msra.mxu0 0.0
    %5120 = vmatprep.subr.mxu0 0.0
    %5121 = vmatpush1.msra.mxu0 0.0
    %5122 = vmatprep.subr.mxu0 0.0
    %5123 = vmatpush1.msra.mxu0 0.0
    %5124 = vmatprep.subr.mxu0 0.0
    %5125 = vmatpush1.msra.mxu0 0.0
    %5126 = vmatprep.subr.mxu0 0.0
    %5127 = vmatpush1.msra.mxu0 0.0
    %5128 = vmatprep.subr.mxu0 0.0
    %5129 = vmatpush1.msra.mxu0 0.0
    %5130 = vmatprep.mubr.f32.mxu0 0.0
    %5131 = vmatmul.mubr.f32.gmra.mrb[0].mxu0 %v5061
    %v5132 = vpop.f32.mrb[0].mxu0
    %v5133 = vadd.f32 0.0, %v5132
    %v5134 = vpop.f32.mrb[0].mxu0
    %5135 = vdwg.mxu0
    %v5137 = vsel %vm3121, %v5057, 0
    %v5140 = vsel %vm3125, %v5058, 0
    %5142 = vmatprep.subr.mxu0 0.0
    %5143 = vmatpush1.msra.mxu0 %v5140
    %5144 = vmatprep.subr.mxu0 0.0
    %5145 = vmatpush1.msra.mxu0 0.0
    %5146 = vmatprep.subr.mxu0 0.0
    %5147 = vmatpush1.msra.mxu0 0.0
    %5148 = vmatprep.subr.mxu0 0.0
    %5149 = vmatpush1.msra.mxu0 0.0
    %5150 = vmatprep.subr.mxu0 0.0
    %5151 = vmatpush1.msra.mxu0 0.0
    %5152 = vmatprep.subr.mxu0 0.0
    %5153 = vmatpush1.msra.mxu0 0.0
    %5154 = vmatprep.subr.mxu0 0.0
    %5155 = vmatpush1.msra.mxu0 0.0
    %5156 = vmatprep.subr.mxu0 0.0
    %5157 = vmatpush1.msra.mxu0 0.0
    %5158 = vmatprep.subr.mxu0 0.0
    %5159 = vmatpush1.msra.mxu0 0.0
    %5160 = vmatprep.subr.mxu0 0.0
    %5161 = vmatpush1.msra.mxu0 0.0
    %5162 = vmatprep.subr.mxu0 0.0
    %5163 = vmatpush1.msra.mxu0 0.0
    %5164 = vmatprep.subr.mxu0 0.0
    %5165 = vmatpush1.msra.mxu0 0.0
    %5166 = vmatprep.subr.mxu0 0.0
    %5167 = vmatpush1.msra.mxu0 0.0
    %5168 = vmatprep.subr.mxu0 0.0
    %5169 = vmatpush1.msra.mxu0 0.0
    %5170 = vmatprep.subr.mxu0 0.0
    %5171 = vmatpush1.msra.mxu0 0.0
    %5172 = vmatprep.subr.mxu0 0.0
    %5173 = vmatpush1.msra.mxu0 0.0
    %5174 = vmatprep.subr.mxu0 0.0
    %5175 = vmatpush1.msra.mxu0 0.0
    %5176 = vmatprep.subr.mxu0 0.0
    %5177 = vmatpush1.msra.mxu0 0.0
    %5178 = vmatprep.subr.mxu0 0.0
    %5179 = vmatpush1.msra.mxu0 0.0
    %5180 = vmatprep.subr.mxu0 0.0
    %5181 = vmatpush1.msra.mxu0 0.0
    %5182 = vmatprep.subr.mxu0 0.0
    %5183 = vmatpush1.msra.mxu0 0.0
    %5184 = vmatprep.subr.mxu0 0.0
    %5185 = vmatpush1.msra.mxu0 0.0
    %5186 = vmatprep.subr.mxu0 0.0
    %5187 = vmatpush1.msra.mxu0 0.0
    %5188 = vmatprep.subr.mxu0 0.0
    %5189 = vmatpush1.msra.mxu0 0.0
    %5190 = vmatprep.subr.mxu0 0.0
    %5191 = vmatpush1.msra.mxu0 0.0
    %5192 = vmatprep.subr.mxu0 0.0
    %5193 = vmatpush1.msra.mxu0 0.0
    %5194 = vmatprep.subr.mxu0 0.0
    %5195 = vmatpush1.msra.mxu0 0.0
    %5196 = vmatprep.subr.mxu0 0.0
    %5197 = vmatpush1.msra.mxu0 0.0
    %5198 = vmatprep.subr.mxu0 0.0
    %5199 = vmatpush1.msra.mxu0 0.0
    %5200 = vmatprep.subr.mxu0 0.0
    %5201 = vmatpush1.msra.mxu0 0.0
    %5202 = vmatprep.subr.mxu0 0.0
    %5203 = vmatpush1.msra.mxu0 0.0
    %5204 = vmatprep.subr.mxu0 0.0
    %5205 = vmatpush1.msra.mxu0 0.0
    %5206 = vmatprep.mubr.f32.mxu0 0.0
    %5207 = vmatmul.mubr.f32.gmra.mrb[0].mxu0 %v5137
    %v5208 = vpop.f32.mrb[0].mxu0
    %v5209 = vadd.f32 %v5133, %v5208
    %v5210 = vpop.f32.mrb[0].mxu0
    %5211 = vdwg.mxu0
    %s5212 = scalar_lea.vmem [#allocation6], 24
    %5213 = vst.msk [vmem:[%s5212] sm:$0xff] %vm3121, %v5209
    %s5214 = scalar_lea.vmem [#allocation5], 16
    %v5215 = vld [vmem:[%s5214] sm:$0xff]
    %v5216 = vld [vmem:[%s47] sm:$0xf]
    %v5218 = vsel %vm3121, %v4435, 0
    %v5221 = vsel %vm3125, %v5216, 0
    %5223 = vmatprep.subr.mxu0 0.0
    %5224 = vmatpush1.msra.mxu0 %v5221
    %5225 = vmatprep.subr.mxu0 0.0
    %5226 = vmatpush1.msra.mxu0 0.0
    %5227 = vmatprep.subr.mxu0 0.0
    %5228 = vmatpush1.msra.mxu0 0.0
    %5229 = vmatprep.subr.mxu0 0.0
    %5230 = vmatpush1.msra.mxu0 0.0
    %5231 = vmatprep.subr.mxu0 0.0
    %5232 = vmatpush1.msra.mxu0 0.0
    %5233 = vmatprep.subr.mxu0 0.0
    %5234 = vmatpush1.msra.mxu0 0.0
    %5235 = vmatprep.subr.mxu0 0.0
    %5236 = vmatpush1.msra.mxu0 0.0
    %5237 = vmatprep.subr.mxu0 0.0
    %5238 = vmatpush1.msra.mxu0 0.0
    %5239 = vmatprep.subr.mxu0 0.0
    %5240 = vmatpush1.msra.mxu0 0.0
    %5241 = vmatprep.subr.mxu0 0.0
    %5242 = vmatpush1.msra.mxu0 0.0
    %5243 = vmatprep.subr.mxu0 0.0
    %5244 = vmatpush1.msra.mxu0 0.0
    %5245 = vmatprep.subr.mxu0 0.0
    %5246 = vmatpush1.msra.mxu0 0.0
    %5247 = vmatprep.subr.mxu0 0.0
    %5248 = vmatpush1.msra.mxu0 0.0
    %5249 = vmatprep.subr.mxu0 0.0
    %5250 = vmatpush1.msra.mxu0 0.0
    %5251 = vmatprep.subr.mxu0 0.0
    %5252 = vmatpush1.msra.mxu0 0.0
    %5253 = vmatprep.subr.mxu0 0.0
    %5254 = vmatpush1.msra.mxu0 0.0
    %5255 = vmatprep.subr.mxu0 0.0
    %5256 = vmatpush1.msra.mxu0 0.0
    %5257 = vmatprep.subr.mxu0 0.0
    %5258 = vmatpush1.msra.mxu0 0.0
    %5259 = vmatprep.subr.mxu0 0.0
    %5260 = vmatpush1.msra.mxu0 0.0
    %5261 = vmatprep.subr.mxu0 0.0
    %5262 = vmatpush1.msra.mxu0 0.0
    %5263 = vmatprep.subr.mxu0 0.0
    %5264 = vmatpush1.msra.mxu0 0.0
    %5265 = vmatprep.subr.mxu0 0.0
    %5266 = vmatpush1.msra.mxu0 0.0
    %5267 = vmatprep.subr.mxu0 0.0
    %5268 = vmatpush1.msra.mxu0 0.0
    %5269 = vmatprep.subr.mxu0 0.0
    %5270 = vmatpush1.msra.mxu0 0.0
    %5271 = vmatprep.subr.mxu0 0.0
    %5272 = vmatpush1.msra.mxu0 0.0
    %5273 = vmatprep.subr.mxu0 0.0
    %5274 = vmatpush1.msra.mxu0 0.0
    %5275 = vmatprep.subr.mxu0 0.0
    %5276 = vmatpush1.msra.mxu0 0.0
    %5277 = vmatprep.subr.mxu0 0.0
    %5278 = vmatpush1.msra.mxu0 0.0
    %5279 = vmatprep.subr.mxu0 0.0
    %5280 = vmatpush1.msra.mxu0 0.0
    %5281 = vmatprep.subr.mxu0 0.0
    %5282 = vmatpush1.msra.mxu0 0.0
    %5283 = vmatprep.subr.mxu0 0.0
    %5284 = vmatpush1.msra.mxu0 0.0
    %5285 = vmatprep.subr.mxu0 0.0
    %5286 = vmatpush1.msra.mxu0 0.0
    %5287 = vmatprep.mubr.f32.mxu0 0.0
    %5288 = vmatmul.mubr.f32.gmra.mrb[0].mxu0 %v5218
    %v5289 = vpop.f32.mrb[0].mxu0
    %v5290 = vadd.f32 0.0, %v5289
    %v5291 = vpop.f32.mrb[0].mxu0
    %5292 = vdwg.mxu0
    %v5293 = vadd.f32 %v5215, %v5290
    %v5294 = vld [vmem:[%s49] sm:$0xff]
    %v5295 = vld [vmem:[%s49 + $0x8] sm:$0xff]
    %v5296 = vld [vmem:[%s49 + $0x10] sm:$0xff]
    %v5297 = vld [vmem:[%s49 + $0x18] sm:$0xff]
    %v5298 = vsel %vm658, %v4623, 0
    %5300 = vmatprep.subr.mxu0 0.0
    %5301 = vmatpush1.msra.mxu0 %v5294
    %5302 = vmatprep.subr.mxu0 0.0
    %5303 = vmatpush1.msra.mxu0 %v5295
    %5304 = vmatprep.subr.mxu0 0.0
    %5305 = vmatpush1.msra.mxu0 %v5296
    %5306 = vmatprep.subr.mxu0 0.0
    %5307 = vmatpush1.msra.mxu0 %v5297
    %5308 = vmatprep.subr.mxu0 0.0
    %5309 = vmatpush1.msra.mxu0 0.0
    %5310 = vmatprep.subr.mxu0 0.0
    %5311 = vmatpush1.msra.mxu0 0.0
    %5312 = vmatprep.subr.mxu0 0.0
    %5313 = vmatpush1.msra.mxu0 0.0
    %5314 = vmatprep.subr.mxu0 0.0
    %5315 = vmatpush1.msra.mxu0 0.0
    %5316 = vmatprep.subr.mxu0 0.0
    %5317 = vmatpush1.msra.mxu0 0.0
    %5318 = vmatprep.subr.mxu0 0.0
    %5319 = vmatpush1.msra.mxu0 0.0
    %5320 = vmatprep.subr.mxu0 0.0
    %5321 = vmatpush1.msra.mxu0 0.0
    %5322 = vmatprep.subr.mxu0 0.0
    %5323 = vmatpush1.msra.mxu0 0.0
    %5324 = vmatprep.subr.mxu0 0.0
    %5325 = vmatpush1.msra.mxu0 0.0
    %5326 = vmatprep.subr.mxu0 0.0
    %5327 = vmatpush1.msra.mxu0 0.0
    %5328 = vmatprep.subr.mxu0 0.0
    %5329 = vmatpush1.msra.mxu0 0.0
    %5330 = vmatprep.subr.mxu0 0.0
    %5331 = vmatpush1.msra.mxu0 0.0
    %5332 = vmatprep.subr.mxu0 0.0
    %5333 = vmatpush1.msra.mxu0 0.0
    %5334 = vmatprep.subr.mxu0 0.0
    %5335 = vmatpush1.msra.mxu0 0.0
    %5336 = vmatprep.subr.mxu0 0.0
    %5337 = vmatpush1.msra.mxu0 0.0
    %5338 = vmatprep.subr.mxu0 0.0
    %5339 = vmatpush1.msra.mxu0 0.0
    %5340 = vmatprep.subr.mxu0 0.0
    %5341 = vmatpush1.msra.mxu0 0.0
    %5342 = vmatprep.subr.mxu0 0.0
    %5343 = vmatpush1.msra.mxu0 0.0
    %5344 = vmatprep.subr.mxu0 0.0
    %5345 = vmatpush1.msra.mxu0 0.0
    %5346 = vmatprep.subr.mxu0 0.0
    %5347 = vmatpush1.msra.mxu0 0.0
    %5348 = vmatprep.subr.mxu0 0.0
    %5349 = vmatpush1.msra.mxu0 0.0
    %5350 = vmatprep.subr.mxu0 0.0
    %5351 = vmatpush1.msra.mxu0 0.0
    %5352 = vmatprep.subr.mxu0 0.0
    %5353 = vmatpush1.msra.mxu0 0.0
    %5354 = vmatprep.subr.mxu0 0.0
    %5355 = vmatpush1.msra.mxu0 0.0
    %5356 = vmatprep.subr.mxu0 0.0
    %5357 = vmatpush1.msra.mxu0 0.0
    %5358 = vmatprep.subr.mxu0 0.0
    %5359 = vmatpush1.msra.mxu0 0.0
    %5360 = vmatprep.subr.mxu0 0.0
    %5361 = vmatpush1.msra.mxu0 0.0
    %5362 = vmatprep.subr.mxu0 0.0
    %5363 = vmatpush1.msra.mxu0 0.0
    %5364 = vmatprep.mubr.f32.mxu0 0.0
    %5365 = vmatmul.mubr.f32.gmra.mrb[0].mxu0 %v5298
    %v5366 = vpop.f32.mrb[0].mxu0
    %v5367 = vadd.f32 0.0, %v5366
    %v5368 = vpop.f32.mrb[0].mxu0
    %5369 = vdwg.mxu0
    %v5370 = vadd.f32 %v5293, %v5367
    %v5371 = vxor.u32 %v5370, 2147483648
    %v5372 = vmul.f32 %v5371, 1.442695
    %v5373 = vpow.pop %v5372
    %v5374 = vadd.f32 %v5373, 1.0
    %v5375 = vrcp.pop %v5374
    %v5376 = vmul.f32 1.0, %v5375
    %v5377 = vtanh.pop %v5370
    %v5378 = vmul.f32 %v5376, %v4614
    %5380 = vrot.lane.b32.xlu0 %v5377, 64
    %v5381 = vpop.permute.xlu0 %5380
    %v5383 = vmul.f32 %v5376, %v5381
    %5385 = vrot.lane.b32.xlu0 %v5383, 32
    %v5386 = vpop.permute.xlu0 %5385
    %v5388 = vadd.f32 %v5378, %v5386
    %v5389 = vtanh.pop %v5388
    %5391 = vrot.lane.b32.xlu0 %v5389, 64
    %v5392 = vpop.permute.xlu0 %5391
    %v5394 = vmul.f32 %v5376, %v5392
    %5396 = vrot.lane.b32.xlu0 %v5394, 32
    %v5397 = vpop.permute.xlu0 %5396
    %5399 = vrot.lane.b32.xlu0 %v4740, 64
    %v5400 = vpop.permute.xlu0 %5399
    %v5402 = vsel %vm658, %v5397, %v5400
    %v5403 = vld [vmem:[%s53] sm:$0xff]
    %v5404 = vld [vmem:[%s53 + $0x8] sm:$0xff]
    %v5405 = vld [vmem:[%s53 + $0x10] sm:$0xff]
    %v5406 = vld [vmem:[%s53 + $0x18] sm:$0xff]
    %v5407 = vld [vmem:[%s53 + $0x20] sm:$0xff]
    %v5408 = vld [vmem:[%s53 + $0x28] sm:$0xff]
    %v5409 = vld [vmem:[%s53 + $0x30] sm:$0xff]
    %v5410 = vld [vmem:[%s53 + $0x38] sm:$0xff]
    %v5411 = vld [vmem:[%s55] sm:$0x1]
    %v5413 = vlaneseq
    %v5414 = vshrl.u32 %v5413, 7
    %v5415 = vsub.s32 0, %v5414
    %v5416 = vrot.slane %v5411, %v5415
    %v5419 = vsel %vm777, %v5402, 0
    %5421 = vmatprep.subr.mxu0 0.0
    %5422 = vmatpush1.msra.mxu0 %v5403
    %5423 = vmatprep.subr.mxu0 0.0
    %5424 = vmatpush1.msra.mxu0 %v5404
    %5425 = vmatprep.subr.mxu0 0.0
    %5426 = vmatpush1.msra.mxu0 %v5405
    %5427 = vmatprep.subr.mxu0 0.0
    %5428 = vmatpush1.msra.mxu0 %v5406
    %5429 = vmatprep.subr.mxu0 0.0
    %5430 = vmatpush1.msra.mxu0 %v5407
    %5431 = vmatprep.subr.mxu0 0.0
    %5432 = vmatpush1.msra.mxu0 %v5408
    %5433 = vmatprep.subr.mxu0 0.0
    %5434 = vmatpush1.msra.mxu0 %v5409
    %5435 = vmatprep.subr.mxu0 0.0
    %5436 = vmatpush1.msra.mxu0 %v5410
    %5437 = vmatprep.subr.mxu0 0.0
    %5438 = vmatpush1.msra.mxu0 0.0
    %5439 = vmatprep.subr.mxu0 0.0
    %5440 = vmatpush1.msra.mxu0 0.0
    %5441 = vmatprep.subr.mxu0 0.0
    %5442 = vmatpush1.msra.mxu0 0.0
    %5443 = vmatprep.subr.mxu0 0.0
    %5444 = vmatpush1.msra.mxu0 0.0
    %5445 = vmatprep.subr.mxu0 0.0
    %5446 = vmatpush1.msra.mxu0 0.0
    %5447 = vmatprep.subr.mxu0 0.0
    %5448 = vmatpush1.msra.mxu0 0.0
    %5449 = vmatprep.subr.mxu0 0.0
    %5450 = vmatpush1.msra.mxu0 0.0
    %5451 = vmatprep.subr.mxu0 0.0
    %5452 = vmatpush1.msra.mxu0 0.0
    %5453 = vmatprep.subr.mxu0 0.0
    %5454 = vmatpush1.msra.mxu0 0.0
    %5455 = vmatprep.subr.mxu0 0.0
    %5456 = vmatpush1.msra.mxu0 0.0
    %5457 = vmatprep.subr.mxu0 0.0
    %5458 = vmatpush1.msra.mxu0 0.0
    %5459 = vmatprep.subr.mxu0 0.0
    %5460 = vmatpush1.msra.mxu0 0.0
    %5461 = vmatprep.subr.mxu0 0.0
    %5462 = vmatpush1.msra.mxu0 0.0
    %5463 = vmatprep.subr.mxu0 0.0
    %5464 = vmatpush1.msra.mxu0 0.0
    %5465 = vmatprep.subr.mxu0 0.0
    %5466 = vmatpush1.msra.mxu0 0.0
    %5467 = vmatprep.subr.mxu0 0.0
    %5468 = vmatpush1.msra.mxu0 0.0
    %5469 = vmatprep.subr.mxu0 0.0
    %5470 = vmatpush1.msra.mxu0 0.0
    %5471 = vmatprep.subr.mxu0 0.0
    %5472 = vmatpush1.msra.mxu0 0.0
    %5473 = vmatprep.subr.mxu0 0.0
    %5474 = vmatpush1.msra.mxu0 0.0
    %5475 = vmatprep.subr.mxu0 0.0
    %5476 = vmatpush1.msra.mxu0 0.0
    %5477 = vmatprep.subr.mxu0 0.0
    %5478 = vmatpush1.msra.mxu0 0.0
    %5479 = vmatprep.subr.mxu0 0.0
    %5480 = vmatpush1.msra.mxu0 0.0
    %5481 = vmatprep.subr.mxu0 0.0
    %5482 = vmatpush1.msra.mxu0 0.0
    %5483 = vmatprep.subr.mxu0 0.0
    %5484 = vmatpush1.msra.mxu0 0.0
    %5485 = vmatprep.mubr.f32.mxu0 0.0
    %5486 = vmatmul.mubr.f32.gmra.mrb[0].mxu0 %v5419
    %v5487 = vpop.f32.mrb[0].mxu0
    %v5488 = vadd.f32 %v5416, %v5487
    %v5489 = vpop.f32.mrb[0].mxu0
    %5490 = vdwg.mxu0
    %v5491 = vxor.u32 %v5488, 2147483648
    %v5492 = vmul.f32 %v5491, 1.442695
    %v5493 = vpow.pop %v5492
    %v5494 = vadd.f32 %v5493, 1.0
    %v5495 = vrcp.pop %v5494
    %v5496 = vmul.f32 1.0, %v5495
    %v5497 = vtanh.pop %v5488
    %v5498 = vmul.f32 %v5496, %v4734
    %5500 = vrot.lane.b32.xlu0 %v5497, 64
    %v5501 = vpop.permute.xlu0 %5500
    %v5503 = vmul.f32 %v5496, %v5501
    %5505 = vrot.lane.b32.xlu0 %v5503, 32
    %v5506 = vpop.permute.xlu0 %5505
    %v5508 = vadd.f32 %v5498, %v5506
    %v5509 = vtanh.pop %v5508
    %5511 = vrot.lane.b32.xlu0 %v5509, 64
    %v5512 = vpop.permute.xlu0 %5511
    %v5514 = vmul.f32 %v5496, %v5512
    %5516 = vrot.lane.b32.xlu0 %v5514, 32
    %v5517 = vpop.permute.xlu0 %5516
    %s5519 = scalar_lea.vmem [#allocation7], 16
    %5520 = vst.msk [vmem:[%s5519] sm:$0xff] %vm658, %v5517
    %s5521 = scalar_lea.vmem [#allocation4], 32
    %v5522 = vld [vmem:[%s5521] sm:$0xff]
    %v5523 = vld [vmem:[%s19] sm:$0xff]
    %v5524 = vld [vmem:[%s19 + $0x8] sm:$0xff]
    %v5525 = vld [vmem:[%s19 + $0x10] sm:$0xff]
    %v5526 = vld [vmem:[%s19 + $0x18] sm:$0xff]
    %v5527 = vsel %vm658, %v4852, 0
    %5529 = vmatprep.subr.mxu0 0.0
    %5530 = vmatpush1.msra.mxu0 %v5523
    %5531 = vmatprep.subr.mxu0 0.0
    %5532 = vmatpush1.msra.mxu0 %v5524
    %5533 = vmatprep.subr.mxu0 0.0
    %5534 = vmatpush1.msra.mxu0 %v5525
    %5535 = vmatprep.subr.mxu0 0.0
    %5536 = vmatpush1.msra.mxu0 %v5526
    %5537 = vmatprep.subr.mxu0 0.0
    %5538 = vmatpush1.msra.mxu0 0.0
    %5539 = vmatprep.subr.mxu0 0.0
    %5540 = vmatpush1.msra.mxu0 0.0
    %5541 = vmatprep.subr.mxu0 0.0
    %5542 = vmatpush1.msra.mxu0 0.0
    %5543 = vmatprep.subr.mxu0 0.0
    %5544 = vmatpush1.msra.mxu0 0.0
    %5545 = vmatprep.subr.mxu0 0.0
    %5546 = vmatpush1.msra.mxu0 0.0
    %5547 = vmatprep.subr.mxu0 0.0
    %5548 = vmatpush1.msra.mxu0 0.0
    %5549 = vmatprep.subr.mxu0 0.0
    %5550 = vmatpush1.msra.mxu0 0.0
    %5551 = vmatprep.subr.mxu0 0.0
    %5552 = vmatpush1.msra.mxu0 0.0
    %5553 = vmatprep.subr.mxu0 0.0
    %5554 = vmatpush1.msra.mxu0 0.0
    %5555 = vmatprep.subr.mxu0 0.0
    %5556 = vmatpush1.msra.mxu0 0.0
    %5557 = vmatprep.subr.mxu0 0.0
    %5558 = vmatpush1.msra.mxu0 0.0
    %5559 = vmatprep.subr.mxu0 0.0
    %5560 = vmatpush1.msra.mxu0 0.0
    %5561 = vmatprep.subr.mxu0 0.0
    %5562 = vmatpush1.msra.mxu0 0.0
    %5563 = vmatprep.subr.mxu0 0.0
    %5564 = vmatpush1.msra.mxu0 0.0
    %5565 = vmatprep.subr.mxu0 0.0
    %5566 = vmatpush1.msra.mxu0 0.0
    %5567 = vmatprep.subr.mxu0 0.0
    %5568 = vmatpush1.msra.mxu0 0.0
    %5569 = vmatprep.subr.mxu0 0.0
    %5570 = vmatpush1.msra.mxu0 0.0
    %5571 = vmatprep.subr.mxu0 0.0
    %5572 = vmatpush1.msra.mxu0 0.0
    %5573 = vmatprep.subr.mxu0 0.0
    %5574 = vmatpush1.msra.mxu0 0.0
    %5575 = vmatprep.subr.mxu0 0.0
    %5576 = vmatpush1.msra.mxu0 0.0
    %5577 = vmatprep.subr.mxu0 0.0
    %5578 = vmatpush1.msra.mxu0 0.0
    %5579 = vmatprep.subr.mxu0 0.0
    %5580 = vmatpush1.msra.mxu0 0.0
    %5581 = vmatprep.subr.mxu0 0.0
    %5582 = vmatpush1.msra.mxu0 0.0
    %5583 = vmatprep.subr.mxu0 0.0
    %5584 = vmatpush1.msra.mxu0 0.0
    %5585 = vmatprep.subr.mxu0 0.0
    %5586 = vmatpush1.msra.mxu0 0.0
    %5587 = vmatprep.subr.mxu0 0.0
    %5588 = vmatpush1.msra.mxu0 0.0
    %5589 = vmatprep.subr.mxu0 0.0
    %5590 = vmatpush1.msra.mxu0 0.0
    %5591 = vmatprep.subr.mxu0 0.0
    %5592 = vmatpush1.msra.mxu0 0.0
    %5593 = vmatprep.mubr.f32.mxu0 0.0
    %5594 = vmatmul.mubr.f32.gmra.mrb[0].mxu0 %v5527
    %v5595 = vpop.f32.mrb[0].mxu0
    %v5596 = vadd.f32 0.0, %v5595
    %v5597 = vpop.f32.mrb[0].mxu0
    %5598 = vdwg.mxu0
    %v5599 = vadd.f32 %v5522, %v5596
    %v5600 = vxor.u32 %v5599, 2147483648
    %v5601 = vmul.f32 %v5600, 1.442695
    %v5602 = vpow.pop %v5601
    %v5603 = vadd.f32 %v5602, 1.0
    %v5604 = vrcp.pop %v5603
    %v5605 = vmul.f32 1.0, %v5604
    %v5606 = vtanh.pop %v5599
    %v5607 = vmul.f32 %v5605, %v4843
    %5609 = vrot.lane.b32.xlu0 %v5606, 64
    %v5610 = vpop.permute.xlu0 %5609
    %v5612 = vmul.f32 %v5605, %v5610
    %5614 = vrot.lane.b32.xlu0 %v5612, 32
    %v5615 = vpop.permute.xlu0 %5614
    %v5617 = vadd.f32 %v5607, %v5615
    %v5618 = vtanh.pop %v5617
    %5620 = vrot.lane.b32.xlu0 %v5618, 64
    %v5621 = vpop.permute.xlu0 %5620
    %v5623 = vmul.f32 %v5605, %v5621
    %5625 = vrot.lane.b32.xlu0 %v5623, 32
    %v5626 = vpop.permute.xlu0 %5625
    %5628 = vrot.lane.b32.xlu0 %v4969, 64
    %v5629 = vpop.permute.xlu0 %5628
    %v5631 = vsel %vm658, %v5626, %v5629
    %v5632 = vld [vmem:[%s23] sm:$0xff]
    %v5633 = vld [vmem:[%s23 + $0x8] sm:$0xff]
    %v5634 = vld [vmem:[%s23 + $0x10] sm:$0xff]
    %v5635 = vld [vmem:[%s23 + $0x18] sm:$0xff]
    %v5636 = vld [vmem:[%s23 + $0x20] sm:$0xff]
    %v5637 = vld [vmem:[%s23 + $0x28] sm:$0xff]
    %v5638 = vld [vmem:[%s23 + $0x30] sm:$0xff]
    %v5639 = vld [vmem:[%s23 + $0x38] sm:$0xff]
    %v5640 = vld [vmem:[%s25] sm:$0x1]
    %v5642 = vlaneseq
    %v5643 = vshrl.u32 %v5642, 7
    %v5644 = vsub.s32 0, %v5643
    %v5645 = vrot.slane %v5640, %v5644
    %v5648 = vsel %vm777, %v5631, 0
    %5650 = vmatprep.subr.mxu0 0.0
    %5651 = vmatpush1.msra.mxu0 %v5632
    %5652 = vmatprep.subr.mxu0 0.0
    %5653 = vmatpush1.msra.mxu0 %v5633
    %5654 = vmatprep.subr.mxu0 0.0
    %5655 = vmatpush1.msra.mxu0 %v5634
    %5656 = vmatprep.subr.mxu0 0.0
    %5657 = vmatpush1.msra.mxu0 %v5635
    %5658 = vmatprep.subr.mxu0 0.0
    %5659 = vmatpush1.msra.mxu0 %v5636
    %5660 = vmatprep.subr.mxu0 0.0
    %5661 = vmatpush1.msra.mxu0 %v5637
    %5662 = vmatprep.subr.mxu0 0.0
    %5663 = vmatpush1.msra.mxu0 %v5638
    %5664 = vmatprep.subr.mxu0 0.0
    %5665 = vmatpush1.msra.mxu0 %v5639
    %5666 = vmatprep.subr.mxu0 0.0
    %5667 = vmatpush1.msra.mxu0 0.0
    %5668 = vmatprep.subr.mxu0 0.0
    %5669 = vmatpush1.msra.mxu0 0.0
    %5670 = vmatprep.subr.mxu0 0.0
    %5671 = vmatpush1.msra.mxu0 0.0
    %5672 = vmatprep.subr.mxu0 0.0
    %5673 = vmatpush1.msra.mxu0 0.0
    %5674 = vmatprep.subr.mxu0 0.0
    %5675 = vmatpush1.msra.mxu0 0.0
    %5676 = vmatprep.subr.mxu0 0.0
    %5677 = vmatpush1.msra.mxu0 0.0
    %5678 = vmatprep.subr.mxu0 0.0
    %5679 = vmatpush1.msra.mxu0 0.0
    %5680 = vmatprep.subr.mxu0 0.0
    %5681 = vmatpush1.msra.mxu0 0.0
    %5682 = vmatprep.subr.mxu0 0.0
    %5683 = vmatpush1.msra.mxu0 0.0
    %5684 = vmatprep.subr.mxu0 0.0
    %5685 = vmatpush1.msra.mxu0 0.0
    %5686 = vmatprep.subr.mxu0 0.0
    %5687 = vmatpush1.msra.mxu0 0.0
    %5688 = vmatprep.subr.mxu0 0.0
    %5689 = vmatpush1.msra.mxu0 0.0
    %5690 = vmatprep.subr.mxu0 0.0
    %5691 = vmatpush1.msra.mxu0 0.0
    %5692 = vmatprep.subr.mxu0 0.0
    %5693 = vmatpush1.msra.mxu0 0.0
    %5694 = vmatprep.subr.mxu0 0.0
    %5695 = vmatpush1.msra.mxu0 0.0
    %5696 = vmatprep.subr.mxu0 0.0
    %5697 = vmatpush1.msra.mxu0 0.0
    %5698 = vmatprep.subr.mxu0 0.0
    %5699 = vmatpush1.msra.mxu0 0.0
    %5700 = vmatprep.subr.mxu0 0.0
    %5701 = vmatpush1.msra.mxu0 0.0
    %5702 = vmatprep.subr.mxu0 0.0
    %5703 = vmatpush1.msra.mxu0 0.0
    %5704 = vmatprep.subr.mxu0 0.0
    %5705 = vmatpush1.msra.mxu0 0.0
    %5706 = vmatprep.subr.mxu0 0.0
    %5707 = vmatpush1.msra.mxu0 0.0
    %5708 = vmatprep.subr.mxu0 0.0
    %5709 = vmatpush1.msra.mxu0 0.0
    %5710 = vmatprep.subr.mxu0 0.0
    %5711 = vmatpush1.msra.mxu0 0.0
    %5712 = vmatprep.subr.mxu0 0.0
    %5713 = vmatpush1.msra.mxu0 0.0
    %5714 = vmatprep.mubr.f32.mxu0 0.0
    %5715 = vmatmul.mubr.f32.gmra.mrb[0].mxu0 %v5648
    %v5716 = vpop.f32.mrb[0].mxu0
    %v5717 = vadd.f32 %v5645, %v5716
    %v5718 = vpop.f32.mrb[0].mxu0
    %5719 = vdwg.mxu0
    %v5720 = vxor.u32 %v5717, 2147483648
    %v5721 = vmul.f32 %v5720, 1.442695
    %v5722 = vpow.pop %v5721
    %v5723 = vadd.f32 %v5722, 1.0
    %v5724 = vrcp.pop %v5723
    %v5725 = vmul.f32 1.0, %v5724
    %v5726 = vtanh.pop %v5717
    %v5727 = vmul.f32 %v5725, %v4963
    %5729 = vrot.lane.b32.xlu0 %v5726, 64
    %v5730 = vpop.permute.xlu0 %5729
    %v5732 = vmul.f32 %v5725, %v5730
    %5734 = vrot.lane.b32.xlu0 %v5732, 32
    %v5735 = vpop.permute.xlu0 %5734
    %v5737 = vadd.f32 %v5727, %v5735
    %v5738 = vtanh.pop %v5737
    %5740 = vrot.lane.b32.xlu0 %v5738, 64
    %v5741 = vpop.permute.xlu0 %5740
    %v5743 = vmul.f32 %v5725, %v5741
    %v5744 = vld [vmem:[%s27] sm:$0xff]
    %v5745 = vld [vmem:[%s27 + $0x8] sm:$0xff]
    %v5746 = vld [vmem:[%s27 + $0x10] sm:$0xff]
    %v5747 = vld [vmem:[%s27 + $0x18] sm:$0xff]
    %v5748 = vld [vmem:[#allocation8] sm:$0x1]
    %v5750 = vlaneseq
    %v5751 = vshrl.u32 %v5750, 7
    %v5752 = vsub.s32 0, %v5751
    %v5753 = vrot.slane %v5748, %v5752
    %5756 = vrot.lane.b32.xlu0 %v5743, 32
    %v5757 = vpop.permute.xlu0 %5756
    %v5758 = vsel %vm658, %v5757, 0
    %5760 = vmatprep.subr.mxu0 0.0
    %5761 = vmatpush1.msra.mxu0 %v5744
    %5762 = vmatprep.subr.mxu0 0.0
    %5763 = vmatpush1.msra.mxu0 %v5745
    %5764 = vmatprep.subr.mxu0 0.0
    %5765 = vmatpush1.msra.mxu0 %v5746
    %5766 = vmatprep.subr.mxu0 0.0
    %5767 = vmatpush1.msra.mxu0 %v5747
    %5768 = vmatprep.subr.mxu0 0.0
    %5769 = vmatpush1.msra.mxu0 0.0
    %5770 = vmatprep.subr.mxu0 0.0
    %5771 = vmatpush1.msra.mxu0 0.0
    %5772 = vmatprep.subr.mxu0 0.0
    %5773 = vmatpush1.msra.mxu0 0.0
    %5774 = vmatprep.subr.mxu0 0.0
    %5775 = vmatpush1.msra.mxu0 0.0
    %5776 = vmatprep.subr.mxu0 0.0
    %5777 = vmatpush1.msra.mxu0 0.0
    %5778 = vmatprep.subr.mxu0 0.0
    %5779 = vmatpush1.msra.mxu0 0.0
    %5780 = vmatprep.subr.mxu0 0.0
    %5781 = vmatpush1.msra.mxu0 0.0
    %5782 = vmatprep.subr.mxu0 0.0
    %5783 = vmatpush1.msra.mxu0 0.0
    %5784 = vmatprep.subr.mxu0 0.0
    %5785 = vmatpush1.msra.mxu0 0.0
    %5786 = vmatprep.subr.mxu0 0.0
    %5787 = vmatpush1.msra.mxu0 0.0
    %5788 = vmatprep.subr.mxu0 0.0
    %5789 = vmatpush1.msra.mxu0 0.0
    %5790 = vmatprep.subr.mxu0 0.0
    %5791 = vmatpush1.msra.mxu0 0.0
    %5792 = vmatprep.subr.mxu0 0.0
    %5793 = vmatpush1.msra.mxu0 0.0
    %5794 = vmatprep.subr.mxu0 0.0
    %5795 = vmatpush1.msra.mxu0 0.0
    %5796 = vmatprep.subr.mxu0 0.0
    %5797 = vmatpush1.msra.mxu0 0.0
    %5798 = vmatprep.subr.mxu0 0.0
    %5799 = vmatpush1.msra.mxu0 0.0
    %5800 = vmatprep.subr.mxu0 0.0
    %5801 = vmatpush1.msra.mxu0 0.0
    %5802 = vmatprep.subr.mxu0 0.0
    %5803 = vmatpush1.msra.mxu0 0.0
    %5804 = vmatprep.subr.mxu0 0.0
    %5805 = vmatpush1.msra.mxu0 0.0
    %5806 = vmatprep.subr.mxu0 0.0
    %5807 = vmatpush1.msra.mxu0 0.0
    %5808 = vmatprep.subr.mxu0 0.0
    %5809 = vmatpush1.msra.mxu0 0.0
    %5810 = vmatprep.subr.mxu0 0.0
    %5811 = vmatpush1.msra.mxu0 0.0
    %5812 = vmatprep.subr.mxu0 0.0
    %5813 = vmatpush1.msra.mxu0 0.0
    %5814 = vmatprep.subr.mxu0 0.0
    %5815 = vmatpush1.msra.mxu0 0.0
    %5816 = vmatprep.subr.mxu0 0.0
    %5817 = vmatpush1.msra.mxu0 0.0
    %5818 = vmatprep.subr.mxu0 0.0
    %5819 = vmatpush1.msra.mxu0 0.0
    %5820 = vmatprep.subr.mxu0 0.0
    %5821 = vmatpush1.msra.mxu0 0.0
    %5822 = vmatprep.subr.mxu0 0.0
    %5823 = vmatpush1.msra.mxu0 0.0
    %5824 = vmatprep.mubr.f32.mxu0 0.0
    %5825 = vmatmul.mubr.f32.gmra.mrb[0].mxu0 %v5758
    %v5826 = vpop.f32.mrb[0].mxu0
    %v5827 = vadd.f32 %v5753, %v5826
    %v5828 = vpop.f32.mrb[0].mxu0
    %5829 = vdwg.mxu0
    %s5830 = scalar_lea.vmem %s5, 32
    %v5831 = vld [vmem:[%s5830] sm:$0xff]
    %v5832 = vld [vmem:[%s31] sm:$0xf]
    %v5833 = vld [vmem:[%s33] sm:$0x3]
    %v5835 = vsel %vm3043, %v5827, 0
    %v5838 = vsel %vm3047, %v5833, 0
    %5840 = vmatprep.subr.mxu0 0.0
    %5841 = vmatpush1.msra.mxu0 %v5838
    %5842 = vmatprep.subr.mxu0 0.0
    %5843 = vmatpush1.msra.mxu0 0.0
    %5844 = vmatprep.subr.mxu0 0.0
    %5845 = vmatpush1.msra.mxu0 0.0
    %5846 = vmatprep.subr.mxu0 0.0
    %5847 = vmatpush1.msra.mxu0 0.0
    %5848 = vmatprep.subr.mxu0 0.0
    %5849 = vmatpush1.msra.mxu0 0.0
    %5850 = vmatprep.subr.mxu0 0.0
    %5851 = vmatpush1.msra.mxu0 0.0
    %5852 = vmatprep.subr.mxu0 0.0
    %5853 = vmatpush1.msra.mxu0 0.0
    %5854 = vmatprep.subr.mxu0 0.0
    %5855 = vmatpush1.msra.mxu0 0.0
    %5856 = vmatprep.subr.mxu0 0.0
    %5857 = vmatpush1.msra.mxu0 0.0
    %5858 = vmatprep.subr.mxu0 0.0
    %5859 = vmatpush1.msra.mxu0 0.0
    %5860 = vmatprep.subr.mxu0 0.0
    %5861 = vmatpush1.msra.mxu0 0.0
    %5862 = vmatprep.subr.mxu0 0.0
    %5863 = vmatpush1.msra.mxu0 0.0
    %5864 = vmatprep.subr.mxu0 0.0
    %5865 = vmatpush1.msra.mxu0 0.0
    %5866 = vmatprep.subr.mxu0 0.0
    %5867 = vmatpush1.msra.mxu0 0.0
    %5868 = vmatprep.subr.mxu0 0.0
    %5869 = vmatpush1.msra.mxu0 0.0
    %5870 = vmatprep.subr.mxu0 0.0
    %5871 = vmatpush1.msra.mxu0 0.0
    %5872 = vmatprep.subr.mxu0 0.0
    %5873 = vmatpush1.msra.mxu0 0.0
    %5874 = vmatprep.subr.mxu0 0.0
    %5875 = vmatpush1.msra.mxu0 0.0
    %5876 = vmatprep.subr.mxu0 0.0
    %5877 = vmatpush1.msra.mxu0 0.0
    %5878 = vmatprep.subr.mxu0 0.0
    %5879 = vmatpush1.msra.mxu0 0.0
    %5880 = vmatprep.subr.mxu0 0.0
    %5881 = vmatpush1.msra.mxu0 0.0
    %5882 = vmatprep.subr.mxu0 0.0
    %5883 = vmatpush1.msra.mxu0 0.0
    %5884 = vmatprep.subr.mxu0 0.0
    %5885 = vmatpush1.msra.mxu0 0.0
    %5886 = vmatprep.subr.mxu0 0.0
    %5887 = vmatpush1.msra.mxu0 0.0
    %5888 = vmatprep.subr.mxu0 0.0
    %5889 = vmatpush1.msra.mxu0 0.0
    %5890 = vmatprep.subr.mxu0 0.0
    %5891 = vmatpush1.msra.mxu0 0.0
    %5892 = vmatprep.subr.mxu0 0.0
    %5893 = vmatpush1.msra.mxu0 0.0
    %5894 = vmatprep.subr.mxu0 0.0
    %5895 = vmatpush1.msra.mxu0 0.0
    %5896 = vmatprep.subr.mxu0 0.0
    %5897 = vmatpush1.msra.mxu0 0.0
    %5898 = vmatprep.subr.mxu0 0.0
    %5899 = vmatpush1.msra.mxu0 0.0
    %5900 = vmatprep.subr.mxu0 0.0
    %5901 = vmatpush1.msra.mxu0 0.0
    %5902 = vmatprep.subr.mxu0 0.0
    %5903 = vmatpush1.msra.mxu0 0.0
    %5904 = vmatprep.mubr.f32.mxu0 0.0
    %5905 = vmatmul.mubr.f32.gmra.mrb[0].mxu0 %v5835
    %v5906 = vpop.f32.mrb[0].mxu0
    %v5907 = vadd.f32 0.0, %v5906
    %v5908 = vpop.f32.mrb[0].mxu0
    %5909 = vdwg.mxu0
    %v5911 = vsel %vm3121, %v5831, 0
    %v5914 = vsel %vm3125, %v5832, 0
    %5916 = vmatprep.subr.mxu0 0.0
    %5917 = vmatpush1.msra.mxu0 %v5914
    %5918 = vmatprep.subr.mxu0 0.0
    %5919 = vmatpush1.msra.mxu0 0.0
    %5920 = vmatprep.subr.mxu0 0.0
    %5921 = vmatpush1.msra.mxu0 0.0
    %5922 = vmatprep.subr.mxu0 0.0
    %5923 = vmatpush1.msra.mxu0 0.0
    %5924 = vmatprep.subr.mxu0 0.0
    %5925 = vmatpush1.msra.mxu0 0.0
    %5926 = vmatprep.subr.mxu0 0.0
    %5927 = vmatpush1.msra.mxu0 0.0
    %5928 = vmatprep.subr.mxu0 0.0
    %5929 = vmatpush1.msra.mxu0 0.0
    %5930 = vmatprep.subr.mxu0 0.0
    %5931 = vmatpush1.msra.mxu0 0.0
    %5932 = vmatprep.subr.mxu0 0.0
    %5933 = vmatpush1.msra.mxu0 0.0
    %5934 = vmatprep.subr.mxu0 0.0
    %5935 = vmatpush1.msra.mxu0 0.0
    %5936 = vmatprep.subr.mxu0 0.0
    %5937 = vmatpush1.msra.mxu0 0.0
    %5938 = vmatprep.subr.mxu0 0.0
    %5939 = vmatpush1.msra.mxu0 0.0
    %5940 = vmatprep.subr.mxu0 0.0
    %5941 = vmatpush1.msra.mxu0 0.0
    %5942 = vmatprep.subr.mxu0 0.0
    %5943 = vmatpush1.msra.mxu0 0.0
    %5944 = vmatprep.subr.mxu0 0.0
    %5945 = vmatpush1.msra.mxu0 0.0
    %5946 = vmatprep.subr.mxu0 0.0
    %5947 = vmatpush1.msra.mxu0 0.0
    %5948 = vmatprep.subr.mxu0 0.0
    %5949 = vmatpush1.msra.mxu0 0.0
    %5950 = vmatprep.subr.mxu0 0.0
    %5951 = vmatpush1.msra.mxu0 0.0
    %5952 = vmatprep.subr.mxu0 0.0
    %5953 = vmatpush1.msra.mxu0 0.0
    %5954 = vmatprep.subr.mxu0 0.0
    %5955 = vmatpush1.msra.mxu0 0.0
    %5956 = vmatprep.subr.mxu0 0.0
    %5957 = vmatpush1.msra.mxu0 0.0
    %5958 = vmatprep.subr.mxu0 0.0
    %5959 = vmatpush1.msra.mxu0 0.0
    %5960 = vmatprep.subr.mxu0 0.0
    %5961 = vmatpush1.msra.mxu0 0.0
    %5962 = vmatprep.subr.mxu0 0.0
    %5963 = vmatpush1.msra.mxu0 0.0
    %5964 = vmatprep.subr.mxu0 0.0
    %5965 = vmatpush1.msra.mxu0 0.0
    %5966 = vmatprep.subr.mxu0 0.0
    %5967 = vmatpush1.msra.mxu0 0.0
    %5968 = vmatprep.subr.mxu0 0.0
    %5969 = vmatpush1.msra.mxu0 0.0
    %5970 = vmatprep.subr.mxu0 0.0
    %5971 = vmatpush1.msra.mxu0 0.0
    %5972 = vmatprep.subr.mxu0 0.0
    %5973 = vmatpush1.msra.mxu0 0.0
    %5974 = vmatprep.subr.mxu0 0.0
    %5975 = vmatpush1.msra.mxu0 0.0
    %5976 = vmatprep.subr.mxu0 0.0
    %5977 = vmatpush1.msra.mxu0 0.0
    %5978 = vmatprep.subr.mxu0 0.0
    %5979 = vmatpush1.msra.mxu0 0.0
    %5980 = vmatprep.mubr.f32.mxu0 0.0
    %5981 = vmatmul.mubr.f32.gmra.mrb[0].mxu0 %v5911
    %v5982 = vpop.f32.mrb[0].mxu0
    %v5983 = vadd.f32 %v5907, %v5982
    %v5984 = vpop.f32.mrb[0].mxu0
    %5985 = vdwg.mxu0
    %s5986 = scalar_lea.vmem [#allocation6], 32
    %5987 = vst.msk [vmem:[%s5986] sm:$0xff] %vm3121, %v5983
    %s5988 = scalar_lea.vmem [#allocation5], 24
    %v5989 = vld [vmem:[%s5988] sm:$0xff]
    %v5990 = vld [vmem:[%s47] sm:$0xf]
    %v5992 = vsel %vm3121, %v5209, 0
    %v5995 = vsel %vm3125, %v5990, 0
    %5997 = vmatprep.subr.mxu0 0.0
    %5998 = vmatpush1.msra.mxu0 %v5995
    %5999 = vmatprep.subr.mxu0 0.0
    %6000 = vmatpush1.msra.mxu0 0.0
    %6001 = vmatprep.subr.mxu0 0.0
    %6002 = vmatpush1.msra.mxu0 0.0
    %6003 = vmatprep.subr.mxu0 0.0
    %6004 = vmatpush1.msra.mxu0 0.0
    %6005 = vmatprep.subr.mxu0 0.0
    %6006 = vmatpush1.msra.mxu0 0.0
    %6007 = vmatprep.subr.mxu0 0.0
    %6008 = vmatpush1.msra.mxu0 0.0
    %6009 = vmatprep.subr.mxu0 0.0
    %6010 = vmatpush1.msra.mxu0 0.0
    %6011 = vmatprep.subr.mxu0 0.0
    %6012 = vmatpush1.msra.mxu0 0.0
    %6013 = vmatprep.subr.mxu0 0.0
    %6014 = vmatpush1.msra.mxu0 0.0
    %6015 = vmatprep.subr.mxu0 0.0
    %6016 = vmatpush1.msra.mxu0 0.0
    %6017 = vmatprep.subr.mxu0 0.0
    %6018 = vmatpush1.msra.mxu0 0.0
    %6019 = vmatprep.subr.mxu0 0.0
    %6020 = vmatpush1.msra.mxu0 0.0
    %6021 = vmatprep.subr.mxu0 0.0
    %6022 = vmatpush1.msra.mxu0 0.0
    %6023 = vmatprep.subr.mxu0 0.0
    %6024 = vmatpush1.msra.mxu0 0.0
    %6025 = vmatprep.subr.mxu0 0.0
    %6026 = vmatpush1.msra.mxu0 0.0
    %6027 = vmatprep.subr.mxu0 0.0
    %6028 = vmatpush1.msra.mxu0 0.0
    %6029 = vmatprep.subr.mxu0 0.0
    %6030 = vmatpush1.msra.mxu0 0.0
    %6031 = vmatprep.subr.mxu0 0.0
    %6032 = vmatpush1.msra.mxu0 0.0
    %6033 = vmatprep.subr.mxu0 0.0
    %6034 = vmatpush1.msra.mxu0 0.0
    %6035 = vmatprep.subr.mxu0 0.0
    %6036 = vmatpush1.msra.mxu0 0.0
    %6037 = vmatprep.subr.mxu0 0.0
    %6038 = vmatpush1.msra.mxu0 0.0
    %6039 = vmatprep.subr.mxu0 0.0
    %6040 = vmatpush1.msra.mxu0 0.0
    %6041 = vmatprep.subr.mxu0 0.0
    %6042 = vmatpush1.msra.mxu0 0.0
    %6043 = vmatprep.subr.mxu0 0.0
    %6044 = vmatpush1.msra.mxu0 0.0
    %6045 = vmatprep.subr.mxu0 0.0
    %6046 = vmatpush1.msra.mxu0 0.0
    %6047 = vmatprep.subr.mxu0 0.0
    %6048 = vmatpush1.msra.mxu0 0.0
    %6049 = vmatprep.subr.mxu0 0.0
    %6050 = vmatpush1.msra.mxu0 0.0
    %6051 = vmatprep.subr.mxu0 0.0
    %6052 = vmatpush1.msra.mxu0 0.0
    %6053 = vmatprep.subr.mxu0 0.0
    %6054 = vmatpush1.msra.mxu0 0.0
    %6055 = vmatprep.subr.mxu0 0.0
    %6056 = vmatpush1.msra.mxu0 0.0
    %6057 = vmatprep.subr.mxu0 0.0
    %6058 = vmatpush1.msra.mxu0 0.0
    %6059 = vmatprep.subr.mxu0 0.0
    %6060 = vmatpush1.msra.mxu0 0.0
    %6061 = vmatprep.mubr.f32.mxu0 0.0
    %6062 = vmatmul.mubr.f32.gmra.mrb[0].mxu0 %v5992
    %v6063 = vpop.f32.mrb[0].mxu0
    %v6064 = vadd.f32 0.0, %v6063
    %v6065 = vpop.f32.mrb[0].mxu0
    %6066 = vdwg.mxu0
    %v6067 = vadd.f32 %v5989, %v6064
    %v6068 = vld [vmem:[%s49] sm:$0xff]
    %v6069 = vld [vmem:[%s49 + $0x8] sm:$0xff]
    %v6070 = vld [vmem:[%s49 + $0x10] sm:$0xff]
    %v6071 = vld [vmem:[%s49 + $0x18] sm:$0xff]
    %v6072 = vsel %vm658, %v5397, 0
    %6074 = vmatprep.subr.mxu0 0.0
    %6075 = vmatpush1.msra.mxu0 %v6068
    %6076 = vmatprep.subr.mxu0 0.0
    %6077 = vmatpush1.msra.mxu0 %v6069
    %6078 = vmatprep.subr.mxu0 0.0
    %6079 = vmatpush1.msra.mxu0 %v6070
    %6080 = vmatprep.subr.mxu0 0.0
    %6081 = vmatpush1.msra.mxu0 %v6071
    %6082 = vmatprep.subr.mxu0 0.0
    %6083 = vmatpush1.msra.mxu0 0.0
    %6084 = vmatprep.subr.mxu0 0.0
    %6085 = vmatpush1.msra.mxu0 0.0
    %6086 = vmatprep.subr.mxu0 0.0
    %6087 = vmatpush1.msra.mxu0 0.0
    %6088 = vmatprep.subr.mxu0 0.0
    %6089 = vmatpush1.msra.mxu0 0.0
    %6090 = vmatprep.subr.mxu0 0.0
    %6091 = vmatpush1.msra.mxu0 0.0
    %6092 = vmatprep.subr.mxu0 0.0
    %6093 = vmatpush1.msra.mxu0 0.0
    %6094 = vmatprep.subr.mxu0 0.0
    %6095 = vmatpush1.msra.mxu0 0.0
    %6096 = vmatprep.subr.mxu0 0.0
    %6097 = vmatpush1.msra.mxu0 0.0
    %6098 = vmatprep.subr.mxu0 0.0
    %6099 = vmatpush1.msra.mxu0 0.0
    %6100 = vmatprep.subr.mxu0 0.0
    %6101 = vmatpush1.msra.mxu0 0.0
    %6102 = vmatprep.subr.mxu0 0.0
    %6103 = vmatpush1.msra.mxu0 0.0
    %6104 = vmatprep.subr.mxu0 0.0
    %6105 = vmatpush1.msra.mxu0 0.0
    %6106 = vmatprep.subr.mxu0 0.0
    %6107 = vmatpush1.msra.mxu0 0.0
    %6108 = vmatprep.subr.mxu0 0.0
    %6109 = vmatpush1.msra.mxu0 0.0
    %6110 = vmatprep.subr.mxu0 0.0
    %6111 = vmatpush1.msra.mxu0 0.0
    %6112 = vmatprep.subr.mxu0 0.0
    %6113 = vmatpush1.msra.mxu0 0.0
    %6114 = vmatprep.subr.mxu0 0.0
    %6115 = vmatpush1.msra.mxu0 0.0
    %6116 = vmatprep.subr.mxu0 0.0
    %6117 = vmatpush1.msra.mxu0 0.0
    %6118 = vmatprep.subr.mxu0 0.0
    %6119 = vmatpush1.msra.mxu0 0.0
    %6120 = vmatprep.subr.mxu0 0.0
    %6121 = vmatpush1.msra.mxu0 0.0
    %6122 = vmatprep.subr.mxu0 0.0
    %6123 = vmatpush1.msra.mxu0 0.0
    %6124 = vmatprep.subr.mxu0 0.0
    %6125 = vmatpush1.msra.mxu0 0.0
    %6126 = vmatprep.subr.mxu0 0.0
    %6127 = vmatpush1.msra.mxu0 0.0
    %6128 = vmatprep.subr.mxu0 0.0
    %6129 = vmatpush1.msra.mxu0 0.0
    %6130 = vmatprep.subr.mxu0 0.0
    %6131 = vmatpush1.msra.mxu0 0.0
    %6132 = vmatprep.subr.mxu0 0.0
    %6133 = vmatpush1.msra.mxu0 0.0
    %6134 = vmatprep.subr.mxu0 0.0
    %6135 = vmatpush1.msra.mxu0 0.0
    %6136 = vmatprep.subr.mxu0 0.0
    %6137 = vmatpush1.msra.mxu0 0.0
    %6138 = vmatprep.mubr.f32.mxu0 0.0
    %6139 = vmatmul.mubr.f32.gmra.mrb[0].mxu0 %v6072
    %v6140 = vpop.f32.mrb[0].mxu0
    %v6141 = vadd.f32 0.0, %v6140
    %v6142 = vpop.f32.mrb[0].mxu0
    %6143 = vdwg.mxu0
    %v6144 = vadd.f32 %v6067, %v6141
    %v6145 = vxor.u32 %v6144, 2147483648
    %v6146 = vmul.f32 %v6145, 1.442695
    %v6147 = vpow.pop %v6146
    %v6148 = vadd.f32 %v6147, 1.0
    %v6149 = vrcp.pop %v6148
    %v6150 = vmul.f32 1.0, %v6149
    %v6151 = vtanh.pop %v6144
    %v6152 = vmul.f32 %v6150, %v5388
    %6154 = vrot.lane.b32.xlu0 %v6151, 64
    %v6155 = vpop.permute.xlu0 %6154
    %v6157 = vmul.f32 %v6150, %v6155
    %6159 = vrot.lane.b32.xlu0 %v6157, 32
    %v6160 = vpop.permute.xlu0 %6159
    %v6162 = vadd.f32 %v6152, %v6160
    %v6163 = vtanh.pop %v6162
    %6165 = vrot.lane.b32.xlu0 %v6163, 64
    %v6166 = vpop.permute.xlu0 %6165
    %v6168 = vmul.f32 %v6150, %v6166
    %6170 = vrot.lane.b32.xlu0 %v6168, 32
    %v6171 = vpop.permute.xlu0 %6170
    %6173 = vrot.lane.b32.xlu0 %v5514, 64
    %v6174 = vpop.permute.xlu0 %6173
    %v6176 = vsel %vm658, %v6171, %v6174
    %v6177 = vld [vmem:[%s53] sm:$0xff]
    %v6178 = vld [vmem:[%s53 + $0x8] sm:$0xff]
    %v6179 = vld [vmem:[%s53 + $0x10] sm:$0xff]
    %v6180 = vld [vmem:[%s53 + $0x18] sm:$0xff]
    %v6181 = vld [vmem:[%s53 + $0x20] sm:$0xff]
    %v6182 = vld [vmem:[%s53 + $0x28] sm:$0xff]
    %v6183 = vld [vmem:[%s53 + $0x30] sm:$0xff]
    %v6184 = vld [vmem:[%s53 + $0x38] sm:$0xff]
    %v6185 = vld [vmem:[%s55] sm:$0x1]
    %v6187 = vlaneseq
    %v6188 = vshrl.u32 %v6187, 7
    %v6189 = vsub.s32 0, %v6188
    %v6190 = vrot.slane %v6185, %v6189
    %v6193 = vsel %vm777, %v6176, 0
    %6195 = vmatprep.subr.mxu0 0.0
    %6196 = vmatpush1.msra.mxu0 %v6177
    %6197 = vmatprep.subr.mxu0 0.0
    %6198 = vmatpush1.msra.mxu0 %v6178
    %6199 = vmatprep.subr.mxu0 0.0
    %6200 = vmatpush1.msra.mxu0 %v6179
    %6201 = vmatprep.subr.mxu0 0.0
    %6202 = vmatpush1.msra.mxu0 %v6180
    %6203 = vmatprep.subr.mxu0 0.0
    %6204 = vmatpush1.msra.mxu0 %v6181
    %6205 = vmatprep.subr.mxu0 0.0
    %6206 = vmatpush1.msra.mxu0 %v6182
    %6207 = vmatprep.subr.mxu0 0.0
    %6208 = vmatpush1.msra.mxu0 %v6183
    %6209 = vmatprep.subr.mxu0 0.0
    %6210 = vmatpush1.msra.mxu0 %v6184
    %6211 = vmatprep.subr.mxu0 0.0
    %6212 = vmatpush1.msra.mxu0 0.0
    %6213 = vmatprep.subr.mxu0 0.0
    %6214 = vmatpush1.msra.mxu0 0.0
    %6215 = vmatprep.subr.mxu0 0.0
    %6216 = vmatpush1.msra.mxu0 0.0
    %6217 = vmatprep.subr.mxu0 0.0
    %6218 = vmatpush1.msra.mxu0 0.0
    %6219 = vmatprep.subr.mxu0 0.0
    %6220 = vmatpush1.msra.mxu0 0.0
    %6221 = vmatprep.subr.mxu0 0.0
    %6222 = vmatpush1.msra.mxu0 0.0
    %6223 = vmatprep.subr.mxu0 0.0
    %6224 = vmatpush1.msra.mxu0 0.0
    %6225 = vmatprep.subr.mxu0 0.0
    %6226 = vmatpush1.msra.mxu0 0.0
    %6227 = vmatprep.subr.mxu0 0.0
    %6228 = vmatpush1.msra.mxu0 0.0
    %6229 = vmatprep.subr.mxu0 0.0
    %6230 = vmatpush1.msra.mxu0 0.0
    %6231 = vmatprep.subr.mxu0 0.0
    %6232 = vmatpush1.msra.mxu0 0.0
    %6233 = vmatprep.subr.mxu0 0.0
    %6234 = vmatpush1.msra.mxu0 0.0
    %6235 = vmatprep.subr.mxu0 0.0
    %6236 = vmatpush1.msra.mxu0 0.0
    %6237 = vmatprep.subr.mxu0 0.0
    %6238 = vmatpush1.msra.mxu0 0.0
    %6239 = vmatprep.subr.mxu0 0.0
    %6240 = vmatpush1.msra.mxu0 0.0
    %6241 = vmatprep.subr.mxu0 0.0
    %6242 = vmatpush1.msra.mxu0 0.0
    %6243 = vmatprep.subr.mxu0 0.0
    %6244 = vmatpush1.msra.mxu0 0.0
    %6245 = vmatprep.subr.mxu0 0.0
    %6246 = vmatpush1.msra.mxu0 0.0
    %6247 = vmatprep.subr.mxu0 0.0
    %6248 = vmatpush1.msra.mxu0 0.0
    %6249 = vmatprep.subr.mxu0 0.0
    %6250 = vmatpush1.msra.mxu0 0.0
    %6251 = vmatprep.subr.mxu0 0.0
    %6252 = vmatpush1.msra.mxu0 0.0
    %6253 = vmatprep.subr.mxu0 0.0
    %6254 = vmatpush1.msra.mxu0 0.0
    %6255 = vmatprep.subr.mxu0 0.0
    %6256 = vmatpush1.msra.mxu0 0.0
    %6257 = vmatprep.subr.mxu0 0.0
    %6258 = vmatpush1.msra.mxu0 0.0
    %6259 = vmatprep.mubr.f32.mxu0 0.0
    %6260 = vmatmul.mubr.f32.gmra.mrb[0].mxu0 %v6193
    %v6261 = vpop.f32.mrb[0].mxu0
    %v6262 = vadd.f32 %v6190, %v6261
    %v6263 = vpop.f32.mrb[0].mxu0
    %6264 = vdwg.mxu0
    %v6265 = vxor.u32 %v6262, 2147483648
    %v6266 = vmul.f32 %v6265, 1.442695
    %v6267 = vpow.pop %v6266
    %v6268 = vadd.f32 %v6267, 1.0
    %v6269 = vrcp.pop %v6268
    %v6270 = vmul.f32 1.0, %v6269
    %v6271 = vtanh.pop %v6262
    %v6272 = vmul.f32 %v6270, %v5508
    %6274 = vrot.lane.b32.xlu0 %v6271, 64
    %v6275 = vpop.permute.xlu0 %6274
    %v6277 = vmul.f32 %v6270, %v6275
    %6279 = vrot.lane.b32.xlu0 %v6277, 32
    %v6280 = vpop.permute.xlu0 %6279
    %v6282 = vadd.f32 %v6272, %v6280
    %v6283 = vtanh.pop %v6282
    %6285 = vrot.lane.b32.xlu0 %v6283, 64
    %v6286 = vpop.permute.xlu0 %6285
    %v6288 = vmul.f32 %v6270, %v6286
    %6290 = vrot.lane.b32.xlu0 %v6288, 32
    %v6291 = vpop.permute.xlu0 %6290
    %s6293 = scalar_lea.vmem [#allocation7], 24
    %6294 = vst.msk [vmem:[%s6293] sm:$0xff] %vm658, %v6291
    %s6295 = scalar_lea.vmem [#allocation4], 40
    %v6296 = vld [vmem:[%s6295] sm:$0xff]
    %v6297 = vld [vmem:[%s19] sm:$0xff]
    %v6298 = vld [vmem:[%s19 + $0x8] sm:$0xff]
    %v6299 = vld [vmem:[%s19 + $0x10] sm:$0xff]
    %v6300 = vld [vmem:[%s19 + $0x18] sm:$0xff]
    %v6301 = vsel %vm658, %v5626, 0
    %6303 = vmatprep.subr.mxu0 0.0
    %6304 = vmatpush1.msra.mxu0 %v6297
    %6305 = vmatprep.subr.mxu0 0.0
    %6306 = vmatpush1.msra.mxu0 %v6298
    %6307 = vmatprep.subr.mxu0 0.0
    %6308 = vmatpush1.msra.mxu0 %v6299
    %6309 = vmatprep.subr.mxu0 0.0
    %6310 = vmatpush1.msra.mxu0 %v6300
    %6311 = vmatprep.subr.mxu0 0.0
    %6312 = vmatpush1.msra.mxu0 0.0
    %6313 = vmatprep.subr.mxu0 0.0
    %6314 = vmatpush1.msra.mxu0 0.0
    %6315 = vmatprep.subr.mxu0 0.0
    %6316 = vmatpush1.msra.mxu0 0.0
    %6317 = vmatprep.subr.mxu0 0.0
    %6318 = vmatpush1.msra.mxu0 0.0
    %6319 = vmatprep.subr.mxu0 0.0
    %6320 = vmatpush1.msra.mxu0 0.0
    %6321 = vmatprep.subr.mxu0 0.0
    %6322 = vmatpush1.msra.mxu0 0.0
    %6323 = vmatprep.subr.mxu0 0.0
    %6324 = vmatpush1.msra.mxu0 0.0
    %6325 = vmatprep.subr.mxu0 0.0
    %6326 = vmatpush1.msra.mxu0 0.0
    %6327 = vmatprep.subr.mxu0 0.0
    %6328 = vmatpush1.msra.mxu0 0.0
    %6329 = vmatprep.subr.mxu0 0.0
    %6330 = vmatpush1.msra.mxu0 0.0
    %6331 = vmatprep.subr.mxu0 0.0
    %6332 = vmatpush1.msra.mxu0 0.0
    %6333 = vmatprep.subr.mxu0 0.0
    %6334 = vmatpush1.msra.mxu0 0.0
    %6335 = vmatprep.subr.mxu0 0.0
    %6336 = vmatpush1.msra.mxu0 0.0
    %6337 = vmatprep.subr.mxu0 0.0
    %6338 = vmatpush1.msra.mxu0 0.0
    %6339 = vmatprep.subr.mxu0 0.0
    %6340 = vmatpush1.msra.mxu0 0.0
    %6341 = vmatprep.subr.mxu0 0.0
    %6342 = vmatpush1.msra.mxu0 0.0
    %6343 = vmatprep.subr.mxu0 0.0
    %6344 = vmatpush1.msra.mxu0 0.0
    %6345 = vmatprep.subr.mxu0 0.0
    %6346 = vmatpush1.msra.mxu0 0.0
    %6347 = vmatprep.subr.mxu0 0.0
    %6348 = vmatpush1.msra.mxu0 0.0
    %6349 = vmatprep.subr.mxu0 0.0
    %6350 = vmatpush1.msra.mxu0 0.0
    %6351 = vmatprep.subr.mxu0 0.0
    %6352 = vmatpush1.msra.mxu0 0.0
    %6353 = vmatprep.subr.mxu0 0.0
    %6354 = vmatpush1.msra.mxu0 0.0
    %6355 = vmatprep.subr.mxu0 0.0
    %6356 = vmatpush1.msra.mxu0 0.0
    %6357 = vmatprep.subr.mxu0 0.0
    %6358 = vmatpush1.msra.mxu0 0.0
    %6359 = vmatprep.subr.mxu0 0.0
    %6360 = vmatpush1.msra.mxu0 0.0
    %6361 = vmatprep.subr.mxu0 0.0
    %6362 = vmatpush1.msra.mxu0 0.0
    %6363 = vmatprep.subr.mxu0 0.0
    %6364 = vmatpush1.msra.mxu0 0.0
    %6365 = vmatprep.subr.mxu0 0.0
    %6366 = vmatpush1.msra.mxu0 0.0
    %6367 = vmatprep.mubr.f32.mxu0 0.0
    %6368 = vmatmul.mubr.f32.gmra.mrb[0].mxu0 %v6301
    %v6369 = vpop.f32.mrb[0].mxu0
    %v6370 = vadd.f32 0.0, %v6369
    %v6371 = vpop.f32.mrb[0].mxu0
    %6372 = vdwg.mxu0
    %v6373 = vadd.f32 %v6296, %v6370
    %v6374 = vxor.u32 %v6373, 2147483648
    %v6375 = vmul.f32 %v6374, 1.442695
    %v6376 = vpow.pop %v6375
    %v6377 = vadd.f32 %v6376, 1.0
    %v6378 = vrcp.pop %v6377
    %v6379 = vmul.f32 1.0, %v6378
    %v6380 = vtanh.pop %v6373
    %v6381 = vmul.f32 %v6379, %v5617
    %6383 = vrot.lane.b32.xlu0 %v6380, 64
    %v6384 = vpop.permute.xlu0 %6383
    %v6386 = vmul.f32 %v6379, %v6384
    %6388 = vrot.lane.b32.xlu0 %v6386, 32
    %v6389 = vpop.permute.xlu0 %6388
    %v6391 = vadd.f32 %v6381, %v6389
    %v6392 = vtanh.pop %v6391
    %6394 = vrot.lane.b32.xlu0 %v6392, 64
    %v6395 = vpop.permute.xlu0 %6394
    %v6397 = vmul.f32 %v6379, %v6395
    %6399 = vrot.lane.b32.xlu0 %v6397, 32
    %v6400 = vpop.permute.xlu0 %6399
    %6402 = vrot.lane.b32.xlu0 %v5743, 64
    %v6403 = vpop.permute.xlu0 %6402
    %v6405 = vsel %vm658, %v6400, %v6403
    %v6406 = vld [vmem:[%s23] sm:$0xff]
    %v6407 = vld [vmem:[%s23 + $0x8] sm:$0xff]
    %v6408 = vld [vmem:[%s23 + $0x10] sm:$0xff]
    %v6409 = vld [vmem:[%s23 + $0x18] sm:$0xff]
    %v6410 = vld [vmem:[%s23 + $0x20] sm:$0xff]
    %v6411 = vld [vmem:[%s23 + $0x28] sm:$0xff]
    %v6412 = vld [vmem:[%s23 + $0x30] sm:$0xff]
    %v6413 = vld [vmem:[%s23 + $0x38] sm:$0xff]
    %v6414 = vld [vmem:[%s25] sm:$0x1]
    %v6416 = vlaneseq
    %v6417 = vshrl.u32 %v6416, 7
    %v6418 = vsub.s32 0, %v6417
    %v6419 = vrot.slane %v6414, %v6418
    %v6422 = vsel %vm777, %v6405, 0
    %6424 = vmatprep.subr.mxu0 0.0
    %6425 = vmatpush1.msra.mxu0 %v6406
    %6426 = vmatprep.subr.mxu0 0.0
    %6427 = vmatpush1.msra.mxu0 %v6407
    %6428 = vmatprep.subr.mxu0 0.0
    %6429 = vmatpush1.msra.mxu0 %v6408
    %6430 = vmatprep.subr.mxu0 0.0
    %6431 = vmatpush1.msra.mxu0 %v6409
    %6432 = vmatprep.subr.mxu0 0.0
    %6433 = vmatpush1.msra.mxu0 %v6410
    %6434 = vmatprep.subr.mxu0 0.0
    %6435 = vmatpush1.msra.mxu0 %v6411
    %6436 = vmatprep.subr.mxu0 0.0
    %6437 = vmatpush1.msra.mxu0 %v6412
    %6438 = vmatprep.subr.mxu0 0.0
    %6439 = vmatpush1.msra.mxu0 %v6413
    %6440 = vmatprep.subr.mxu0 0.0
    %6441 = vmatpush1.msra.mxu0 0.0
    %6442 = vmatprep.subr.mxu0 0.0
    %6443 = vmatpush1.msra.mxu0 0.0
    %6444 = vmatprep.subr.mxu0 0.0
    %6445 = vmatpush1.msra.mxu0 0.0
    %6446 = vmatprep.subr.mxu0 0.0
    %6447 = vmatpush1.msra.mxu0 0.0
    %6448 = vmatprep.subr.mxu0 0.0
    %6449 = vmatpush1.msra.mxu0 0.0
    %6450 = vmatprep.subr.mxu0 0.0
    %6451 = vmatpush1.msra.mxu0 0.0
    %6452 = vmatprep.subr.mxu0 0.0
    %6453 = vmatpush1.msra.mxu0 0.0
    %6454 = vmatprep.subr.mxu0 0.0
    %6455 = vmatpush1.msra.mxu0 0.0
    %6456 = vmatprep.subr.mxu0 0.0
    %6457 = vmatpush1.msra.mxu0 0.0
    %6458 = vmatprep.subr.mxu0 0.0
    %6459 = vmatpush1.msra.mxu0 0.0
    %6460 = vmatprep.subr.mxu0 0.0
    %6461 = vmatpush1.msra.mxu0 0.0
    %6462 = vmatprep.subr.mxu0 0.0
    %6463 = vmatpush1.msra.mxu0 0.0
    %6464 = vmatprep.subr.mxu0 0.0
    %6465 = vmatpush1.msra.mxu0 0.0
    %6466 = vmatprep.subr.mxu0 0.0
    %6467 = vmatpush1.msra.mxu0 0.0
    %6468 = vmatprep.subr.mxu0 0.0
    %6469 = vmatpush1.msra.mxu0 0.0
    %6470 = vmatprep.subr.mxu0 0.0
    %6471 = vmatpush1.msra.mxu0 0.0
    %6472 = vmatprep.subr.mxu0 0.0
    %6473 = vmatpush1.msra.mxu0 0.0
    %6474 = vmatprep.subr.mxu0 0.0
    %6475 = vmatpush1.msra.mxu0 0.0
    %6476 = vmatprep.subr.mxu0 0.0
    %6477 = vmatpush1.msra.mxu0 0.0
    %6478 = vmatprep.subr.mxu0 0.0
    %6479 = vmatpush1.msra.mxu0 0.0
    %6480 = vmatprep.subr.mxu0 0.0
    %6481 = vmatpush1.msra.mxu0 0.0
    %6482 = vmatprep.subr.mxu0 0.0
    %6483 = vmatpush1.msra.mxu0 0.0
    %6484 = vmatprep.subr.mxu0 0.0
    %6485 = vmatpush1.msra.mxu0 0.0
    %6486 = vmatprep.subr.mxu0 0.0
    %6487 = vmatpush1.msra.mxu0 0.0
    %6488 = vmatprep.mubr.f32.mxu0 0.0
    %6489 = vmatmul.mubr.f32.gmra.mrb[0].mxu0 %v6422
    %v6490 = vpop.f32.mrb[0].mxu0
    %v6491 = vadd.f32 %v6419, %v6490
    %v6492 = vpop.f32.mrb[0].mxu0
    %6493 = vdwg.mxu0
    %v6494 = vxor.u32 %v6491, 2147483648
    %v6495 = vmul.f32 %v6494, 1.442695
    %v6496 = vpow.pop %v6495
    %v6497 = vadd.f32 %v6496, 1.0
    %v6498 = vrcp.pop %v6497
    %v6499 = vmul.f32 1.0, %v6498
    %v6500 = vtanh.pop %v6491
    %v6501 = vmul.f32 %v6499, %v5737
    %6503 = vrot.lane.b32.xlu0 %v6500, 64
    %v6504 = vpop.permute.xlu0 %6503
    %v6506 = vmul.f32 %v6499, %v6504
    %6508 = vrot.lane.b32.xlu0 %v6506, 32
    %v6509 = vpop.permute.xlu0 %6508
    %v6511 = vadd.f32 %v6501, %v6509
    %v6512 = vtanh.pop %v6511
    %6514 = vrot.lane.b32.xlu0 %v6512, 64
    %v6515 = vpop.permute.xlu0 %6514
    %v6517 = vmul.f32 %v6499, %v6515
    %v6518 = vld [vmem:[%s27] sm:$0xff]
    %v6519 = vld [vmem:[%s27 + $0x8] sm:$0xff]
    %v6520 = vld [vmem:[%s27 + $0x10] sm:$0xff]
    %v6521 = vld [vmem:[%s27 + $0x18] sm:$0xff]
    %v6522 = vld [vmem:[#allocation8] sm:$0x1]
    %v6524 = vlaneseq
    %v6525 = vshrl.u32 %v6524, 7
    %v6526 = vsub.s32 0, %v6525
    %v6527 = vrot.slane %v6522, %v6526
    %6530 = vrot.lane.b32.xlu0 %v6517, 32
    %v6531 = vpop.permute.xlu0 %6530
    %v6532 = vsel %vm658, %v6531, 0
    %6534 = vmatprep.subr.mxu0 0.0
    %6535 = vmatpush1.msra.mxu0 %v6518
    %6536 = vmatprep.subr.mxu0 0.0
    %6537 = vmatpush1.msra.mxu0 %v6519
    %6538 = vmatprep.subr.mxu0 0.0
    %6539 = vmatpush1.msra.mxu0 %v6520
    %6540 = vmatprep.subr.mxu0 0.0
    %6541 = vmatpush1.msra.mxu0 %v6521
    %6542 = vmatprep.subr.mxu0 0.0
    %6543 = vmatpush1.msra.mxu0 0.0
    %6544 = vmatprep.subr.mxu0 0.0
    %6545 = vmatpush1.msra.mxu0 0.0
    %6546 = vmatprep.subr.mxu0 0.0
    %6547 = vmatpush1.msra.mxu0 0.0
    %6548 = vmatprep.subr.mxu0 0.0
    %6549 = vmatpush1.msra.mxu0 0.0
    %6550 = vmatprep.subr.mxu0 0.0
    %6551 = vmatpush1.msra.mxu0 0.0
    %6552 = vmatprep.subr.mxu0 0.0
    %6553 = vmatpush1.msra.mxu0 0.0
    %6554 = vmatprep.subr.mxu0 0.0
    %6555 = vmatpush1.msra.mxu0 0.0
    %6556 = vmatprep.subr.mxu0 0.0
    %6557 = vmatpush1.msra.mxu0 0.0
    %6558 = vmatprep.subr.mxu0 0.0
    %6559 = vmatpush1.msra.mxu0 0.0
    %6560 = vmatprep.subr.mxu0 0.0
    %6561 = vmatpush1.msra.mxu0 0.0
    %6562 = vmatprep.subr.mxu0 0.0
    %6563 = vmatpush1.msra.mxu0 0.0
    %6564 = vmatprep.subr.mxu0 0.0
    %6565 = vmatpush1.msra.mxu0 0.0
    %6566 = vmatprep.subr.mxu0 0.0
    %6567 = vmatpush1.msra.mxu0 0.0
    %6568 = vmatprep.subr.mxu0 0.0
    %6569 = vmatpush1.msra.mxu0 0.0
    %6570 = vmatprep.subr.mxu0 0.0
    %6571 = vmatpush1.msra.mxu0 0.0
    %6572 = vmatprep.subr.mxu0 0.0
    %6573 = vmatpush1.msra.mxu0 0.0
    %6574 = vmatprep.subr.mxu0 0.0
    %6575 = vmatpush1.msra.mxu0 0.0
    %6576 = vmatprep.subr.mxu0 0.0
    %6577 = vmatpush1.msra.mxu0 0.0
    %6578 = vmatprep.subr.mxu0 0.0
    %6579 = vmatpush1.msra.mxu0 0.0
    %6580 = vmatprep.subr.mxu0 0.0
    %6581 = vmatpush1.msra.mxu0 0.0
    %6582 = vmatprep.subr.mxu0 0.0
    %6583 = vmatpush1.msra.mxu0 0.0
    %6584 = vmatprep.subr.mxu0 0.0
    %6585 = vmatpush1.msra.mxu0 0.0
    %6586 = vmatprep.subr.mxu0 0.0
    %6587 = vmatpush1.msra.mxu0 0.0
    %6588 = vmatprep.subr.mxu0 0.0
    %6589 = vmatpush1.msra.mxu0 0.0
    %6590 = vmatprep.subr.mxu0 0.0
    %6591 = vmatpush1.msra.mxu0 0.0
    %6592 = vmatprep.subr.mxu0 0.0
    %6593 = vmatpush1.msra.mxu0 0.0
    %6594 = vmatprep.subr.mxu0 0.0
    %6595 = vmatpush1.msra.mxu0 0.0
    %6596 = vmatprep.subr.mxu0 0.0
    %6597 = vmatpush1.msra.mxu0 0.0
    %6598 = vmatprep.mubr.f32.mxu0 0.0
    %6599 = vmatmul.mubr.f32.gmra.mrb[0].mxu0 %v6532
    %v6600 = vpop.f32.mrb[0].mxu0
    %v6601 = vadd.f32 %v6527, %v6600
    %v6602 = vpop.f32.mrb[0].mxu0
    %6603 = vdwg.mxu0
    %s6604 = scalar_lea.vmem %s5, 40
    %v6605 = vld [vmem:[%s6604] sm:$0xff]
    %v6606 = vld [vmem:[%s31] sm:$0xf]
    %v6607 = vld [vmem:[%s33] sm:$0x3]
    %v6609 = vsel %vm3043, %v6601, 0
    %v6612 = vsel %vm3047, %v6607, 0
    %6614 = vmatprep.subr.mxu0 0.0
    %6615 = vmatpush1.msra.mxu0 %v6612
    %6616 = vmatprep.subr.mxu0 0.0
    %6617 = vmatpush1.msra.mxu0 0.0
    %6618 = vmatprep.subr.mxu0 0.0
    %6619 = vmatpush1.msra.mxu0 0.0
    %6620 = vmatprep.subr.mxu0 0.0
    %6621 = vmatpush1.msra.mxu0 0.0
    %6622 = vmatprep.subr.mxu0 0.0
    %6623 = vmatpush1.msra.mxu0 0.0
    %6624 = vmatprep.subr.mxu0 0.0
    %6625 = vmatpush1.msra.mxu0 0.0
    %6626 = vmatprep.subr.mxu0 0.0
    %6627 = vmatpush1.msra.mxu0 0.0
    %6628 = vmatprep.subr.mxu0 0.0
    %6629 = vmatpush1.msra.mxu0 0.0
    %6630 = vmatprep.subr.mxu0 0.0
    %6631 = vmatpush1.msra.mxu0 0.0
    %6632 = vmatprep.subr.mxu0 0.0
    %6633 = vmatpush1.msra.mxu0 0.0
    %6634 = vmatprep.subr.mxu0 0.0
    %6635 = vmatpush1.msra.mxu0 0.0
    %6636 = vmatprep.subr.mxu0 0.0
    %6637 = vmatpush1.msra.mxu0 0.0
    %6638 = vmatprep.subr.mxu0 0.0
    %6639 = vmatpush1.msra.mxu0 0.0
    %6640 = vmatprep.subr.mxu0 0.0
    %6641 = vmatpush1.msra.mxu0 0.0
    %6642 = vmatprep.subr.mxu0 0.0
    %6643 = vmatpush1.msra.mxu0 0.0
    %6644 = vmatprep.subr.mxu0 0.0
    %6645 = vmatpush1.msra.mxu0 0.0
    %6646 = vmatprep.subr.mxu0 0.0
    %6647 = vmatpush1.msra.mxu0 0.0
    %6648 = vmatprep.subr.mxu0 0.0
    %6649 = vmatpush1.msra.mxu0 0.0
    %6650 = vmatprep.subr.mxu0 0.0
    %6651 = vmatpush1.msra.mxu0 0.0
    %6652 = vmatprep.subr.mxu0 0.0
    %6653 = vmatpush1.msra.mxu0 0.0
    %6654 = vmatprep.subr.mxu0 0.0
    %6655 = vmatpush1.msra.mxu0 0.0
    %6656 = vmatprep.subr.mxu0 0.0
    %6657 = vmatpush1.msra.mxu0 0.0
    %6658 = vmatprep.subr.mxu0 0.0
    %6659 = vmatpush1.msra.mxu0 0.0
    %6660 = vmatprep.subr.mxu0 0.0
    %6661 = vmatpush1.msra.mxu0 0.0
    %6662 = vmatprep.subr.mxu0 0.0
    %6663 = vmatpush1.msra.mxu0 0.0
    %6664 = vmatprep.subr.mxu0 0.0
    %6665 = vmatpush1.msra.mxu0 0.0
    %6666 = vmatprep.subr.mxu0 0.0
    %6667 = vmatpush1.msra.mxu0 0.0
    %6668 = vmatprep.subr.mxu0 0.0
    %6669 = vmatpush1.msra.mxu0 0.0
    %6670 = vmatprep.subr.mxu0 0.0
    %6671 = vmatpush1.msra.mxu0 0.0
    %6672 = vmatprep.subr.mxu0 0.0
    %6673 = vmatpush1.msra.mxu0 0.0
    %6674 = vmatprep.subr.mxu0 0.0
    %6675 = vmatpush1.msra.mxu0 0.0
    %6676 = vmatprep.subr.mxu0 0.0
    %6677 = vmatpush1.msra.mxu0 0.0
    %6678 = vmatprep.mubr.f32.mxu0 0.0
    %6679 = vmatmul.mubr.f32.gmra.mrb[0].mxu0 %v6609
    %v6680 = vpop.f32.mrb[0].mxu0
    %v6681 = vadd.f32 0.0, %v6680
    %v6682 = vpop.f32.mrb[0].mxu0
    %6683 = vdwg.mxu0
    %v6685 = vsel %vm3121, %v6605, 0
    %v6688 = vsel %vm3125, %v6606, 0
    %6690 = vmatprep.subr.mxu0 0.0
    %6691 = vmatpush1.msra.mxu0 %v6688
    %6692 = vmatprep.subr.mxu0 0.0
    %6693 = vmatpush1.msra.mxu0 0.0
    %6694 = vmatprep.subr.mxu0 0.0
    %6695 = vmatpush1.msra.mxu0 0.0
    %6696 = vmatprep.subr.mxu0 0.0
    %6697 = vmatpush1.msra.mxu0 0.0
    %6698 = vmatprep.subr.mxu0 0.0
    %6699 = vmatpush1.msra.mxu0 0.0
    %6700 = vmatprep.subr.mxu0 0.0
    %6701 = vmatpush1.msra.mxu0 0.0
    %6702 = vmatprep.subr.mxu0 0.0
    %6703 = vmatpush1.msra.mxu0 0.0
    %6704 = vmatprep.subr.mxu0 0.0
    %6705 = vmatpush1.msra.mxu0 0.0
    %6706 = vmatprep.subr.mxu0 0.0
    %6707 = vmatpush1.msra.mxu0 0.0
    %6708 = vmatprep.subr.mxu0 0.0
    %6709 = vmatpush1.msra.mxu0 0.0
    %6710 = vmatprep.subr.mxu0 0.0
    %6711 = vmatpush1.msra.mxu0 0.0
    %6712 = vmatprep.subr.mxu0 0.0
    %6713 = vmatpush1.msra.mxu0 0.0
    %6714 = vmatprep.subr.mxu0 0.0
    %6715 = vmatpush1.msra.mxu0 0.0
    %6716 = vmatprep.subr.mxu0 0.0
    %6717 = vmatpush1.msra.mxu0 0.0
    %6718 = vmatprep.subr.mxu0 0.0
    %6719 = vmatpush1.msra.mxu0 0.0
    %6720 = vmatprep.subr.mxu0 0.0
    %6721 = vmatpush1.msra.mxu0 0.0
    %6722 = vmatprep.subr.mxu0 0.0
    %6723 = vmatpush1.msra.mxu0 0.0
    %6724 = vmatprep.subr.mxu0 0.0
    %6725 = vmatpush1.msra.mxu0 0.0
    %6726 = vmatprep.subr.mxu0 0.0
    %6727 = vmatpush1.msra.mxu0 0.0
    %6728 = vmatprep.subr.mxu0 0.0
    %6729 = vmatpush1.msra.mxu0 0.0
    %6730 = vmatprep.subr.mxu0 0.0
    %6731 = vmatpush1.msra.mxu0 0.0
    %6732 = vmatprep.subr.mxu0 0.0
    %6733 = vmatpush1.msra.mxu0 0.0
    %6734 = vmatprep.subr.mxu0 0.0
    %6735 = vmatpush1.msra.mxu0 0.0
    %6736 = vmatprep.subr.mxu0 0.0
    %6737 = vmatpush1.msra.mxu0 0.0
    %6738 = vmatprep.subr.mxu0 0.0
    %6739 = vmatpush1.msra.mxu0 0.0
    %6740 = vmatprep.subr.mxu0 0.0
    %6741 = vmatpush1.msra.mxu0 0.0
    %6742 = vmatprep.subr.mxu0 0.0
    %6743 = vmatpush1.msra.mxu0 0.0
    %6744 = vmatprep.subr.mxu0 0.0
    %6745 = vmatpush1.msra.mxu0 0.0
    %6746 = vmatprep.subr.mxu0 0.0
    %6747 = vmatpush1.msra.mxu0 0.0
    %6748 = vmatprep.subr.mxu0 0.0
    %6749 = vmatpush1.msra.mxu0 0.0
    %6750 = vmatprep.subr.mxu0 0.0
    %6751 = vmatpush1.msra.mxu0 0.0
    %6752 = vmatprep.subr.mxu0 0.0
    %6753 = vmatpush1.msra.mxu0 0.0
    %6754 = vmatprep.mubr.f32.mxu0 0.0
    %6755 = vmatmul.mubr.f32.gmra.mrb[0].mxu0 %v6685
    %v6756 = vpop.f32.mrb[0].mxu0
    %v6757 = vadd.f32 %v6681, %v6756
    %v6758 = vpop.f32.mrb[0].mxu0
    %6759 = vdwg.mxu0
    %s6760 = scalar_lea.vmem [#allocation6], 40
    %6761 = vst.msk [vmem:[%s6760] sm:$0xff] %vm3121, %v6757
    %s6762 = scalar_lea.vmem [#allocation5], 32
    %v6763 = vld [vmem:[%s6762] sm:$0xff]
    %v6764 = vld [vmem:[%s47] sm:$0xf]
    %v6766 = vsel %vm3121, %v5983, 0
    %v6769 = vsel %vm3125, %v6764, 0
    %6771 = vmatprep.subr.mxu0 0.0
    %6772 = vmatpush1.msra.mxu0 %v6769
    %6773 = vmatprep.subr.mxu0 0.0
    %6774 = vmatpush1.msra.mxu0 0.0
    %6775 = vmatprep.subr.mxu0 0.0
    %6776 = vmatpush1.msra.mxu0 0.0
    %6777 = vmatprep.subr.mxu0 0.0
    %6778 = vmatpush1.msra.mxu0 0.0
    %6779 = vmatprep.subr.mxu0 0.0
    %6780 = vmatpush1.msra.mxu0 0.0
    %6781 = vmatprep.subr.mxu0 0.0
    %6782 = vmatpush1.msra.mxu0 0.0
    %6783 = vmatprep.subr.mxu0 0.0
    %6784 = vmatpush1.msra.mxu0 0.0
    %6785 = vmatprep.subr.mxu0 0.0
    %6786 = vmatpush1.msra.mxu0 0.0
    %6787 = vmatprep.subr.mxu0 0.0
    %6788 = vmatpush1.msra.mxu0 0.0
    %6789 = vmatprep.subr.mxu0 0.0
    %6790 = vmatpush1.msra.mxu0 0.0
    %6791 = vmatprep.subr.mxu0 0.0
    %6792 = vmatpush1.msra.mxu0 0.0
    %6793 = vmatprep.subr.mxu0 0.0
    %6794 = vmatpush1.msra.mxu0 0.0
    %6795 = vmatprep.subr.mxu0 0.0
    %6796 = vmatpush1.msra.mxu0 0.0
    %6797 = vmatprep.subr.mxu0 0.0
    %6798 = vmatpush1.msra.mxu0 0.0
    %6799 = vmatprep.subr.mxu0 0.0
    %6800 = vmatpush1.msra.mxu0 0.0
    %6801 = vmatprep.subr.mxu0 0.0
    %6802 = vmatpush1.msra.mxu0 0.0
    %6803 = vmatprep.subr.mxu0 0.0
    %6804 = vmatpush1.msra.mxu0 0.0
    %6805 = vmatprep.subr.mxu0 0.0
    %6806 = vmatpush1.msra.mxu0 0.0
    %6807 = vmatprep.subr.mxu0 0.0
    %6808 = vmatpush1.msra.mxu0 0.0
    %6809 = vmatprep.subr.mxu0 0.0
    %6810 = vmatpush1.msra.mxu0 0.0
    %6811 = vmatprep.subr.mxu0 0.0
    %6812 = vmatpush1.msra.mxu0 0.0
    %6813 = vmatprep.subr.mxu0 0.0
    %6814 = vmatpush1.msra.mxu0 0.0
    %6815 = vmatprep.subr.mxu0 0.0
    %6816 = vmatpush1.msra.mxu0 0.0
    %6817 = vmatprep.subr.mxu0 0.0
    %6818 = vmatpush1.msra.mxu0 0.0
    %6819 = vmatprep.subr.mxu0 0.0
    %6820 = vmatpush1.msra.mxu0 0.0
    %6821 = vmatprep.subr.mxu0 0.0
    %6822 = vmatpush1.msra.mxu0 0.0
    %6823 = vmatprep.subr.mxu0 0.0
    %6824 = vmatpush1.msra.mxu0 0.0
    %6825 = vmatprep.subr.mxu0 0.0
    %6826 = vmatpush1.msra.mxu0 0.0
    %6827 = vmatprep.subr.mxu0 0.0
    %6828 = vmatpush1.msra.mxu0 0.0
    %6829 = vmatprep.subr.mxu0 0.0
    %6830 = vmatpush1.msra.mxu0 0.0
    %6831 = vmatprep.subr.mxu0 0.0
    %6832 = vmatpush1.msra.mxu0 0.0
    %6833 = vmatprep.subr.mxu0 0.0
    %6834 = vmatpush1.msra.mxu0 0.0
    %6835 = vmatprep.mubr.f32.mxu0 0.0
    %6836 = vmatmul.mubr.f32.gmra.mrb[0].mxu0 %v6766
    %v6837 = vpop.f32.mrb[0].mxu0
    %v6838 = vadd.f32 0.0, %v6837
    %v6839 = vpop.f32.mrb[0].mxu0
    %6840 = vdwg.mxu0
    %v6841 = vadd.f32 %v6763, %v6838
    %v6842 = vld [vmem:[%s49] sm:$0xff]
    %v6843 = vld [vmem:[%s49 + $0x8] sm:$0xff]
    %v6844 = vld [vmem:[%s49 + $0x10] sm:$0xff]
    %v6845 = vld [vmem:[%s49 + $0x18] sm:$0xff]
    %v6846 = vsel %vm658, %v6171, 0
    %6848 = vmatprep.subr.mxu0 0.0
    %6849 = vmatpush1.msra.mxu0 %v6842
    %6850 = vmatprep.subr.mxu0 0.0
    %6851 = vmatpush1.msra.mxu0 %v6843
    %6852 = vmatprep.subr.mxu0 0.0
    %6853 = vmatpush1.msra.mxu0 %v6844
    %6854 = vmatprep.subr.mxu0 0.0
    %6855 = vmatpush1.msra.mxu0 %v6845
    %6856 = vmatprep.subr.mxu0 0.0
    %6857 = vmatpush1.msra.mxu0 0.0
    %6858 = vmatprep.subr.mxu0 0.0
    %6859 = vmatpush1.msra.mxu0 0.0
    %6860 = vmatprep.subr.mxu0 0.0
    %6861 = vmatpush1.msra.mxu0 0.0
    %6862 = vmatprep.subr.mxu0 0.0
    %6863 = vmatpush1.msra.mxu0 0.0
    %6864 = vmatprep.subr.mxu0 0.0
    %6865 = vmatpush1.msra.mxu0 0.0
    %6866 = vmatprep.subr.mxu0 0.0
    %6867 = vmatpush1.msra.mxu0 0.0
    %6868 = vmatprep.subr.mxu0 0.0
    %6869 = vmatpush1.msra.mxu0 0.0
    %6870 = vmatprep.subr.mxu0 0.0
    %6871 = vmatpush1.msra.mxu0 0.0
    %6872 = vmatprep.subr.mxu0 0.0
    %6873 = vmatpush1.msra.mxu0 0.0
    %6874 = vmatprep.subr.mxu0 0.0
    %6875 = vmatpush1.msra.mxu0 0.0
    %6876 = vmatprep.subr.mxu0 0.0
    %6877 = vmatpush1.msra.mxu0 0.0
    %6878 = vmatprep.subr.mxu0 0.0
    %6879 = vmatpush1.msra.mxu0 0.0
    %6880 = vmatprep.subr.mxu0 0.0
    %6881 = vmatpush1.msra.mxu0 0.0
    %6882 = vmatprep.subr.mxu0 0.0
    %6883 = vmatpush1.msra.mxu0 0.0
    %6884 = vmatprep.subr.mxu0 0.0
    %6885 = vmatpush1.msra.mxu0 0.0
    %6886 = vmatprep.subr.mxu0 0.0
    %6887 = vmatpush1.msra.mxu0 0.0
    %6888 = vmatprep.subr.mxu0 0.0
    %6889 = vmatpush1.msra.mxu0 0.0
    %6890 = vmatprep.subr.mxu0 0.0
    %6891 = vmatpush1.msra.mxu0 0.0
    %6892 = vmatprep.subr.mxu0 0.0
    %6893 = vmatpush1.msra.mxu0 0.0
    %6894 = vmatprep.subr.mxu0 0.0
    %6895 = vmatpush1.msra.mxu0 0.0
    %6896 = vmatprep.subr.mxu0 0.0
    %6897 = vmatpush1.msra.mxu0 0.0
    %6898 = vmatprep.subr.mxu0 0.0
    %6899 = vmatpush1.msra.mxu0 0.0
    %6900 = vmatprep.subr.mxu0 0.0
    %6901 = vmatpush1.msra.mxu0 0.0
    %6902 = vmatprep.subr.mxu0 0.0
    %6903 = vmatpush1.msra.mxu0 0.0
    %6904 = vmatprep.subr.mxu0 0.0
    %6905 = vmatpush1.msra.mxu0 0.0
    %6906 = vmatprep.subr.mxu0 0.0
    %6907 = vmatpush1.msra.mxu0 0.0
    %6908 = vmatprep.subr.mxu0 0.0
    %6909 = vmatpush1.msra.mxu0 0.0
    %6910 = vmatprep.subr.mxu0 0.0
    %6911 = vmatpush1.msra.mxu0 0.0
    %6912 = vmatprep.mubr.f32.mxu0 0.0
    %6913 = vmatmul.mubr.f32.gmra.mrb[0].mxu0 %v6846
    %v6914 = vpop.f32.mrb[0].mxu0
    %v6915 = vadd.f32 0.0, %v6914
    %v6916 = vpop.f32.mrb[0].mxu0
    %6917 = vdwg.mxu0
    %v6918 = vadd.f32 %v6841, %v6915
    %v6919 = vxor.u32 %v6918, 2147483648
    %v6920 = vmul.f32 %v6919, 1.442695
    %v6921 = vpow.pop %v6920
    %v6922 = vadd.f32 %v6921, 1.0
    %v6923 = vrcp.pop %v6922
    %v6924 = vmul.f32 1.0, %v6923
    %v6925 = vtanh.pop %v6918
    %v6926 = vmul.f32 %v6924, %v6162
    %6928 = vrot.lane.b32.xlu0 %v6925, 64
    %v6929 = vpop.permute.xlu0 %6928
    %v6931 = vmul.f32 %v6924, %v6929
    %6933 = vrot.lane.b32.xlu0 %v6931, 32
    %v6934 = vpop.permute.xlu0 %6933
    %v6936 = vadd.f32 %v6926, %v6934
    %v6937 = vtanh.pop %v6936
    %6939 = vrot.lane.b32.xlu0 %v6937, 64
    %v6940 = vpop.permute.xlu0 %6939
    %v6942 = vmul.f32 %v6924, %v6940
    %6944 = vrot.lane.b32.xlu0 %v6942, 32
    %v6945 = vpop.permute.xlu0 %6944
    %6947 = vrot.lane.b32.xlu0 %v6288, 64
    %v6948 = vpop.permute.xlu0 %6947
    %v6950 = vsel %vm658, %v6945, %v6948
    %v6951 = vld [vmem:[%s53] sm:$0xff]
    %v6952 = vld [vmem:[%s53 + $0x8] sm:$0xff]
    %v6953 = vld [vmem:[%s53 + $0x10] sm:$0xff]
    %v6954 = vld [vmem:[%s53 + $0x18] sm:$0xff]
    %v6955 = vld [vmem:[%s53 + $0x20] sm:$0xff]
    %v6956 = vld [vmem:[%s53 + $0x28] sm:$0xff]
    %v6957 = vld [vmem:[%s53 + $0x30] sm:$0xff]
    %v6958 = vld [vmem:[%s53 + $0x38] sm:$0xff]
    %v6959 = vld [vmem:[%s55] sm:$0x1]
    %v6961 = vlaneseq
    %v6962 = vshrl.u32 %v6961, 7
    %v6963 = vsub.s32 0, %v6962
    %v6964 = vrot.slane %v6959, %v6963
    %v6967 = vsel %vm777, %v6950, 0
    %6969 = vmatprep.subr.mxu0 0.0
    %6970 = vmatpush1.msra.mxu0 %v6951
    %6971 = vmatprep.subr.mxu0 0.0
    %6972 = vmatpush1.msra.mxu0 %v6952
    %6973 = vmatprep.subr.mxu0 0.0
    %6974 = vmatpush1.msra.mxu0 %v6953
    %6975 = vmatprep.subr.mxu0 0.0
    %6976 = vmatpush1.msra.mxu0 %v6954
    %6977 = vmatprep.subr.mxu0 0.0
    %6978 = vmatpush1.msra.mxu0 %v6955
    %6979 = vmatprep.subr.mxu0 0.0
    %6980 = vmatpush1.msra.mxu0 %v6956
    %6981 = vmatprep.subr.mxu0 0.0
    %6982 = vmatpush1.msra.mxu0 %v6957
    %6983 = vmatprep.subr.mxu0 0.0
    %6984 = vmatpush1.msra.mxu0 %v6958
    %6985 = vmatprep.subr.mxu0 0.0
    %6986 = vmatpush1.msra.mxu0 0.0
    %6987 = vmatprep.subr.mxu0 0.0
    %6988 = vmatpush1.msra.mxu0 0.0
    %6989 = vmatprep.subr.mxu0 0.0
    %6990 = vmatpush1.msra.mxu0 0.0
    %6991 = vmatprep.subr.mxu0 0.0
    %6992 = vmatpush1.msra.mxu0 0.0
    %6993 = vmatprep.subr.mxu0 0.0
    %6994 = vmatpush1.msra.mxu0 0.0
    %6995 = vmatprep.subr.mxu0 0.0
    %6996 = vmatpush1.msra.mxu0 0.0
    %6997 = vmatprep.subr.mxu0 0.0
    %6998 = vmatpush1.msra.mxu0 0.0
    %6999 = vmatprep.subr.mxu0 0.0
    %7000 = vmatpush1.msra.mxu0 0.0
    %7001 = vmatprep.subr.mxu0 0.0
    %7002 = vmatpush1.msra.mxu0 0.0
    %7003 = vmatprep.subr.mxu0 0.0
    %7004 = vmatpush1.msra.mxu0 0.0
    %7005 = vmatprep.subr.mxu0 0.0
    %7006 = vmatpush1.msra.mxu0 0.0
    %7007 = vmatprep.subr.mxu0 0.0
    %7008 = vmatpush1.msra.mxu0 0.0
    %7009 = vmatprep.subr.mxu0 0.0
    %7010 = vmatpush1.msra.mxu0 0.0
    %7011 = vmatprep.subr.mxu0 0.0
    %7012 = vmatpush1.msra.mxu0 0.0
    %7013 = vmatprep.subr.mxu0 0.0
    %7014 = vmatpush1.msra.mxu0 0.0
    %7015 = vmatprep.subr.mxu0 0.0
    %7016 = vmatpush1.msra.mxu0 0.0
    %7017 = vmatprep.subr.mxu0 0.0
    %7018 = vmatpush1.msra.mxu0 0.0
    %7019 = vmatprep.subr.mxu0 0.0
    %7020 = vmatpush1.msra.mxu0 0.0
    %7021 = vmatprep.subr.mxu0 0.0
    %7022 = vmatpush1.msra.mxu0 0.0
    %7023 = vmatprep.subr.mxu0 0.0
    %7024 = vmatpush1.msra.mxu0 0.0
    %7025 = vmatprep.subr.mxu0 0.0
    %7026 = vmatpush1.msra.mxu0 0.0
    %7027 = vmatprep.subr.mxu0 0.0
    %7028 = vmatpush1.msra.mxu0 0.0
    %7029 = vmatprep.subr.mxu0 0.0
    %7030 = vmatpush1.msra.mxu0 0.0
    %7031 = vmatprep.subr.mxu0 0.0
    %7032 = vmatpush1.msra.mxu0 0.0
    %7033 = vmatprep.mubr.f32.mxu0 0.0
    %7034 = vmatmul.mubr.f32.gmra.mrb[0].mxu0 %v6967
    %v7035 = vpop.f32.mrb[0].mxu0
    %v7036 = vadd.f32 %v6964, %v7035
    %v7037 = vpop.f32.mrb[0].mxu0
    %7038 = vdwg.mxu0
    %v7039 = vxor.u32 %v7036, 2147483648
    %v7040 = vmul.f32 %v7039, 1.442695
    %v7041 = vpow.pop %v7040
    %v7042 = vadd.f32 %v7041, 1.0
    %v7043 = vrcp.pop %v7042
    %v7044 = vmul.f32 1.0, %v7043
    %v7045 = vtanh.pop %v7036
    %v7046 = vmul.f32 %v7044, %v6282
    %7048 = vrot.lane.b32.xlu0 %v7045, 64
    %v7049 = vpop.permute.xlu0 %7048
    %v7051 = vmul.f32 %v7044, %v7049
    %7053 = vrot.lane.b32.xlu0 %v7051, 32
    %v7054 = vpop.permute.xlu0 %7053
    %v7056 = vadd.f32 %v7046, %v7054
    %v7057 = vtanh.pop %v7056
    %7059 = vrot.lane.b32.xlu0 %v7057, 64
    %v7060 = vpop.permute.xlu0 %7059
    %v7062 = vmul.f32 %v7044, %v7060
    %7064 = vrot.lane.b32.xlu0 %v7062, 32
    %v7065 = vpop.permute.xlu0 %7064
    %s7067 = scalar_lea.vmem [#allocation7], 32
    %7068 = vst.msk [vmem:[%s7067] sm:$0xff] %vm658, %v7065
    %s7069 = scalar_lea.vmem [#allocation4], 48
    %v7070 = vld [vmem:[%s7069] sm:$0xff]
    %v7071 = vld [vmem:[%s19] sm:$0xff]
    %v7072 = vld [vmem:[%s19 + $0x8] sm:$0xff]
    %v7073 = vld [vmem:[%s19 + $0x10] sm:$0xff]
    %v7074 = vld [vmem:[%s19 + $0x18] sm:$0xff]
    %v7075 = vsel %vm658, %v6400, 0
    %7077 = vmatprep.subr.mxu0 0.0
    %7078 = vmatpush1.msra.mxu0 %v7071
    %7079 = vmatprep.subr.mxu0 0.0
    %7080 = vmatpush1.msra.mxu0 %v7072
    %7081 = vmatprep.subr.mxu0 0.0
    %7082 = vmatpush1.msra.mxu0 %v7073
    %7083 = vmatprep.subr.mxu0 0.0
    %7084 = vmatpush1.msra.mxu0 %v7074
    %7085 = vmatprep.subr.mxu0 0.0
    %7086 = vmatpush1.msra.mxu0 0.0
    %7087 = vmatprep.subr.mxu0 0.0
    %7088 = vmatpush1.msra.mxu0 0.0
    %7089 = vmatprep.subr.mxu0 0.0
    %7090 = vmatpush1.msra.mxu0 0.0
    %7091 = vmatprep.subr.mxu0 0.0
    %7092 = vmatpush1.msra.mxu0 0.0
    %7093 = vmatprep.subr.mxu0 0.0
    %7094 = vmatpush1.msra.mxu0 0.0
    %7095 = vmatprep.subr.mxu0 0.0
    %7096 = vmatpush1.msra.mxu0 0.0
    %7097 = vmatprep.subr.mxu0 0.0
    %7098 = vmatpush1.msra.mxu0 0.0
    %7099 = vmatprep.subr.mxu0 0.0
    %7100 = vmatpush1.msra.mxu0 0.0
    %7101 = vmatprep.subr.mxu0 0.0
    %7102 = vmatpush1.msra.mxu0 0.0
    %7103 = vmatprep.subr.mxu0 0.0
    %7104 = vmatpush1.msra.mxu0 0.0
    %7105 = vmatprep.subr.mxu0 0.0
    %7106 = vmatpush1.msra.mxu0 0.0
    %7107 = vmatprep.subr.mxu0 0.0
    %7108 = vmatpush1.msra.mxu0 0.0
    %7109 = vmatprep.subr.mxu0 0.0
    %7110 = vmatpush1.msra.mxu0 0.0
    %7111 = vmatprep.subr.mxu0 0.0
    %7112 = vmatpush1.msra.mxu0 0.0
    %7113 = vmatprep.subr.mxu0 0.0
    %7114 = vmatpush1.msra.mxu0 0.0
    %7115 = vmatprep.subr.mxu0 0.0
    %7116 = vmatpush1.msra.mxu0 0.0
    %7117 = vmatprep.subr.mxu0 0.0
    %7118 = vmatpush1.msra.mxu0 0.0
    %7119 = vmatprep.subr.mxu0 0.0
    %7120 = vmatpush1.msra.mxu0 0.0
    %7121 = vmatprep.subr.mxu0 0.0
    %7122 = vmatpush1.msra.mxu0 0.0
    %7123 = vmatprep.subr.mxu0 0.0
    %7124 = vmatpush1.msra.mxu0 0.0
    %7125 = vmatprep.subr.mxu0 0.0
    %7126 = vmatpush1.msra.mxu0 0.0
    %7127 = vmatprep.subr.mxu0 0.0
    %7128 = vmatpush1.msra.mxu0 0.0
    %7129 = vmatprep.subr.mxu0 0.0
    %7130 = vmatpush1.msra.mxu0 0.0
    %7131 = vmatprep.subr.mxu0 0.0
    %7132 = vmatpush1.msra.mxu0 0.0
    %7133 = vmatprep.subr.mxu0 0.0
    %7134 = vmatpush1.msra.mxu0 0.0
    %7135 = vmatprep.subr.mxu0 0.0
    %7136 = vmatpush1.msra.mxu0 0.0
    %7137 = vmatprep.subr.mxu0 0.0
    %7138 = vmatpush1.msra.mxu0 0.0
    %7139 = vmatprep.subr.mxu0 0.0
    %7140 = vmatpush1.msra.mxu0 0.0
    %7141 = vmatprep.mubr.f32.mxu0 0.0
    %7142 = vmatmul.mubr.f32.gmra.mrb[0].mxu0 %v7075
    %v7143 = vpop.f32.mrb[0].mxu0
    %v7144 = vadd.f32 0.0, %v7143
    %v7145 = vpop.f32.mrb[0].mxu0
    %7146 = vdwg.mxu0
    %v7147 = vadd.f32 %v7070, %v7144
    %v7148 = vxor.u32 %v7147, 2147483648
    %v7149 = vmul.f32 %v7148, 1.442695
    %v7150 = vpow.pop %v7149
    %v7151 = vadd.f32 %v7150, 1.0
    %v7152 = vrcp.pop %v7151
    %v7153 = vmul.f32 1.0, %v7152
    %v7154 = vtanh.pop %v7147
    %v7155 = vmul.f32 %v7153, %v6391
    %7157 = vrot.lane.b32.xlu0 %v7154, 64
    %v7158 = vpop.permute.xlu0 %7157
    %v7160 = vmul.f32 %v7153, %v7158
    %7162 = vrot.lane.b32.xlu0 %v7160, 32
    %v7163 = vpop.permute.xlu0 %7162
    %v7165 = vadd.f32 %v7155, %v7163
    %v7166 = vtanh.pop %v7165
    %7168 = vrot.lane.b32.xlu0 %v7166, 64
    %v7169 = vpop.permute.xlu0 %7168
    %v7171 = vmul.f32 %v7153, %v7169
    %7173 = vrot.lane.b32.xlu0 %v7171, 32
    %v7174 = vpop.permute.xlu0 %7173
    %7176 = vrot.lane.b32.xlu0 %v6517, 64
    %v7177 = vpop.permute.xlu0 %7176
    %v7179 = vsel %vm658, %v7174, %v7177
    %v7180 = vld [vmem:[%s23] sm:$0xff]
    %v7181 = vld [vmem:[%s23 + $0x8] sm:$0xff]
    %v7182 = vld [vmem:[%s23 + $0x10] sm:$0xff]
    %v7183 = vld [vmem:[%s23 + $0x18] sm:$0xff]
    %v7184 = vld [vmem:[%s23 + $0x20] sm:$0xff]
    %v7185 = vld [vmem:[%s23 + $0x28] sm:$0xff]
    %v7186 = vld [vmem:[%s23 + $0x30] sm:$0xff]
    %v7187 = vld [vmem:[%s23 + $0x38] sm:$0xff]
    %v7188 = vld [vmem:[%s25] sm:$0x1]
    %v7190 = vlaneseq
    %v7191 = vshrl.u32 %v7190, 7
    %v7192 = vsub.s32 0, %v7191
    %v7193 = vrot.slane %v7188, %v7192
    %v7196 = vsel %vm777, %v7179, 0
    %7198 = vmatprep.subr.mxu0 0.0
    %7199 = vmatpush1.msra.mxu0 %v7180
    %7200 = vmatprep.subr.mxu0 0.0
    %7201 = vmatpush1.msra.mxu0 %v7181
    %7202 = vmatprep.subr.mxu0 0.0
    %7203 = vmatpush1.msra.mxu0 %v7182
    %7204 = vmatprep.subr.mxu0 0.0
    %7205 = vmatpush1.msra.mxu0 %v7183
    %7206 = vmatprep.subr.mxu0 0.0
    %7207 = vmatpush1.msra.mxu0 %v7184
    %7208 = vmatprep.subr.mxu0 0.0
    %7209 = vmatpush1.msra.mxu0 %v7185
    %7210 = vmatprep.subr.mxu0 0.0
    %7211 = vmatpush1.msra.mxu0 %v7186
    %7212 = vmatprep.subr.mxu0 0.0
    %7213 = vmatpush1.msra.mxu0 %v7187
    %7214 = vmatprep.subr.mxu0 0.0
    %7215 = vmatpush1.msra.mxu0 0.0
    %7216 = vmatprep.subr.mxu0 0.0
    %7217 = vmatpush1.msra.mxu0 0.0
    %7218 = vmatprep.subr.mxu0 0.0
    %7219 = vmatpush1.msra.mxu0 0.0
    %7220 = vmatprep.subr.mxu0 0.0
    %7221 = vmatpush1.msra.mxu0 0.0
    %7222 = vmatprep.subr.mxu0 0.0
    %7223 = vmatpush1.msra.mxu0 0.0
    %7224 = vmatprep.subr.mxu0 0.0
    %7225 = vmatpush1.msra.mxu0 0.0
    %7226 = vmatprep.subr.mxu0 0.0
    %7227 = vmatpush1.msra.mxu0 0.0
    %7228 = vmatprep.subr.mxu0 0.0
    %7229 = vmatpush1.msra.mxu0 0.0
    %7230 = vmatprep.subr.mxu0 0.0
    %7231 = vmatpush1.msra.mxu0 0.0
    %7232 = vmatprep.subr.mxu0 0.0
    %7233 = vmatpush1.msra.mxu0 0.0
    %7234 = vmatprep.subr.mxu0 0.0
    %7235 = vmatpush1.msra.mxu0 0.0
    %7236 = vmatprep.subr.mxu0 0.0
    %7237 = vmatpush1.msra.mxu0 0.0
    %7238 = vmatprep.subr.mxu0 0.0
    %7239 = vmatpush1.msra.mxu0 0.0
    %7240 = vmatprep.subr.mxu0 0.0
    %7241 = vmatpush1.msra.mxu0 0.0
    %7242 = vmatprep.subr.mxu0 0.0
    %7243 = vmatpush1.msra.mxu0 0.0
    %7244 = vmatprep.subr.mxu0 0.0
    %7245 = vmatpush1.msra.mxu0 0.0
    %7246 = vmatprep.subr.mxu0 0.0
    %7247 = vmatpush1.msra.mxu0 0.0
    %7248 = vmatprep.subr.mxu0 0.0
    %7249 = vmatpush1.msra.mxu0 0.0
    %7250 = vmatprep.subr.mxu0 0.0
    %7251 = vmatpush1.msra.mxu0 0.0
    %7252 = vmatprep.subr.mxu0 0.0
    %7253 = vmatpush1.msra.mxu0 0.0
    %7254 = vmatprep.subr.mxu0 0.0
    %7255 = vmatpush1.msra.mxu0 0.0
    %7256 = vmatprep.subr.mxu0 0.0
    %7257 = vmatpush1.msra.mxu0 0.0
    %7258 = vmatprep.subr.mxu0 0.0
    %7259 = vmatpush1.msra.mxu0 0.0
    %7260 = vmatprep.subr.mxu0 0.0
    %7261 = vmatpush1.msra.mxu0 0.0
    %7262 = vmatprep.mubr.f32.mxu0 0.0
    %7263 = vmatmul.mubr.f32.gmra.mrb[0].mxu0 %v7196
    %v7264 = vpop.f32.mrb[0].mxu0
    %v7265 = vadd.f32 %v7193, %v7264
    %v7266 = vpop.f32.mrb[0].mxu0
    %7267 = vdwg.mxu0
    %v7268 = vxor.u32 %v7265, 2147483648
    %v7269 = vmul.f32 %v7268, 1.442695
    %v7270 = vpow.pop %v7269
    %v7271 = vadd.f32 %v7270, 1.0
    %v7272 = vrcp.pop %v7271
    %v7273 = vmul.f32 1.0, %v7272
    %v7274 = vtanh.pop %v7265
    %v7275 = vmul.f32 %v7273, %v6511
    %7277 = vrot.lane.b32.xlu0 %v7274, 64
    %v7278 = vpop.permute.xlu0 %7277
    %v7280 = vmul.f32 %v7273, %v7278
    %7282 = vrot.lane.b32.xlu0 %v7280, 32
    %v7283 = vpop.permute.xlu0 %7282
    %v7285 = vadd.f32 %v7275, %v7283
    %v7286 = vtanh.pop %v7285
    %7288 = vrot.lane.b32.xlu0 %v7286, 64
    %v7289 = vpop.permute.xlu0 %7288
    %v7291 = vmul.f32 %v7273, %v7289
    %v7292 = vld [vmem:[%s27] sm:$0xff]
    %v7293 = vld [vmem:[%s27 + $0x8] sm:$0xff]
    %v7294 = vld [vmem:[%s27 + $0x10] sm:$0xff]
    %v7295 = vld [vmem:[%s27 + $0x18] sm:$0xff]
    %v7296 = vld [vmem:[#allocation8] sm:$0x1]
    %v7298 = vlaneseq
    %v7299 = vshrl.u32 %v7298, 7
    %v7300 = vsub.s32 0, %v7299
    %v7301 = vrot.slane %v7296, %v7300
    %7304 = vrot.lane.b32.xlu0 %v7291, 32
    %v7305 = vpop.permute.xlu0 %7304
    %v7306 = vsel %vm658, %v7305, 0
    %7308 = vmatprep.subr.mxu0 0.0
    %7309 = vmatpush1.msra.mxu0 %v7292
    %7310 = vmatprep.subr.mxu0 0.0
    %7311 = vmatpush1.msra.mxu0 %v7293
    %7312 = vmatprep.subr.mxu0 0.0
    %7313 = vmatpush1.msra.mxu0 %v7294
    %7314 = vmatprep.subr.mxu0 0.0
    %7315 = vmatpush1.msra.mxu0 %v7295
    %7316 = vmatprep.subr.mxu0 0.0
    %7317 = vmatpush1.msra.mxu0 0.0
    %7318 = vmatprep.subr.mxu0 0.0
    %7319 = vmatpush1.msra.mxu0 0.0
    %7320 = vmatprep.subr.mxu0 0.0
    %7321 = vmatpush1.msra.mxu0 0.0
    %7322 = vmatprep.subr.mxu0 0.0
    %7323 = vmatpush1.msra.mxu0 0.0
    %7324 = vmatprep.subr.mxu0 0.0
    %7325 = vmatpush1.msra.mxu0 0.0
    %7326 = vmatprep.subr.mxu0 0.0
    %7327 = vmatpush1.msra.mxu0 0.0
    %7328 = vmatprep.subr.mxu0 0.0
    %7329 = vmatpush1.msra.mxu0 0.0
    %7330 = vmatprep.subr.mxu0 0.0
    %7331 = vmatpush1.msra.mxu0 0.0
    %7332 = vmatprep.subr.mxu0 0.0
    %7333 = vmatpush1.msra.mxu0 0.0
    %7334 = vmatprep.subr.mxu0 0.0
    %7335 = vmatpush1.msra.mxu0 0.0
    %7336 = vmatprep.subr.mxu0 0.0
    %7337 = vmatpush1.msra.mxu0 0.0
    %7338 = vmatprep.subr.mxu0 0.0
    %7339 = vmatpush1.msra.mxu0 0.0
    %7340 = vmatprep.subr.mxu0 0.0
    %7341 = vmatpush1.msra.mxu0 0.0
    %7342 = vmatprep.subr.mxu0 0.0
    %7343 = vmatpush1.msra.mxu0 0.0
    %7344 = vmatprep.subr.mxu0 0.0
    %7345 = vmatpush1.msra.mxu0 0.0
    %7346 = vmatprep.subr.mxu0 0.0
    %7347 = vmatpush1.msra.mxu0 0.0
    %7348 = vmatprep.subr.mxu0 0.0
    %7349 = vmatpush1.msra.mxu0 0.0
    %7350 = vmatprep.subr.mxu0 0.0
    %7351 = vmatpush1.msra.mxu0 0.0
    %7352 = vmatprep.subr.mxu0 0.0
    %7353 = vmatpush1.msra.mxu0 0.0
    %7354 = vmatprep.subr.mxu0 0.0
    %7355 = vmatpush1.msra.mxu0 0.0
    %7356 = vmatprep.subr.mxu0 0.0
    %7357 = vmatpush1.msra.mxu0 0.0
    %7358 = vmatprep.subr.mxu0 0.0
    %7359 = vmatpush1.msra.mxu0 0.0
    %7360 = vmatprep.subr.mxu0 0.0
    %7361 = vmatpush1.msra.mxu0 0.0
    %7362 = vmatprep.subr.mxu0 0.0
    %7363 = vmatpush1.msra.mxu0 0.0
    %7364 = vmatprep.subr.mxu0 0.0
    %7365 = vmatpush1.msra.mxu0 0.0
    %7366 = vmatprep.subr.mxu0 0.0
    %7367 = vmatpush1.msra.mxu0 0.0
    %7368 = vmatprep.subr.mxu0 0.0
    %7369 = vmatpush1.msra.mxu0 0.0
    %7370 = vmatprep.subr.mxu0 0.0
    %7371 = vmatpush1.msra.mxu0 0.0
    %7372 = vmatprep.mubr.f32.mxu0 0.0
    %7373 = vmatmul.mubr.f32.gmra.mrb[0].mxu0 %v7306
    %v7374 = vpop.f32.mrb[0].mxu0
    %v7375 = vadd.f32 %v7301, %v7374
    %v7376 = vpop.f32.mrb[0].mxu0
    %7377 = vdwg.mxu0
    %s7378 = scalar_lea.vmem %s5, 48
    %v7379 = vld [vmem:[%s7378] sm:$0xff]
    %v7380 = vld [vmem:[%s31] sm:$0xf]
    %v7381 = vld [vmem:[%s33] sm:$0x3]
    %v7383 = vsel %vm3043, %v7375, 0
    %v7386 = vsel %vm3047, %v7381, 0
    %7388 = vmatprep.subr.mxu0 0.0
    %7389 = vmatpush1.msra.mxu0 %v7386
    %7390 = vmatprep.subr.mxu0 0.0
    %7391 = vmatpush1.msra.mxu0 0.0
    %7392 = vmatprep.subr.mxu0 0.0
    %7393 = vmatpush1.msra.mxu0 0.0
    %7394 = vmatprep.subr.mxu0 0.0
    %7395 = vmatpush1.msra.mxu0 0.0
    %7396 = vmatprep.subr.mxu0 0.0
    %7397 = vmatpush1.msra.mxu0 0.0
    %7398 = vmatprep.subr.mxu0 0.0
    %7399 = vmatpush1.msra.mxu0 0.0
    %7400 = vmatprep.subr.mxu0 0.0
    %7401 = vmatpush1.msra.mxu0 0.0
    %7402 = vmatprep.subr.mxu0 0.0
    %7403 = vmatpush1.msra.mxu0 0.0
    %7404 = vmatprep.subr.mxu0 0.0
    %7405 = vmatpush1.msra.mxu0 0.0
    %7406 = vmatprep.subr.mxu0 0.0
    %7407 = vmatpush1.msra.mxu0 0.0
    %7408 = vmatprep.subr.mxu0 0.0
    %7409 = vmatpush1.msra.mxu0 0.0
    %7410 = vmatprep.subr.mxu0 0.0
    %7411 = vmatpush1.msra.mxu0 0.0
    %7412 = vmatprep.subr.mxu0 0.0
    %7413 = vmatpush1.msra.mxu0 0.0
    %7414 = vmatprep.subr.mxu0 0.0
    %7415 = vmatpush1.msra.mxu0 0.0
    %7416 = vmatprep.subr.mxu0 0.0
    %7417 = vmatpush1.msra.mxu0 0.0
    %7418 = vmatprep.subr.mxu0 0.0
    %7419 = vmatpush1.msra.mxu0 0.0
    %7420 = vmatprep.subr.mxu0 0.0
    %7421 = vmatpush1.msra.mxu0 0.0
    %7422 = vmatprep.subr.mxu0 0.0
    %7423 = vmatpush1.msra.mxu0 0.0
    %7424 = vmatprep.subr.mxu0 0.0
    %7425 = vmatpush1.msra.mxu0 0.0
    %7426 = vmatprep.subr.mxu0 0.0
    %7427 = vmatpush1.msra.mxu0 0.0
    %7428 = vmatprep.subr.mxu0 0.0
    %7429 = vmatpush1.msra.mxu0 0.0
    %7430 = vmatprep.subr.mxu0 0.0
    %7431 = vmatpush1.msra.mxu0 0.0
    %7432 = vmatprep.subr.mxu0 0.0
    %7433 = vmatpush1.msra.mxu0 0.0
    %7434 = vmatprep.subr.mxu0 0.0
    %7435 = vmatpush1.msra.mxu0 0.0
    %7436 = vmatprep.subr.mxu0 0.0
    %7437 = vmatpush1.msra.mxu0 0.0
    %7438 = vmatprep.subr.mxu0 0.0
    %7439 = vmatpush1.msra.mxu0 0.0
    %7440 = vmatprep.subr.mxu0 0.0
    %7441 = vmatpush1.msra.mxu0 0.0
    %7442 = vmatprep.subr.mxu0 0.0
    %7443 = vmatpush1.msra.mxu0 0.0
    %7444 = vmatprep.subr.mxu0 0.0
    %7445 = vmatpush1.msra.mxu0 0.0
    %7446 = vmatprep.subr.mxu0 0.0
    %7447 = vmatpush1.msra.mxu0 0.0
    %7448 = vmatprep.subr.mxu0 0.0
    %7449 = vmatpush1.msra.mxu0 0.0
    %7450 = vmatprep.subr.mxu0 0.0
    %7451 = vmatpush1.msra.mxu0 0.0
    %7452 = vmatprep.mubr.f32.mxu0 0.0
    %7453 = vmatmul.mubr.f32.gmra.mrb[0].mxu0 %v7383
    %v7454 = vpop.f32.mrb[0].mxu0
    %v7455 = vadd.f32 0.0, %v7454
    %v7456 = vpop.f32.mrb[0].mxu0
    %7457 = vdwg.mxu0
    %v7459 = vsel %vm3121, %v7379, 0
    %v7462 = vsel %vm3125, %v7380, 0
    %7464 = vmatprep.subr.mxu0 0.0
    %7465 = vmatpush1.msra.mxu0 %v7462
    %7466 = vmatprep.subr.mxu0 0.0
    %7467 = vmatpush1.msra.mxu0 0.0
    %7468 = vmatprep.subr.mxu0 0.0
    %7469 = vmatpush1.msra.mxu0 0.0
    %7470 = vmatprep.subr.mxu0 0.0
    %7471 = vmatpush1.msra.mxu0 0.0
    %7472 = vmatprep.subr.mxu0 0.0
    %7473 = vmatpush1.msra.mxu0 0.0
    %7474 = vmatprep.subr.mxu0 0.0
    %7475 = vmatpush1.msra.mxu0 0.0
    %7476 = vmatprep.subr.mxu0 0.0
    %7477 = vmatpush1.msra.mxu0 0.0
    %7478 = vmatprep.subr.mxu0 0.0
    %7479 = vmatpush1.msra.mxu0 0.0
    %7480 = vmatprep.subr.mxu0 0.0
    %7481 = vmatpush1.msra.mxu0 0.0
    %7482 = vmatprep.subr.mxu0 0.0
    %7483 = vmatpush1.msra.mxu0 0.0
    %7484 = vmatprep.subr.mxu0 0.0
    %7485 = vmatpush1.msra.mxu0 0.0
    %7486 = vmatprep.subr.mxu0 0.0
    %7487 = vmatpush1.msra.mxu0 0.0
    %7488 = vmatprep.subr.mxu0 0.0
    %7489 = vmatpush1.msra.mxu0 0.0
    %7490 = vmatprep.subr.mxu0 0.0
    %7491 = vmatpush1.msra.mxu0 0.0
    %7492 = vmatprep.subr.mxu0 0.0
    %7493 = vmatpush1.msra.mxu0 0.0
    %7494 = vmatprep.subr.mxu0 0.0
    %7495 = vmatpush1.msra.mxu0 0.0
    %7496 = vmatprep.subr.mxu0 0.0
    %7497 = vmatpush1.msra.mxu0 0.0
    %7498 = vmatprep.subr.mxu0 0.0
    %7499 = vmatpush1.msra.mxu0 0.0
    %7500 = vmatprep.subr.mxu0 0.0
    %7501 = vmatpush1.msra.mxu0 0.0
    %7502 = vmatprep.subr.mxu0 0.0
    %7503 = vmatpush1.msra.mxu0 0.0
    %7504 = vmatprep.subr.mxu0 0.0
    %7505 = vmatpush1.msra.mxu0 0.0
    %7506 = vmatprep.subr.mxu0 0.0
    %7507 = vmatpush1.msra.mxu0 0.0
    %7508 = vmatprep.subr.mxu0 0.0
    %7509 = vmatpush1.msra.mxu0 0.0
    %7510 = vmatprep.subr.mxu0 0.0
    %7511 = vmatpush1.msra.mxu0 0.0
    %7512 = vmatprep.subr.mxu0 0.0
    %7513 = vmatpush1.msra.mxu0 0.0
    %7514 = vmatprep.subr.mxu0 0.0
    %7515 = vmatpush1.msra.mxu0 0.0
    %7516 = vmatprep.subr.mxu0 0.0
    %7517 = vmatpush1.msra.mxu0 0.0
    %7518 = vmatprep.subr.mxu0 0.0
    %7519 = vmatpush1.msra.mxu0 0.0
    %7520 = vmatprep.subr.mxu0 0.0
    %7521 = vmatpush1.msra.mxu0 0.0
    %7522 = vmatprep.subr.mxu0 0.0
    %7523 = vmatpush1.msra.mxu0 0.0
    %7524 = vmatprep.subr.mxu0 0.0
    %7525 = vmatpush1.msra.mxu0 0.0
    %7526 = vmatprep.subr.mxu0 0.0
    %7527 = vmatpush1.msra.mxu0 0.0
    %7528 = vmatprep.mubr.f32.mxu0 0.0
    %7529 = vmatmul.mubr.f32.gmra.mrb[0].mxu0 %v7459
    %v7530 = vpop.f32.mrb[0].mxu0
    %v7531 = vadd.f32 %v7455, %v7530
    %v7532 = vpop.f32.mrb[0].mxu0
    %7533 = vdwg.mxu0
    %s7534 = scalar_lea.vmem [#allocation6], 48
    %7535 = vst.msk [vmem:[%s7534] sm:$0xff] %vm3121, %v7531
    %s7536 = scalar_lea.vmem [#allocation5], 40
    %v7537 = vld [vmem:[%s7536] sm:$0xff]
    %v7538 = vld [vmem:[%s47] sm:$0xf]
    %v7540 = vsel %vm3121, %v6757, 0
    %v7543 = vsel %vm3125, %v7538, 0
    %7545 = vmatprep.subr.mxu0 0.0
    %7546 = vmatpush1.msra.mxu0 %v7543
    %7547 = vmatprep.subr.mxu0 0.0
    %7548 = vmatpush1.msra.mxu0 0.0
    %7549 = vmatprep.subr.mxu0 0.0
    %7550 = vmatpush1.msra.mxu0 0.0
    %7551 = vmatprep.subr.mxu0 0.0
    %7552 = vmatpush1.msra.mxu0 0.0
    %7553 = vmatprep.subr.mxu0 0.0
    %7554 = vmatpush1.msra.mxu0 0.0
    %7555 = vmatprep.subr.mxu0 0.0
    %7556 = vmatpush1.msra.mxu0 0.0
    %7557 = vmatprep.subr.mxu0 0.0
    %7558 = vmatpush1.msra.mxu0 0.0
    %7559 = vmatprep.subr.mxu0 0.0
    %7560 = vmatpush1.msra.mxu0 0.0
    %7561 = vmatprep.subr.mxu0 0.0
    %7562 = vmatpush1.msra.mxu0 0.0
    %7563 = vmatprep.subr.mxu0 0.0
    %7564 = vmatpush1.msra.mxu0 0.0
    %7565 = vmatprep.subr.mxu0 0.0
    %7566 = vmatpush1.msra.mxu0 0.0
    %7567 = vmatprep.subr.mxu0 0.0
    %7568 = vmatpush1.msra.mxu0 0.0
    %7569 = vmatprep.subr.mxu0 0.0
    %7570 = vmatpush1.msra.mxu0 0.0
    %7571 = vmatprep.subr.mxu0 0.0
    %7572 = vmatpush1.msra.mxu0 0.0
    %7573 = vmatprep.subr.mxu0 0.0
    %7574 = vmatpush1.msra.mxu0 0.0
    %7575 = vmatprep.subr.mxu0 0.0
    %7576 = vmatpush1.msra.mxu0 0.0
    %7577 = vmatprep.subr.mxu0 0.0
    %7578 = vmatpush1.msra.mxu0 0.0
    %7579 = vmatprep.subr.mxu0 0.0
    %7580 = vmatpush1.msra.mxu0 0.0
    %7581 = vmatprep.subr.mxu0 0.0
    %7582 = vmatpush1.msra.mxu0 0.0
    %7583 = vmatprep.subr.mxu0 0.0
    %7584 = vmatpush1.msra.mxu0 0.0
    %7585 = vmatprep.subr.mxu0 0.0
    %7586 = vmatpush1.msra.mxu0 0.0
    %7587 = vmatprep.subr.mxu0 0.0
    %7588 = vmatpush1.msra.mxu0 0.0
    %7589 = vmatprep.subr.mxu0 0.0
    %7590 = vmatpush1.msra.mxu0 0.0
    %7591 = vmatprep.subr.mxu0 0.0
    %7592 = vmatpush1.msra.mxu0 0.0
    %7593 = vmatprep.subr.mxu0 0.0
    %7594 = vmatpush1.msra.mxu0 0.0
    %7595 = vmatprep.subr.mxu0 0.0
    %7596 = vmatpush1.msra.mxu0 0.0
    %7597 = vmatprep.subr.mxu0 0.0
    %7598 = vmatpush1.msra.mxu0 0.0
    %7599 = vmatprep.subr.mxu0 0.0
    %7600 = vmatpush1.msra.mxu0 0.0
    %7601 = vmatprep.subr.mxu0 0.0
    %7602 = vmatpush1.msra.mxu0 0.0
    %7603 = vmatprep.subr.mxu0 0.0
    %7604 = vmatpush1.msra.mxu0 0.0
    %7605 = vmatprep.subr.mxu0 0.0
    %7606 = vmatpush1.msra.mxu0 0.0
    %7607 = vmatprep.subr.mxu0 0.0
    %7608 = vmatpush1.msra.mxu0 0.0
    %7609 = vmatprep.mubr.f32.mxu0 0.0
    %7610 = vmatmul.mubr.f32.gmra.mrb[0].mxu0 %v7540
    %v7611 = vpop.f32.mrb[0].mxu0
    %v7612 = vadd.f32 0.0, %v7611
    %v7613 = vpop.f32.mrb[0].mxu0
    %7614 = vdwg.mxu0
    %v7615 = vadd.f32 %v7537, %v7612
    %v7616 = vld [vmem:[%s49] sm:$0xff]
    %v7617 = vld [vmem:[%s49 + $0x8] sm:$0xff]
    %v7618 = vld [vmem:[%s49 + $0x10] sm:$0xff]
    %v7619 = vld [vmem:[%s49 + $0x18] sm:$0xff]
    %v7620 = vsel %vm658, %v6945, 0
    %7622 = vmatprep.subr.mxu0 0.0
    %7623 = vmatpush1.msra.mxu0 %v7616
    %7624 = vmatprep.subr.mxu0 0.0
    %7625 = vmatpush1.msra.mxu0 %v7617
    %7626 = vmatprep.subr.mxu0 0.0
    %7627 = vmatpush1.msra.mxu0 %v7618
    %7628 = vmatprep.subr.mxu0 0.0
    %7629 = vmatpush1.msra.mxu0 %v7619
    %7630 = vmatprep.subr.mxu0 0.0
    %7631 = vmatpush1.msra.mxu0 0.0
    %7632 = vmatprep.subr.mxu0 0.0
    %7633 = vmatpush1.msra.mxu0 0.0
    %7634 = vmatprep.subr.mxu0 0.0
    %7635 = vmatpush1.msra.mxu0 0.0
    %7636 = vmatprep.subr.mxu0 0.0
    %7637 = vmatpush1.msra.mxu0 0.0
    %7638 = vmatprep.subr.mxu0 0.0
    %7639 = vmatpush1.msra.mxu0 0.0
    %7640 = vmatprep.subr.mxu0 0.0
    %7641 = vmatpush1.msra.mxu0 0.0
    %7642 = vmatprep.subr.mxu0 0.0
    %7643 = vmatpush1.msra.mxu0 0.0
    %7644 = vmatprep.subr.mxu0 0.0
    %7645 = vmatpush1.msra.mxu0 0.0
    %7646 = vmatprep.subr.mxu0 0.0
    %7647 = vmatpush1.msra.mxu0 0.0
    %7648 = vmatprep.subr.mxu0 0.0
    %7649 = vmatpush1.msra.mxu0 0.0
    %7650 = vmatprep.subr.mxu0 0.0
    %7651 = vmatpush1.msra.mxu0 0.0
    %7652 = vmatprep.subr.mxu0 0.0
    %7653 = vmatpush1.msra.mxu0 0.0
    %7654 = vmatprep.subr.mxu0 0.0
    %7655 = vmatpush1.msra.mxu0 0.0
    %7656 = vmatprep.subr.mxu0 0.0
    %7657 = vmatpush1.msra.mxu0 0.0
    %7658 = vmatprep.subr.mxu0 0.0
    %7659 = vmatpush1.msra.mxu0 0.0
    %7660 = vmatprep.subr.mxu0 0.0
    %7661 = vmatpush1.msra.mxu0 0.0
    %7662 = vmatprep.subr.mxu0 0.0
    %7663 = vmatpush1.msra.mxu0 0.0
    %7664 = vmatprep.subr.mxu0 0.0
    %7665 = vmatpush1.msra.mxu0 0.0
    %7666 = vmatprep.subr.mxu0 0.0
    %7667 = vmatpush1.msra.mxu0 0.0
    %7668 = vmatprep.subr.mxu0 0.0
    %7669 = vmatpush1.msra.mxu0 0.0
    %7670 = vmatprep.subr.mxu0 0.0
    %7671 = vmatpush1.msra.mxu0 0.0
    %7672 = vmatprep.subr.mxu0 0.0
    %7673 = vmatpush1.msra.mxu0 0.0
    %7674 = vmatprep.subr.mxu0 0.0
    %7675 = vmatpush1.msra.mxu0 0.0
    %7676 = vmatprep.subr.mxu0 0.0
    %7677 = vmatpush1.msra.mxu0 0.0
    %7678 = vmatprep.subr.mxu0 0.0
    %7679 = vmatpush1.msra.mxu0 0.0
    %7680 = vmatprep.subr.mxu0 0.0
    %7681 = vmatpush1.msra.mxu0 0.0
    %7682 = vmatprep.subr.mxu0 0.0
    %7683 = vmatpush1.msra.mxu0 0.0
    %7684 = vmatprep.subr.mxu0 0.0
    %7685 = vmatpush1.msra.mxu0 0.0
    %7686 = vmatprep.mubr.f32.mxu0 0.0
    %7687 = vmatmul.mubr.f32.gmra.mrb[0].mxu0 %v7620
    %v7688 = vpop.f32.mrb[0].mxu0
    %v7689 = vadd.f32 0.0, %v7688
    %v7690 = vpop.f32.mrb[0].mxu0
    %7691 = vdwg.mxu0
    %v7692 = vadd.f32 %v7615, %v7689
    %v7693 = vxor.u32 %v7692, 2147483648
    %v7694 = vmul.f32 %v7693, 1.442695
    %v7695 = vpow.pop %v7694
    %v7696 = vadd.f32 %v7695, 1.0
    %v7697 = vrcp.pop %v7696
    %v7698 = vmul.f32 1.0, %v7697
    %v7699 = vtanh.pop %v7692
    %v7700 = vmul.f32 %v7698, %v6936
    %7702 = vrot.lane.b32.xlu0 %v7699, 64
    %v7703 = vpop.permute.xlu0 %7702
    %v7705 = vmul.f32 %v7698, %v7703
    %7707 = vrot.lane.b32.xlu0 %v7705, 32
    %v7708 = vpop.permute.xlu0 %7707
    %v7710 = vadd.f32 %v7700, %v7708
    %v7711 = vtanh.pop %v7710
    %7713 = vrot.lane.b32.xlu0 %v7711, 64
    %v7714 = vpop.permute.xlu0 %7713
    %v7716 = vmul.f32 %v7698, %v7714
    %7718 = vrot.lane.b32.xlu0 %v7716, 32
    %v7719 = vpop.permute.xlu0 %7718
    %7721 = vrot.lane.b32.xlu0 %v7062, 64
    %v7722 = vpop.permute.xlu0 %7721
    %v7724 = vsel %vm658, %v7719, %v7722
    %v7725 = vld [vmem:[%s53] sm:$0xff]
    %v7726 = vld [vmem:[%s53 + $0x8] sm:$0xff]
    %v7727 = vld [vmem:[%s53 + $0x10] sm:$0xff]
    %v7728 = vld [vmem:[%s53 + $0x18] sm:$0xff]
    %v7729 = vld [vmem:[%s53 + $0x20] sm:$0xff]
    %v7730 = vld [vmem:[%s53 + $0x28] sm:$0xff]
    %v7731 = vld [vmem:[%s53 + $0x30] sm:$0xff]
    %v7732 = vld [vmem:[%s53 + $0x38] sm:$0xff]
    %v7733 = vld [vmem:[%s55] sm:$0x1]
    %v7735 = vlaneseq
    %v7736 = vshrl.u32 %v7735, 7
    %v7737 = vsub.s32 0, %v7736
    %v7738 = vrot.slane %v7733, %v7737
    %v7741 = vsel %vm777, %v7724, 0
    %7743 = vmatprep.subr.mxu0 0.0
    %7744 = vmatpush1.msra.mxu0 %v7725
    %7745 = vmatprep.subr.mxu0 0.0
    %7746 = vmatpush1.msra.mxu0 %v7726
    %7747 = vmatprep.subr.mxu0 0.0
    %7748 = vmatpush1.msra.mxu0 %v7727
    %7749 = vmatprep.subr.mxu0 0.0
    %7750 = vmatpush1.msra.mxu0 %v7728
    %7751 = vmatprep.subr.mxu0 0.0
    %7752 = vmatpush1.msra.mxu0 %v7729
    %7753 = vmatprep.subr.mxu0 0.0
    %7754 = vmatpush1.msra.mxu0 %v7730
    %7755 = vmatprep.subr.mxu0 0.0
    %7756 = vmatpush1.msra.mxu0 %v7731
    %7757 = vmatprep.subr.mxu0 0.0
    %7758 = vmatpush1.msra.mxu0 %v7732
    %7759 = vmatprep.subr.mxu0 0.0
    %7760 = vmatpush1.msra.mxu0 0.0
    %7761 = vmatprep.subr.mxu0 0.0
    %7762 = vmatpush1.msra.mxu0 0.0
    %7763 = vmatprep.subr.mxu0 0.0
    %7764 = vmatpush1.msra.mxu0 0.0
    %7765 = vmatprep.subr.mxu0 0.0
    %7766 = vmatpush1.msra.mxu0 0.0
    %7767 = vmatprep.subr.mxu0 0.0
    %7768 = vmatpush1.msra.mxu0 0.0
    %7769 = vmatprep.subr.mxu0 0.0
    %7770 = vmatpush1.msra.mxu0 0.0
    %7771 = vmatprep.subr.mxu0 0.0
    %7772 = vmatpush1.msra.mxu0 0.0
    %7773 = vmatprep.subr.mxu0 0.0
    %7774 = vmatpush1.msra.mxu0 0.0
    %7775 = vmatprep.subr.mxu0 0.0
    %7776 = vmatpush1.msra.mxu0 0.0
    %7777 = vmatprep.subr.mxu0 0.0
    %7778 = vmatpush1.msra.mxu0 0.0
    %7779 = vmatprep.subr.mxu0 0.0
    %7780 = vmatpush1.msra.mxu0 0.0
    %7781 = vmatprep.subr.mxu0 0.0
    %7782 = vmatpush1.msra.mxu0 0.0
    %7783 = vmatprep.subr.mxu0 0.0
    %7784 = vmatpush1.msra.mxu0 0.0
    %7785 = vmatprep.subr.mxu0 0.0
    %7786 = vmatpush1.msra.mxu0 0.0
    %7787 = vmatprep.subr.mxu0 0.0
    %7788 = vmatpush1.msra.mxu0 0.0
    %7789 = vmatprep.subr.mxu0 0.0
    %7790 = vmatpush1.msra.mxu0 0.0
    %7791 = vmatprep.subr.mxu0 0.0
    %7792 = vmatpush1.msra.mxu0 0.0
    %7793 = vmatprep.subr.mxu0 0.0
    %7794 = vmatpush1.msra.mxu0 0.0
    %7795 = vmatprep.subr.mxu0 0.0
    %7796 = vmatpush1.msra.mxu0 0.0
    %7797 = vmatprep.subr.mxu0 0.0
    %7798 = vmatpush1.msra.mxu0 0.0
    %7799 = vmatprep.subr.mxu0 0.0
    %7800 = vmatpush1.msra.mxu0 0.0
    %7801 = vmatprep.subr.mxu0 0.0
    %7802 = vmatpush1.msra.mxu0 0.0
    %7803 = vmatprep.subr.mxu0 0.0
    %7804 = vmatpush1.msra.mxu0 0.0
    %7805 = vmatprep.subr.mxu0 0.0
    %7806 = vmatpush1.msra.mxu0 0.0
    %7807 = vmatprep.mubr.f32.mxu0 0.0
    %7808 = vmatmul.mubr.f32.gmra.mrb[0].mxu0 %v7741
    %v7809 = vpop.f32.mrb[0].mxu0
    %v7810 = vadd.f32 %v7738, %v7809
    %v7811 = vpop.f32.mrb[0].mxu0
    %7812 = vdwg.mxu0
    %v7813 = vxor.u32 %v7810, 2147483648
    %v7814 = vmul.f32 %v7813, 1.442695
    %v7815 = vpow.pop %v7814
    %v7816 = vadd.f32 %v7815, 1.0
    %v7817 = vrcp.pop %v7816
    %v7818 = vmul.f32 1.0, %v7817
    %v7819 = vtanh.pop %v7810
    %v7820 = vmul.f32 %v7818, %v7056
    %7822 = vrot.lane.b32.xlu0 %v7819, 64
    %v7823 = vpop.permute.xlu0 %7822
    %v7825 = vmul.f32 %v7818, %v7823
    %7827 = vrot.lane.b32.xlu0 %v7825, 32
    %v7828 = vpop.permute.xlu0 %7827
    %v7830 = vadd.f32 %v7820, %v7828
    %v7831 = vtanh.pop %v7830
    %7833 = vrot.lane.b32.xlu0 %v7831, 64
    %v7834 = vpop.permute.xlu0 %7833
    %v7836 = vmul.f32 %v7818, %v7834
    %7838 = vrot.lane.b32.xlu0 %v7836, 32
    %v7839 = vpop.permute.xlu0 %7838
    %s7841 = scalar_lea.vmem [#allocation7], 40
    %7842 = vst.msk [vmem:[%s7841] sm:$0xff] %vm658, %v7839
    %s7843 = scalar_lea.vmem [#allocation4], 56
    %v7844 = vld [vmem:[%s7843] sm:$0xff]
    %v7845 = vld [vmem:[%s19] sm:$0xff]
    %v7846 = vld [vmem:[%s19 + $0x8] sm:$0xff]
    %v7847 = vld [vmem:[%s19 + $0x10] sm:$0xff]
    %v7848 = vld [vmem:[%s19 + $0x18] sm:$0xff]
    %v7849 = vsel %vm658, %v7174, 0
    %7851 = vmatprep.subr.mxu0 0.0
    %7852 = vmatpush1.msra.mxu0 %v7845
    %7853 = vmatprep.subr.mxu0 0.0
    %7854 = vmatpush1.msra.mxu0 %v7846
    %7855 = vmatprep.subr.mxu0 0.0
    %7856 = vmatpush1.msra.mxu0 %v7847
    %7857 = vmatprep.subr.mxu0 0.0
    %7858 = vmatpush1.msra.mxu0 %v7848
    %7859 = vmatprep.subr.mxu0 0.0
    %7860 = vmatpush1.msra.mxu0 0.0
    %7861 = vmatprep.subr.mxu0 0.0
    %7862 = vmatpush1.msra.mxu0 0.0
    %7863 = vmatprep.subr.mxu0 0.0
    %7864 = vmatpush1.msra.mxu0 0.0
    %7865 = vmatprep.subr.mxu0 0.0
    %7866 = vmatpush1.msra.mxu0 0.0
    %7867 = vmatprep.subr.mxu0 0.0
    %7868 = vmatpush1.msra.mxu0 0.0
    %7869 = vmatprep.subr.mxu0 0.0
    %7870 = vmatpush1.msra.mxu0 0.0
    %7871 = vmatprep.subr.mxu0 0.0
    %7872 = vmatpush1.msra.mxu0 0.0
    %7873 = vmatprep.subr.mxu0 0.0
    %7874 = vmatpush1.msra.mxu0 0.0
    %7875 = vmatprep.subr.mxu0 0.0
    %7876 = vmatpush1.msra.mxu0 0.0
    %7877 = vmatprep.subr.mxu0 0.0
    %7878 = vmatpush1.msra.mxu0 0.0
    %7879 = vmatprep.subr.mxu0 0.0
    %7880 = vmatpush1.msra.mxu0 0.0
    %7881 = vmatprep.subr.mxu0 0.0
    %7882 = vmatpush1.msra.mxu0 0.0
    %7883 = vmatprep.subr.mxu0 0.0
    %7884 = vmatpush1.msra.mxu0 0.0
    %7885 = vmatprep.subr.mxu0 0.0
    %7886 = vmatpush1.msra.mxu0 0.0
    %7887 = vmatprep.subr.mxu0 0.0
    %7888 = vmatpush1.msra.mxu0 0.0
    %7889 = vmatprep.subr.mxu0 0.0
    %7890 = vmatpush1.msra.mxu0 0.0
    %7891 = vmatprep.subr.mxu0 0.0
    %7892 = vmatpush1.msra.mxu0 0.0
    %7893 = vmatprep.subr.mxu0 0.0
    %7894 = vmatpush1.msra.mxu0 0.0
    %7895 = vmatprep.subr.mxu0 0.0
    %7896 = vmatpush1.msra.mxu0 0.0
    %7897 = vmatprep.subr.mxu0 0.0
    %7898 = vmatpush1.msra.mxu0 0.0
    %7899 = vmatprep.subr.mxu0 0.0
    %7900 = vmatpush1.msra.mxu0 0.0
    %7901 = vmatprep.subr.mxu0 0.0
    %7902 = vmatpush1.msra.mxu0 0.0
    %7903 = vmatprep.subr.mxu0 0.0
    %7904 = vmatpush1.msra.mxu0 0.0
    %7905 = vmatprep.subr.mxu0 0.0
    %7906 = vmatpush1.msra.mxu0 0.0
    %7907 = vmatprep.subr.mxu0 0.0
    %7908 = vmatpush1.msra.mxu0 0.0
    %7909 = vmatprep.subr.mxu0 0.0
    %7910 = vmatpush1.msra.mxu0 0.0
    %7911 = vmatprep.subr.mxu0 0.0
    %7912 = vmatpush1.msra.mxu0 0.0
    %7913 = vmatprep.subr.mxu0 0.0
    %7914 = vmatpush1.msra.mxu0 0.0
    %7915 = vmatprep.mubr.f32.mxu0 0.0
    %7916 = vmatmul.mubr.f32.gmra.mrb[0].mxu0 %v7849
    %v7917 = vpop.f32.mrb[0].mxu0
    %v7918 = vadd.f32 0.0, %v7917
    %v7919 = vpop.f32.mrb[0].mxu0
    %7920 = vdwg.mxu0
    %v7921 = vadd.f32 %v7844, %v7918
    %v7922 = vxor.u32 %v7921, 2147483648
    %v7923 = vmul.f32 %v7922, 1.442695
    %v7924 = vpow.pop %v7923
    %v7925 = vadd.f32 %v7924, 1.0
    %v7926 = vrcp.pop %v7925
    %v7927 = vmul.f32 1.0, %v7926
    %v7928 = vtanh.pop %v7921
    %v7929 = vmul.f32 %v7927, %v7165
    %7931 = vrot.lane.b32.xlu0 %v7928, 64
    %v7932 = vpop.permute.xlu0 %7931
    %v7934 = vmul.f32 %v7927, %v7932
    %7936 = vrot.lane.b32.xlu0 %v7934, 32
    %v7937 = vpop.permute.xlu0 %7936
    %v7939 = vadd.f32 %v7929, %v7937
    %v7940 = vtanh.pop %v7939
    %7942 = vrot.lane.b32.xlu0 %v7940, 64
    %v7943 = vpop.permute.xlu0 %7942
    %v7945 = vmul.f32 %v7927, %v7943
    %7947 = vrot.lane.b32.xlu0 %v7945, 32
    %v7948 = vpop.permute.xlu0 %7947
    %7950 = vrot.lane.b32.xlu0 %v7291, 64
    %v7951 = vpop.permute.xlu0 %7950
    %v7953 = vsel %vm658, %v7948, %v7951
    %v7954 = vld [vmem:[%s23] sm:$0xff]
    %v7955 = vld [vmem:[%s23 + $0x8] sm:$0xff]
    %v7956 = vld [vmem:[%s23 + $0x10] sm:$0xff]
    %v7957 = vld [vmem:[%s23 + $0x18] sm:$0xff]
    %v7958 = vld [vmem:[%s23 + $0x20] sm:$0xff]
    %v7959 = vld [vmem:[%s23 + $0x28] sm:$0xff]
    %v7960 = vld [vmem:[%s23 + $0x30] sm:$0xff]
    %v7961 = vld [vmem:[%s23 + $0x38] sm:$0xff]
    %v7962 = vld [vmem:[%s25] sm:$0x1]
    %v7964 = vlaneseq
    %v7965 = vshrl.u32 %v7964, 7
    %v7966 = vsub.s32 0, %v7965
    %v7967 = vrot.slane %v7962, %v7966
    %v7970 = vsel %vm777, %v7953, 0
    %7972 = vmatprep.subr.mxu0 0.0
    %7973 = vmatpush1.msra.mxu0 %v7954
    %7974 = vmatprep.subr.mxu0 0.0
    %7975 = vmatpush1.msra.mxu0 %v7955
    %7976 = vmatprep.subr.mxu0 0.0
    %7977 = vmatpush1.msra.mxu0 %v7956
    %7978 = vmatprep.subr.mxu0 0.0
    %7979 = vmatpush1.msra.mxu0 %v7957
    %7980 = vmatprep.subr.mxu0 0.0
    %7981 = vmatpush1.msra.mxu0 %v7958
    %7982 = vmatprep.subr.mxu0 0.0
    %7983 = vmatpush1.msra.mxu0 %v7959
    %7984 = vmatprep.subr.mxu0 0.0
    %7985 = vmatpush1.msra.mxu0 %v7960
    %7986 = vmatprep.subr.mxu0 0.0
    %7987 = vmatpush1.msra.mxu0 %v7961
    %7988 = vmatprep.subr.mxu0 0.0
    %7989 = vmatpush1.msra.mxu0 0.0
    %7990 = vmatprep.subr.mxu0 0.0
    %7991 = vmatpush1.msra.mxu0 0.0
    %7992 = vmatprep.subr.mxu0 0.0
    %7993 = vmatpush1.msra.mxu0 0.0
    %7994 = vmatprep.subr.mxu0 0.0
    %7995 = vmatpush1.msra.mxu0 0.0
    %7996 = vmatprep.subr.mxu0 0.0
    %7997 = vmatpush1.msra.mxu0 0.0
    %7998 = vmatprep.subr.mxu0 0.0
    %7999 = vmatpush1.msra.mxu0 0.0
    %8000 = vmatprep.subr.mxu0 0.0
    %8001 = vmatpush1.msra.mxu0 0.0
    %8002 = vmatprep.subr.mxu0 0.0
    %8003 = vmatpush1.msra.mxu0 0.0
    %8004 = vmatprep.subr.mxu0 0.0
    %8005 = vmatpush1.msra.mxu0 0.0
    %8006 = vmatprep.subr.mxu0 0.0
    %8007 = vmatpush1.msra.mxu0 0.0
    %8008 = vmatprep.subr.mxu0 0.0
    %8009 = vmatpush1.msra.mxu0 0.0
    %8010 = vmatprep.subr.mxu0 0.0
    %8011 = vmatpush1.msra.mxu0 0.0
    %8012 = vmatprep.subr.mxu0 0.0
    %8013 = vmatpush1.msra.mxu0 0.0
    %8014 = vmatprep.subr.mxu0 0.0
    %8015 = vmatpush1.msra.mxu0 0.0
    %8016 = vmatprep.subr.mxu0 0.0
    %8017 = vmatpush1.msra.mxu0 0.0
    %8018 = vmatprep.subr.mxu0 0.0
    %8019 = vmatpush1.msra.mxu0 0.0
    %8020 = vmatprep.subr.mxu0 0.0
    %8021 = vmatpush1.msra.mxu0 0.0
    %8022 = vmatprep.subr.mxu0 0.0
    %8023 = vmatpush1.msra.mxu0 0.0
    %8024 = vmatprep.subr.mxu0 0.0
    %8025 = vmatpush1.msra.mxu0 0.0
    %8026 = vmatprep.subr.mxu0 0.0
    %8027 = vmatpush1.msra.mxu0 0.0
    %8028 = vmatprep.subr.mxu0 0.0
    %8029 = vmatpush1.msra.mxu0 0.0
    %8030 = vmatprep.subr.mxu0 0.0
    %8031 = vmatpush1.msra.mxu0 0.0
    %8032 = vmatprep.subr.mxu0 0.0
    %8033 = vmatpush1.msra.mxu0 0.0
    %8034 = vmatprep.subr.mxu0 0.0
    %8035 = vmatpush1.msra.mxu0 0.0
    %8036 = vmatprep.mubr.f32.mxu0 0.0
    %8037 = vmatmul.mubr.f32.gmra.mrb[0].mxu0 %v7970
    %v8038 = vpop.f32.mrb[0].mxu0
    %v8039 = vadd.f32 %v7967, %v8038
    %v8040 = vpop.f32.mrb[0].mxu0
    %8041 = vdwg.mxu0
    %v8042 = vxor.u32 %v8039, 2147483648
    %v8043 = vmul.f32 %v8042, 1.442695
    %v8044 = vpow.pop %v8043
    %v8045 = vadd.f32 %v8044, 1.0
    %v8046 = vrcp.pop %v8045
    %v8047 = vmul.f32 1.0, %v8046
    %v8048 = vtanh.pop %v8039
    %v8049 = vmul.f32 %v8047, %v7285
    %8051 = vrot.lane.b32.xlu0 %v8048, 64
    %v8052 = vpop.permute.xlu0 %8051
    %v8054 = vmul.f32 %v8047, %v8052
    %8056 = vrot.lane.b32.xlu0 %v8054, 32
    %v8057 = vpop.permute.xlu0 %8056
    %v8059 = vadd.f32 %v8049, %v8057
    %v8060 = vtanh.pop %v8059
    %8062 = vrot.lane.b32.xlu0 %v8060, 64
    %v8063 = vpop.permute.xlu0 %8062
    %v8065 = vmul.f32 %v8047, %v8063
    %v8066 = vld [vmem:[%s27] sm:$0xff]
    %v8067 = vld [vmem:[%s27 + $0x8] sm:$0xff]
    %v8068 = vld [vmem:[%s27 + $0x10] sm:$0xff]
    %v8069 = vld [vmem:[%s27 + $0x18] sm:$0xff]
    %v8070 = vld [vmem:[#allocation8] sm:$0x1]
    %v8072 = vlaneseq
    %v8073 = vshrl.u32 %v8072, 7
    %v8074 = vsub.s32 0, %v8073
    %v8075 = vrot.slane %v8070, %v8074
    %8078 = vrot.lane.b32.xlu0 %v8065, 32
    %v8079 = vpop.permute.xlu0 %8078
    %v8080 = vsel %vm658, %v8079, 0
    %8082 = vmatprep.subr.mxu0 0.0
    %8083 = vmatpush1.msra.mxu0 %v8066
    %8084 = vmatprep.subr.mxu0 0.0
    %8085 = vmatpush1.msra.mxu0 %v8067
    %8086 = vmatprep.subr.mxu0 0.0
    %8087 = vmatpush1.msra.mxu0 %v8068
    %8088 = vmatprep.subr.mxu0 0.0
    %8089 = vmatpush1.msra.mxu0 %v8069
    %8090 = vmatprep.subr.mxu0 0.0
    %8091 = vmatpush1.msra.mxu0 0.0
    %8092 = vmatprep.subr.mxu0 0.0
    %8093 = vmatpush1.msra.mxu0 0.0
    %8094 = vmatprep.subr.mxu0 0.0
    %8095 = vmatpush1.msra.mxu0 0.0
    %8096 = vmatprep.subr.mxu0 0.0
    %8097 = vmatpush1.msra.mxu0 0.0
    %8098 = vmatprep.subr.mxu0 0.0
    %8099 = vmatpush1.msra.mxu0 0.0
    %8100 = vmatprep.subr.mxu0 0.0
    %8101 = vmatpush1.msra.mxu0 0.0
    %8102 = vmatprep.subr.mxu0 0.0
    %8103 = vmatpush1.msra.mxu0 0.0
    %8104 = vmatprep.subr.mxu0 0.0
    %8105 = vmatpush1.msra.mxu0 0.0
    %8106 = vmatprep.subr.mxu0 0.0
    %8107 = vmatpush1.msra.mxu0 0.0
    %8108 = vmatprep.subr.mxu0 0.0
    %8109 = vmatpush1.msra.mxu0 0.0
    %8110 = vmatprep.subr.mxu0 0.0
    %8111 = vmatpush1.msra.mxu0 0.0
    %8112 = vmatprep.subr.mxu0 0.0
    %8113 = vmatpush1.msra.mxu0 0.0
    %8114 = vmatprep.subr.mxu0 0.0
    %8115 = vmatpush1.msra.mxu0 0.0
    %8116 = vmatprep.subr.mxu0 0.0
    %8117 = vmatpush1.msra.mxu0 0.0
    %8118 = vmatprep.subr.mxu0 0.0
    %8119 = vmatpush1.msra.mxu0 0.0
    %8120 = vmatprep.subr.mxu0 0.0
    %8121 = vmatpush1.msra.mxu0 0.0
    %8122 = vmatprep.subr.mxu0 0.0
    %8123 = vmatpush1.msra.mxu0 0.0
    %8124 = vmatprep.subr.mxu0 0.0
    %8125 = vmatpush1.msra.mxu0 0.0
    %8126 = vmatprep.subr.mxu0 0.0
    %8127 = vmatpush1.msra.mxu0 0.0
    %8128 = vmatprep.subr.mxu0 0.0
    %8129 = vmatpush1.msra.mxu0 0.0
    %8130 = vmatprep.subr.mxu0 0.0
    %8131 = vmatpush1.msra.mxu0 0.0
    %8132 = vmatprep.subr.mxu0 0.0
    %8133 = vmatpush1.msra.mxu0 0.0
    %8134 = vmatprep.subr.mxu0 0.0
    %8135 = vmatpush1.msra.mxu0 0.0
    %8136 = vmatprep.subr.mxu0 0.0
    %8137 = vmatpush1.msra.mxu0 0.0
    %8138 = vmatprep.subr.mxu0 0.0
    %8139 = vmatpush1.msra.mxu0 0.0
    %8140 = vmatprep.subr.mxu0 0.0
    %8141 = vmatpush1.msra.mxu0 0.0
    %8142 = vmatprep.subr.mxu0 0.0
    %8143 = vmatpush1.msra.mxu0 0.0
    %8144 = vmatprep.subr.mxu0 0.0
    %8145 = vmatpush1.msra.mxu0 0.0
    %8146 = vmatprep.mubr.f32.mxu0 0.0
    %8147 = vmatmul.mubr.f32.gmra.mrb[0].mxu0 %v8080
    %v8148 = vpop.f32.mrb[0].mxu0
    %v8149 = vadd.f32 %v8075, %v8148
    %v8150 = vpop.f32.mrb[0].mxu0
    %8151 = vdwg.mxu0
    %s8152 = scalar_lea.vmem %s5, 56
    %v8153 = vld [vmem:[%s8152] sm:$0xff]
    %v8154 = vld [vmem:[%s31] sm:$0xf]
    %v8155 = vld [vmem:[%s33] sm:$0x3]
    %v8157 = vsel %vm3043, %v8149, 0
    %v8160 = vsel %vm3047, %v8155, 0
    %8162 = vmatprep.subr.mxu0 0.0
    %8163 = vmatpush1.msra.mxu0 %v8160
    %8164 = vmatprep.subr.mxu0 0.0
    %8165 = vmatpush1.msra.mxu0 0.0
    %8166 = vmatprep.subr.mxu0 0.0
    %8167 = vmatpush1.msra.mxu0 0.0
    %8168 = vmatprep.subr.mxu0 0.0
    %8169 = vmatpush1.msra.mxu0 0.0
    %8170 = vmatprep.subr.mxu0 0.0
    %8171 = vmatpush1.msra.mxu0 0.0
    %8172 = vmatprep.subr.mxu0 0.0
    %8173 = vmatpush1.msra.mxu0 0.0
    %8174 = vmatprep.subr.mxu0 0.0
    %8175 = vmatpush1.msra.mxu0 0.0
    %8176 = vmatprep.subr.mxu0 0.0
    %8177 = vmatpush1.msra.mxu0 0.0
    %8178 = vmatprep.subr.mxu0 0.0
    %8179 = vmatpush1.msra.mxu0 0.0
    %8180 = vmatprep.subr.mxu0 0.0
    %8181 = vmatpush1.msra.mxu0 0.0
    %8182 = vmatprep.subr.mxu0 0.0
    %8183 = vmatpush1.msra.mxu0 0.0
    %8184 = vmatprep.subr.mxu0 0.0
    %8185 = vmatpush1.msra.mxu0 0.0
    %8186 = vmatprep.subr.mxu0 0.0
    %8187 = vmatpush1.msra.mxu0 0.0
    %8188 = vmatprep.subr.mxu0 0.0
    %8189 = vmatpush1.msra.mxu0 0.0
    %8190 = vmatprep.subr.mxu0 0.0
    %8191 = vmatpush1.msra.mxu0 0.0
    %8192 = vmatprep.subr.mxu0 0.0
    %8193 = vmatpush1.msra.mxu0 0.0
    %8194 = vmatprep.subr.mxu0 0.0
    %8195 = vmatpush1.msra.mxu0 0.0
    %8196 = vmatprep.subr.mxu0 0.0
    %8197 = vmatpush1.msra.mxu0 0.0
    %8198 = vmatprep.subr.mxu0 0.0
    %8199 = vmatpush1.msra.mxu0 0.0
    %8200 = vmatprep.subr.mxu0 0.0
    %8201 = vmatpush1.msra.mxu0 0.0
    %8202 = vmatprep.subr.mxu0 0.0
    %8203 = vmatpush1.msra.mxu0 0.0
    %8204 = vmatprep.subr.mxu0 0.0
    %8205 = vmatpush1.msra.mxu0 0.0
    %8206 = vmatprep.subr.mxu0 0.0
    %8207 = vmatpush1.msra.mxu0 0.0
    %8208 = vmatprep.subr.mxu0 0.0
    %8209 = vmatpush1.msra.mxu0 0.0
    %8210 = vmatprep.subr.mxu0 0.0
    %8211 = vmatpush1.msra.mxu0 0.0
    %8212 = vmatprep.subr.mxu0 0.0
    %8213 = vmatpush1.msra.mxu0 0.0
    %8214 = vmatprep.subr.mxu0 0.0
    %8215 = vmatpush1.msra.mxu0 0.0
    %8216 = vmatprep.subr.mxu0 0.0
    %8217 = vmatpush1.msra.mxu0 0.0
    %8218 = vmatprep.subr.mxu0 0.0
    %8219 = vmatpush1.msra.mxu0 0.0
    %8220 = vmatprep.subr.mxu0 0.0
    %8221 = vmatpush1.msra.mxu0 0.0
    %8222 = vmatprep.subr.mxu0 0.0
    %8223 = vmatpush1.msra.mxu0 0.0
    %8224 = vmatprep.subr.mxu0 0.0
    %8225 = vmatpush1.msra.mxu0 0.0
    %8226 = vmatprep.mubr.f32.mxu0 0.0
    %8227 = vmatmul.mubr.f32.gmra.mrb[0].mxu0 %v8157
    %v8228 = vpop.f32.mrb[0].mxu0
    %v8229 = vadd.f32 0.0, %v8228
    %v8230 = vpop.f32.mrb[0].mxu0
    %8231 = vdwg.mxu0
    %v8233 = vsel %vm3121, %v8153, 0
    %v8236 = vsel %vm3125, %v8154, 0
    %8238 = vmatprep.subr.mxu0 0.0
    %8239 = vmatpush1.msra.mxu0 %v8236
    %8240 = vmatprep.subr.mxu0 0.0
    %8241 = vmatpush1.msra.mxu0 0.0
    %8242 = vmatprep.subr.mxu0 0.0
    %8243 = vmatpush1.msra.mxu0 0.0
    %8244 = vmatprep.subr.mxu0 0.0
    %8245 = vmatpush1.msra.mxu0 0.0
    %8246 = vmatprep.subr.mxu0 0.0
    %8247 = vmatpush1.msra.mxu0 0.0
    %8248 = vmatprep.subr.mxu0 0.0
    %8249 = vmatpush1.msra.mxu0 0.0
    %8250 = vmatprep.subr.mxu0 0.0
    %8251 = vmatpush1.msra.mxu0 0.0
    %8252 = vmatprep.subr.mxu0 0.0
    %8253 = vmatpush1.msra.mxu0 0.0
    %8254 = vmatprep.subr.mxu0 0.0
    %8255 = vmatpush1.msra.mxu0 0.0
    %8256 = vmatprep.subr.mxu0 0.0
    %8257 = vmatpush1.msra.mxu0 0.0
    %8258 = vmatprep.subr.mxu0 0.0
    %8259 = vmatpush1.msra.mxu0 0.0
    %8260 = vmatprep.subr.mxu0 0.0
    %8261 = vmatpush1.msra.mxu0 0.0
    %8262 = vmatprep.subr.mxu0 0.0
    %8263 = vmatpush1.msra.mxu0 0.0
    %8264 = vmatprep.subr.mxu0 0.0
    %8265 = vmatpush1.msra.mxu0 0.0
    %8266 = vmatprep.subr.mxu0 0.0
    %8267 = vmatpush1.msra.mxu0 0.0
    %8268 = vmatprep.subr.mxu0 0.0
    %8269 = vmatpush1.msra.mxu0 0.0
    %8270 = vmatprep.subr.mxu0 0.0
    %8271 = vmatpush1.msra.mxu0 0.0
    %8272 = vmatprep.subr.mxu0 0.0
    %8273 = vmatpush1.msra.mxu0 0.0
    %8274 = vmatprep.subr.mxu0 0.0
    %8275 = vmatpush1.msra.mxu0 0.0
    %8276 = vmatprep.subr.mxu0 0.0
    %8277 = vmatpush1.msra.mxu0 0.0
    %8278 = vmatprep.subr.mxu0 0.0
    %8279 = vmatpush1.msra.mxu0 0.0
    %8280 = vmatprep.subr.mxu0 0.0
    %8281 = vmatpush1.msra.mxu0 0.0
    %8282 = vmatprep.subr.mxu0 0.0
    %8283 = vmatpush1.msra.mxu0 0.0
    %8284 = vmatprep.subr.mxu0 0.0
    %8285 = vmatpush1.msra.mxu0 0.0
    %8286 = vmatprep.subr.mxu0 0.0
    %8287 = vmatpush1.msra.mxu0 0.0
    %8288 = vmatprep.subr.mxu0 0.0
    %8289 = vmatpush1.msra.mxu0 0.0
    %8290 = vmatprep.subr.mxu0 0.0
    %8291 = vmatpush1.msra.mxu0 0.0
    %8292 = vmatprep.subr.mxu0 0.0
    %8293 = vmatpush1.msra.mxu0 0.0
    %8294 = vmatprep.subr.mxu0 0.0
    %8295 = vmatpush1.msra.mxu0 0.0
    %8296 = vmatprep.subr.mxu0 0.0
    %8297 = vmatpush1.msra.mxu0 0.0
    %8298 = vmatprep.subr.mxu0 0.0
    %8299 = vmatpush1.msra.mxu0 0.0
    %8300 = vmatprep.subr.mxu0 0.0
    %8301 = vmatpush1.msra.mxu0 0.0
    %8302 = vmatprep.mubr.f32.mxu0 0.0
    %8303 = vmatmul.mubr.f32.gmra.mrb[0].mxu0 %v8233
    %v8304 = vpop.f32.mrb[0].mxu0
    %v8305 = vadd.f32 %v8229, %v8304
    %v8306 = vpop.f32.mrb[0].mxu0
    %8307 = vdwg.mxu0
    %s8308 = scalar_lea.vmem [#allocation6], 56
    %8309 = vst.msk [vmem:[%s8308] sm:$0xff] %vm3121, %v8305
    %s8310 = scalar_lea.vmem [#allocation5], 48
    %v8311 = vld [vmem:[%s8310] sm:$0xff]
    %v8312 = vld [vmem:[%s47] sm:$0xf]
    %v8314 = vsel %vm3121, %v7531, 0
    %v8317 = vsel %vm3125, %v8312, 0
    %8319 = vmatprep.subr.mxu0 0.0
    %8320 = vmatpush1.msra.mxu0 %v8317
    %8321 = vmatprep.subr.mxu0 0.0
    %8322 = vmatpush1.msra.mxu0 0.0
    %8323 = vmatprep.subr.mxu0 0.0
    %8324 = vmatpush1.msra.mxu0 0.0
    %8325 = vmatprep.subr.mxu0 0.0
    %8326 = vmatpush1.msra.mxu0 0.0
    %8327 = vmatprep.subr.mxu0 0.0
    %8328 = vmatpush1.msra.mxu0 0.0
    %8329 = vmatprep.subr.mxu0 0.0
    %8330 = vmatpush1.msra.mxu0 0.0
    %8331 = vmatprep.subr.mxu0 0.0
    %8332 = vmatpush1.msra.mxu0 0.0
    %8333 = vmatprep.subr.mxu0 0.0
    %8334 = vmatpush1.msra.mxu0 0.0
    %8335 = vmatprep.subr.mxu0 0.0
    %8336 = vmatpush1.msra.mxu0 0.0
    %8337 = vmatprep.subr.mxu0 0.0
    %8338 = vmatpush1.msra.mxu0 0.0
    %8339 = vmatprep.subr.mxu0 0.0
    %8340 = vmatpush1.msra.mxu0 0.0
    %8341 = vmatprep.subr.mxu0 0.0
    %8342 = vmatpush1.msra.mxu0 0.0
    %8343 = vmatprep.subr.mxu0 0.0
    %8344 = vmatpush1.msra.mxu0 0.0
    %8345 = vmatprep.subr.mxu0 0.0
    %8346 = vmatpush1.msra.mxu0 0.0
    %8347 = vmatprep.subr.mxu0 0.0
    %8348 = vmatpush1.msra.mxu0 0.0
    %8349 = vmatprep.subr.mxu0 0.0
    %8350 = vmatpush1.msra.mxu0 0.0
    %8351 = vmatprep.subr.mxu0 0.0
    %8352 = vmatpush1.msra.mxu0 0.0
    %8353 = vmatprep.subr.mxu0 0.0
    %8354 = vmatpush1.msra.mxu0 0.0
    %8355 = vmatprep.subr.mxu0 0.0
    %8356 = vmatpush1.msra.mxu0 0.0
    %8357 = vmatprep.subr.mxu0 0.0
    %8358 = vmatpush1.msra.mxu0 0.0
    %8359 = vmatprep.subr.mxu0 0.0
    %8360 = vmatpush1.msra.mxu0 0.0
    %8361 = vmatprep.subr.mxu0 0.0
    %8362 = vmatpush1.msra.mxu0 0.0
    %8363 = vmatprep.subr.mxu0 0.0
    %8364 = vmatpush1.msra.mxu0 0.0
    %8365 = vmatprep.subr.mxu0 0.0
    %8366 = vmatpush1.msra.mxu0 0.0
    %8367 = vmatprep.subr.mxu0 0.0
    %8368 = vmatpush1.msra.mxu0 0.0
    %8369 = vmatprep.subr.mxu0 0.0
    %8370 = vmatpush1.msra.mxu0 0.0
    %8371 = vmatprep.subr.mxu0 0.0
    %8372 = vmatpush1.msra.mxu0 0.0
    %8373 = vmatprep.subr.mxu0 0.0
    %8374 = vmatpush1.msra.mxu0 0.0
    %8375 = vmatprep.subr.mxu0 0.0
    %8376 = vmatpush1.msra.mxu0 0.0
    %8377 = vmatprep.subr.mxu0 0.0
    %8378 = vmatpush1.msra.mxu0 0.0
    %8379 = vmatprep.subr.mxu0 0.0
    %8380 = vmatpush1.msra.mxu0 0.0
    %8381 = vmatprep.subr.mxu0 0.0
    %8382 = vmatpush1.msra.mxu0 0.0
    %8383 = vmatprep.mubr.f32.mxu0 0.0
    %8384 = vmatmul.mubr.f32.gmra.mrb[0].mxu0 %v8314
    %v8385 = vpop.f32.mrb[0].mxu0
    %v8386 = vadd.f32 0.0, %v8385
    %v8387 = vpop.f32.mrb[0].mxu0
    %8388 = vdwg.mxu0
    %v8389 = vadd.f32 %v8311, %v8386
    %v8390 = vld [vmem:[%s49] sm:$0xff]
    %v8391 = vld [vmem:[%s49 + $0x8] sm:$0xff]
    %v8392 = vld [vmem:[%s49 + $0x10] sm:$0xff]
    %v8393 = vld [vmem:[%s49 + $0x18] sm:$0xff]
    %v8394 = vsel %vm658, %v7719, 0
    %8396 = vmatprep.subr.mxu0 0.0
    %8397 = vmatpush1.msra.mxu0 %v8390
    %8398 = vmatprep.subr.mxu0 0.0
    %8399 = vmatpush1.msra.mxu0 %v8391
    %8400 = vmatprep.subr.mxu0 0.0
    %8401 = vmatpush1.msra.mxu0 %v8392
    %8402 = vmatprep.subr.mxu0 0.0
    %8403 = vmatpush1.msra.mxu0 %v8393
    %8404 = vmatprep.subr.mxu0 0.0
    %8405 = vmatpush1.msra.mxu0 0.0
    %8406 = vmatprep.subr.mxu0 0.0
    %8407 = vmatpush1.msra.mxu0 0.0
    %8408 = vmatprep.subr.mxu0 0.0
    %8409 = vmatpush1.msra.mxu0 0.0
    %8410 = vmatprep.subr.mxu0 0.0
    %8411 = vmatpush1.msra.mxu0 0.0
    %8412 = vmatprep.subr.mxu0 0.0
    %8413 = vmatpush1.msra.mxu0 0.0
    %8414 = vmatprep.subr.mxu0 0.0
    %8415 = vmatpush1.msra.mxu0 0.0
    %8416 = vmatprep.subr.mxu0 0.0
    %8417 = vmatpush1.msra.mxu0 0.0
    %8418 = vmatprep.subr.mxu0 0.0
    %8419 = vmatpush1.msra.mxu0 0.0
    %8420 = vmatprep.subr.mxu0 0.0
    %8421 = vmatpush1.msra.mxu0 0.0
    %8422 = vmatprep.subr.mxu0 0.0
    %8423 = vmatpush1.msra.mxu0 0.0
    %8424 = vmatprep.subr.mxu0 0.0
    %8425 = vmatpush1.msra.mxu0 0.0
    %8426 = vmatprep.subr.mxu0 0.0
    %8427 = vmatpush1.msra.mxu0 0.0
    %8428 = vmatprep.subr.mxu0 0.0
    %8429 = vmatpush1.msra.mxu0 0.0
    %8430 = vmatprep.subr.mxu0 0.0
    %8431 = vmatpush1.msra.mxu0 0.0
    %8432 = vmatprep.subr.mxu0 0.0
    %8433 = vmatpush1.msra.mxu0 0.0
    %8434 = vmatprep.subr.mxu0 0.0
    %8435 = vmatpush1.msra.mxu0 0.0
    %8436 = vmatprep.subr.mxu0 0.0
    %8437 = vmatpush1.msra.mxu0 0.0
    %8438 = vmatprep.subr.mxu0 0.0
    %8439 = vmatpush1.msra.mxu0 0.0
    %8440 = vmatprep.subr.mxu0 0.0
    %8441 = vmatpush1.msra.mxu0 0.0
    %8442 = vmatprep.subr.mxu0 0.0
    %8443 = vmatpush1.msra.mxu0 0.0
    %8444 = vmatprep.subr.mxu0 0.0
    %8445 = vmatpush1.msra.mxu0 0.0
    %8446 = vmatprep.subr.mxu0 0.0
    %8447 = vmatpush1.msra.mxu0 0.0
    %8448 = vmatprep.subr.mxu0 0.0
    %8449 = vmatpush1.msra.mxu0 0.0
    %8450 = vmatprep.subr.mxu0 0.0
    %8451 = vmatpush1.msra.mxu0 0.0
    %8452 = vmatprep.subr.mxu0 0.0
    %8453 = vmatpush1.msra.mxu0 0.0
    %8454 = vmatprep.subr.mxu0 0.0
    %8455 = vmatpush1.msra.mxu0 0.0
    %8456 = vmatprep.subr.mxu0 0.0
    %8457 = vmatpush1.msra.mxu0 0.0
    %8458 = vmatprep.subr.mxu0 0.0
    %8459 = vmatpush1.msra.mxu0 0.0
    %8460 = vmatprep.mubr.f32.mxu0 0.0
    %8461 = vmatmul.mubr.f32.gmra.mrb[0].mxu0 %v8394
    %v8462 = vpop.f32.mrb[0].mxu0
    %v8463 = vadd.f32 0.0, %v8462
    %v8464 = vpop.f32.mrb[0].mxu0
    %8465 = vdwg.mxu0
    %v8466 = vadd.f32 %v8389, %v8463
    %v8467 = vxor.u32 %v8466, 2147483648
    %v8468 = vmul.f32 %v8467, 1.442695
    %v8469 = vpow.pop %v8468
    %v8470 = vadd.f32 %v8469, 1.0
    %v8471 = vrcp.pop %v8470
    %v8472 = vmul.f32 1.0, %v8471
    %v8473 = vtanh.pop %v8466
    %v8474 = vmul.f32 %v8472, %v7710
    %8476 = vrot.lane.b32.xlu0 %v8473, 64
    %v8477 = vpop.permute.xlu0 %8476
    %v8479 = vmul.f32 %v8472, %v8477
    %8481 = vrot.lane.b32.xlu0 %v8479, 32
    %v8482 = vpop.permute.xlu0 %8481
    %v8484 = vadd.f32 %v8474, %v8482
    %v8485 = vtanh.pop %v8484
    %8487 = vrot.lane.b32.xlu0 %v8485, 64
    %v8488 = vpop.permute.xlu0 %8487
    %v8490 = vmul.f32 %v8472, %v8488
    %8492 = vrot.lane.b32.xlu0 %v8490, 32
    %v8493 = vpop.permute.xlu0 %8492
    %8495 = vrot.lane.b32.xlu0 %v7836, 64
    %v8496 = vpop.permute.xlu0 %8495
    %v8498 = vsel %vm658, %v8493, %v8496
    %v8499 = vld [vmem:[%s53] sm:$0xff]
    %v8500 = vld [vmem:[%s53 + $0x8] sm:$0xff]
    %v8501 = vld [vmem:[%s53 + $0x10] sm:$0xff]
    %v8502 = vld [vmem:[%s53 + $0x18] sm:$0xff]
    %v8503 = vld [vmem:[%s53 + $0x20] sm:$0xff]
    %v8504 = vld [vmem:[%s53 + $0x28] sm:$0xff]
    %v8505 = vld [vmem:[%s53 + $0x30] sm:$0xff]
    %v8506 = vld [vmem:[%s53 + $0x38] sm:$0xff]
    %v8507 = vld [vmem:[%s55] sm:$0x1]
    %v8509 = vlaneseq
    %v8510 = vshrl.u32 %v8509, 7
    %v8511 = vsub.s32 0, %v8510
    %v8512 = vrot.slane %v8507, %v8511
    %v8515 = vsel %vm777, %v8498, 0
    %8517 = vmatprep.subr.mxu0 0.0
    %8518 = vmatpush1.msra.mxu0 %v8499
    %8519 = vmatprep.subr.mxu0 0.0
    %8520 = vmatpush1.msra.mxu0 %v8500
    %8521 = vmatprep.subr.mxu0 0.0
    %8522 = vmatpush1.msra.mxu0 %v8501
    %8523 = vmatprep.subr.mxu0 0.0
    %8524 = vmatpush1.msra.mxu0 %v8502
    %8525 = vmatprep.subr.mxu0 0.0
    %8526 = vmatpush1.msra.mxu0 %v8503
    %8527 = vmatprep.subr.mxu0 0.0
    %8528 = vmatpush1.msra.mxu0 %v8504
    %8529 = vmatprep.subr.mxu0 0.0
    %8530 = vmatpush1.msra.mxu0 %v8505
    %8531 = vmatprep.subr.mxu0 0.0
    %8532 = vmatpush1.msra.mxu0 %v8506
    %8533 = vmatprep.subr.mxu0 0.0
    %8534 = vmatpush1.msra.mxu0 0.0
    %8535 = vmatprep.subr.mxu0 0.0
    %8536 = vmatpush1.msra.mxu0 0.0
    %8537 = vmatprep.subr.mxu0 0.0
    %8538 = vmatpush1.msra.mxu0 0.0
    %8539 = vmatprep.subr.mxu0 0.0
    %8540 = vmatpush1.msra.mxu0 0.0
    %8541 = vmatprep.subr.mxu0 0.0
    %8542 = vmatpush1.msra.mxu0 0.0
    %8543 = vmatprep.subr.mxu0 0.0
    %8544 = vmatpush1.msra.mxu0 0.0
    %8545 = vmatprep.subr.mxu0 0.0
    %8546 = vmatpush1.msra.mxu0 0.0
    %8547 = vmatprep.subr.mxu0 0.0
    %8548 = vmatpush1.msra.mxu0 0.0
    %8549 = vmatprep.subr.mxu0 0.0
    %8550 = vmatpush1.msra.mxu0 0.0
    %8551 = vmatprep.subr.mxu0 0.0
    %8552 = vmatpush1.msra.mxu0 0.0
    %8553 = vmatprep.subr.mxu0 0.0
    %8554 = vmatpush1.msra.mxu0 0.0
    %8555 = vmatprep.subr.mxu0 0.0
    %8556 = vmatpush1.msra.mxu0 0.0
    %8557 = vmatprep.subr.mxu0 0.0
    %8558 = vmatpush1.msra.mxu0 0.0
    %8559 = vmatprep.subr.mxu0 0.0
    %8560 = vmatpush1.msra.mxu0 0.0
    %8561 = vmatprep.subr.mxu0 0.0
    %8562 = vmatpush1.msra.mxu0 0.0
    %8563 = vmatprep.subr.mxu0 0.0
    %8564 = vmatpush1.msra.mxu0 0.0
    %8565 = vmatprep.subr.mxu0 0.0
    %8566 = vmatpush1.msra.mxu0 0.0
    %8567 = vmatprep.subr.mxu0 0.0
    %8568 = vmatpush1.msra.mxu0 0.0
    %8569 = vmatprep.subr.mxu0 0.0
    %8570 = vmatpush1.msra.mxu0 0.0
    %8571 = vmatprep.subr.mxu0 0.0
    %8572 = vmatpush1.msra.mxu0 0.0
    %8573 = vmatprep.subr.mxu0 0.0
    %8574 = vmatpush1.msra.mxu0 0.0
    %8575 = vmatprep.subr.mxu0 0.0
    %8576 = vmatpush1.msra.mxu0 0.0
    %8577 = vmatprep.subr.mxu0 0.0
    %8578 = vmatpush1.msra.mxu0 0.0
    %8579 = vmatprep.subr.mxu0 0.0
    %8580 = vmatpush1.msra.mxu0 0.0
    %8581 = vmatprep.mubr.f32.mxu0 0.0
    %8582 = vmatmul.mubr.f32.gmra.mrb[0].mxu0 %v8515
    %v8583 = vpop.f32.mrb[0].mxu0
    %v8584 = vadd.f32 %v8512, %v8583
    %v8585 = vpop.f32.mrb[0].mxu0
    %8586 = vdwg.mxu0
    %v8587 = vxor.u32 %v8584, 2147483648
    %v8588 = vmul.f32 %v8587, 1.442695
    %v8589 = vpow.pop %v8588
    %v8590 = vadd.f32 %v8589, 1.0
    %v8591 = vrcp.pop %v8590
    %v8592 = vmul.f32 1.0, %v8591
    %v8593 = vtanh.pop %v8584
    %v8594 = vmul.f32 %v8592, %v7830
    %8596 = vrot.lane.b32.xlu0 %v8593, 64
    %v8597 = vpop.permute.xlu0 %8596
    %v8599 = vmul.f32 %v8592, %v8597
    %8601 = vrot.lane.b32.xlu0 %v8599, 32
    %v8602 = vpop.permute.xlu0 %8601
    %v8604 = vadd.f32 %v8594, %v8602
    %v8605 = vtanh.pop %v8604
    %8607 = vrot.lane.b32.xlu0 %v8605, 64
    %v8608 = vpop.permute.xlu0 %8607
    %v8610 = vmul.f32 %v8592, %v8608
    %8612 = vrot.lane.b32.xlu0 %v8610, 32
    %v8613 = vpop.permute.xlu0 %8612
    %s8615 = scalar_lea.vmem [#allocation7], 48
    %8616 = vst.msk [vmem:[%s8615] sm:$0xff] %vm658, %v8613
    %s8617 = scalar_lea.vmem [#allocation5], 56
    %v8618 = vld [vmem:[%s8617] sm:$0xff]
    %v8619 = vld [vmem:[%s47] sm:$0xf]
    %v8621 = vsel %vm3121, %v8305, 0
    %v8624 = vsel %vm3125, %v8619, 0
    %8626 = vmatprep.subr.mxu0 0.0
    %8627 = vmatpush1.msra.mxu0 %v8624
    %8628 = vmatprep.subr.mxu0 0.0
    %8629 = vmatpush1.msra.mxu0 0.0
    %8630 = vmatprep.subr.mxu0 0.0
    %8631 = vmatpush1.msra.mxu0 0.0
    %8632 = vmatprep.subr.mxu0 0.0
    %8633 = vmatpush1.msra.mxu0 0.0
    %8634 = vmatprep.subr.mxu0 0.0
    %8635 = vmatpush1.msra.mxu0 0.0
    %8636 = vmatprep.subr.mxu0 0.0
    %8637 = vmatpush1.msra.mxu0 0.0
    %8638 = vmatprep.subr.mxu0 0.0
    %8639 = vmatpush1.msra.mxu0 0.0
    %8640 = vmatprep.subr.mxu0 0.0
    %8641 = vmatpush1.msra.mxu0 0.0
    %8642 = vmatprep.subr.mxu0 0.0
    %8643 = vmatpush1.msra.mxu0 0.0
    %8644 = vmatprep.subr.mxu0 0.0
    %8645 = vmatpush1.msra.mxu0 0.0
    %8646 = vmatprep.subr.mxu0 0.0
    %8647 = vmatpush1.msra.mxu0 0.0
    %8648 = vmatprep.subr.mxu0 0.0
    %8649 = vmatpush1.msra.mxu0 0.0
    %8650 = vmatprep.subr.mxu0 0.0
    %8651 = vmatpush1.msra.mxu0 0.0
    %8652 = vmatprep.subr.mxu0 0.0
    %8653 = vmatpush1.msra.mxu0 0.0
    %8654 = vmatprep.subr.mxu0 0.0
    %8655 = vmatpush1.msra.mxu0 0.0
    %8656 = vmatprep.subr.mxu0 0.0
    %8657 = vmatpush1.msra.mxu0 0.0
    %8658 = vmatprep.subr.mxu0 0.0
    %8659 = vmatpush1.msra.mxu0 0.0
    %8660 = vmatprep.subr.mxu0 0.0
    %8661 = vmatpush1.msra.mxu0 0.0
    %8662 = vmatprep.subr.mxu0 0.0
    %8663 = vmatpush1.msra.mxu0 0.0
    %8664 = vmatprep.subr.mxu0 0.0
    %8665 = vmatpush1.msra.mxu0 0.0
    %8666 = vmatprep.subr.mxu0 0.0
    %8667 = vmatpush1.msra.mxu0 0.0
    %8668 = vmatprep.subr.mxu0 0.0
    %8669 = vmatpush1.msra.mxu0 0.0
    %8670 = vmatprep.subr.mxu0 0.0
    %8671 = vmatpush1.msra.mxu0 0.0
    %8672 = vmatprep.subr.mxu0 0.0
    %8673 = vmatpush1.msra.mxu0 0.0
    %8674 = vmatprep.subr.mxu0 0.0
    %8675 = vmatpush1.msra.mxu0 0.0
    %8676 = vmatprep.subr.mxu0 0.0
    %8677 = vmatpush1.msra.mxu0 0.0
    %8678 = vmatprep.subr.mxu0 0.0
    %8679 = vmatpush1.msra.mxu0 0.0
    %8680 = vmatprep.subr.mxu0 0.0
    %8681 = vmatpush1.msra.mxu0 0.0
    %8682 = vmatprep.subr.mxu0 0.0
    %8683 = vmatpush1.msra.mxu0 0.0
    %8684 = vmatprep.subr.mxu0 0.0
    %8685 = vmatpush1.msra.mxu0 0.0
    %8686 = vmatprep.subr.mxu0 0.0
    %8687 = vmatpush1.msra.mxu0 0.0
    %8688 = vmatprep.subr.mxu0 0.0
    %8689 = vmatpush1.msra.mxu0 0.0
    %8690 = vmatprep.mubr.f32.mxu0 0.0
    %8691 = vmatmul.mubr.f32.gmra.mrb[0].mxu0 %v8621
    %v8692 = vpop.f32.mrb[0].mxu0
    %v8693 = vadd.f32 0.0, %v8692
    %v8694 = vpop.f32.mrb[0].mxu0
    %8695 = vdwg.mxu0
    %v8696 = vadd.f32 %v8618, %v8693
    %v8697 = vld [vmem:[%s49] sm:$0xff]
    %v8698 = vld [vmem:[%s49 + $0x8] sm:$0xff]
    %v8699 = vld [vmem:[%s49 + $0x10] sm:$0xff]
    %v8700 = vld [vmem:[%s49 + $0x18] sm:$0xff]
    %v8701 = vsel %vm658, %v8493, 0
    %8703 = vmatprep.subr.mxu0 0.0
    %8704 = vmatpush1.msra.mxu0 %v8697
    %8705 = vmatprep.subr.mxu0 0.0
    %8706 = vmatpush1.msra.mxu0 %v8698
    %8707 = vmatprep.subr.mxu0 0.0
    %8708 = vmatpush1.msra.mxu0 %v8699
    %8709 = vmatprep.subr.mxu0 0.0
    %8710 = vmatpush1.msra.mxu0 %v8700
    %8711 = vmatprep.subr.mxu0 0.0
    %8712 = vmatpush1.msra.mxu0 0.0
    %8713 = vmatprep.subr.mxu0 0.0
    %8714 = vmatpush1.msra.mxu0 0.0
    %8715 = vmatprep.subr.mxu0 0.0
    %8716 = vmatpush1.msra.mxu0 0.0
    %8717 = vmatprep.subr.mxu0 0.0
    %8718 = vmatpush1.msra.mxu0 0.0
    %8719 = vmatprep.subr.mxu0 0.0
    %8720 = vmatpush1.msra.mxu0 0.0
    %8721 = vmatprep.subr.mxu0 0.0
    %8722 = vmatpush1.msra.mxu0 0.0
    %8723 = vmatprep.subr.mxu0 0.0
    %8724 = vmatpush1.msra.mxu0 0.0
    %8725 = vmatprep.subr.mxu0 0.0
    %8726 = vmatpush1.msra.mxu0 0.0
    %8727 = vmatprep.subr.mxu0 0.0
    %8728 = vmatpush1.msra.mxu0 0.0
    %8729 = vmatprep.subr.mxu0 0.0
    %8730 = vmatpush1.msra.mxu0 0.0
    %8731 = vmatprep.subr.mxu0 0.0
    %8732 = vmatpush1.msra.mxu0 0.0
    %8733 = vmatprep.subr.mxu0 0.0
    %8734 = vmatpush1.msra.mxu0 0.0
    %8735 = vmatprep.subr.mxu0 0.0
    %8736 = vmatpush1.msra.mxu0 0.0
    %8737 = vmatprep.subr.mxu0 0.0
    %8738 = vmatpush1.msra.mxu0 0.0
    %8739 = vmatprep.subr.mxu0 0.0
    %8740 = vmatpush1.msra.mxu0 0.0
    %8741 = vmatprep.subr.mxu0 0.0
    %8742 = vmatpush1.msra.mxu0 0.0
    %8743 = vmatprep.subr.mxu0 0.0
    %8744 = vmatpush1.msra.mxu0 0.0
    %8745 = vmatprep.subr.mxu0 0.0
    %8746 = vmatpush1.msra.mxu0 0.0
    %8747 = vmatprep.subr.mxu0 0.0
    %8748 = vmatpush1.msra.mxu0 0.0
    %8749 = vmatprep.subr.mxu0 0.0
    %8750 = vmatpush1.msra.mxu0 0.0
    %8751 = vmatprep.subr.mxu0 0.0
    %8752 = vmatpush1.msra.mxu0 0.0
    %8753 = vmatprep.subr.mxu0 0.0
    %8754 = vmatpush1.msra.mxu0 0.0
    %8755 = vmatprep.subr.mxu0 0.0
    %8756 = vmatpush1.msra.mxu0 0.0
    %8757 = vmatprep.subr.mxu0 0.0
    %8758 = vmatpush1.msra.mxu0 0.0
    %8759 = vmatprep.subr.mxu0 0.0
    %8760 = vmatpush1.msra.mxu0 0.0
    %8761 = vmatprep.subr.mxu0 0.0
    %8762 = vmatpush1.msra.mxu0 0.0
    %8763 = vmatprep.subr.mxu0 0.0
    %8764 = vmatpush1.msra.mxu0 0.0
    %8765 = vmatprep.subr.mxu0 0.0
    %8766 = vmatpush1.msra.mxu0 0.0
    %8767 = vmatprep.mubr.f32.mxu0 0.0
    %8768 = vmatmul.mubr.f32.gmra.mrb[0].mxu0 %v8701
    %v8769 = vpop.f32.mrb[0].mxu0
    %v8770 = vadd.f32 0.0, %v8769
    %v8771 = vpop.f32.mrb[0].mxu0
    %8772 = vdwg.mxu0
    %v8773 = vadd.f32 %v8696, %v8770
    %v8774 = vxor.u32 %v8773, 2147483648
    %v8775 = vmul.f32 %v8774, 1.442695
    %v8776 = vpow.pop %v8775
    %v8777 = vadd.f32 %v8776, 1.0
    %v8778 = vrcp.pop %v8777
    %v8779 = vmul.f32 1.0, %v8778
    %v8780 = vtanh.pop %v8773
    %v8781 = vmul.f32 %v8779, %v8484
    %8783 = vrot.lane.b32.xlu0 %v8780, 64
    %v8784 = vpop.permute.xlu0 %8783
    %v8786 = vmul.f32 %v8779, %v8784
    %8788 = vrot.lane.b32.xlu0 %v8786, 32
    %v8789 = vpop.permute.xlu0 %8788
    %v8791 = vadd.f32 %v8781, %v8789
    %v8792 = vtanh.pop %v8791
    %8794 = vrot.lane.b32.xlu0 %v8792, 64
    %v8795 = vpop.permute.xlu0 %8794
    %v8797 = vmul.f32 %v8779, %v8795
    %8799 = vrot.lane.b32.xlu0 %v8797, 32
    %v8800 = vpop.permute.xlu0 %8799
    %8802 = vrot.lane.b32.xlu0 %v8610, 64
    %v8803 = vpop.permute.xlu0 %8802
    %v8805 = vsel %vm658, %v8800, %v8803
    %v8806 = vld [vmem:[%s53] sm:$0xff]
    %v8807 = vld [vmem:[%s53 + $0x8] sm:$0xff]
    %v8808 = vld [vmem:[%s53 + $0x10] sm:$0xff]
    %v8809 = vld [vmem:[%s53 + $0x18] sm:$0xff]
    %v8810 = vld [vmem:[%s53 + $0x20] sm:$0xff]
    %v8811 = vld [vmem:[%s53 + $0x28] sm:$0xff]
    %v8812 = vld [vmem:[%s53 + $0x30] sm:$0xff]
    %v8813 = vld [vmem:[%s53 + $0x38] sm:$0xff]
    %v8814 = vld [vmem:[%s55] sm:$0x1]
    %v8816 = vlaneseq
    %v8817 = vshrl.u32 %v8816, 7
    %v8818 = vsub.s32 0, %v8817
    %v8819 = vrot.slane %v8814, %v8818
    %v8822 = vsel %vm777, %v8805, 0
    %8824 = vmatprep.subr.mxu0 0.0
    %8825 = vmatpush1.msra.mxu0 %v8806
    %8826 = vmatprep.subr.mxu0 0.0
    %8827 = vmatpush1.msra.mxu0 %v8807
    %8828 = vmatprep.subr.mxu0 0.0
    %8829 = vmatpush1.msra.mxu0 %v8808
    %8830 = vmatprep.subr.mxu0 0.0
    %8831 = vmatpush1.msra.mxu0 %v8809
    %8832 = vmatprep.subr.mxu0 0.0
    %8833 = vmatpush1.msra.mxu0 %v8810
    %8834 = vmatprep.subr.mxu0 0.0
    %8835 = vmatpush1.msra.mxu0 %v8811
    %8836 = vmatprep.subr.mxu0 0.0
    %8837 = vmatpush1.msra.mxu0 %v8812
    %8838 = vmatprep.subr.mxu0 0.0
    %8839 = vmatpush1.msra.mxu0 %v8813
    %8840 = vmatprep.subr.mxu0 0.0
    %8841 = vmatpush1.msra.mxu0 0.0
    %8842 = vmatprep.subr.mxu0 0.0
    %8843 = vmatpush1.msra.mxu0 0.0
    %8844 = vmatprep.subr.mxu0 0.0
    %8845 = vmatpush1.msra.mxu0 0.0
    %8846 = vmatprep.subr.mxu0 0.0
    %8847 = vmatpush1.msra.mxu0 0.0
    %8848 = vmatprep.subr.mxu0 0.0
    %8849 = vmatpush1.msra.mxu0 0.0
    %8850 = vmatprep.subr.mxu0 0.0
    %8851 = vmatpush1.msra.mxu0 0.0
    %8852 = vmatprep.subr.mxu0 0.0
    %8853 = vmatpush1.msra.mxu0 0.0
    %8854 = vmatprep.subr.mxu0 0.0
    %8855 = vmatpush1.msra.mxu0 0.0
    %8856 = vmatprep.subr.mxu0 0.0
    %8857 = vmatpush1.msra.mxu0 0.0
    %8858 = vmatprep.subr.mxu0 0.0
    %8859 = vmatpush1.msra.mxu0 0.0
    %8860 = vmatprep.subr.mxu0 0.0
    %8861 = vmatpush1.msra.mxu0 0.0
    %8862 = vmatprep.subr.mxu0 0.0
    %8863 = vmatpush1.msra.mxu0 0.0
    %8864 = vmatprep.subr.mxu0 0.0
    %8865 = vmatpush1.msra.mxu0 0.0
    %8866 = vmatprep.subr.mxu0 0.0
    %8867 = vmatpush1.msra.mxu0 0.0
    %8868 = vmatprep.subr.mxu0 0.0
    %8869 = vmatpush1.msra.mxu0 0.0
    %8870 = vmatprep.subr.mxu0 0.0
    %8871 = vmatpush1.msra.mxu0 0.0
    %8872 = vmatprep.subr.mxu0 0.0
    %8873 = vmatpush1.msra.mxu0 0.0
    %8874 = vmatprep.subr.mxu0 0.0
    %8875 = vmatpush1.msra.mxu0 0.0
    %8876 = vmatprep.subr.mxu0 0.0
    %8877 = vmatpush1.msra.mxu0 0.0
    %8878 = vmatprep.subr.mxu0 0.0
    %8879 = vmatpush1.msra.mxu0 0.0
    %8880 = vmatprep.subr.mxu0 0.0
    %8881 = vmatpush1.msra.mxu0 0.0
    %8882 = vmatprep.subr.mxu0 0.0
    %8883 = vmatpush1.msra.mxu0 0.0
    %8884 = vmatprep.subr.mxu0 0.0
    %8885 = vmatpush1.msra.mxu0 0.0
    %8886 = vmatprep.subr.mxu0 0.0
    %8887 = vmatpush1.msra.mxu0 0.0
    %8888 = vmatprep.mubr.f32.mxu0 0.0
    %8889 = vmatmul.mubr.f32.gmra.mrb[0].mxu0 %v8822
    %v8890 = vpop.f32.mrb[0].mxu0
    %v8891 = vadd.f32 %v8819, %v8890
    %v8892 = vpop.f32.mrb[0].mxu0
    %8893 = vdwg.mxu0
    %v8894 = vxor.u32 %v8891, 2147483648
    %v8895 = vmul.f32 %v8894, 1.442695
    %v8896 = vpow.pop %v8895
    %v8897 = vadd.f32 %v8896, 1.0
    %v8898 = vrcp.pop %v8897
    %v8899 = vmul.f32 1.0, %v8898
    %v8900 = vtanh.pop %v8891
    %v8901 = vmul.f32 %v8899, %v8604
    %8903 = vrot.lane.b32.xlu0 %v8900, 64
    %v8904 = vpop.permute.xlu0 %8903
    %v8906 = vmul.f32 %v8899, %v8904
    %8908 = vrot.lane.b32.xlu0 %v8906, 32
    %v8909 = vpop.permute.xlu0 %8908
    %v8911 = vadd.f32 %v8901, %v8909
    %v8912 = vtanh.pop %v8911
    %8914 = vrot.lane.b32.xlu0 %v8912, 64
    %v8915 = vpop.permute.xlu0 %8914
    %v8917 = vmul.f32 %v8899, %v8915
    %8919 = vrot.lane.b32.xlu0 %v8917, 32
    %v8920 = vpop.permute.xlu0 %8919
    %s8922 = scalar_lea.vmem [#allocation7], 56
    %8923 = vst.msk [vmem:[%s8922] sm:$0xff] %vm658, %v8920
    %v8924 = vld [vmem:[#allocation7] sm:$0xff]
    %v8925 = vld [vmem:[#allocation7 + $0x8] sm:$0xff]
    %v8926 = vld [vmem:[#allocation7 + $0x10] sm:$0xff]
    %v8927 = vld [vmem:[#allocation7 + $0x18] sm:$0xff]
    %v8928 = vld [vmem:[#allocation7 + $0x20] sm:$0xff]
    %v8929 = vld [vmem:[#allocation7 + $0x28] sm:$0xff]
    %v8930 = vld [vmem:[#allocation7 + $0x30] sm:$0xff]
    %v8931 = vld [vmem:[#allocation7 + $0x38] sm:$0xff]
    %v8932 = vld [vmem:[%s57] sm:$0xff]
    %v8933 = vld [vmem:[%s57 + $0x8] sm:$0xff]
    %v8934 = vld [vmem:[%s57 + $0x10] sm:$0xff]
    %v8935 = vld [vmem:[%s57 + $0x18] sm:$0xff]
    %v8936 = vld [vmem:[%s59] sm:$0x1]
    %v8938 = vlaneseq
    %v8939 = vshrl.u32 %v8938, 7
    %v8940 = vsub.s32 0, %v8939
    %v8941 = vrot.slane %v8936, %v8940
    %v8944 = vsel %vm658, %v8924, 0
    %v8947 = vsel %vm658, %v8925, 0
    %v8950 = vsel %vm658, %v8926, 0
    %v8953 = vsel %vm658, %v8927, 0
    %v8956 = vsel %vm658, %v8928, 0
    %v8959 = vsel %vm658, %v8929, 0
    %v8962 = vsel %vm658, %v8930, 0
    %v8965 = vsel %vm658, %v8931, 0
    %8967 = vmatprep.subr.mxu0 0.0
    %8968 = vmatpush1.msra.mxu0 %v8932
    %8969 = vmatprep.subr.mxu0 0.0
    %8970 = vmatpush1.msra.mxu0 %v8933
    %8971 = vmatprep.subr.mxu0 0.0
    %8972 = vmatpush1.msra.mxu0 %v8934
    %8973 = vmatprep.subr.mxu0 0.0
    %8974 = vmatpush1.msra.mxu0 %v8935
    %8975 = vmatprep.subr.mxu0 0.0
    %8976 = vmatpush1.msra.mxu0 0.0
    %8977 = vmatprep.subr.mxu0 0.0
    %8978 = vmatpush1.msra.mxu0 0.0
    %8979 = vmatprep.subr.mxu0 0.0
    %8980 = vmatpush1.msra.mxu0 0.0
    %8981 = vmatprep.subr.mxu0 0.0
    %8982 = vmatpush1.msra.mxu0 0.0
    %8983 = vmatprep.subr.mxu0 0.0
    %8984 = vmatpush1.msra.mxu0 0.0
    %8985 = vmatprep.subr.mxu0 0.0
    %8986 = vmatpush1.msra.mxu0 0.0
    %8987 = vmatprep.subr.mxu0 0.0
    %8988 = vmatpush1.msra.mxu0 0.0
    %8989 = vmatprep.subr.mxu0 0.0
    %8990 = vmatpush1.msra.mxu0 0.0
    %8991 = vmatprep.subr.mxu0 0.0
    %8992 = vmatpush1.msra.mxu0 0.0
    %8993 = vmatprep.subr.mxu0 0.0
    %8994 = vmatpush1.msra.mxu0 0.0
    %8995 = vmatprep.subr.mxu0 0.0
    %8996 = vmatpush1.msra.mxu0 0.0
    %8997 = vmatprep.subr.mxu0 0.0
    %8998 = vmatpush1.msra.mxu0 0.0
    %8999 = vmatprep.subr.mxu0 0.0
    %9000 = vmatpush1.msra.mxu0 0.0
    %9001 = vmatprep.subr.mxu0 0.0
    %9002 = vmatpush1.msra.mxu0 0.0
    %9003 = vmatprep.subr.mxu0 0.0
    %9004 = vmatpush1.msra.mxu0 0.0
    %9005 = vmatprep.subr.mxu0 0.0
    %9006 = vmatpush1.msra.mxu0 0.0
    %9007 = vmatprep.subr.mxu0 0.0
    %9008 = vmatpush1.msra.mxu0 0.0
    %9009 = vmatprep.subr.mxu0 0.0
    %9010 = vmatpush1.msra.mxu0 0.0
    %9011 = vmatprep.subr.mxu0 0.0
    %9012 = vmatpush1.msra.mxu0 0.0
    %9013 = vmatprep.subr.mxu0 0.0
    %9014 = vmatpush1.msra.mxu0 0.0
    %9015 = vmatprep.subr.mxu0 0.0
    %9016 = vmatpush1.msra.mxu0 0.0
    %9017 = vmatprep.subr.mxu0 0.0
    %9018 = vmatpush1.msra.mxu0 0.0
    %9019 = vmatprep.subr.mxu0 0.0
    %9020 = vmatpush1.msra.mxu0 0.0
    %9021 = vmatprep.subr.mxu0 0.0
    %9022 = vmatpush1.msra.mxu0 0.0
    %9023 = vmatprep.subr.mxu0 0.0
    %9024 = vmatpush1.msra.mxu0 0.0
    %9025 = vmatprep.subr.mxu0 0.0
    %9026 = vmatpush1.msra.mxu0 0.0
    %9027 = vmatprep.subr.mxu0 0.0
    %9028 = vmatpush1.msra.mxu0 0.0
    %9029 = vmatprep.subr.mxu0 0.0
    %9030 = vmatpush1.msra.mxu0 0.0
    %9031 = vmatprep.mubr.f32.mxu0 0.0
    %9032 = vmatmul.mubr.f32.gmra.mrb[0].mxu0 %v8944
    %v9033 = vpop.f32.mrb[0].mxu0
    %v9034 = vadd.f32 %v8941, %v9033
    %v9035 = vpop.f32.mrb[0].mxu0
    %9036 = vmatprep.mubr.f32.mxu0 0.0
    %9037 = vmatmul.mubr.f32.gmra.mrb[0].mxu0 %v8947
    %v9038 = vpop.f32.mrb[0].mxu0
    %v9039 = vadd.f32 %v8941, %v9038
    %v9040 = vpop.f32.mrb[0].mxu0
    %9041 = vmatprep.mubr.f32.mxu0 0.0
    %9042 = vmatmul.mubr.f32.gmra.mrb[0].mxu0 %v8950
    %v9043 = vpop.f32.mrb[0].mxu0
    %v9044 = vadd.f32 %v8941, %v9043
    %v9045 = vpop.f32.mrb[0].mxu0
    %9046 = vmatprep.mubr.f32.mxu0 0.0
    %9047 = vmatmul.mubr.f32.gmra.mrb[0].mxu0 %v8953
    %v9048 = vpop.f32.mrb[0].mxu0
    %v9049 = vadd.f32 %v8941, %v9048
    %v9050 = vpop.f32.mrb[0].mxu0
    %9051 = vmatprep.mubr.f32.mxu0 0.0
    %9052 = vmatmul.mubr.f32.gmra.mrb[0].mxu0 %v8956
    %v9053 = vpop.f32.mrb[0].mxu0
    %v9054 = vadd.f32 %v8941, %v9053
    %v9055 = vpop.f32.mrb[0].mxu0
    %9056 = vmatprep.mubr.f32.mxu0 0.0
    %9057 = vmatmul.mubr.f32.gmra.mrb[0].mxu0 %v8959
    %v9058 = vpop.f32.mrb[0].mxu0
    %v9059 = vadd.f32 %v8941, %v9058
    %v9060 = vpop.f32.mrb[0].mxu0
    %9061 = vmatprep.mubr.f32.mxu0 0.0
    %9062 = vmatmul.mubr.f32.gmra.mrb[0].mxu0 %v8962
    %v9063 = vpop.f32.mrb[0].mxu0
    %v9064 = vadd.f32 %v8941, %v9063
    %v9065 = vpop.f32.mrb[0].mxu0
    %9066 = vmatprep.mubr.f32.mxu0 0.0
    %9067 = vmatmul.mubr.f32.gmra.mrb[0].mxu0 %v8965
    %v9068 = vpop.f32.mrb[0].mxu0
    %v9069 = vadd.f32 %v8941, %v9068
    %v9070 = vpop.f32.mrb[0].mxu0
    %9071 = vdwg.mxu0
    %v9072 = vld [vmem:[#allocation6] sm:$0xff]
    %v9073 = vld [vmem:[#allocation6 + $0x8] sm:$0xff]
    %v9074 = vld [vmem:[#allocation6 + $0x10] sm:$0xff]
    %v9075 = vld [vmem:[#allocation6 + $0x18] sm:$0xff]
    %v9076 = vld [vmem:[#allocation6 + $0x20] sm:$0xff]
    %v9077 = vld [vmem:[#allocation6 + $0x28] sm:$0xff]
    %v9078 = vld [vmem:[#allocation6 + $0x30] sm:$0xff]
    %v9079 = vld [vmem:[#allocation6 + $0x38] sm:$0xff]
    %v9080 = vadd.f32 %v9072, %v9034
    %v9081 = vadd.f32 %v9073, %v9039
    %v9082 = vadd.f32 %v9074, %v9044
    %v9083 = vadd.f32 %v9075, %v9049
    %v9084 = vadd.f32 %v9076, %v9054
    %v9085 = vadd.f32 %v9077, %v9059
    %v9086 = vadd.f32 %v9078, %v9064
    %v9087 = vadd.f32 %v9079, %v9069
    %9088 = vst.msk [vmem:[%s61] sm:$0xff] %vm3121, %v9080
    %9089 = vst.msk [vmem:[%s61 + $0x8] sm:$0xff] %vm3121, %v9081
    %9090 = vst.msk [vmem:[%s61 + $0x10] sm:$0xff] %vm3121, %v9082
    %9091 = vst.msk [vmem:[%s61 + $0x18] sm:$0xff] %vm3121, %v9083
    %9092 = vst.msk [vmem:[%s61 + $0x20] sm:$0xff] %vm3121, %v9084
    %9093 = vst.msk [vmem:[%s61 + $0x28] sm:$0xff] %vm3121, %v9085
    %9094 = vst.msk [vmem:[%s61 + $0x30] sm:$0xff] %vm3121, %v9086
    %9095 = vst.msk [vmem:[%s61 + $0x38] sm:$0xff] %vm3121, %v9087
    // Predicated region
    $region126: #{serial_parallel_forward_teacher.1} parent=1 // pred_check
      _
    $region127: #{serial_parallel_forward_teacher.1} parent=1 // pred_check_branch
      %9097 = sbr.rel (0) target = $region129
    $region128: #{serial_parallel_forward_teacher.1} parent=1 // pred_region
      _
    $region129: #{serial_parallel_forward_teacher.1} parent=1 // pred_fallthru
      _
    // Predicated region
    $region130: #{serial_parallel_forward_teacher.1} parent=1 // pred_check
      _
    $region131: #{serial_parallel_forward_teacher.1} parent=1 // pred_check_branch
      %9099 = sbr.rel (0) target = $region133
    $region132: #{serial_parallel_forward_teacher.1} parent=1 // pred_region
      _
    $region133: #{serial_parallel_forward_teacher.1} parent=1 // pred_fallthru
      _
    %9100 = vsyncpa [#allocation9], 1

</llo_original>
